<compile_context>
chip_gen: v7x
topology: tpu7x:2x2x1
jax: 0.10.0
libtpu: 0.0.40
codegen_flags: <defaults>
</compile_context>

<pallas_src>
import functools

import jax
import jax.numpy as jnp
from jax.experimental import pallas as pl
from jax.experimental.pallas import tpu as pltpu

MXU_DTYPE = jnp.bfloat16          # MXU operand dtype (accumulate in f32)
ACT_DTYPE = jnp.bfloat16          # storage dtype for large pre-BN activations
VMEM_LIMIT = 48 * 1024 * 1024     # valid on v5e/v6e (128 MiB) and v7x (64 MiB)
BN_EPS = 1e-5
CPAD = 128                        # lane-dense padding target for 64-wide dims


# ----------------------------------------------------------------------------
# Small helpers
# ----------------------------------------------------------------------------

def _pad_axis(a, axis, to):
    pad = to - a.shape[axis]
    if pad <= 0:
        return a
    widths = [(0, 0)] * a.ndim
    widths[axis] = (0, pad)
    return jnp.pad(a, widths)


def _pad_last(a, to):
    return _pad_axis(a, a.ndim - 1, to)


def _row_tile(rows, n_out):
    """N-aware row tile: ~2 MiB of bf16 output per grid step, additionally
    bounded so the in-kernel f32 intermediates keep the per-step working set
    well under v7x's 64 MiB VMEM (and the 48 MiB scoped limit)."""
    target = (2 * 1024 * 1024) // max(1, n_out * 2)                  # bf16 out tile
    target = min(target, (16 * 1024 * 1024) // max(1, n_out * 4))    # f32 temp bound
    target = max(256, min(8192, target))
    if rows <= target:
        return ((rows + 7) // 8) * 8
    return (target // 8) * 8


def bn_affine(stats, count, gamma, beta, eps=BN_EPS):
    """Fold training-mode BatchNorm1d (batch stats, biased variance) into
    per-channel scale/shift.  Pad channels (gamma=beta=0, stats=0) fold to 0."""
    mean = stats[0] / count
    var = jnp.maximum(stats[1] / count - mean * mean, 0.0)
    scale = gamma * jax.lax.rsqrt(var + eps)
    shift = beta - mean * scale
    return scale, shift
    # TODO(synk): nn.BatchNorm1d running_mean/var bookkeeping is not tracked;
    # the training-mode forward output does not depend on it.


# ----------------------------------------------------------------------------
# Pallas kernels
# ----------------------------------------------------------------------------

def _fused_layer_kernel(x_ref, w_ref, sin_ref, shin_ref, z_ref, st_ref, *,
                        prologue_relu, rows_valid, tm):
    """[prologue BN+ReLU] -> bf16 matmul -> pre-BN tile + (sum, sumsq) stats.

    Conv bias is intentionally dropped: the layer is always followed by
    training-mode BatchNorm, which cancels a per-channel bias exactly.
    Stats are computed as skinny MXU matmuls to keep the VALU free.
    """
    x = x_ref[0].astype(jnp.float32)
    if prologue_relu:
        x = jnp.maximum(x * sin_ref[...] + shin_ref[...], 0.0)
    if rows_valid is not None:     # ragged rows: zero padded rows before matmul
        ridx = (jax.lax.broadcasted_iota(jnp.int32, (tm, 1), 0)
                + pl.program_id(1) * tm)
        x = jnp.where(ridx < rows_valid, x, 0.0)
    z = jnp.dot(x.astype(MXU_DTYPE), w_ref[0],
                preferred_element_type=jnp.float32)
    z_ref[0] = z.astype(z_ref.dtype)
    ones = jnp.ones((1, tm), jnp.float32)
    st_ref[0, 0, 0:1, :] = jnp.dot(ones, z, preferred_element_type=jnp.float32)
    st_ref[0, 0, 1:2, :] = jnp.dot(ones, z * z,
                                   preferred_element_type=jnp.float32)


def _fused_layer_pool_kernel(x_ref, w_ref, sin_ref, shin_ref, st_ref, *,
                             prologue_relu, rows_valid, tm):
    """Same as above but emits only per-tile (sum, sumsq, max, min) of z and
    never writes z to HBM (Tnet conv3 + bn3 + ReLU + MaxPool fusion)."""
    x = x_ref[0].astype(jnp.float32)
    if prologue_relu:
        x = jnp.maximum(x * sin_ref[...] + shin_ref[...], 0.0)
    valid = None
    if rows_valid is not None:
        ridx = (jax.lax.broadcasted_iota(jnp.int32, (tm, 1), 0)
                + pl.program_id(1) * tm)
        valid = ridx < rows_valid
        x = jnp.where(valid, x, 0.0)
    z = jnp.dot(x.astype(MXU_DTYPE), w_ref[0],
                preferred_element_type=jnp.float32)
    ones = jnp.ones((1, tm), jnp.float32)
    st_ref[0, 0, 0:1, :] = jnp.dot(ones, z, preferred_element_type=jnp.float32)
    st_ref[0, 0, 1:2, :] = jnp.dot(ones, z * z,
                                   preferred_element_type=jnp.float32)
    if valid is not None:
        zmax = jnp.max(jnp.where(valid, z, -jnp.inf), axis=0, keepdims=True)
        zmin = jnp.min(jnp.where(valid, z, jnp.inf), axis=0, keepdims=True)
    else:
        zmax = jnp.max(z, axis=0, keepdims=True)
        zmin = jnp.min(z, axis=0, keepdims=True)
    st_ref[0, 0, 2:3, :] = zmax
    st_ref[0, 0, 3:4, :] = zmin


def _affine_transpose_kernel(z_ref, s_ref, h_ref, o_ref):
    """Final BN-affine (no ReLU) fused with the NCW transpose."""
    y = z_ref[0].astype(jnp.float32) * s_ref[...] + h_ref[...]   # (tm, C)
    o_ref[0] = jnp.transpose(y).astype(o_ref.dtype)              # (C, tm)


# ----------------------------------------------------------------------------
# Kernel wrappers
# ----------------------------------------------------------------------------

def fused_layer(x, w, scale_in, shift_in, *, prologue_relu,
                out_dtype=ACT_DTYPE):
    """z[b] = prologue(x[b]) @ w[b], plus per-channel (sum, sumsq) of z.

    x: (B, R, K); w: (1 or B, K, N); scale_in/shift_in: (K,)
    Returns z: (B, R, N) in `out_dtype`, stats: (2, N) float32.
    """
    B, R, K = x.shape
    Bw, Kw, N = w.shape
    assert Kw == K and Bw in (1, B)

    tm = _row_tile(R, N)
    nt = pl.cdiv(R, tm)
    r_pad = nt * tm
    rows_valid = R if r_pad != R else None
    if r_pad != R:
        x = jnp.pad(x, ((0, 0), (0, r_pad - R), (0, 0)))

    w_map = (lambda b, i: (b, 0, 0)) if Bw == B else (lambda b, i: (0, 0, 0))
    kernel = functools.partial(_fused_layer_kernel, prologue_relu=prologue_relu,
                               rows_valid=rows_valid, tm=tm)
    z, st = pl.pallas_call(
        kernel,
        out_shape=(jax.ShapeDtypeStruct((B, r_pad, N), out_dtype),
                   jax.ShapeDtypeStruct((B, nt, 2, N), jnp.float32)),
        grid=(B, nt),
        in_specs=[
            pl.BlockSpec((1, tm, K), lambda b, i: (b, i, 0)),   # activation tile
            pl.BlockSpec((1, K, N), w_map),                     # weights (resident)
            pl.BlockSpec((1, K), lambda b, i: (0, 0)),          # prologue BN scale
            pl.BlockSpec((1, K), lambda b, i: (0, 0)),          # prologue BN shift
        ],
        out_specs=(
            pl.BlockSpec((1, tm, N), lambda b, i: (b, i, 0)),
            pl.BlockSpec((1, 1, 2, N), lambda b, i: (b, i, 0, 0)),
        ),
        compiler_params=pltpu.CompilerParams(
            dimension_semantics=("parallel", "parallel"),
            vmem_limit_bytes=VMEM_LIMIT),
    )(x, w.astype(MXU_DTYPE),
      scale_in.reshape(1, K).astype(jnp.float32),
      shift_in.reshape(1, K).astype(jnp.float32))

    stats = jnp.sum(st, axis=(0, 1))            # tiny reduction in plain JAX
    if rows_valid is not None:
        z = z[:, :R]
    return z, stats


def fused_layer_pool(x, w, scale_in, shift_in, *, prologue_relu):
    """Conv + BN-stats + (max, min) over points; z is never written to HBM.

    x: (B, R, K); w: (1, K, N).  Returns stats (2, N), zmax (B, N), zmin (B, N).
    """
    B, R, K = x.shape
    _, Kw, N = w.shape
    assert Kw == K

    tm = _row_tile(R, N)
    nt = pl.cdiv(R, tm)
    r_pad = nt * tm
    rows_valid = R if r_pad != R else None
    if r_pad != R:
        x = jnp.pad(x, ((0, 0), (0, r_pad - R), (0, 0)))

    kernel = functools.partial(_fused_layer_pool_kernel,
                               prologue_relu=prologue_relu,
                               rows_valid=rows_valid, tm=tm)
    st = pl.pallas_call(
        kernel,
        out_shape=jax.ShapeDtypeStruct((B, nt, 4, N), jnp.float32),
        grid=(B, nt),
        in_specs=[
            pl.BlockSpec((1, tm, K), lambda b, i: (b, i, 0)),
            pl.BlockSpec((1, K, N), lambda b, i: (0, 0, 0)),
            pl.BlockSpec((1, K), lambda b, i: (0, 0)),
            pl.BlockSpec((1, K), lambda b, i: (0, 0)),
        ],
        out_specs=pl.BlockSpec((1, 1, 4, N), lambda b, i: (b, i, 0, 0)),
        compiler_params=pltpu.CompilerParams(
            dimension_semantics=("parallel", "parallel"),
            vmem_limit_bytes=VMEM_LIMIT),
    )(x, w.astype(MXU_DTYPE),
      scale_in.reshape(1, K).astype(jnp.float32),
      shift_in.reshape(1, K).astype(jnp.float32))

    stats = jnp.stack([jnp.sum(st[:, :, 0], axis=(0, 1)),
                       jnp.sum(st[:, :, 1], axis=(0, 1))])
    zmax = jnp.max(st[:, :, 2], axis=1)          # (B, N)
    zmin = jnp.min(st[:, :, 3], axis=1)          # (B, N)
    return stats, zmax, zmin


def affine_transpose(z, scale, shift, out_dtype=jnp.float32):
    """(B, N, C) pre-BN -> BN-affine (no ReLU) + transpose -> (B, C, N)."""
    B, N, C = z.shape
    cap = max(128, min(2048, (4 * 1024 * 1024) // (C * 4)))
    tm = 0
    t = (min(cap, N) // 128) * 128
    while t >= 128:
        if N % t == 0:
            tm = t
            break
        t -= 128
    if tm == 0:
        # TODO(synk): N has no 128-aligned divisor — fall back to an unfused
        # plain-JAX affine + transpose (one extra HBM round trip).
        y = z.astype(jnp.float32) * scale + shift
        return jnp.transpose(y, (0, 2, 1)).astype(out_dtype)

    nt = N // tm
    return pl.pallas_call(
        _affine_transpose_kernel,
        out_shape=jax.ShapeDtypeStruct((B, C, N), out_dtype),
        grid=(B, nt),
        in_specs=[
            pl.BlockSpec((1, tm, C), lambda b, i: (b, i, 0)),
            pl.BlockSpec((1, C), lambda b, i: (0, 0)),
            pl.BlockSpec((1, C), lambda b, i: (0, 0)),
        ],
        out_specs=pl.BlockSpec((1, C, tm), lambda b, i: (b, 0, i)),
        compiler_params=pltpu.CompilerParams(
            dimension_semantics=("parallel", "parallel"),
            vmem_limit_bytes=VMEM_LIMIT),
    )(z, scale.reshape(1, C).astype(jnp.float32),
      shift.reshape(1, C).astype(jnp.float32))


# ----------------------------------------------------------------------------
# Parameter construction (deterministic, synthetic; weights stored as (in, out))
# ----------------------------------------------------------------------------

def _w(key, shape):
    return jax.random.normal(key, shape, jnp.float32) * 0.05


def init_tnet_params(key, k):
    keys = jax.random.split(key, 12)
    p = {
        # Conv biases are generated for structural fidelity but unused by the
        # kernels (training-mode BatchNorm cancels them exactly).
        "conv1_w": _w(keys[0], (k, 64)),       "conv1_b": _w(keys[1], (64,)),
        "conv2_w": _w(keys[2], (64, 128)),     "conv2_b": _w(keys[3], (128,)),
        "conv3_w": _w(keys[4], (128, 1024)),   "conv3_b": _w(keys[5], (1024,)),
        "fc1_w":   _w(keys[6], (1024, 512)),   "fc1_b":   _w(keys[7], (512,)),
        "fc2_w":   _w(keys[8], (512, 256)),    "fc2_b":   _w(keys[9], (256,)),
        "fc3_w":   _w(keys[10], (256, k * k)), "fc3_b":   _w(keys[11], (k * k,)),
    }
    for i, c in zip(range(1, 6), (64, 128, 1024, 512, 256)):
        p[f"bn{i}_g"] = jnp.ones((c,), jnp.float32)
        p[f"bn{i}_b"] = jnp.zeros((c,), jnp.float32)
    return p


def init_transform_params(key, k_transform):
    k_in, k_feat, k_main = jax.random.split(key, 3)
    keys = jax.random.split(k_main, 6)
    p = {
        "input_transform": init_tnet_params(k_in, k_transform),
        "feature_transform": init_tnet_params(k_feat, 64),
        "conv1_w": _w(keys[0], (k_transform, 64)), "conv1_b": _w(keys[1], (64,)),
        "conv2_w": _w(keys[2], (64, 128)),         "conv2_b": _w(keys[3], (128,)),
        "conv3_w": _w(keys[4], (128, 1024)),       "conv3_b": _w(keys[5], (1024,)),
    }
    for i, c in zip(range(1, 4), (64, 128, 1024)):
        p[f"bn{i}_g"] = jnp.ones((c,), jnp.float32)
        p[f"bn{i}_b"] = jnp.zeros((c,), jnp.float32)
    return p


# ----------------------------------------------------------------------------
# Model forward (hot path in fused Pallas kernels, tiny glue in plain JAX)
# ----------------------------------------------------------------------------

def tnet_forward(x, p, k, *, prologue=None):
    """x: (B, R, Kin) channel-last (Kin may be lane-padded).  If `prologue` is
    (scale, shift), the Tnet input is relu(x*scale+shift), applied inside the
    first kernel's prologue so the normalized activation is never written."""
    B, R, Kin = x.shape
    npts = B * R

    if prologue is None:
        s_in = jnp.ones((Kin,), jnp.float32)
        h_in = jnp.zeros((Kin,), jnp.float32)
        pre = False
    else:
        s_in, h_in = prologue
        pre = True

    # conv1: Kin -> 64, output lane-padded to 128; K padded to match the input.
    w1 = _pad_last(_pad_axis(p["conv1_w"], 0, Kin), CPAD)
    g1 = _pad_last(p["bn1_g"], CPAD)
    b1 = _pad_last(p["bn1_b"], CPAD)
    x2 = x.reshape(1, npts, Kin)                       # shared weights: flatten rows
    z1, st1 = fused_layer(x2, w1[None], s_in, h_in, prologue_relu=pre)
    s1, h1 = bn_affine(st1, npts, g1, b1)

    # conv2: 64(pad 128) -> 128 (K zero-padded to match z1's pad lanes).
    w2 = _pad_axis(p["conv2_w"], 0, CPAD)
    z2, st2 = fused_layer(z1, w2[None], s1, h1, prologue_relu=True)
    s2, h2 = bn_affine(st2, npts, p["bn2_g"], p["bn2_b"])

    # conv3 + bn3 + ReLU + MaxPool1d fused: only (sum, sumsq, max, min) stats
    # leave the kernel — no (B*N, 1024) activation round-trip.
    st3, zmax, zmin = fused_layer_pool(z2.reshape(B, R, CPAD), p["conv3_w"][None],
                                       s2, h2, prologue_relu=True)
    s3, h3 = bn_affine(st3, npts, p["bn3_g"], p["bn3_b"])
    pooled = jnp.maximum(jnp.where(s3 >= 0.0, s3 * zmax, s3 * zmin) + h3, 0.0)

    # fc1/fc2/fc3: only B rows — plain JAX (XLA fuses these; a pallas_call per
    # layer would just add fixed launch overhead).
    def bn_relu(z, g, b):
        mean = jnp.mean(z, axis=0)
        var = jnp.maximum(jnp.mean(z * z, axis=0) - mean * mean, 0.0)
        return jnp.maximum((z - mean) * (g * jax.lax.rsqrt(var + BN_EPS)) + b, 0.0)

    h4 = bn_relu(pooled @ p["fc1_w"] + p["fc1_b"], p["bn4_g"], p["bn4_b"])
    h5 = bn_relu(h4 @ p["fc2_w"] + p["fc2_b"], p["bn5_g"], p["bn5_b"])
    m = h5 @ p["fc3_w"] + p["fc3_b"]
    return m.reshape(B, k, k) + jnp.eye(k, dtype=jnp.float32)


def transform_forward(x_bcn, params, k_transform):
    """x_bcn: PyTorch layout (B, k_transform, N)."""
    B, k, N = x_bcn.shape
    assert k == k_transform
    npts = B * N
    x_bnc = jnp.transpose(x_bcn, (0, 2, 1)).astype(jnp.float32)   # (B, N, k)

    # ---- input transform ----
    matrix3x3 = tnet_forward(x_bnc, params["input_transform"], k_transform)

    # Fold per-batch kxk matrix into conv1 ((x@M)@W == x@(M@W)); pad 64 -> 128
    # output lanes so the z1 store / re-reads stay lane-dense.
    w1_eff = jnp.einsum("bij,jo->bio", matrix3x3, params["conv1_w"])   # (B, k, 64)
    w1_eff = _pad_last(w1_eff, CPAD)
    g1 = _pad_last(params["bn1_g"], CPAD)
    b1 = _pad_last(params["bn1_b"], CPAD)
    z1, st1 = fused_layer(x_bnc, w1_eff,
                          jnp.ones((k,), jnp.float32), jnp.zeros((k,), jnp.float32),
                          prologue_relu=False)                          # (B, N, 128)
    s1, h1 = bn_affine(st1, npts, g1, b1)

    # ---- feature transform: relu(bn1(z1)) applied as the Tnet's kernel prologue
    matrix64x64 = tnet_forward(z1, params["feature_transform"], 64, prologue=(s1, h1))

    # Fold per-batch 64x64 matrix into conv2; pad K 64 -> 128 to match z1 lanes.
    w2_eff = jnp.einsum("bij,jo->bio", matrix64x64, params["conv2_w"])  # (B, 64, 128)
    w2_eff = _pad_axis(w2_eff, 1, CPAD)
    z2, st2 = fused_layer(z1, w2_eff, s1, h1, prologue_relu=True)       # (B, N, 128)
    s2, h2 = bn_affine(st2, npts, params["bn2_g"], params["bn2_b"])

    # conv3 (shared weight): flatten batch*points.
    z3, st3 = fused_layer(z2.reshape(1, npts, CPAD), params["conv3_w"][None],
                          s2, h2, prologue_relu=True)                   # (1, B*N, 1024)
    s3, h3 = bn_affine(st3, npts, params["bn3_g"], params["bn3_b"])

    # Final bn3 (no ReLU) fused with the NCW transpose: writes (B, 1024, N) directly.
    out = affine_transpose(z3.reshape(B, N, 1024), s3, h3)              # (B, 1024, N)
    return out, matrix3x3, matrix64x64


# ----------------------------------------------------------------------------

if __name__ == "__main__":
    key = jax.random.PRNGKey(0)
    k_transform, B, N = 3, 2, 128

    kp, kx = jax.random.split(key)
    params = init_transform_params(kp, k_transform)
    x = jax.random.normal(kx, (B, k_transform, N), jnp.float32)   # PyTorch NCW layout

    fwd = jax.jit(lambda xx, pp: transform_forward(xx, pp, k_transform))
    out, m3, m64 = fwd(x, params)
    jax.block_until_ready((out, m3, m64))

    assert out.shape == (B, 1024, N)
    assert m3.shape == (B, k_transform, k_transform)
    assert m64.shape == (B, 64, 64)
    assert bool(jnp.all(jnp.isfinite(out)))
    assert bool(jnp.all(jnp.isfinite(m3))) and bool(jnp.all(jnp.isfinite(m64)))
    print("KERNEL_OK")
</pallas_src>

<mosaic_0001>
module attributes {stable_mosaic.version = 11 : i64} {
  func.func @_fused_layer_kernel(%arg0: i32, %arg1: i32, %arg2: memref<1x256x128xbf16, #tpu.memory_space<vmem>>, %arg3: memref<1x128x128xbf16, #tpu.memory_space<vmem>>, %arg4: memref<1x128xf32, #tpu.memory_space<vmem>>, %arg5: memref<1x128xf32, #tpu.memory_space<vmem>>, %arg6: memref<1x256x128xbf16, #tpu.memory_space<vmem>>, %arg7: memref<1x1x2x128xf32, #tpu.memory_space<vmem>>) attributes {dimension_semantics = [#tpu.dimension_semantics<parallel>, #tpu.dimension_semantics<parallel>], iteration_bounds = array<i64: 1, 1>, scalar_prefetch = 0 : i64, scratch_operands = 0 : i64, tpu.core_type = #tpu.core_type<tc>, window_params = [{transform_indices = @transform_0, window_bounds = array<i64: 1, 256, 128>}, {transform_indices = @transform_1, window_bounds = array<i64: 1, 128, 128>}, {pipeline_mode = #tpu.pipeline_mode<synchronous>, transform_indices = @transform_2, window_bounds = array<i64: 1, 128>}, {pipeline_mode = #tpu.pipeline_mode<synchronous>, transform_indices = @transform_3, window_bounds = array<i64: 1, 128>}, {transform_indices = @transform_4, window_bounds = array<i64: 1, 256, 128>}, {transform_indices = @transform_5, window_bounds = array<i64: 1, 1, 2, 128>}]} {
    %c0 = arith.constant 0 : index
    %c0_0 = arith.constant 0 : index
    %c0_1 = arith.constant 0 : index
    %0 = vector.load %arg2[%c0, %c0_0, %c0_1] : memref<1x256x128xbf16, #tpu.memory_space<vmem>>, vector<1x256x128xbf16>
    %1 = vector.shape_cast %0 : vector<1x256x128xbf16> to vector<256x128xbf16>
    %2 = arith.extf %1 : vector<256x128xbf16> to vector<256x128xf32>
    %c0_2 = arith.constant 0 : index
    %c0_3 = arith.constant 0 : index
    %3 = vector.load %arg4[%c0_2, %c0_3] : memref<1x128xf32, #tpu.memory_space<vmem>>, vector<1x128xf32>
    %4 = vector.broadcast %3 : vector<1x128xf32> to vector<256x128xf32>
    %5 = arith.mulf %2, %4 : vector<256x128xf32>
    %c0_4 = arith.constant 0 : index
    %c0_5 = arith.constant 0 : index
    %6 = vector.load %arg5[%c0_4, %c0_5] : memref<1x128xf32, #tpu.memory_space<vmem>>, vector<1x128xf32>
    %7 = vector.broadcast %6 : vector<1x128xf32> to vector<256x128xf32>
    %8 = arith.addf %5, %7 : vector<256x128xf32>
    %cst = arith.constant 0.000000e+00 : f32
    %9 = vector.broadcast %cst : f32 to vector<256x128xf32>
    %10 = arith.maximumf %8, %9 : vector<256x128xf32>
    %11 = arith.truncf %10 : vector<256x128xf32> to vector<256x128xbf16>
    %c0_6 = arith.constant 0 : index
    %c0_7 = arith.constant 0 : index
    %c0_8 = arith.constant 0 : index
    %12 = vector.load %arg3[%c0_6, %c0_7, %c0_8] : memref<1x128x128xbf16, #tpu.memory_space<vmem>>, vector<1x128x128xbf16>
    %13 = vector.shape_cast %12 : vector<1x128x128xbf16> to vector<128x128xbf16>
    %cst_9 = arith.constant dense<0.000000e+00> : vector<256x128xf32>
    %14 = tpu.matmul %11, %13, %cst_9 {dimension_numbers = #tpu.dot_dimension_numbers<[1], [0], [0], [1], [0, 0, 1, 1], [], []>} : vector<256x128xbf16>, vector<128x128xbf16>, vector<256x128xf32> -> vector<256x128xf32>
    %15 = arith.truncf %14 : vector<256x128xf32> to vector<256x128xbf16>
    %c0_10 = arith.constant 0 : index
    %c0_11 = arith.constant 0 : index
    %c0_12 = arith.constant 0 : index
    %16 = vector.load %arg6[%c0_10, %c0_11, %c0_12] : memref<1x256x128xbf16, #tpu.memory_space<vmem>>, vector<1x256x128xbf16>
    %17 = vector.shape_cast %16 : vector<1x256x128xbf16> to vector<256x128xbf16>
    %18 = vector.shape_cast %15 : vector<256x128xbf16> to vector<1x256x128xbf16>
    tpu.vector_store %arg6[%c0_10, %c0_11, %c0_12], %18 {strides = array<i32>} : memref<1x256x128xbf16, #tpu.memory_space<vmem>>, vector<1x256x128xbf16>,
    %cst_13 = arith.constant 1.000000e+00 : f32
    %19 = vector.broadcast %cst_13 : f32 to vector<1x256xf32>
    %cst_14 = arith.constant dense<0.000000e+00> : vector<1x128xf32>
    %20 = tpu.matmul %19, %14, %cst_14 {dimension_numbers = #tpu.dot_dimension_numbers<[1], [0], [0], [1], [0, 0, 1, 1], [], []>} : vector<1x256xf32>, vector<256x128xf32>, vector<1x128xf32> -> vector<1x128xf32>
    %c0_15 = arith.constant 0 : index
    %c0_16 = arith.constant 0 : index
    %c0_17 = arith.constant 0 : index
    %c0_18 = arith.constant 0 : index
    %21 = vector.load %arg7[%c0_15, %c0_16, %c0_17, %c0_18] : memref<1x1x2x128xf32, #tpu.memory_space<vmem>>, vector<1x1x1x128xf32>
    %22 = vector.shape_cast %21 : vector<1x1x1x128xf32> to vector<1x128xf32>
    %23 = vector.shape_cast %20 : vector<1x128xf32> to vector<1x1x1x128xf32>
    tpu.vector_store %arg7[%c0_15, %c0_16, %c0_17, %c0_18], %23 {strides = array<i32>} : memref<1x1x2x128xf32, #tpu.memory_space<vmem>>, vector<1x1x1x128xf32>,
    %24 = arith.mulf %14, %14 : vector<256x128xf32>
    %cst_19 = arith.constant dense<0.000000e+00> : vector<1x128xf32>
    %25 = tpu.matmul %19, %24, %cst_19 {dimension_numbers = #tpu.dot_dimension_numbers<[1], [0], [0], [1], [0, 0, 1, 1], [], []>} : vector<1x256xf32>, vector<256x128xf32>, vector<1x128xf32> -> vector<1x128xf32>
    %c0_20 = arith.constant 0 : index
    %c0_21 = arith.constant 0 : index
    %c1 = arith.constant 1 : index
    %c0_22 = arith.constant 0 : index
    %26 = vector.load %arg7[%c0_20, %c0_21, %c1, %c0_22] : memref<1x1x2x128xf32, #tpu.memory_space<vmem>>, vector<1x1x1x128xf32>
    %27 = vector.shape_cast %26 : vector<1x1x1x128xf32> to vector<1x128xf32>
    %28 = vector.shape_cast %25 : vector<1x128xf32> to vector<1x1x1x128xf32>
    tpu.vector_store %arg7[%c0_20, %c0_21, %c1, %c0_22], %28 {strides = array<i32>} : memref<1x1x2x128xf32, #tpu.memory_space<vmem>>, vector<1x1x1x128xf32>,
    return
  }
  func.func @transform_0(%arg0: i32, %arg1: i32) -> (i32, i32, i32) {
    %c0_i32 = arith.constant 0 : i32
    %c0_i32_0 = arith.constant 0 : i32
    return %arg0, %arg1, %c0_i32 : i32, i32, i32
  }
  func.func @transform_1(%arg0: i32, %arg1: i32) -> (i32, i32, i32) {
    %c0_i32 = arith.constant 0 : i32
    %c0_i32_0 = arith.constant 0 : i32
    %c0_i32_1 = arith.constant 0 : i32
    return %arg0, %c0_i32, %c0_i32_0 : i32, i32, i32
  }
  func.func @transform_2(%arg0: i32, %arg1: i32) -> (i32, i32) {
    %c0_i32 = arith.constant 0 : i32
    %c0_i32_0 = arith.constant 0 : i32
    %c0_i32_1 = arith.constant 0 : i32
    return %c0_i32, %c0_i32_0 : i32, i32
  }
  func.func @transform_3(%arg0: i32, %arg1: i32) -> (i32, i32) {
    %c0_i32 = arith.constant 0 : i32
    %c0_i32_0 = arith.constant 0 : i32
    %c0_i32_1 = arith.constant 0 : i32
    return %c0_i32, %c0_i32_0 : i32, i32
  }
  func.func @transform_4(%arg0: i32, %arg1: i32) -> (i32, i32, i32) {
    %c0_i32 = arith.constant 0 : i32
    %c0_i32_0 = arith.constant 0 : i32
    return %arg0, %arg1, %c0_i32 : i32, i32, i32
  }
  func.func @transform_5(%arg0: i32, %arg1: i32) -> (i32, i32, i32, i32) {
    %c0_i32 = arith.constant 0 : i32
    %c0_i32_0 = arith.constant 0 : i32
    %c0_i32_1 = arith.constant 0 : i32
    return %arg0, %arg1, %c0_i32, %c0_i32_0 : i32, i32, i32, i32
  }
}

module attributes {stable_mosaic.version = 11 : i64} {
  func.func @_fused_layer_kernel(%arg0: i32, %arg1: i32, %arg2: memref<1x256x3xf32, #tpu.memory_space<vmem>>, %arg3: memref<1x3x128xbf16, #tpu.memory_space<vmem>>, %arg4: memref<1x3xf32, #tpu.memory_space<vmem>>, %arg5: memref<1x3xf32, #tpu.memory_space<vmem>>, %arg6: memref<1x256x128xbf16, #tpu.memory_space<vmem>>, %arg7: memref<1x1x2x128xf32, #tpu.memory_space<vmem>>) attributes {dimension_semantics = [#tpu.dimension_semantics<parallel>, #tpu.dimension_semantics<parallel>], iteration_bounds = array<i64: 1, 1>, scalar_prefetch = 0 : i64, scratch_operands = 0 : i64, tpu.core_type = #tpu.core_type<tc>, window_params = [{transform_indices = @transform_0, window_bounds = array<i64: 1, 256, 3>}, {transform_indices = @transform_1, window_bounds = array<i64: 1, 3, 128>}, {pipeline_mode = #tpu.pipeline_mode<synchronous>, transform_indices = @transform_2, window_bounds = array<i64: 1, 3>}, {pipeline_mode = #tpu.pipeline_mode<synchronous>, transform_indices = @transform_3, window_bounds = array<i64: 1, 3>}, {transform_indices = @transform_4, window_bounds = array<i64: 1, 256, 128>}, {transform_indices = @transform_5, window_bounds = array<i64: 1, 1, 2, 128>}]} {
    %c0 = arith.constant 0 : index
    %c0_0 = arith.constant 0 : index
    %c0_1 = arith.constant 0 : index
    %0 = vector.load %arg2[%c0, %c0_0, %c0_1] : memref<1x256x3xf32, #tpu.memory_space<vmem>>, vector<1x256x3xf32>
    %1 = vector.shape_cast %0 : vector<1x256x3xf32> to vector<256x3xf32>
    %2 = arith.truncf %1 : vector<256x3xf32> to vector<256x3xbf16>
    %c0_2 = arith.constant 0 : index
    %c0_3 = arith.constant 0 : index
    %c0_4 = arith.constant 0 : index
    %3 = vector.load %arg3[%c0_2, %c0_3, %c0_4] : memref<1x3x128xbf16, #tpu.memory_space<vmem>>, vector<1x3x128xbf16>
    %4 = vector.shape_cast %3 : vector<1x3x128xbf16> to vector<3x128xbf16>
    %cst = arith.constant dense<0.000000e+00> : vector<256x128xf32>
    %5 = tpu.matmul %2, %4, %cst {dimension_numbers = #tpu.dot_dimension_numbers<[1], [0], [0], [1], [0, 0, 1, 1], [], []>} : vector<256x3xbf16>, vector<3x128xbf16>, vector<256x128xf32> -> vector<256x128xf32>
    %6 = arith.truncf %5 : vector<256x128xf32> to vector<256x128xbf16>
    %c0_5 = arith.constant 0 : index
    %c0_6 = arith.constant 0 : index
    %c0_7 = arith.constant 0 : index
    %7 = vector.load %arg6[%c0_5, %c0_6, %c0_7] : memref<1x256x128xbf16, #tpu.memory_space<vmem>>, vector<1x256x128xbf16>
    %8 = vector.shape_cast %7 : vector<1x256x128xbf16> to vector<256x128xbf16>
    %9 = vector.shape_cast %6 : vector<256x128xbf16> to vector<1x256x128xbf16>
    tpu.vector_store %arg6[%c0_5, %c0_6, %c0_7], %9 {strides = array<i32>} : memref<1x256x128xbf16, #tpu.memory_space<vmem>>, vector<1x256x128xbf16>,
    %cst_8 = arith.constant 1.000000e+00 : f32
    %10 = vector.broadcast %cst_8 : f32 to vector<1x256xf32>
    %cst_9 = arith.constant dense<0.000000e+00> : vector<1x128xf32>
    %11 = tpu.matmul %10, %5, %cst_9 {dimension_numbers = #tpu.dot_dimension_numbers<[1], [0], [0], [1], [0, 0, 1, 1], [], []>} : vector<1x256xf32>, vector<256x128xf32>, vector<1x128xf32> -> vector<1x128xf32>
    %c0_10 = arith.constant 0 : index
    %c0_11 = arith.constant 0 : index
    %c0_12 = arith.constant 0 : index
    %c0_13 = arith.constant 0 : index
    %12 = vector.load %arg7[%c0_10, %c0_11, %c0_12, %c0_13] : memref<1x1x2x128xf32, #tpu.memory_space<vmem>>, vector<1x1x1x128xf32>
    %13 = vector.shape_cast %12 : vector<1x1x1x128xf32> to vector<1x128xf32>
    %14 = vector.shape_cast %11 : vector<1x128xf32> to vector<1x1x1x128xf32>
    tpu.vector_store %arg7[%c0_10, %c0_11, %c0_12, %c0_13], %14 {strides = array<i32>} : memref<1x1x2x128xf32, #tpu.memory_space<vmem>>, vector<1x1x1x128xf32>,
    %15 = arith.mulf %5, %5 : vector<256x128xf32>
    %cst_14 = arith.constant dense<0.000000e+00> : vector<1x128xf32>
    %16 = tpu.matmul %10, %15, %cst_14 {dimension_numbers = #tpu.dot_dimension_numbers<[1], [0], [0], [1], [0, 0, 1, 1], [], []>} : vector<1x256xf32>, vector<256x128xf32>, vector<1x128xf32> -> vector<1x128xf32>
    %c0_15 = arith.constant 0 : index
    %c0_16 = arith.constant 0 : index
    %c1 = arith.constant 1 : index
    %c0_17 = arith.constant 0 : index
    %17 = vector.load %arg7[%c0_15, %c0_16, %c1, %c0_17] : memref<1x1x2x128xf32, #tpu.memory_space<vmem>>, vector<1x1x1x128xf32>
    %18 = vector.shape_cast %17 : vector<1x1x1x128xf32> to vector<1x128xf32>
    %19 = vector.shape_cast %16 : vector<1x128xf32> to vector<1x1x1x128xf32>
    tpu.vector_store %arg7[%c0_15, %c0_16, %c1, %c0_17], %19 {strides = array<i32>} : memref<1x1x2x128xf32, #tpu.memory_space<vmem>>, vector<1x1x1x128xf32>,
    return
  }
  func.func @transform_0(%arg0: i32, %arg1: i32) -> (i32, i32, i32) {
    %c0_i32 = arith.constant 0 : i32
    %c0_i32_0 = arith.constant 0 : i32
    return %arg0, %arg1, %c0_i32 : i32, i32, i32
  }
  func.func @transform_1(%arg0: i32, %arg1: i32) -> (i32, i32, i32) {
    %c0_i32 = arith.constant 0 : i32
    %c0_i32_0 = arith.constant 0 : i32
    %c0_i32_1 = arith.constant 0 : i32
    return %arg0, %c0_i32, %c0_i32_0 : i32, i32, i32
  }
  func.func @transform_2(%arg0: i32, %arg1: i32) -> (i32, i32) {
    %c0_i32 = arith.constant 0 : i32
    %c0_i32_0 = arith.constant 0 : i32
    %c0_i32_1 = arith.constant 0 : i32
    return %c0_i32, %c0_i32_0 : i32, i32
  }
  func.func @transform_3(%arg0: i32, %arg1: i32) -> (i32, i32) {
    %c0_i32 = arith.constant 0 : i32
    %c0_i32_0 = arith.constant 0 : i32
    %c0_i32_1 = arith.constant 0 : i32
    return %c0_i32, %c0_i32_0 : i32, i32
  }
  func.func @transform_4(%arg0: i32, %arg1: i32) -> (i32, i32, i32) {
    %c0_i32 = arith.constant 0 : i32
    %c0_i32_0 = arith.constant 0 : i32
    return %arg0, %arg1, %c0_i32 : i32, i32, i32
  }
  func.func @transform_5(%arg0: i32, %arg1: i32) -> (i32, i32, i32, i32) {
    %c0_i32 = arith.constant 0 : i32
    %c0_i32_0 = arith.constant 0 : i32
    %c0_i32_1 = arith.constant 0 : i32
    return %arg0, %arg1, %c0_i32, %c0_i32_0 : i32, i32, i32, i32
  }
}

module attributes {stable_mosaic.version = 11 : i64} {
  func.func @_fused_layer_pool_kernel(%arg0: i32, %arg1: i32, %arg2: memref<1x128x128xbf16, #tpu.memory_space<vmem>>, %arg3: memref<1x128x1024xbf16, #tpu.memory_space<vmem>>, %arg4: memref<1x128xf32, #tpu.memory_space<vmem>>, %arg5: memref<1x128xf32, #tpu.memory_space<vmem>>, %arg6: memref<1x1x4x1024xf32, #tpu.memory_space<vmem>>) attributes {dimension_semantics = [#tpu.dimension_semantics<parallel>, #tpu.dimension_semantics<parallel>], iteration_bounds = array<i64: 2, 1>, scalar_prefetch = 0 : i64, scratch_operands = 0 : i64, tpu.core_type = #tpu.core_type<tc>, window_params = [{transform_indices = @transform_0, window_bounds = array<i64: 1, 128, 128>}, {pipeline_mode = #tpu.pipeline_mode<synchronous>, transform_indices = @transform_1, window_bounds = array<i64: 1, 128, 1024>}, {pipeline_mode = #tpu.pipeline_mode<synchronous>, transform_indices = @transform_2, window_bounds = array<i64: 1, 128>}, {pipeline_mode = #tpu.pipeline_mode<synchronous>, transform_indices = @transform_3, window_bounds = array<i64: 1, 128>}, {transform_indices = @transform_4, window_bounds = array<i64: 1, 1, 4, 1024>}]} {
    %c0 = arith.constant 0 : index
    %c0_0 = arith.constant 0 : index
    %c0_1 = arith.constant 0 : index
    %0 = vector.load %arg2[%c0, %c0_0, %c0_1] : memref<1x128x128xbf16, #tpu.memory_space<vmem>>, vector<1x128x128xbf16>
    %1 = vector.shape_cast %0 : vector<1x128x128xbf16> to vector<128x128xbf16>
    %2 = arith.extf %1 : vector<128x128xbf16> to vector<128x128xf32>
    %c0_2 = arith.constant 0 : index
    %c0_3 = arith.constant 0 : index
    %3 = vector.load %arg4[%c0_2, %c0_3] : memref<1x128xf32, #tpu.memory_space<vmem>>, vector<1x128xf32>
    %4 = vector.broadcast %3 : vector<1x128xf32> to vector<128x128xf32>
    %5 = arith.mulf %2, %4 : vector<128x128xf32>
    %c0_4 = arith.constant 0 : index
    %c0_5 = arith.constant 0 : index
    %6 = vector.load %arg5[%c0_4, %c0_5] : memref<1x128xf32, #tpu.memory_space<vmem>>, vector<1x128xf32>
    %7 = vector.broadcast %6 : vector<1x128xf32> to vector<128x128xf32>
    %8 = arith.addf %5, %7 : vector<128x128xf32>
    %cst = arith.constant 0.000000e+00 : f32
    %9 = vector.broadcast %cst : f32 to vector<128x128xf32>
    %10 = arith.maximumf %8, %9 : vector<128x128xf32>
    %11 = arith.truncf %10 : vector<128x128xf32> to vector<128x128xbf16>
    %c0_6 = arith.constant 0 : index
    %c0_7 = arith.constant 0 : index
    %c0_8 = arith.constant 0 : index
    %12 = vector.load %arg3[%c0_6, %c0_7, %c0_8] : memref<1x128x1024xbf16, #tpu.memory_space<vmem>>, vector<1x128x1024xbf16>
    %13 = vector.shape_cast %12 : vector<1x128x1024xbf16> to vector<128x1024xbf16>
    %cst_9 = arith.constant dense<0.000000e+00> : vector<128x1024xf32>
    %14 = tpu.matmul %11, %13, %cst_9 {dimension_numbers = #tpu.dot_dimension_numbers<[1], [0], [0], [1], [0, 0, 1, 1], [], []>} : vector<128x128xbf16>, vector<128x1024xbf16>, vector<128x1024xf32> -> vector<128x1024xf32>
    %cst_10 = arith.constant 1.000000e+00 : f32
    %15 = vector.broadcast %cst_10 : f32 to vector<1x128xf32>
    %cst_11 = arith.constant dense<0.000000e+00> : vector<1x1024xf32>
    %16 = tpu.matmul %15, %14, %cst_11 {dimension_numbers = #tpu.dot_dimension_numbers<[1], [0], [0], [1], [0, 0, 1, 1], [], []>} : vector<1x128xf32>, vector<128x1024xf32>, vector<1x1024xf32> -> vector<1x1024xf32>
    %c0_12 = arith.constant 0 : index
    %c0_13 = arith.constant 0 : index
    %c0_14 = arith.constant 0 : index
    %c0_15 = arith.constant 0 : index
    %17 = vector.load %arg6[%c0_12, %c0_13, %c0_14, %c0_15] : memref<1x1x4x1024xf32, #tpu.memory_space<vmem>>, vector<1x1x1x1024xf32>
    %18 = vector.shape_cast %17 : vector<1x1x1x1024xf32> to vector<1x1024xf32>
    %19 = vector.shape_cast %16 : vector<1x1024xf32> to vector<1x1x1x1024xf32>
    tpu.vector_store %arg6[%c0_12, %c0_13, %c0_14, %c0_15], %19 {strides = array<i32>} : memref<1x1x4x1024xf32, #tpu.memory_space<vmem>>, vector<1x1x1x1024xf32>,
    %20 = arith.mulf %14, %14 : vector<128x1024xf32>
    %cst_16 = arith.constant dense<0.000000e+00> : vector<1x1024xf32>
    %21 = tpu.matmul %15, %20, %cst_16 {dimension_numbers = #tpu.dot_dimension_numbers<[1], [0], [0], [1], [0, 0, 1, 1], [], []>} : vector<1x128xf32>, vector<128x1024xf32>, vector<1x1024xf32> -> vector<1x1024xf32>
    %c0_17 = arith.constant 0 : index
    %c0_18 = arith.constant 0 : index
    %c1 = arith.constant 1 : index
    %c0_19 = arith.constant 0 : index
    %22 = vector.load %arg6[%c0_17, %c0_18, %c1, %c0_19] : memref<1x1x4x1024xf32, #tpu.memory_space<vmem>>, vector<1x1x1x1024xf32>
    %23 = vector.shape_cast %22 : vector<1x1x1x1024xf32> to vector<1x1024xf32>
    %24 = vector.shape_cast %21 : vector<1x1024xf32> to vector<1x1x1x1024xf32>
    tpu.vector_store %arg6[%c0_17, %c0_18, %c1, %c0_19], %24 {strides = array<i32>} : memref<1x1x4x1024xf32, #tpu.memory_space<vmem>>, vector<1x1x1x1024xf32>,
    %cst_20 = arith.constant dense<0xFF800000> : vector<1024xf32>
    %25 = vector.multi_reduction <maximumf>, %14, %cst_20 [0] : vector<128x1024xf32> to vector<1024xf32>
    %26 = vector.shape_cast %25 : vector<1024xf32> to vector<1x1024xf32>
    %cst_21 = arith.constant dense<0x7F800000> : vector<1024xf32>
    %27 = vector.multi_reduction <minimumf>, %14, %cst_21 [0] : vector<128x1024xf32> to vector<1024xf32>
    %28 = vector.shape_cast %27 : vector<1024xf32> to vector<1x1024xf32>
    %c0_22 = arith.constant 0 : index
    %c0_23 = arith.constant 0 : index
    %c2 = arith.constant 2 : index
    %c0_24 = arith.constant 0 : index
    %29 = vector.load %arg6[%c0_22, %c0_23, %c2, %c0_24] : memref<1x1x4x1024xf32, #tpu.memory_space<vmem>>, vector<1x1x1x1024xf32>
    %30 = vector.shape_cast %29 : vector<1x1x1x1024xf32> to vector<1x1024xf32>
    %31 = vector.shape_cast %26 : vector<1x1024xf32> to vector<1x1x1x1024xf32>
    tpu.vector_store %arg6[%c0_22, %c0_23, %c2, %c0_24], %31 {strides = array<i32>} : memref<1x1x4x1024xf32, #tpu.memory_space<vmem>>, vector<1x1x1x1024xf32>,
    %c0_25 = arith.constant 0 : index
    %c0_26 = arith.constant 0 : index
    %c3 = arith.constant 3 : index
    %c0_27 = arith.constant 0 : index
    %32 = vector.load %arg6[%c0_25, %c0_26, %c3, %c0_27] : memref<1x1x4x1024xf32, #tpu.memory_space<vmem>>, vector<1x1x1x1024xf32>
    %33 = vector.shape_cast %32 : vector<1x1x1x1024xf32> to vector<1x1024xf32>
    %34 = vector.shape_cast %28 : vector<1x1024xf32> to vector<1x1x1x1024xf32>
    tpu.vector_store %arg6[%c0_25, %c0_26, %c3, %c0_27], %34 {strides = array<i32>} : memref<1x1x4x1024xf32, #tpu.memory_space<vmem>>, vector<1x1x1x1024xf32>,
    return
  }
  func.func @transform_0(%arg0: i32, %arg1: i32) -> (i32, i32, i32) {
    %c0_i32 = arith.constant 0 : i32
    %c0_i32_0 = arith.constant 0 : i32
    return %arg0, %arg1, %c0_i32 : i32, i32, i32
  }
  func.func @transform_1(%arg0: i32, %arg1: i32) -> (i32, i32, i32) {
    %c0_i32 = arith.constant 0 : i32
    %c0_i32_0 = arith.constant 0 : i32
    %c0_i32_1 = arith.constant 0 : i32
    %c0_i32_2 = arith.constant 0 : i32
    return %c0_i32, %c0_i32_0, %c0_i32_1 : i32, i32, i32
  }
  func.func @transform_2(%arg0: i32, %arg1: i32) -> (i32, i32) {
    %c0_i32 = arith.constant 0 : i32
    %c0_i32_0 = arith.constant 0 : i32
    %c0_i32_1 = arith.constant 0 : i32
    return %c0_i32, %c0_i32_0 : i32, i32
  }
  func.func @transform_3(%arg0: i32, %arg1: i32) -> (i32, i32) {
    %c0_i32 = arith.constant 0 : i32
    %c0_i32_0 = arith.constant 0 : i32
    %c0_i32_1 = arith.constant 0 : i32
    return %c0_i32, %c0_i32_0 : i32, i32
  }
  func.func @transform_4(%arg0: i32, %arg1: i32) -> (i32, i32, i32, i32) {
    %c0_i32 = arith.constant 0 : i32
    %c0_i32_0 = arith.constant 0 : i32
    %c0_i32_1 = arith.constant 0 : i32
    return %arg0, %arg1, %c0_i32, %c0_i32_0 : i32, i32, i32, i32
  }
}

module attributes {stable_mosaic.version = 11 : i64} {
  func.func @_fused_layer_kernel(%arg0: i32, %arg1: i32, %arg2: memref<1x128x3xf32, #tpu.memory_space<vmem>>, %arg3: memref<1x3x128xbf16, #tpu.memory_space<vmem>>, %arg4: memref<1x3xf32, #tpu.memory_space<vmem>>, %arg5: memref<1x3xf32, #tpu.memory_space<vmem>>, %arg6: memref<1x128x128xbf16, #tpu.memory_space<vmem>>, %arg7: memref<1x1x2x128xf32, #tpu.memory_space<vmem>>) attributes {dimension_semantics = [#tpu.dimension_semantics<parallel>, #tpu.dimension_semantics<parallel>], iteration_bounds = array<i64: 2, 1>, scalar_prefetch = 0 : i64, scratch_operands = 0 : i64, tpu.core_type = #tpu.core_type<tc>, window_params = [{transform_indices = @transform_0, window_bounds = array<i64: 1, 128, 3>}, {transform_indices = @transform_1, window_bounds = array<i64: 1, 3, 128>}, {pipeline_mode = #tpu.pipeline_mode<synchronous>, transform_indices = @transform_2, window_bounds = array<i64: 1, 3>}, {pipeline_mode = #tpu.pipeline_mode<synchronous>, transform_indices = @transform_3, window_bounds = array<i64: 1, 3>}, {transform_indices = @transform_4, window_bounds = array<i64: 1, 128, 128>}, {transform_indices = @transform_5, window_bounds = array<i64: 1, 1, 2, 128>}]} {
    %c0 = arith.constant 0 : index
    %c0_0 = arith.constant 0 : index
    %c0_1 = arith.constant 0 : index
    %0 = vector.load %arg2[%c0, %c0_0, %c0_1] : memref<1x128x3xf32, #tpu.memory_space<vmem>>, vector<1x128x3xf32>
    %1 = vector.shape_cast %0 : vector<1x128x3xf32> to vector<128x3xf32>
    %2 = arith.truncf %1 : vector<128x3xf32> to vector<128x3xbf16>
    %c0_2 = arith.constant 0 : index
    %c0_3 = arith.constant 0 : index
    %c0_4 = arith.constant 0 : index
    %3 = vector.load %arg3[%c0_2, %c0_3, %c0_4] : memref<1x3x128xbf16, #tpu.memory_space<vmem>>, vector<1x3x128xbf16>
    %4 = vector.shape_cast %3 : vector<1x3x128xbf16> to vector<3x128xbf16>
    %cst = arith.constant dense<0.000000e+00> : vector<128x128xf32>
    %5 = tpu.matmul %2, %4, %cst {dimension_numbers = #tpu.dot_dimension_numbers<[1], [0], [0], [1], [0, 0, 1, 1], [], []>} : vector<128x3xbf16>, vector<3x128xbf16>, vector<128x128xf32> -> vector<128x128xf32>
    %6 = arith.truncf %5 : vector<128x128xf32> to vector<128x128xbf16>
    %c0_5 = arith.constant 0 : index
    %c0_6 = arith.constant 0 : index
    %c0_7 = arith.constant 0 : index
    %7 = vector.load %arg6[%c0_5, %c0_6, %c0_7] : memref<1x128x128xbf16, #tpu.memory_space<vmem>>, vector<1x128x128xbf16>
    %8 = vector.shape_cast %7 : vector<1x128x128xbf16> to vector<128x128xbf16>
    %9 = vector.shape_cast %6 : vector<128x128xbf16> to vector<1x128x128xbf16>
    tpu.vector_store %arg6[%c0_5, %c0_6, %c0_7], %9 {strides = array<i32>} : memref<1x128x128xbf16, #tpu.memory_space<vmem>>, vector<1x128x128xbf16>,
    %cst_8 = arith.constant 1.000000e+00 : f32
    %10 = vector.broadcast %cst_8 : f32 to vector<1x128xf32>
    %cst_9 = arith.constant dense<0.000000e+00> : vector<1x128xf32>
    %11 = tpu.matmul %10, %5, %cst_9 {dimension_numbers = #tpu.dot_dimension_numbers<[1], [0], [0], [1], [0, 0, 1, 1], [], []>} : vector<1x128xf32>, vector<128x128xf32>, vector<1x128xf32> -> vector<1x128xf32>
    %c0_10 = arith.constant 0 : index
    %c0_11 = arith.constant 0 : index
    %c0_12 = arith.constant 0 : index
    %c0_13 = arith.constant 0 : index
    %12 = vector.load %arg7[%c0_10, %c0_11, %c0_12, %c0_13] : memref<1x1x2x128xf32, #tpu.memory_space<vmem>>, vector<1x1x1x128xf32>
    %13 = vector.shape_cast %12 : vector<1x1x1x128xf32> to vector<1x128xf32>
    %14 = vector.shape_cast %11 : vector<1x128xf32> to vector<1x1x1x128xf32>
    tpu.vector_store %arg7[%c0_10, %c0_11, %c0_12, %c0_13], %14 {strides = array<i32>} : memref<1x1x2x128xf32, #tpu.memory_space<vmem>>, vector<1x1x1x128xf32>,
    %15 = arith.mulf %5, %5 : vector<128x128xf32>
    %cst_14 = arith.constant dense<0.000000e+00> : vector<1x128xf32>
    %16 = tpu.matmul %10, %15, %cst_14 {dimension_numbers = #tpu.dot_dimension_numbers<[1], [0], [0], [1], [0, 0, 1, 1], [], []>} : vector<1x128xf32>, vector<128x128xf32>, vector<1x128xf32> -> vector<1x128xf32>
    %c0_15 = arith.constant 0 : index
    %c0_16 = arith.constant 0 : index
    %c1 = arith.constant 1 : index
    %c0_17 = arith.constant 0 : index
    %17 = vector.load %arg7[%c0_15, %c0_16, %c1, %c0_17] : memref<1x1x2x128xf32, #tpu.memory_space<vmem>>, vector<1x1x1x128xf32>
    %18 = vector.shape_cast %17 : vector<1x1x1x128xf32> to vector<1x128xf32>
    %19 = vector.shape_cast %16 : vector<1x128xf32> to vector<1x1x1x128xf32>
    tpu.vector_store %arg7[%c0_15, %c0_16, %c1, %c0_17], %19 {strides = array<i32>} : memref<1x1x2x128xf32, #tpu.memory_space<vmem>>, vector<1x1x1x128xf32>,
    return
  }
  func.func @transform_0(%arg0: i32, %arg1: i32) -> (i32, i32, i32) {
    %c0_i32 = arith.constant 0 : i32
    %c0_i32_0 = arith.constant 0 : i32
    return %arg0, %arg1, %c0_i32 : i32, i32, i32
  }
  func.func @transform_1(%arg0: i32, %arg1: i32) -> (i32, i32, i32) {
    %c0_i32 = arith.constant 0 : i32
    %c0_i32_0 = arith.constant 0 : i32
    %c0_i32_1 = arith.constant 0 : i32
    return %arg0, %c0_i32, %c0_i32_0 : i32, i32, i32
  }
  func.func @transform_2(%arg0: i32, %arg1: i32) -> (i32, i32) {
    %c0_i32 = arith.constant 0 : i32
    %c0_i32_0 = arith.constant 0 : i32
    %c0_i32_1 = arith.constant 0 : i32
    return %c0_i32, %c0_i32_0 : i32, i32
  }
  func.func @transform_3(%arg0: i32, %arg1: i32) -> (i32, i32) {
    %c0_i32 = arith.constant 0 : i32
    %c0_i32_0 = arith.constant 0 : i32
    %c0_i32_1 = arith.constant 0 : i32
    return %c0_i32, %c0_i32_0 : i32, i32
  }
  func.func @transform_4(%arg0: i32, %arg1: i32) -> (i32, i32, i32) {
    %c0_i32 = arith.constant 0 : i32
    %c0_i32_0 = arith.constant 0 : i32
    return %arg0, %arg1, %c0_i32 : i32, i32, i32
  }
  func.func @transform_5(%arg0: i32, %arg1: i32) -> (i32, i32, i32, i32) {
    %c0_i32 = arith.constant 0 : i32
    %c0_i32_0 = arith.constant 0 : i32
    %c0_i32_1 = arith.constant 0 : i32
    return %arg0, %arg1, %c0_i32, %c0_i32_0 : i32, i32, i32, i32
  }
}

module attributes {stable_mosaic.version = 11 : i64} {
  func.func @_fused_layer_kernel(%arg0: i32, %arg1: i32, %arg2: memref<1x128x128xbf16, #tpu.memory_space<vmem>>, %arg3: memref<1x128x128xbf16, #tpu.memory_space<vmem>>, %arg4: memref<1x128xf32, #tpu.memory_space<vmem>>, %arg5: memref<1x128xf32, #tpu.memory_space<vmem>>, %arg6: memref<1x128x128xbf16, #tpu.memory_space<vmem>>, %arg7: memref<1x1x2x128xf32, #tpu.memory_space<vmem>>) attributes {dimension_semantics = [#tpu.dimension_semantics<parallel>, #tpu.dimension_semantics<parallel>], iteration_bounds = array<i64: 2, 1>, scalar_prefetch = 0 : i64, scratch_operands = 0 : i64, tpu.core_type = #tpu.core_type<tc>, window_params = [{transform_indices = @transform_0, window_bounds = array<i64: 1, 128, 128>}, {transform_indices = @transform_1, window_bounds = array<i64: 1, 128, 128>}, {pipeline_mode = #tpu.pipeline_mode<synchronous>, transform_indices = @transform_2, window_bounds = array<i64: 1, 128>}, {pipeline_mode = #tpu.pipeline_mode<synchronous>, transform_indices = @transform_3, window_bounds = array<i64: 1, 128>}, {transform_indices = @transform_4, window_bounds = array<i64: 1, 128, 128>}, {transform_indices = @transform_5, window_bounds = array<i64: 1, 1, 2, 128>}]} {
    %c0 = arith.constant 0 : index
    %c0_0 = arith.constant 0 : index
    %c0_1 = arith.constant 0 : index
    %0 = vector.load %arg2[%c0, %c0_0, %c0_1] : memref<1x128x128xbf16, #tpu.memory_space<vmem>>, vector<1x128x128xbf16>
    %1 = vector.shape_cast %0 : vector<1x128x128xbf16> to vector<128x128xbf16>
    %2 = arith.extf %1 : vector<128x128xbf16> to vector<128x128xf32>
    %c0_2 = arith.constant 0 : index
    %c0_3 = arith.constant 0 : index
    %3 = vector.load %arg4[%c0_2, %c0_3] : memref<1x128xf32, #tpu.memory_space<vmem>>, vector<1x128xf32>
    %4 = vector.broadcast %3 : vector<1x128xf32> to vector<128x128xf32>
    %5 = arith.mulf %2, %4 : vector<128x128xf32>
    %c0_4 = arith.constant 0 : index
    %c0_5 = arith.constant 0 : index
    %6 = vector.load %arg5[%c0_4, %c0_5] : memref<1x128xf32, #tpu.memory_space<vmem>>, vector<1x128xf32>
    %7 = vector.broadcast %6 : vector<1x128xf32> to vector<128x128xf32>
    %8 = arith.addf %5, %7 : vector<128x128xf32>
    %cst = arith.constant 0.000000e+00 : f32
    %9 = vector.broadcast %cst : f32 to vector<128x128xf32>
    %10 = arith.maximumf %8, %9 : vector<128x128xf32>
    %11 = arith.truncf %10 : vector<128x128xf32> to vector<128x128xbf16>
    %c0_6 = arith.constant 0 : index
    %c0_7 = arith.constant 0 : index
    %c0_8 = arith.constant 0 : index
    %12 = vector.load %arg3[%c0_6, %c0_7, %c0_8] : memref<1x128x128xbf16, #tpu.memory_space<vmem>>, vector<1x128x128xbf16>
    %13 = vector.shape_cast %12 : vector<1x128x128xbf16> to vector<128x128xbf16>
    %cst_9 = arith.constant dense<0.000000e+00> : vector<128x128xf32>
    %14 = tpu.matmul %11, %13, %cst_9 {dimension_numbers = #tpu.dot_dimension_numbers<[1], [0], [0], [1], [0, 0, 1, 1], [], []>} : vector<128x128xbf16>, vector<128x128xbf16>, vector<128x128xf32> -> vector<128x128xf32>
    %15 = arith.truncf %14 : vector<128x128xf32> to vector<128x128xbf16>
    %c0_10 = arith.constant 0 : index
    %c0_11 = arith.constant 0 : index
    %c0_12 = arith.constant 0 : index
    %16 = vector.load %arg6[%c0_10, %c0_11, %c0_12] : memref<1x128x128xbf16, #tpu.memory_space<vmem>>, vector<1x128x128xbf16>
    %17 = vector.shape_cast %16 : vector<1x128x128xbf16> to vector<128x128xbf16>
    %18 = vector.shape_cast %15 : vector<128x128xbf16> to vector<1x128x128xbf16>
    tpu.vector_store %arg6[%c0_10, %c0_11, %c0_12], %18 {strides = array<i32>} : memref<1x128x128xbf16, #tpu.memory_space<vmem>>, vector<1x128x128xbf16>,
    %cst_13 = arith.constant 1.000000e+00 : f32
    %19 = vector.broadcast %cst_13 : f32 to vector<1x128xf32>
    %cst_14 = arith.constant dense<0.000000e+00> : vector<1x128xf32>
    %20 = tpu.matmul %19, %14, %cst_14 {dimension_numbers = #tpu.dot_dimension_numbers<[1], [0], [0], [1], [0, 0, 1, 1], [], []>} : vector<1x128xf32>, vector<128x128xf32>, vector<1x128xf32> -> vector<1x128xf32>
    %c0_15 = arith.constant 0 : index
    %c0_16 = arith.constant 0 : index
    %c0_17 = arith.constant 0 : index
    %c0_18 = arith.constant 0 : index
    %21 = vector.load %arg7[%c0_15, %c0_16, %c0_17, %c0_18] : memref<1x1x2x128xf32, #tpu.memory_space<vmem>>, vector<1x1x1x128xf32>
    %22 = vector.shape_cast %21 : vector<1x1x1x128xf32> to vector<1x128xf32>
    %23 = vector.shape_cast %20 : vector<1x128xf32> to vector<1x1x1x128xf32>
    tpu.vector_store %arg7[%c0_15, %c0_16, %c0_17, %c0_18], %23 {strides = array<i32>} : memref<1x1x2x128xf32, #tpu.memory_space<vmem>>, vector<1x1x1x128xf32>,
    %24 = arith.mulf %14, %14 : vector<128x128xf32>
    %cst_19 = arith.constant dense<0.000000e+00> : vector<1x128xf32>
    %25 = tpu.matmul %19, %24, %cst_19 {dimension_numbers = #tpu.dot_dimension_numbers<[1], [0], [0], [1], [0, 0, 1, 1], [], []>} : vector<1x128xf32>, vector<128x128xf32>, vector<1x128xf32> -> vector<1x128xf32>
    %c0_20 = arith.constant 0 : index
    %c0_21 = arith.constant 0 : index
    %c1 = arith.constant 1 : index
    %c0_22 = arith.constant 0 : index
    %26 = vector.load %arg7[%c0_20, %c0_21, %c1, %c0_22] : memref<1x1x2x128xf32, #tpu.memory_space<vmem>>, vector<1x1x1x128xf32>
    %27 = vector.shape_cast %26 : vector<1x1x1x128xf32> to vector<1x128xf32>
    %28 = vector.shape_cast %25 : vector<1x128xf32> to vector<1x1x1x128xf32>
    tpu.vector_store %arg7[%c0_20, %c0_21, %c1, %c0_22], %28 {strides = array<i32>} : memref<1x1x2x128xf32, #tpu.memory_space<vmem>>, vector<1x1x1x128xf32>,
    return
  }
  func.func @transform_0(%arg0: i32, %arg1: i32) -> (i32, i32, i32) {
    %c0_i32 = arith.constant 0 : i32
    %c0_i32_0 = arith.constant 0 : i32
    return %arg0, %arg1, %c0_i32 : i32, i32, i32
  }
  func.func @transform_1(%arg0: i32, %arg1: i32) -> (i32, i32, i32) {
    %c0_i32 = arith.constant 0 : i32
    %c0_i32_0 = arith.constant 0 : i32
    %c0_i32_1 = arith.constant 0 : i32
    return %arg0, %c0_i32, %c0_i32_0 : i32, i32, i32
  }
  func.func @transform_2(%arg0: i32, %arg1: i32) -> (i32, i32) {
    %c0_i32 = arith.constant 0 : i32
    %c0_i32_0 = arith.constant 0 : i32
    %c0_i32_1 = arith.constant 0 : i32
    return %c0_i32, %c0_i32_0 : i32, i32
  }
  func.func @transform_3(%arg0: i32, %arg1: i32) -> (i32, i32) {
    %c0_i32 = arith.constant 0 : i32
    %c0_i32_0 = arith.constant 0 : i32
    %c0_i32_1 = arith.constant 0 : i32
    return %c0_i32, %c0_i32_0 : i32, i32
  }
  func.func @transform_4(%arg0: i32, %arg1: i32) -> (i32, i32, i32) {
    %c0_i32 = arith.constant 0 : i32
    %c0_i32_0 = arith.constant 0 : i32
    return %arg0, %arg1, %c0_i32 : i32, i32, i32
  }
  func.func @transform_5(%arg0: i32, %arg1: i32) -> (i32, i32, i32, i32) {
    %c0_i32 = arith.constant 0 : i32
    %c0_i32_0 = arith.constant 0 : i32
    %c0_i32_1 = arith.constant 0 : i32
    return %arg0, %arg1, %c0_i32, %c0_i32_0 : i32, i32, i32, i32
  }
}

module attributes {stable_mosaic.version = 11 : i64} {
  func.func @_fused_layer_kernel(%arg0: i32, %arg1: i32, %arg2: memref<1x256x128xbf16, #tpu.memory_space<vmem>>, %arg3: memref<1x128x1024xbf16, #tpu.memory_space<vmem>>, %arg4: memref<1x128xf32, #tpu.memory_space<vmem>>, %arg5: memref<1x128xf32, #tpu.memory_space<vmem>>, %arg6: memref<1x256x1024xbf16, #tpu.memory_space<vmem>>, %arg7: memref<1x1x2x1024xf32, #tpu.memory_space<vmem>>) attributes {dimension_semantics = [#tpu.dimension_semantics<parallel>, #tpu.dimension_semantics<parallel>], iteration_bounds = array<i64: 1, 1>, scalar_prefetch = 0 : i64, scratch_operands = 0 : i64, tpu.core_type = #tpu.core_type<tc>, window_params = [{transform_indices = @transform_0, window_bounds = array<i64: 1, 256, 128>}, {transform_indices = @transform_1, window_bounds = array<i64: 1, 128, 1024>}, {pipeline_mode = #tpu.pipeline_mode<synchronous>, transform_indices = @transform_2, window_bounds = array<i64: 1, 128>}, {pipeline_mode = #tpu.pipeline_mode<synchronous>, transform_indices = @transform_3, window_bounds = array<i64: 1, 128>}, {transform_indices = @transform_4, window_bounds = array<i64: 1, 256, 1024>}, {transform_indices = @transform_5, window_bounds = array<i64: 1, 1, 2, 1024>}]} {
    %c0 = arith.constant 0 : index
    %c0_0 = arith.constant 0 : index
    %c0_1 = arith.constant 0 : index
    %0 = vector.load %arg2[%c0, %c0_0, %c0_1] : memref<1x256x128xbf16, #tpu.memory_space<vmem>>, vector<1x256x128xbf16>
    %1 = vector.shape_cast %0 : vector<1x256x128xbf16> to vector<256x128xbf16>
    %2 = arith.extf %1 : vector<256x128xbf16> to vector<256x128xf32>
    %c0_2 = arith.constant 0 : index
    %c0_3 = arith.constant 0 : index
    %3 = vector.load %arg4[%c0_2, %c0_3] : memref<1x128xf32, #tpu.memory_space<vmem>>, vector<1x128xf32>
    %4 = vector.broadcast %3 : vector<1x128xf32> to vector<256x128xf32>
    %5 = arith.mulf %2, %4 : vector<256x128xf32>
    %c0_4 = arith.constant 0 : index
    %c0_5 = arith.constant 0 : index
    %6 = vector.load %arg5[%c0_4, %c0_5] : memref<1x128xf32, #tpu.memory_space<vmem>>, vector<1x128xf32>
    %7 = vector.broadcast %6 : vector<1x128xf32> to vector<256x128xf32>
    %8 = arith.addf %5, %7 : vector<256x128xf32>
    %cst = arith.constant 0.000000e+00 : f32
    %9 = vector.broadcast %cst : f32 to vector<256x128xf32>
    %10 = arith.maximumf %8, %9 : vector<256x128xf32>
    %11 = arith.truncf %10 : vector<256x128xf32> to vector<256x128xbf16>
    %c0_6 = arith.constant 0 : index
    %c0_7 = arith.constant 0 : index
    %c0_8 = arith.constant 0 : index
    %12 = vector.load %arg3[%c0_6, %c0_7, %c0_8] : memref<1x128x1024xbf16, #tpu.memory_space<vmem>>, vector<1x128x1024xbf16>
    %13 = vector.shape_cast %12 : vector<1x128x1024xbf16> to vector<128x1024xbf16>
    %cst_9 = arith.constant dense<0.000000e+00> : vector<256x1024xf32>
    %14 = tpu.matmul %11, %13, %cst_9 {dimension_numbers = #tpu.dot_dimension_numbers<[1], [0], [0], [1], [0, 0, 1, 1], [], []>} : vector<256x128xbf16>, vector<128x1024xbf16>, vector<256x1024xf32> -> vector<256x1024xf32>
    %15 = arith.truncf %14 : vector<256x1024xf32> to vector<256x1024xbf16>
    %c0_10 = arith.constant 0 : index
    %c0_11 = arith.constant 0 : index
    %c0_12 = arith.constant 0 : index
    %16 = vector.load %arg6[%c0_10, %c0_11, %c0_12] : memref<1x256x1024xbf16, #tpu.memory_space<vmem>>, vector<1x256x1024xbf16>
    %17 = vector.shape_cast %16 : vector<1x256x1024xbf16> to vector<256x1024xbf16>
    %18 = vector.shape_cast %15 : vector<256x1024xbf16> to vector<1x256x1024xbf16>
    tpu.vector_store %arg6[%c0_10, %c0_11, %c0_12], %18 {strides = array<i32>} : memref<1x256x1024xbf16, #tpu.memory_space<vmem>>, vector<1x256x1024xbf16>,
    %cst_13 = arith.constant 1.000000e+00 : f32
    %19 = vector.broadcast %cst_13 : f32 to vector<1x256xf32>
    %cst_14 = arith.constant dense<0.000000e+00> : vector<1x1024xf32>
    %20 = tpu.matmul %19, %14, %cst_14 {dimension_numbers = #tpu.dot_dimension_numbers<[1], [0], [0], [1], [0, 0, 1, 1], [], []>} : vector<1x256xf32>, vector<256x1024xf32>, vector<1x1024xf32> -> vector<1x1024xf32>
    %c0_15 = arith.constant 0 : index
    %c0_16 = arith.constant 0 : index
    %c0_17 = arith.constant 0 : index
    %c0_18 = arith.constant 0 : index
    %21 = vector.load %arg7[%c0_15, %c0_16, %c0_17, %c0_18] : memref<1x1x2x1024xf32, #tpu.memory_space<vmem>>, vector<1x1x1x1024xf32>
    %22 = vector.shape_cast %21 : vector<1x1x1x1024xf32> to vector<1x1024xf32>
    %23 = vector.shape_cast %20 : vector<1x1024xf32> to vector<1x1x1x1024xf32>
    tpu.vector_store %arg7[%c0_15, %c0_16, %c0_17, %c0_18], %23 {strides = array<i32>} : memref<1x1x2x1024xf32, #tpu.memory_space<vmem>>, vector<1x1x1x1024xf32>,
    %24 = arith.mulf %14, %14 : vector<256x1024xf32>
    %cst_19 = arith.constant dense<0.000000e+00> : vector<1x1024xf32>
    %25 = tpu.matmul %19, %24, %cst_19 {dimension_numbers = #tpu.dot_dimension_numbers<[1], [0], [0], [1], [0, 0, 1, 1], [], []>} : vector<1x256xf32>, vector<256x1024xf32>, vector<1x1024xf32> -> vector<1x1024xf32>
    %c0_20 = arith.constant 0 : index
    %c0_21 = arith.constant 0 : index
    %c1 = arith.constant 1 : index
    %c0_22 = arith.constant 0 : index
    %26 = vector.load %arg7[%c0_20, %c0_21, %c1, %c0_22] : memref<1x1x2x1024xf32, #tpu.memory_space<vmem>>, vector<1x1x1x1024xf32>
    %27 = vector.shape_cast %26 : vector<1x1x1x1024xf32> to vector<1x1024xf32>
    %28 = vector.shape_cast %25 : vector<1x1024xf32> to vector<1x1x1x1024xf32>
    tpu.vector_store %arg7[%c0_20, %c0_21, %c1, %c0_22], %28 {strides = array<i32>} : memref<1x1x2x1024xf32, #tpu.memory_space<vmem>>, vector<1x1x1x1024xf32>,
    return
  }
  func.func @transform_0(%arg0: i32, %arg1: i32) -> (i32, i32, i32) {
    %c0_i32 = arith.constant 0 : i32
    %c0_i32_0 = arith.constant 0 : i32
    return %arg0, %arg1, %c0_i32 : i32, i32, i32
  }
  func.func @transform_1(%arg0: i32, %arg1: i32) -> (i32, i32, i32) {
    %c0_i32 = arith.constant 0 : i32
    %c0_i32_0 = arith.constant 0 : i32
    %c0_i32_1 = arith.constant 0 : i32
    return %arg0, %c0_i32, %c0_i32_0 : i32, i32, i32
  }
  func.func @transform_2(%arg0: i32, %arg1: i32) -> (i32, i32) {
    %c0_i32 = arith.constant 0 : i32
    %c0_i32_0 = arith.constant 0 : i32
    %c0_i32_1 = arith.constant 0 : i32
    return %c0_i32, %c0_i32_0 : i32, i32
  }
  func.func @transform_3(%arg0: i32, %arg1: i32) -> (i32, i32) {
    %c0_i32 = arith.constant 0 : i32
    %c0_i32_0 = arith.constant 0 : i32
    %c0_i32_1 = arith.constant 0 : i32
    return %c0_i32, %c0_i32_0 : i32, i32
  }
  func.func @transform_4(%arg0: i32, %arg1: i32) -> (i32, i32, i32) {
    %c0_i32 = arith.constant 0 : i32
    %c0_i32_0 = arith.constant 0 : i32
    return %arg0, %arg1, %c0_i32 : i32, i32, i32
  }
  func.func @transform_5(%arg0: i32, %arg1: i32) -> (i32, i32, i32, i32) {
    %c0_i32 = arith.constant 0 : i32
    %c0_i32_0 = arith.constant 0 : i32
    %c0_i32_1 = arith.constant 0 : i32
    return %arg0, %arg1, %c0_i32, %c0_i32_0 : i32, i32, i32, i32
  }
}

module attributes {stable_mosaic.version = 11 : i64} {
  func.func @_affine_transpose_kernel(%arg0: i32, %arg1: i32, %arg2: memref<1x128x1024xbf16, #tpu.memory_space<vmem>>, %arg3: memref<1x1024xf32, #tpu.memory_space<vmem>>, %arg4: memref<1x1024xf32, #tpu.memory_space<vmem>>, %arg5: memref<1x1024x128xf32, #tpu.memory_space<vmem>>) attributes {dimension_semantics = [#tpu.dimension_semantics<parallel>, #tpu.dimension_semantics<parallel>], iteration_bounds = array<i64: 2, 1>, scalar_prefetch = 0 : i64, scratch_operands = 0 : i64, tpu.core_type = #tpu.core_type<tc>, window_params = [{transform_indices = @transform_0, window_bounds = array<i64: 1, 128, 1024>}, {pipeline_mode = #tpu.pipeline_mode<synchronous>, transform_indices = @transform_1, window_bounds = array<i64: 1, 1024>}, {pipeline_mode = #tpu.pipeline_mode<synchronous>, transform_indices = @transform_2, window_bounds = array<i64: 1, 1024>}, {transform_indices = @transform_3, window_bounds = array<i64: 1, 1024, 128>}]} {
    %c0 = arith.constant 0 : index
    %c0_0 = arith.constant 0 : index
    %c0_1 = arith.constant 0 : index
    %0 = vector.load %arg2[%c0, %c0_0, %c0_1] : memref<1x128x1024xbf16, #tpu.memory_space<vmem>>, vector<1x128x1024xbf16>
    %1 = vector.shape_cast %0 : vector<1x128x1024xbf16> to vector<128x1024xbf16>
    %2 = arith.extf %1 : vector<128x1024xbf16> to vector<128x1024xf32>
    %c0_2 = arith.constant 0 : index
    %c0_3 = arith.constant 0 : index
    %3 = vector.load %arg3[%c0_2, %c0_3] : memref<1x1024xf32, #tpu.memory_space<vmem>>, vector<1x1024xf32>
    %4 = vector.broadcast %3 : vector<1x1024xf32> to vector<128x1024xf32>
    %5 = arith.mulf %2, %4 : vector<128x1024xf32>
    %c0_4 = arith.constant 0 : index
    %c0_5 = arith.constant 0 : index
    %6 = vector.load %arg4[%c0_4, %c0_5] : memref<1x1024xf32, #tpu.memory_space<vmem>>, vector<1x1024xf32>
    %7 = vector.broadcast %6 : vector<1x1024xf32> to vector<128x1024xf32>
    %8 = arith.addf %5, %7 : vector<128x1024xf32>
    %9 = tpu.transpose %8, [1, 0] : vector<128x1024xf32> -> vector<1024x128xf32>
    %c0_6 = arith.constant 0 : index
    %c0_7 = arith.constant 0 : index
    %c0_8 = arith.constant 0 : index
    %10 = vector.load %arg5[%c0_6, %c0_7, %c0_8] : memref<1x1024x128xf32, #tpu.memory_space<vmem>>, vector<1x1024x128xf32>
    %11 = vector.shape_cast %10 : vector<1x1024x128xf32> to vector<1024x128xf32>
    %12 = vector.shape_cast %9 : vector<1024x128xf32> to vector<1x1024x128xf32>
    tpu.vector_store %arg5[%c0_6, %c0_7, %c0_8], %12 {strides = array<i32>} : memref<1x1024x128xf32, #tpu.memory_space<vmem>>, vector<1x1024x128xf32>,
    return
  }
  func.func @transform_0(%arg0: i32, %arg1: i32) -> (i32, i32, i32) {
    %c0_i32 = arith.constant 0 : i32
    %c0_i32_0 = arith.constant 0 : i32
    return %arg0, %arg1, %c0_i32 : i32, i32, i32
  }
  func.func @transform_1(%arg0: i32, %arg1: i32) -> (i32, i32) {
    %c0_i32 = arith.constant 0 : i32
    %c0_i32_0 = arith.constant 0 : i32
    %c0_i32_1 = arith.constant 0 : i32
    return %c0_i32, %c0_i32_0 : i32, i32
  }
  func.func @transform_2(%arg0: i32, %arg1: i32) -> (i32, i32) {
    %c0_i32 = arith.constant 0 : i32
    %c0_i32_0 = arith.constant 0 : i32
    %c0_i32_1 = arith.constant 0 : i32
    return %c0_i32, %c0_i32_0 : i32, i32
  }
  func.func @transform_3(%arg0: i32, %arg1: i32) -> (i32, i32, i32) {
    %c0_i32 = arith.constant 0 : i32
    %c0_i32_0 = arith.constant 0 : i32
    return %arg0, %c0_i32, %arg1 : i32, i32, i32
  }
}

</mosaic_0001>

<llo_original>
// kernel: _lambda_.11
$region0: #{_lambda_.11}
  #allocation0 [shape = 'u32[]', space=smem, size = 0x4, offset = 0x4, fixed_abs, tag = 'smem constant byte address 0x4 - core index']
  #allocation1 [shape = 'u32[144,128]{1,0:T(1,128)}', space=vmem, size = 0x12000, scoped, tag = 'internal scratch']
  %s0 = inlined_call_operand.vmem [shape: bf16[1,256,128], index: 0, kind: input, shape index: {}]
  %s1 = inlined_call_operand.vmem [shape: bf16[1,128,128], index: 1, kind: input, shape index: {}]
  %s2 = inlined_call_operand.vmem [shape: f32[1,128], index: 2, kind: input, shape index: {}]
  %s3 = inlined_call_operand.vmem [shape: f32[1,128], index: 3, kind: input, shape index: {}]
  %s4 = inlined_call_operand.vmem [shape: bf16[1,256,128], index: 4, kind: output, shape index: {0}]
  %s5 = inlined_call_operand.vmem [shape: f32[1,1,2,128], index: 5, kind: output, shape index: {1}]
  %6 = xla_tuple %s4, %s5
  %s7 = sld [smem:[#allocation0]]
  $region34: #{_lambda_.11} parent=0
    _
  %s9 = ssub.s32 1, %s7
  %s10 = scalar_select 0, %s9, %s7
  // Predicated region
  $region2: #{_lambda_.11} parent=0 // pred_check
    _
  $region3: #{_lambda_.11} parent=0 // pred_check_branch
    %12 = sbr.rel (0) target = $region5
  $region4: #{_lambda_.11} parent=0 // pred_region
    _
  $region5: #{_lambda_.11} parent=0 // pred_fallthru
    _
  // Predicated region
  $region6: #{_lambda_.11} parent=0 // pred_check
    _
  $region7: #{_lambda_.11} parent=0 // pred_check_branch
    %14 = sbr.rel (0) target = $region9
  $region8: #{_lambda_.11} parent=0 // pred_region
    _
  $region9: #{_lambda_.11} parent=0 // pred_fallthru
    _
  // Predicated region
  $region10: #{_lambda_.11} parent=0 // pred_check
    _
  $region11: #{_lambda_.11} parent=0 // pred_check_branch
    %16 = sbr.rel (0) target = $region13
  $region12: #{_lambda_.11} parent=0 // pred_region
    _
  $region13: #{_lambda_.11} parent=0 // pred_fallthru
    _
  // Predicated region
  $region14: #{_lambda_.11} parent=0 // pred_check
    _
  $region15: #{_lambda_.11} parent=0 // pred_check_branch
    %18 = sbr.rel (0) target = $region17
  $region16: #{_lambda_.11} parent=0 // pred_region
    _
  $region17: #{_lambda_.11} parent=0 // pred_fallthru
    _
  %v20 = vld [vmem:[%s0] sm:$0xf]
  %v21 = vld [vmem:[%s0 + $0x4] sm:$0xf]
  %v22 = vld [vmem:[%s0 + $0x8] sm:$0xf]
  %v23 = vld [vmem:[%s0 + $0xc] sm:$0xf]
  %v24 = vld [vmem:[%s0 + $0x10] sm:$0xf]
  %v25 = vld [vmem:[%s0 + $0x14] sm:$0xf]
  %v26 = vld [vmem:[%s0 + $0x18] sm:$0xf]
  %v27 = vld [vmem:[%s0 + $0x1c] sm:$0xf]
  %v28 = vld [vmem:[%s0 + $0x20] sm:$0xf]
  %v29 = vld [vmem:[%s0 + $0x24] sm:$0xf]
  %v30 = vld [vmem:[%s0 + $0x28] sm:$0xf]
  %v31 = vld [vmem:[%s0 + $0x2c] sm:$0xf]
  %v32 = vld [vmem:[%s0 + $0x30] sm:$0xf]
  %v33 = vld [vmem:[%s0 + $0x34] sm:$0xf]
  %v34 = vld [vmem:[%s0 + $0x38] sm:$0xf]
  %v35 = vld [vmem:[%s0 + $0x3c] sm:$0xf]
  %v36 = vld [vmem:[%s0 + $0x40] sm:$0xf]
  %v37 = vld [vmem:[%s0 + $0x44] sm:$0xf]
  %v38 = vld [vmem:[%s0 + $0x48] sm:$0xf]
  %v39 = vld [vmem:[%s0 + $0x4c] sm:$0xf]
  %v40 = vld [vmem:[%s0 + $0x50] sm:$0xf]
  %v41 = vld [vmem:[%s0 + $0x54] sm:$0xf]
  %v42 = vld [vmem:[%s0 + $0x58] sm:$0xf]
  %v43 = vld [vmem:[%s0 + $0x5c] sm:$0xf]
  %v44 = vld [vmem:[%s0 + $0x60] sm:$0xf]
  %v45 = vld [vmem:[%s0 + $0x64] sm:$0xf]
  %v46 = vld [vmem:[%s0 + $0x68] sm:$0xf]
  %v47 = vld [vmem:[%s0 + $0x6c] sm:$0xf]
  %v48 = vld [vmem:[%s0 + $0x70] sm:$0xf]
  %v49 = vld [vmem:[%s0 + $0x74] sm:$0xf]
  %v50 = vld [vmem:[%s0 + $0x78] sm:$0xf]
  %v51 = vld [vmem:[%s0 + $0x7c] sm:$0xf]
  %v52 = vunpack.c.l.bf16 %v20
  %v53 = vunpack.c.l.bf16 %v21
  %v54 = vunpack.c.l.bf16 %v22
  %v55 = vunpack.c.l.bf16 %v23
  %v56 = vunpack.c.l.bf16 %v24
  %v57 = vunpack.c.l.bf16 %v25
  %v58 = vunpack.c.l.bf16 %v26
  %v59 = vunpack.c.l.bf16 %v27
  %v60 = vunpack.c.l.bf16 %v28
  %v61 = vunpack.c.l.bf16 %v29
  %v62 = vunpack.c.l.bf16 %v30
  %v63 = vunpack.c.l.bf16 %v31
  %v64 = vunpack.c.l.bf16 %v32
  %v65 = vunpack.c.l.bf16 %v33
  %v66 = vunpack.c.l.bf16 %v34
  %v67 = vunpack.c.l.bf16 %v35
  %v68 = vunpack.c.l.bf16 %v36
  %v69 = vunpack.c.l.bf16 %v37
  %v70 = vunpack.c.l.bf16 %v38
  %v71 = vunpack.c.l.bf16 %v39
  %v72 = vunpack.c.l.bf16 %v40
  %v73 = vunpack.c.l.bf16 %v41
  %v74 = vunpack.c.l.bf16 %v42
  %v75 = vunpack.c.l.bf16 %v43
  %v76 = vunpack.c.l.bf16 %v44
  %v77 = vunpack.c.l.bf16 %v45
  %v78 = vunpack.c.l.bf16 %v46
  %v79 = vunpack.c.l.bf16 %v47
  %v80 = vunpack.c.l.bf16 %v48
  %v81 = vunpack.c.l.bf16 %v49
  %v82 = vunpack.c.l.bf16 %v50
  %v83 = vunpack.c.l.bf16 %v51
  %v84 = vld [vmem:[%s2] sm:$0x1]
  %v86 = vlaneseq
  %v87 = vshrl.u32 %v86, 7
  %v88 = vsub.s32 0, %v87
  %v89 = vrot.slane %v84, %v88
  %v91 = vmul.f32 %v52, %v89
  %v92 = vmul.f32 %v53, %v89
  %v93 = vmul.f32 %v54, %v89
  %v94 = vmul.f32 %v55, %v89
  %v95 = vmul.f32 %v56, %v89
  %v96 = vmul.f32 %v57, %v89
  %v97 = vmul.f32 %v58, %v89
  %v98 = vmul.f32 %v59, %v89
  %v99 = vmul.f32 %v60, %v89
  %v100 = vmul.f32 %v61, %v89
  %v101 = vmul.f32 %v62, %v89
  %v102 = vmul.f32 %v63, %v89
  %v103 = vmul.f32 %v64, %v89
  %v104 = vmul.f32 %v65, %v89
  %v105 = vmul.f32 %v66, %v89
  %v106 = vmul.f32 %v67, %v89
  %v107 = vmul.f32 %v68, %v89
  %v108 = vmul.f32 %v69, %v89
  %v109 = vmul.f32 %v70, %v89
  %v110 = vmul.f32 %v71, %v89
  %v111 = vmul.f32 %v72, %v89
  %v112 = vmul.f32 %v73, %v89
  %v113 = vmul.f32 %v74, %v89
  %v114 = vmul.f32 %v75, %v89
  %v115 = vmul.f32 %v76, %v89
  %v116 = vmul.f32 %v77, %v89
  %v117 = vmul.f32 %v78, %v89
  %v118 = vmul.f32 %v79, %v89
  %v119 = vmul.f32 %v80, %v89
  %v120 = vmul.f32 %v81, %v89
  %v121 = vmul.f32 %v82, %v89
  %v122 = vmul.f32 %v83, %v89
  %v123 = vld [vmem:[%s3] sm:$0x1]
  %v125 = vlaneseq
  %v126 = vshrl.u32 %v125, 7
  %v127 = vsub.s32 0, %v126
  %v128 = vrot.slane %v123, %v127
  %v130 = vadd.f32 %v91, %v128
  %v131 = vadd.f32 %v92, %v128
  %v132 = vadd.f32 %v93, %v128
  %v133 = vadd.f32 %v94, %v128
  %v134 = vadd.f32 %v95, %v128
  %v135 = vadd.f32 %v96, %v128
  %v136 = vadd.f32 %v97, %v128
  %v137 = vadd.f32 %v98, %v128
  %v138 = vadd.f32 %v99, %v128
  %v139 = vadd.f32 %v100, %v128
  %v140 = vadd.f32 %v101, %v128
  %v141 = vadd.f32 %v102, %v128
  %v142 = vadd.f32 %v103, %v128
  %v143 = vadd.f32 %v104, %v128
  %v144 = vadd.f32 %v105, %v128
  %v145 = vadd.f32 %v106, %v128
  %v146 = vadd.f32 %v107, %v128
  %v147 = vadd.f32 %v108, %v128
  %v148 = vadd.f32 %v109, %v128
  %v149 = vadd.f32 %v110, %v128
  %v150 = vadd.f32 %v111, %v128
  %v151 = vadd.f32 %v112, %v128
  %v152 = vadd.f32 %v113, %v128
  %v153 = vadd.f32 %v114, %v128
  %v154 = vadd.f32 %v115, %v128
  %v155 = vadd.f32 %v116, %v128
  %v156 = vadd.f32 %v117, %v128
  %v157 = vadd.f32 %v118, %v128
  %v158 = vadd.f32 %v119, %v128
  %v159 = vadd.f32 %v120, %v128
  %v160 = vadd.f32 %v121, %v128
  %v161 = vadd.f32 %v122, %v128
  %v162 = vmax.f32 %v130, 0.0
  %v163 = vmax.f32 %v131, 0.0
  %v164 = vmax.f32 %v132, 0.0
  %v165 = vmax.f32 %v133, 0.0
  %v166 = vmax.f32 %v134, 0.0
  %v167 = vmax.f32 %v135, 0.0
  %v168 = vmax.f32 %v136, 0.0
  %v169 = vmax.f32 %v137, 0.0
  %v170 = vmax.f32 %v138, 0.0
  %v171 = vmax.f32 %v139, 0.0
  %v172 = vmax.f32 %v140, 0.0
  %v173 = vmax.f32 %v141, 0.0
  %v174 = vmax.f32 %v142, 0.0
  %v175 = vmax.f32 %v143, 0.0
  %v176 = vmax.f32 %v144, 0.0
  %v177 = vmax.f32 %v145, 0.0
  %v178 = vmax.f32 %v146, 0.0
  %v179 = vmax.f32 %v147, 0.0
  %v180 = vmax.f32 %v148, 0.0
  %v181 = vmax.f32 %v149, 0.0
  %v182 = vmax.f32 %v150, 0.0
  %v183 = vmax.f32 %v151, 0.0
  %v184 = vmax.f32 %v152, 0.0
  %v185 = vmax.f32 %v153, 0.0
  %v186 = vmax.f32 %v154, 0.0
  %v187 = vmax.f32 %v155, 0.0
  %v188 = vmax.f32 %v156, 0.0
  %v189 = vmax.f32 %v157, 0.0
  %v190 = vmax.f32 %v158, 0.0
  %v191 = vmax.f32 %v159, 0.0
  %v192 = vmax.f32 %v160, 0.0
  %v193 = vmax.f32 %v161, 0.0
  %v194 = vpack.c.bf16 %v163, %v162
  %v195 = vpack.c.bf16 %v165, %v164
  %v196 = vpack.c.bf16 %v167, %v166
  %v197 = vpack.c.bf16 %v169, %v168
  %v198 = vpack.c.bf16 %v171, %v170
  %v199 = vpack.c.bf16 %v173, %v172
  %v200 = vpack.c.bf16 %v175, %v174
  %v201 = vpack.c.bf16 %v177, %v176
  %v202 = vpack.c.bf16 %v179, %v178
  %v203 = vpack.c.bf16 %v181, %v180
  %v204 = vpack.c.bf16 %v183, %v182
  %v205 = vpack.c.bf16 %v185, %v184
  %v206 = vpack.c.bf16 %v187, %v186
  %v207 = vpack.c.bf16 %v189, %v188
  %v208 = vpack.c.bf16 %v191, %v190
  %v209 = vpack.c.bf16 %v193, %v192
  %v210 = vld [vmem:[%s1] sm:$0xf]
  %v211 = vld [vmem:[%s1 + $0x4] sm:$0xf]
  %v212 = vld [vmem:[%s1 + $0x8] sm:$0xf]
  %v213 = vld [vmem:[%s1 + $0xc] sm:$0xf]
  %v214 = vld [vmem:[%s1 + $0x10] sm:$0xf]
  %v215 = vld [vmem:[%s1 + $0x14] sm:$0xf]
  %v216 = vld [vmem:[%s1 + $0x18] sm:$0xf]
  %v217 = vld [vmem:[%s1 + $0x1c] sm:$0xf]
  %v218 = vld [vmem:[%s1 + $0x20] sm:$0xf]
  %v219 = vld [vmem:[%s1 + $0x24] sm:$0xf]
  %v220 = vld [vmem:[%s1 + $0x28] sm:$0xf]
  %v221 = vld [vmem:[%s1 + $0x2c] sm:$0xf]
  %v222 = vld [vmem:[%s1 + $0x30] sm:$0xf]
  %v223 = vld [vmem:[%s1 + $0x34] sm:$0xf]
  %v224 = vld [vmem:[%s1 + $0x38] sm:$0xf]
  %v225 = vld [vmem:[%s1 + $0x3c] sm:$0xf]
  %v242 = vunpack.c.l.b16 %v210
  %v243 = vunpack.c.l.b16 %v211
  %v244 = vunpack.c.l.b16 %v212
  %v245 = vunpack.c.l.b16 %v213
  %v246 = vunpack.c.l.b16 %v214
  %v247 = vunpack.c.l.b16 %v215
  %v248 = vunpack.c.l.b16 %v216
  %v249 = vunpack.c.l.b16 %v217
  %v250 = vunpack.c.l.b16 %v218
  %v251 = vunpack.c.l.b16 %v219
  %v252 = vunpack.c.l.b16 %v220
  %v253 = vunpack.c.l.b16 %v221
  %v254 = vunpack.c.l.b16 %v222
  %v255 = vunpack.c.l.b16 %v223
  %v256 = vunpack.c.l.b16 %v224
  %v257 = vunpack.c.l.b16 %v225
  %v258 = vpack.c.b16 %v243, %v242
  %v259 = vpack.c.b16 %v245, %v244
  %v260 = vpack.c.b16 %v247, %v246
  %v261 = vpack.c.b16 %v249, %v248
  %v262 = vpack.c.b16 %v251, %v250
  %v263 = vpack.c.b16 %v253, %v252
  %v264 = vpack.c.b16 %v255, %v254
  %v265 = vpack.c.b16 %v257, %v256
  %274 = vmatprep.subr.bf16.mxu0 0
  %275 = vmatpush1.bf16.msra.mxu0 %v258
  %276 = vmatprep.subr.bf16.mxu0 0
  %277 = vmatpush1.bf16.msra.mxu0 %v259
  %278 = vmatprep.subr.bf16.mxu0 0
  %279 = vmatpush1.bf16.msra.mxu0 %v260
  %280 = vmatprep.subr.bf16.mxu0 0
  %281 = vmatpush1.bf16.msra.mxu0 %v261
  %282 = vmatprep.subr.bf16.mxu0 0
  %283 = vmatpush1.bf16.msra.mxu0 %v262
  %284 = vmatprep.subr.bf16.mxu0 0
  %285 = vmatpush1.bf16.msra.mxu0 %v263
  %286 = vmatprep.subr.bf16.mxu0 0
  %287 = vmatpush1.bf16.msra.mxu0 %v264
  %288 = vmatprep.subr.bf16.mxu0 0
  %289 = vmatpush1.bf16.msra.mxu0 %v265
  %290 = vmatprep.subr.bf16.mxu0 0
  %291 = vmatpush1.bf16.msra.mxu0 0
  %292 = vmatprep.subr.bf16.mxu0 0
  %293 = vmatpush1.bf16.msra.mxu0 0
  %294 = vmatprep.subr.bf16.mxu0 0
  %295 = vmatpush1.bf16.msra.mxu0 0
  %296 = vmatprep.subr.bf16.mxu0 0
  %297 = vmatpush1.bf16.msra.mxu0 0
  %298 = vmatprep.subr.bf16.mxu0 0
  %299 = vmatpush1.bf16.msra.mxu0 0
  %300 = vmatprep.subr.bf16.mxu0 0
  %301 = vmatpush1.bf16.msra.mxu0 0
  %302 = vmatprep.subr.bf16.mxu0 0
  %303 = vmatpush1.bf16.msra.mxu0 0
  %304 = vmatprep.subr.bf16.mxu0 0
  %305 = vmatpush1.bf16.msra.mxu0 0
  %306 = vmatprep.mubr.bf16.mxu0 0
  %307 = vmatmul.mubr.bf16.gmra.mrb[0].mxu0 %v194
  %v308 = vpop.f32.mrb[0].mxu0
  %v309 = vadd.f32 0.0, %v308
  %v310 = vpop.f32.mrb[0].mxu0
  %v311 = vpop.f32.mrb[0].mxu0
  %v312 = vadd.f32 0.0, %v311
  %v313 = vpop.f32.mrb[0].mxu0
  %314 = vmatprep.mubr.bf16.mxu0 0
  %315 = vmatmul.mubr.bf16.gmra.mrb[0].mxu0 %v195
  %v316 = vpop.f32.mrb[0].mxu0
  %v317 = vadd.f32 0.0, %v316
  %v318 = vpop.f32.mrb[0].mxu0
  %v319 = vpop.f32.mrb[0].mxu0
  %v320 = vadd.f32 0.0, %v319
  %v321 = vpop.f32.mrb[0].mxu0
  %322 = vmatprep.mubr.bf16.mxu0 0
  %323 = vmatmul.mubr.bf16.gmra.mrb[0].mxu0 %v196
  %v324 = vpop.f32.mrb[0].mxu0
  %v325 = vadd.f32 0.0, %v324
  %v326 = vpop.f32.mrb[0].mxu0
  %v327 = vpop.f32.mrb[0].mxu0
  %v328 = vadd.f32 0.0, %v327
  %v329 = vpop.f32.mrb[0].mxu0
  %330 = vmatprep.mubr.bf16.mxu0 0
  %331 = vmatmul.mubr.bf16.gmra.mrb[0].mxu0 %v197
  %v332 = vpop.f32.mrb[0].mxu0
  %v333 = vadd.f32 0.0, %v332
  %v334 = vpop.f32.mrb[0].mxu0
  %v335 = vpop.f32.mrb[0].mxu0
  %v336 = vadd.f32 0.0, %v335
  %v337 = vpop.f32.mrb[0].mxu0
  %338 = vmatprep.mubr.bf16.mxu0 0
  %339 = vmatmul.mubr.bf16.gmra.mrb[0].mxu0 %v198
  %v340 = vpop.f32.mrb[0].mxu0
  %v341 = vadd.f32 0.0, %v340
  %v342 = vpop.f32.mrb[0].mxu0
  %v343 = vpop.f32.mrb[0].mxu0
  %v344 = vadd.f32 0.0, %v343
  %v345 = vpop.f32.mrb[0].mxu0
  %346 = vmatprep.mubr.bf16.mxu0 0
  %347 = vmatmul.mubr.bf16.gmra.mrb[0].mxu0 %v199
  %v348 = vpop.f32.mrb[0].mxu0
  %v349 = vadd.f32 0.0, %v348
  %v350 = vpop.f32.mrb[0].mxu0
  %v351 = vpop.f32.mrb[0].mxu0
  %v352 = vadd.f32 0.0, %v351
  %v353 = vpop.f32.mrb[0].mxu0
  %354 = vmatprep.mubr.bf16.mxu0 0
  %355 = vmatmul.mubr.bf16.gmra.mrb[0].mxu0 %v200
  %v356 = vpop.f32.mrb[0].mxu0
  %v357 = vadd.f32 0.0, %v356
  %v358 = vpop.f32.mrb[0].mxu0
  %v359 = vpop.f32.mrb[0].mxu0
  %v360 = vadd.f32 0.0, %v359
  %v361 = vpop.f32.mrb[0].mxu0
  %362 = vmatprep.mubr.bf16.mxu0 0
  %363 = vmatmul.mubr.bf16.gmra.mrb[0].mxu0 %v201
  %v364 = vpop.f32.mrb[0].mxu0
  %v365 = vadd.f32 0.0, %v364
  %v366 = vpop.f32.mrb[0].mxu0
  %v367 = vpop.f32.mrb[0].mxu0
  %v368 = vadd.f32 0.0, %v367
  %v369 = vpop.f32.mrb[0].mxu0
  %370 = vmatprep.mubr.bf16.mxu0 0
  %371 = vmatmul.mubr.bf16.gmra.mrb[0].mxu0 %v202
  %v372 = vpop.f32.mrb[0].mxu0
  %v373 = vadd.f32 0.0, %v372
  %v374 = vpop.f32.mrb[0].mxu0
  %v375 = vpop.f32.mrb[0].mxu0
  %v376 = vadd.f32 0.0, %v375
  %v377 = vpop.f32.mrb[0].mxu0
  %378 = vmatprep.mubr.bf16.mxu0 0
  %379 = vmatmul.mubr.bf16.gmra.mrb[0].mxu0 %v203
  %v380 = vpop.f32.mrb[0].mxu0
  %v381 = vadd.f32 0.0, %v380
  %v382 = vpop.f32.mrb[0].mxu0
  %v383 = vpop.f32.mrb[0].mxu0
  %v384 = vadd.f32 0.0, %v383
  %v385 = vpop.f32.mrb[0].mxu0
  %386 = vmatprep.mubr.bf16.mxu0 0
  %387 = vmatmul.mubr.bf16.gmra.mrb[0].mxu0 %v204
  %v388 = vpop.f32.mrb[0].mxu0
  %v389 = vadd.f32 0.0, %v388
  %v390 = vpop.f32.mrb[0].mxu0
  %v391 = vpop.f32.mrb[0].mxu0
  %v392 = vadd.f32 0.0, %v391
  %v393 = vpop.f32.mrb[0].mxu0
  %394 = vmatprep.mubr.bf16.mxu0 0
  %395 = vmatmul.mubr.bf16.gmra.mrb[0].mxu0 %v205
  %v396 = vpop.f32.mrb[0].mxu0
  %v397 = vadd.f32 0.0, %v396
  %v398 = vpop.f32.mrb[0].mxu0
  %v399 = vpop.f32.mrb[0].mxu0
  %v400 = vadd.f32 0.0, %v399
  %v401 = vpop.f32.mrb[0].mxu0
  %402 = vmatprep.mubr.bf16.mxu0 0
  %403 = vmatmul.mubr.bf16.gmra.mrb[0].mxu0 %v206
  %v404 = vpop.f32.mrb[0].mxu0
  %v405 = vadd.f32 0.0, %v404
  %v406 = vpop.f32.mrb[0].mxu0
  %v407 = vpop.f32.mrb[0].mxu0
  %v408 = vadd.f32 0.0, %v407
  %v409 = vpop.f32.mrb[0].mxu0
  %410 = vmatprep.mubr.bf16.mxu0 0
  %411 = vmatmul.mubr.bf16.gmra.mrb[0].mxu0 %v207
  %v412 = vpop.f32.mrb[0].mxu0
  %v413 = vadd.f32 0.0, %v412
  %v414 = vpop.f32.mrb[0].mxu0
  %v415 = vpop.f32.mrb[0].mxu0
  %v416 = vadd.f32 0.0, %v415
  %v417 = vpop.f32.mrb[0].mxu0
  %418 = vmatprep.mubr.bf16.mxu0 0
  %419 = vmatmul.mubr.bf16.gmra.mrb[0].mxu0 %v208
  %v420 = vpop.f32.mrb[0].mxu0
  %v421 = vadd.f32 0.0, %v420
  %v422 = vpop.f32.mrb[0].mxu0
  %v423 = vpop.f32.mrb[0].mxu0
  %v424 = vadd.f32 0.0, %v423
  %v425 = vpop.f32.mrb[0].mxu0
  %426 = vmatprep.mubr.bf16.mxu0 0
  %427 = vmatmul.mubr.bf16.gmra.mrb[0].mxu0 %v209
  %v428 = vpop.f32.mrb[0].mxu0
  %v429 = vadd.f32 0.0, %v428
  %v430 = vpop.f32.mrb[0].mxu0
  %v431 = vpop.f32.mrb[0].mxu0
  %v432 = vadd.f32 0.0, %v431
  %v433 = vpop.f32.mrb[0].mxu0
  %434 = vdwg.mxu0
  %v435 = vpack.c.bf16 %v312, %v309
  %v436 = vpack.c.bf16 %v320, %v317
  %v437 = vpack.c.bf16 %v328, %v325
  %v438 = vpack.c.bf16 %v336, %v333
  %v439 = vpack.c.bf16 %v344, %v341
  %v440 = vpack.c.bf16 %v352, %v349
  %v441 = vpack.c.bf16 %v360, %v357
  %v442 = vpack.c.bf16 %v368, %v365
  %v443 = vpack.c.bf16 %v376, %v373
  %v444 = vpack.c.bf16 %v384, %v381
  %v445 = vpack.c.bf16 %v392, %v389
  %v446 = vpack.c.bf16 %v400, %v397
  %v447 = vpack.c.bf16 %v408, %v405
  %v448 = vpack.c.bf16 %v416, %v413
  %v449 = vpack.c.bf16 %v424, %v421
  %v450 = vpack.c.bf16 %v432, %v429
  %v467 = vunpack.c.l.b16 %v435
  %v468 = vunpack.c.h.b16 %v435
  %v469 = vunpack.c.l.b16 %v436
  %v470 = vunpack.c.h.b16 %v436
  %v471 = vunpack.c.l.b16 %v437
  %v472 = vunpack.c.h.b16 %v437
  %v473 = vunpack.c.l.b16 %v438
  %v474 = vunpack.c.h.b16 %v438
  %v475 = vunpack.c.l.b16 %v439
  %v476 = vunpack.c.h.b16 %v439
  %v477 = vunpack.c.l.b16 %v440
  %v478 = vunpack.c.h.b16 %v440
  %v479 = vunpack.c.l.b16 %v441
  %v480 = vunpack.c.h.b16 %v441
  %v481 = vunpack.c.l.b16 %v442
  %v482 = vunpack.c.h.b16 %v442
  %v483 = vunpack.c.l.b16 %v443
  %v484 = vunpack.c.h.b16 %v443
  %v485 = vunpack.c.l.b16 %v444
  %v486 = vunpack.c.h.b16 %v444
  %v487 = vunpack.c.l.b16 %v445
  %v488 = vunpack.c.h.b16 %v445
  %v489 = vunpack.c.l.b16 %v446
  %v490 = vunpack.c.h.b16 %v446
  %v491 = vunpack.c.l.b16 %v447
  %v492 = vunpack.c.h.b16 %v447
  %v493 = vunpack.c.l.b16 %v448
  %v494 = vunpack.c.h.b16 %v448
  %v495 = vunpack.c.l.b16 %v449
  %v496 = vunpack.c.h.b16 %v449
  %v497 = vunpack.c.l.b16 %v450
  %v498 = vunpack.c.h.b16 %v450
  %v499 = vpack.c.b16 %v467, %v467
  %v500 = vpack.c.b16 %v468, %v468
  %v501 = vpack.c.b16 %v469, %v469
  %v502 = vpack.c.b16 %v470, %v470
  %v503 = vpack.c.b16 %v471, %v471
  %v504 = vpack.c.b16 %v472, %v472
  %v505 = vpack.c.b16 %v473, %v473
  %v506 = vpack.c.b16 %v474, %v474
  %v507 = vpack.c.b16 %v475, %v475
  %v508 = vpack.c.b16 %v476, %v476
  %v509 = vpack.c.b16 %v477, %v477
  %v510 = vpack.c.b16 %v478, %v478
  %v511 = vpack.c.b16 %v479, %v479
  %v512 = vpack.c.b16 %v480, %v480
  %v513 = vpack.c.b16 %v481, %v481
  %v514 = vpack.c.b16 %v482, %v482
  %v515 = vpack.c.b16 %v483, %v483
  %v516 = vpack.c.b16 %v484, %v484
  %v517 = vpack.c.b16 %v485, %v485
  %v518 = vpack.c.b16 %v486, %v486
  %v519 = vpack.c.b16 %v487, %v487
  %v520 = vpack.c.b16 %v488, %v488
  %v521 = vpack.c.b16 %v489, %v489
  %v522 = vpack.c.b16 %v490, %v490
  %v523 = vpack.c.b16 %v491, %v491
  %v524 = vpack.c.b16 %v492, %v492
  %v525 = vpack.c.b16 %v493, %v493
  %v526 = vpack.c.b16 %v494, %v494
  %v527 = vpack.c.b16 %v495, %v495
  %v528 = vpack.c.b16 %v496, %v496
  %v529 = vpack.c.b16 %v497, %v497
  %v530 = vpack.c.b16 %v498, %v498
  %563 = vst [vmem:[%s4] sm:$0xf] %v499
  %564 = vst [vmem:[%s4 + $0x4] sm:$0xf] %v500
  %565 = vst [vmem:[%s4 + $0x8] sm:$0xf] %v501
  %566 = vst [vmem:[%s4 + $0xc] sm:$0xf] %v502
  %567 = vst [vmem:[%s4 + $0x10] sm:$0xf] %v503
  %568 = vst [vmem:[%s4 + $0x14] sm:$0xf] %v504
  %569 = vst [vmem:[%s4 + $0x18] sm:$0xf] %v505
  %570 = vst [vmem:[%s4 + $0x1c] sm:$0xf] %v506
  %571 = vst [vmem:[%s4 + $0x20] sm:$0xf] %v507
  %572 = vst [vmem:[%s4 + $0x24] sm:$0xf] %v508
  %573 = vst [vmem:[%s4 + $0x28] sm:$0xf] %v509
  %574 = vst [vmem:[%s4 + $0x2c] sm:$0xf] %v510
  %575 = vst [vmem:[%s4 + $0x30] sm:$0xf] %v511
  %576 = vst [vmem:[%s4 + $0x34] sm:$0xf] %v512
  %577 = vst [vmem:[%s4 + $0x38] sm:$0xf] %v513
  %578 = vst [vmem:[%s4 + $0x3c] sm:$0xf] %v514
  %579 = vst [vmem:[%s4 + $0x40] sm:$0xf] %v515
  %580 = vst [vmem:[%s4 + $0x44] sm:$0xf] %v516
  %581 = vst [vmem:[%s4 + $0x48] sm:$0xf] %v517
  %582 = vst [vmem:[%s4 + $0x4c] sm:$0xf] %v518
  %583 = vst [vmem:[%s4 + $0x50] sm:$0xf] %v519
  %584 = vst [vmem:[%s4 + $0x54] sm:$0xf] %v520
  %585 = vst [vmem:[%s4 + $0x58] sm:$0xf] %v521
  %586 = vst [vmem:[%s4 + $0x5c] sm:$0xf] %v522
  %587 = vst [vmem:[%s4 + $0x60] sm:$0xf] %v523
  %588 = vst [vmem:[%s4 + $0x64] sm:$0xf] %v524
  %589 = vst [vmem:[%s4 + $0x68] sm:$0xf] %v525
  %590 = vst [vmem:[%s4 + $0x6c] sm:$0xf] %v526
  %591 = vst [vmem:[%s4 + $0x70] sm:$0xf] %v527
  %592 = vst [vmem:[%s4 + $0x74] sm:$0xf] %v528
  %593 = vst [vmem:[%s4 + $0x78] sm:$0xf] %v529
  %594 = vst [vmem:[%s4 + $0x7c] sm:$0xf] %v530
  %595 = vmatprep.subr.mxu0 0.0
  %596 = vmatpush1.msra.mxu0 %v309
  %597 = vmatprep.subr.mxu0 0.0
  %598 = vmatpush1.msra.mxu0 %v312
  %599 = vmatprep.subr.mxu0 0.0
  %600 = vmatpush1.msra.mxu0 %v317
  %601 = vmatprep.subr.mxu0 0.0
  %602 = vmatpush1.msra.mxu0 %v320
  %603 = vmatprep.subr.mxu0 0.0
  %604 = vmatpush1.msra.mxu0 %v325
  %605 = vmatprep.subr.mxu0 0.0
  %606 = vmatpush1.msra.mxu0 %v328
  %607 = vmatprep.subr.mxu0 0.0
  %608 = vmatpush1.msra.mxu0 %v333
  %609 = vmatprep.subr.mxu0 0.0
  %610 = vmatpush1.msra.mxu0 %v336
  %611 = vmatprep.subr.mxu0 0.0
  %612 = vmatpush1.msra.mxu0 %v341
  %613 = vmatprep.subr.mxu0 0.0
  %614 = vmatpush1.msra.mxu0 %v344
  %615 = vmatprep.subr.mxu0 0.0
  %616 = vmatpush1.msra.mxu0 %v349
  %617 = vmatprep.subr.mxu0 0.0
  %618 = vmatpush1.msra.mxu0 %v352
  %619 = vmatprep.subr.mxu0 0.0
  %620 = vmatpush1.msra.mxu0 %v357
  %621 = vmatprep.subr.mxu0 0.0
  %622 = vmatpush1.msra.mxu0 %v360
  %623 = vmatprep.subr.mxu0 0.0
  %624 = vmatpush1.msra.mxu0 %v365
  %625 = vmatprep.subr.mxu0 0.0
  %626 = vmatpush1.msra.mxu0 %v368
  %627 = vmatprep.subr.mxu0 0.0
  %628 = vmatpush1.msra.mxu0 %v373
  %629 = vmatprep.subr.mxu0 0.0
  %630 = vmatpush1.msra.mxu0 %v376
  %631 = vmatprep.subr.mxu0 0.0
  %632 = vmatpush1.msra.mxu0 %v381
  %633 = vmatprep.subr.mxu0 0.0
  %634 = vmatpush1.msra.mxu0 %v384
  %635 = vmatprep.subr.mxu0 0.0
  %636 = vmatpush1.msra.mxu0 %v389
  %637 = vmatprep.subr.mxu0 0.0
  %638 = vmatpush1.msra.mxu0 %v392
  %639 = vmatprep.subr.mxu0 0.0
  %640 = vmatpush1.msra.mxu0 %v397
  %641 = vmatprep.subr.mxu0 0.0
  %642 = vmatpush1.msra.mxu0 %v400
  %643 = vmatprep.subr.mxu0 0.0
  %644 = vmatpush1.msra.mxu0 %v405
  %645 = vmatprep.subr.mxu0 0.0
  %646 = vmatpush1.msra.mxu0 %v408
  %647 = vmatprep.subr.mxu0 0.0
  %648 = vmatpush1.msra.mxu0 %v413
  %649 = vmatprep.subr.mxu0 0.0
  %650 = vmatpush1.msra.mxu0 %v416
  %651 = vmatprep.subr.mxu0 0.0
  %652 = vmatpush1.msra.mxu0 %v421
  %653 = vmatprep.subr.mxu0 0.0
  %654 = vmatpush1.msra.mxu0 %v424
  %655 = vmatprep.subr.mxu0 0.0
  %656 = vmatpush1.msra.mxu0 %v429
  %657 = vmatprep.subr.mxu0 0.0
  %658 = vmatpush1.msra.mxu0 %v432
  %659 = vmatprep.mubr.f32.mxu0 1.0
  %660 = vmatmul.mubr.f32.gmra.mrb[0].mxu0 1.0
  %v661 = vpop.f32.mrb[0].mxu0
  %v662 = vadd.f32 0.0, %v661
  %v663 = vpop.f32.mrb[0].mxu0
  %664 = vdwg.mxu0
  %665 = vst [vmem:[%s5] sm:$0x1] %v662
  %v666 = vmul.f32 %v309, %v309
  %v667 = vmul.f32 %v312, %v312
  %v668 = vmul.f32 %v317, %v317
  %v669 = vmul.f32 %v320, %v320
  %v670 = vmul.f32 %v325, %v325
  %v671 = vmul.f32 %v328, %v328
  %v672 = vmul.f32 %v333, %v333
  %v673 = vmul.f32 %v336, %v336
  %v674 = vmul.f32 %v341, %v341
  %v675 = vmul.f32 %v344, %v344
  %v676 = vmul.f32 %v349, %v349
  %v677 = vmul.f32 %v352, %v352
  %v678 = vmul.f32 %v357, %v357
  %v679 = vmul.f32 %v360, %v360
  %v680 = vmul.f32 %v365, %v365
  %v681 = vmul.f32 %v368, %v368
  %v682 = vmul.f32 %v373, %v373
  %v683 = vmul.f32 %v376, %v376
  %v684 = vmul.f32 %v381, %v381
  %v685 = vmul.f32 %v384, %v384
  %v686 = vmul.f32 %v389, %v389
  %v687 = vmul.f32 %v392, %v392
  %v688 = vmul.f32 %v397, %v397
  %v689 = vmul.f32 %v400, %v400
  %v690 = vmul.f32 %v405, %v405
  %v691 = vmul.f32 %v408, %v408
  %v692 = vmul.f32 %v413, %v413
  %v693 = vmul.f32 %v416, %v416
  %v694 = vmul.f32 %v421, %v421
  %v695 = vmul.f32 %v424, %v424
  %v696 = vmul.f32 %v429, %v429
  %v697 = vmul.f32 %v432, %v432
  %698 = vmatprep.subr.mxu0 0.0
  %699 = vmatpush1.msra.mxu0 %v666
  %700 = vmatprep.subr.mxu0 0.0
  %701 = vmatpush1.msra.mxu0 %v667
  %702 = vmatprep.subr.mxu0 0.0
  %703 = vmatpush1.msra.mxu0 %v668
  %704 = vmatprep.subr.mxu0 0.0
  %705 = vmatpush1.msra.mxu0 %v669
  %706 = vmatprep.subr.mxu0 0.0
  %707 = vmatpush1.msra.mxu0 %v670
  %708 = vmatprep.subr.mxu0 0.0
  %709 = vmatpush1.msra.mxu0 %v671
  %710 = vmatprep.subr.mxu0 0.0
  %711 = vmatpush1.msra.mxu0 %v672
  %712 = vmatprep.subr.mxu0 0.0
  %713 = vmatpush1.msra.mxu0 %v673
  %714 = vmatprep.subr.mxu0 0.0
  %715 = vmatpush1.msra.mxu0 %v674
  %716 = vmatprep.subr.mxu0 0.0
  %717 = vmatpush1.msra.mxu0 %v675
  %718 = vmatprep.subr.mxu0 0.0
  %719 = vmatpush1.msra.mxu0 %v676
  %720 = vmatprep.subr.mxu0 0.0
  %721 = vmatpush1.msra.mxu0 %v677
  %722 = vmatprep.subr.mxu0 0.0
  %723 = vmatpush1.msra.mxu0 %v678
  %724 = vmatprep.subr.mxu0 0.0
  %725 = vmatpush1.msra.mxu0 %v679
  %726 = vmatprep.subr.mxu0 0.0
  %727 = vmatpush1.msra.mxu0 %v680
  %728 = vmatprep.subr.mxu0 0.0
  %729 = vmatpush1.msra.mxu0 %v681
  %730 = vmatprep.subr.mxu0 0.0
  %731 = vmatpush1.msra.mxu0 %v682
  %732 = vmatprep.subr.mxu0 0.0
  %733 = vmatpush1.msra.mxu0 %v683
  %734 = vmatprep.subr.mxu0 0.0
  %735 = vmatpush1.msra.mxu0 %v684
  %736 = vmatprep.subr.mxu0 0.0
  %737 = vmatpush1.msra.mxu0 %v685
  %738 = vmatprep.subr.mxu0 0.0
  %739 = vmatpush1.msra.mxu0 %v686
  %740 = vmatprep.subr.mxu0 0.0
  %741 = vmatpush1.msra.mxu0 %v687
  %742 = vmatprep.subr.mxu0 0.0
  %743 = vmatpush1.msra.mxu0 %v688
  %744 = vmatprep.subr.mxu0 0.0
  %745 = vmatpush1.msra.mxu0 %v689
  %746 = vmatprep.subr.mxu0 0.0
  %747 = vmatpush1.msra.mxu0 %v690
  %748 = vmatprep.subr.mxu0 0.0
  %749 = vmatpush1.msra.mxu0 %v691
  %750 = vmatprep.subr.mxu0 0.0
  %751 = vmatpush1.msra.mxu0 %v692
  %752 = vmatprep.subr.mxu0 0.0
  %753 = vmatpush1.msra.mxu0 %v693
  %754 = vmatprep.subr.mxu0 0.0
  %755 = vmatpush1.msra.mxu0 %v694
  %756 = vmatprep.subr.mxu0 0.0
  %757 = vmatpush1.msra.mxu0 %v695
  %758 = vmatprep.subr.mxu0 0.0
  %759 = vmatpush1.msra.mxu0 %v696
  %760 = vmatprep.subr.mxu0 0.0
  %761 = vmatpush1.msra.mxu0 %v697
  %762 = vmatprep.mubr.f32.mxu0 1.0
  %763 = vmatmul.mubr.f32.gmra.mrb[0].mxu0 1.0
  %v764 = vpop.f32.mrb[0].mxu0
  %v765 = vadd.f32 0.0, %v764
  %v766 = vpop.f32.mrb[0].mxu0
  %767 = vdwg.mxu0
  %768 = vst [vmem:[%s5 + $0x1] sm:$0x1] %v765
  // Predicated region
  $region18: #{_lambda_.11} parent=0 // pred_check
    _
  $region19: #{_lambda_.11} parent=0 // pred_check_branch
    %770 = sbr.rel (0) target = $region21
  $region20: #{_lambda_.11} parent=0 // pred_region
    _
  $region21: #{_lambda_.11} parent=0 // pred_fallthru
    _
  // Predicated region
  $region22: #{_lambda_.11} parent=0 // pred_check
    _
  $region23: #{_lambda_.11} parent=0 // pred_check_branch
    %772 = sbr.rel (0) target = $region25
  $region24: #{_lambda_.11} parent=0 // pred_region
    _
  $region25: #{_lambda_.11} parent=0 // pred_fallthru
    _
  // Predicated region
  $region26: #{_lambda_.11} parent=0 // pred_check
    _
  $region27: #{_lambda_.11} parent=0 // pred_check_branch
    %774 = sbr.rel (0) target = $region29
  $region28: #{_lambda_.11} parent=0 // pred_region
    _
  $region29: #{_lambda_.11} parent=0 // pred_fallthru
    _
  // Predicated region
  $region30: #{_lambda_.11} parent=0 // pred_check
    _
  $region31: #{_lambda_.11} parent=0 // pred_check_branch
    %776 = sbr.rel (0) target = $region33
  $region32: #{_lambda_.11} parent=0 // pred_region
    _
  $region33: #{_lambda_.11} parent=0 // pred_fallthru
    _

// kernel: _lambda_.10
$region0: #{_lambda_.10}
  #allocation0 [shape = 'u32[]', space=smem, size = 0x4, offset = 0x4, fixed_abs, tag = 'smem constant byte address 0x4 - core index']
  #allocation1 [shape = 'u32[144,128]{1,0:T(1,128)}', space=vmem, size = 0x12000, scoped, tag = 'internal scratch']
  %s0 = inlined_call_operand.vmem [shape: f32[1,256,3], index: 0, kind: input, shape index: {}]
  %s1 = inlined_call_operand.vmem [shape: bf16[1,3,128], index: 1, kind: input, shape index: {}]
  %s2 = inlined_call_operand.vmem [shape: f32[1,3], index: 2, kind: input, shape index: {}]
  %s3 = inlined_call_operand.vmem [shape: f32[1,3], index: 3, kind: input, shape index: {}]
  %s4 = inlined_call_operand.vmem [shape: bf16[1,256,128], index: 4, kind: output, shape index: {0}]
  %s5 = inlined_call_operand.vmem [shape: f32[1,1,2,128], index: 5, kind: output, shape index: {1}]
  %6 = xla_tuple %s4, %s5
  %s7 = sld [smem:[#allocation0]]
  $region34: #{_lambda_.10} parent=0
    _
  %s9 = ssub.s32 1, %s7
  %s10 = scalar_select 0, %s9, %s7
  // Predicated region
  $region2: #{_lambda_.10} parent=0 // pred_check
    _
  $region3: #{_lambda_.10} parent=0 // pred_check_branch
    %12 = sbr.rel (0) target = $region5
  $region4: #{_lambda_.10} parent=0 // pred_region
    _
  $region5: #{_lambda_.10} parent=0 // pred_fallthru
    _
  // Predicated region
  $region6: #{_lambda_.10} parent=0 // pred_check
    _
  $region7: #{_lambda_.10} parent=0 // pred_check_branch
    %14 = sbr.rel (0) target = $region9
  $region8: #{_lambda_.10} parent=0 // pred_region
    _
  $region9: #{_lambda_.10} parent=0 // pred_fallthru
    _
  // Predicated region
  $region10: #{_lambda_.10} parent=0 // pred_check
    _
  $region11: #{_lambda_.10} parent=0 // pred_check_branch
    %16 = sbr.rel (0) target = $region13
  $region12: #{_lambda_.10} parent=0 // pred_region
    _
  $region13: #{_lambda_.10} parent=0 // pred_fallthru
    _
  // Predicated region
  $region14: #{_lambda_.10} parent=0 // pred_check
    _
  $region15: #{_lambda_.10} parent=0 // pred_check_branch
    %18 = sbr.rel (0) target = $region17
  $region16: #{_lambda_.10} parent=0 // pred_region
    _
  $region17: #{_lambda_.10} parent=0 // pred_fallthru
    _
  %v20 = vld [vmem:[%s0] sm:$0xff]
  %v21 = vld [vmem:[%s0 + $0x8] sm:$0xff]
  %v22 = vld [vmem:[%s0 + $0x10] sm:$0xff]
  %v23 = vld [vmem:[%s0 + $0x18] sm:$0xff]
  %v24 = vld [vmem:[%s0 + $0x20] sm:$0xff]
  %v25 = vld [vmem:[%s0 + $0x28] sm:$0xff]
  %v26 = vld [vmem:[%s0 + $0x30] sm:$0xff]
  %v27 = vld [vmem:[%s0 + $0x38] sm:$0xff]
  %v28 = vld [vmem:[%s0 + $0x40] sm:$0xff]
  %v29 = vld [vmem:[%s0 + $0x48] sm:$0xff]
  %v30 = vld [vmem:[%s0 + $0x50] sm:$0xff]
  %v31 = vld [vmem:[%s0 + $0x58] sm:$0xff]
  %v32 = vld [vmem:[%s0 + $0x60] sm:$0xff]
  %v33 = vld [vmem:[%s0 + $0x68] sm:$0xff]
  %v34 = vld [vmem:[%s0 + $0x70] sm:$0xff]
  %v35 = vld [vmem:[%s0 + $0x78] sm:$0xff]
  %v36 = vld [vmem:[%s0 + $0x80] sm:$0xff]
  %v37 = vld [vmem:[%s0 + $0x88] sm:$0xff]
  %v38 = vld [vmem:[%s0 + $0x90] sm:$0xff]
  %v39 = vld [vmem:[%s0 + $0x98] sm:$0xff]
  %v40 = vld [vmem:[%s0 + $0xa0] sm:$0xff]
  %v41 = vld [vmem:[%s0 + $0xa8] sm:$0xff]
  %v42 = vld [vmem:[%s0 + $0xb0] sm:$0xff]
  %v43 = vld [vmem:[%s0 + $0xb8] sm:$0xff]
  %v44 = vld [vmem:[%s0 + $0xc0] sm:$0xff]
  %v45 = vld [vmem:[%s0 + $0xc8] sm:$0xff]
  %v46 = vld [vmem:[%s0 + $0xd0] sm:$0xff]
  %v47 = vld [vmem:[%s0 + $0xd8] sm:$0xff]
  %v48 = vld [vmem:[%s0 + $0xe0] sm:$0xff]
  %v49 = vld [vmem:[%s0 + $0xe8] sm:$0xff]
  %v50 = vld [vmem:[%s0 + $0xf0] sm:$0xff]
  %v51 = vld [vmem:[%s0 + $0xf8] sm:$0xff]
  %v52 = vpack.c.bf16 %v21, %v20
  %v53 = vpack.c.bf16 %v23, %v22
  %v54 = vpack.c.bf16 %v25, %v24
  %v55 = vpack.c.bf16 %v27, %v26
  %v56 = vpack.c.bf16 %v29, %v28
  %v57 = vpack.c.bf16 %v31, %v30
  %v58 = vpack.c.bf16 %v33, %v32
  %v59 = vpack.c.bf16 %v35, %v34
  %v60 = vpack.c.bf16 %v37, %v36
  %v61 = vpack.c.bf16 %v39, %v38
  %v62 = vpack.c.bf16 %v41, %v40
  %v63 = vpack.c.bf16 %v43, %v42
  %v64 = vpack.c.bf16 %v45, %v44
  %v65 = vpack.c.bf16 %v47, %v46
  %v66 = vpack.c.bf16 %v49, %v48
  %v67 = vpack.c.bf16 %v51, %v50
  %v68 = vld [vmem:[%s1] sm:$0x3]
  %vm69 = vcmask 23552
  %v71 = vsel %vm69, %v52, 0
  %v74 = vsel %vm69, %v53, 0
  %v77 = vsel %vm69, %v54, 0
  %v80 = vsel %vm69, %v55, 0
  %v83 = vsel %vm69, %v56, 0
  %v86 = vsel %vm69, %v57, 0
  %v89 = vsel %vm69, %v58, 0
  %v92 = vsel %vm69, %v59, 0
  %v95 = vsel %vm69, %v60, 0
  %v98 = vsel %vm69, %v61, 0
  %v101 = vsel %vm69, %v62, 0
  %v104 = vsel %vm69, %v63, 0
  %v107 = vsel %vm69, %v64, 0
  %v110 = vsel %vm69, %v65, 0
  %v113 = vsel %vm69, %v66, 0
  %v116 = vsel %vm69, %v67, 0
  %vm118 = vcmask 1040384
  %vm119 = vcmask 1041408
  %v120 = vsel %vm118, 4294967295, 65535
  %v121 = vsel %vm119, %v120, 0
  %v123 = vand.u32 %v68, %v121
  %125 = vmatprep.subr.bf16.mxu0 0
  %126 = vmatpush1.bf16.msra.mxu0 %v123
  %127 = vmatprep.subr.bf16.mxu0 0
  %128 = vmatpush1.bf16.msra.mxu0 0
  %129 = vmatprep.subr.bf16.mxu0 0
  %130 = vmatpush1.bf16.msra.mxu0 0
  %131 = vmatprep.subr.bf16.mxu0 0
  %132 = vmatpush1.bf16.msra.mxu0 0
  %133 = vmatprep.subr.bf16.mxu0 0
  %134 = vmatpush1.bf16.msra.mxu0 0
  %135 = vmatprep.subr.bf16.mxu0 0
  %136 = vmatpush1.bf16.msra.mxu0 0
  %137 = vmatprep.subr.bf16.mxu0 0
  %138 = vmatpush1.bf16.msra.mxu0 0
  %139 = vmatprep.subr.bf16.mxu0 0
  %140 = vmatpush1.bf16.msra.mxu0 0
  %141 = vmatprep.subr.bf16.mxu0 0
  %142 = vmatpush1.bf16.msra.mxu0 0
  %143 = vmatprep.subr.bf16.mxu0 0
  %144 = vmatpush1.bf16.msra.mxu0 0
  %145 = vmatprep.subr.bf16.mxu0 0
  %146 = vmatpush1.bf16.msra.mxu0 0
  %147 = vmatprep.subr.bf16.mxu0 0
  %148 = vmatpush1.bf16.msra.mxu0 0
  %149 = vmatprep.subr.bf16.mxu0 0
  %150 = vmatpush1.bf16.msra.mxu0 0
  %151 = vmatprep.subr.bf16.mxu0 0
  %152 = vmatpush1.bf16.msra.mxu0 0
  %153 = vmatprep.subr.bf16.mxu0 0
  %154 = vmatpush1.bf16.msra.mxu0 0
  %155 = vmatprep.subr.bf16.mxu0 0
  %156 = vmatpush1.bf16.msra.mxu0 0
  %157 = vmatprep.mubr.bf16.mxu0 0
  %158 = vmatmul.mubr.bf16.gmra.mrb[0].mxu0 %v71
  %v159 = vpop.f32.mrb[0].mxu0
  %v160 = vadd.f32 0.0, %v159
  %v161 = vpop.f32.mrb[0].mxu0
  %v162 = vpop.f32.mrb[0].mxu0
  %v163 = vadd.f32 0.0, %v162
  %v164 = vpop.f32.mrb[0].mxu0
  %165 = vmatprep.mubr.bf16.mxu0 0
  %166 = vmatmul.mubr.bf16.gmra.mrb[0].mxu0 %v74
  %v167 = vpop.f32.mrb[0].mxu0
  %v168 = vadd.f32 0.0, %v167
  %v169 = vpop.f32.mrb[0].mxu0
  %v170 = vpop.f32.mrb[0].mxu0
  %v171 = vadd.f32 0.0, %v170
  %v172 = vpop.f32.mrb[0].mxu0
  %173 = vmatprep.mubr.bf16.mxu0 0
  %174 = vmatmul.mubr.bf16.gmra.mrb[0].mxu0 %v77
  %v175 = vpop.f32.mrb[0].mxu0
  %v176 = vadd.f32 0.0, %v175
  %v177 = vpop.f32.mrb[0].mxu0
  %v178 = vpop.f32.mrb[0].mxu0
  %v179 = vadd.f32 0.0, %v178
  %v180 = vpop.f32.mrb[0].mxu0
  %181 = vmatprep.mubr.bf16.mxu0 0
  %182 = vmatmul.mubr.bf16.gmra.mrb[0].mxu0 %v80
  %v183 = vpop.f32.mrb[0].mxu0
  %v184 = vadd.f32 0.0, %v183
  %v185 = vpop.f32.mrb[0].mxu0
  %v186 = vpop.f32.mrb[0].mxu0
  %v187 = vadd.f32 0.0, %v186
  %v188 = vpop.f32.mrb[0].mxu0
  %189 = vmatprep.mubr.bf16.mxu0 0
  %190 = vmatmul.mubr.bf16.gmra.mrb[0].mxu0 %v83
  %v191 = vpop.f32.mrb[0].mxu0
  %v192 = vadd.f32 0.0, %v191
  %v193 = vpop.f32.mrb[0].mxu0
  %v194 = vpop.f32.mrb[0].mxu0
  %v195 = vadd.f32 0.0, %v194
  %v196 = vpop.f32.mrb[0].mxu0
  %197 = vmatprep.mubr.bf16.mxu0 0
  %198 = vmatmul.mubr.bf16.gmra.mrb[0].mxu0 %v86
  %v199 = vpop.f32.mrb[0].mxu0
  %v200 = vadd.f32 0.0, %v199
  %v201 = vpop.f32.mrb[0].mxu0
  %v202 = vpop.f32.mrb[0].mxu0
  %v203 = vadd.f32 0.0, %v202
  %v204 = vpop.f32.mrb[0].mxu0
  %205 = vmatprep.mubr.bf16.mxu0 0
  %206 = vmatmul.mubr.bf16.gmra.mrb[0].mxu0 %v89
  %v207 = vpop.f32.mrb[0].mxu0
  %v208 = vadd.f32 0.0, %v207
  %v209 = vpop.f32.mrb[0].mxu0
  %v210 = vpop.f32.mrb[0].mxu0
  %v211 = vadd.f32 0.0, %v210
  %v212 = vpop.f32.mrb[0].mxu0
  %213 = vmatprep.mubr.bf16.mxu0 0
  %214 = vmatmul.mubr.bf16.gmra.mrb[0].mxu0 %v92
  %v215 = vpop.f32.mrb[0].mxu0
  %v216 = vadd.f32 0.0, %v215
  %v217 = vpop.f32.mrb[0].mxu0
  %v218 = vpop.f32.mrb[0].mxu0
  %v219 = vadd.f32 0.0, %v218
  %v220 = vpop.f32.mrb[0].mxu0
  %221 = vmatprep.mubr.bf16.mxu0 0
  %222 = vmatmul.mubr.bf16.gmra.mrb[0].mxu0 %v95
  %v223 = vpop.f32.mrb[0].mxu0
  %v224 = vadd.f32 0.0, %v223
  %v225 = vpop.f32.mrb[0].mxu0
  %v226 = vpop.f32.mrb[0].mxu0
  %v227 = vadd.f32 0.0, %v226
  %v228 = vpop.f32.mrb[0].mxu0
  %229 = vmatprep.mubr.bf16.mxu0 0
  %230 = vmatmul.mubr.bf16.gmra.mrb[0].mxu0 %v98
  %v231 = vpop.f32.mrb[0].mxu0
  %v232 = vadd.f32 0.0, %v231
  %v233 = vpop.f32.mrb[0].mxu0
  %v234 = vpop.f32.mrb[0].mxu0
  %v235 = vadd.f32 0.0, %v234
  %v236 = vpop.f32.mrb[0].mxu0
  %237 = vmatprep.mubr.bf16.mxu0 0
  %238 = vmatmul.mubr.bf16.gmra.mrb[0].mxu0 %v101
  %v239 = vpop.f32.mrb[0].mxu0
  %v240 = vadd.f32 0.0, %v239
  %v241 = vpop.f32.mrb[0].mxu0
  %v242 = vpop.f32.mrb[0].mxu0
  %v243 = vadd.f32 0.0, %v242
  %v244 = vpop.f32.mrb[0].mxu0
  %245 = vmatprep.mubr.bf16.mxu0 0
  %246 = vmatmul.mubr.bf16.gmra.mrb[0].mxu0 %v104
  %v247 = vpop.f32.mrb[0].mxu0
  %v248 = vadd.f32 0.0, %v247
  %v249 = vpop.f32.mrb[0].mxu0
  %v250 = vpop.f32.mrb[0].mxu0
  %v251 = vadd.f32 0.0, %v250
  %v252 = vpop.f32.mrb[0].mxu0
  %253 = vmatprep.mubr.bf16.mxu0 0
  %254 = vmatmul.mubr.bf16.gmra.mrb[0].mxu0 %v107
  %v255 = vpop.f32.mrb[0].mxu0
  %v256 = vadd.f32 0.0, %v255
  %v257 = vpop.f32.mrb[0].mxu0
  %v258 = vpop.f32.mrb[0].mxu0
  %v259 = vadd.f32 0.0, %v258
  %v260 = vpop.f32.mrb[0].mxu0
  %261 = vmatprep.mubr.bf16.mxu0 0
  %262 = vmatmul.mubr.bf16.gmra.mrb[0].mxu0 %v110
  %v263 = vpop.f32.mrb[0].mxu0
  %v264 = vadd.f32 0.0, %v263
  %v265 = vpop.f32.mrb[0].mxu0
  %v266 = vpop.f32.mrb[0].mxu0
  %v267 = vadd.f32 0.0, %v266
  %v268 = vpop.f32.mrb[0].mxu0
  %269 = vmatprep.mubr.bf16.mxu0 0
  %270 = vmatmul.mubr.bf16.gmra.mrb[0].mxu0 %v113
  %v271 = vpop.f32.mrb[0].mxu0
  %v272 = vadd.f32 0.0, %v271
  %v273 = vpop.f32.mrb[0].mxu0
  %v274 = vpop.f32.mrb[0].mxu0
  %v275 = vadd.f32 0.0, %v274
  %v276 = vpop.f32.mrb[0].mxu0
  %277 = vmatprep.mubr.bf16.mxu0 0
  %278 = vmatmul.mubr.bf16.gmra.mrb[0].mxu0 %v116
  %v279 = vpop.f32.mrb[0].mxu0
  %v280 = vadd.f32 0.0, %v279
  %v281 = vpop.f32.mrb[0].mxu0
  %v282 = vpop.f32.mrb[0].mxu0
  %v283 = vadd.f32 0.0, %v282
  %v284 = vpop.f32.mrb[0].mxu0
  %285 = vdwg.mxu0
  %v286 = vpack.c.bf16 %v163, %v160
  %v287 = vpack.c.bf16 %v171, %v168
  %v288 = vpack.c.bf16 %v179, %v176
  %v289 = vpack.c.bf16 %v187, %v184
  %v290 = vpack.c.bf16 %v195, %v192
  %v291 = vpack.c.bf16 %v203, %v200
  %v292 = vpack.c.bf16 %v211, %v208
  %v293 = vpack.c.bf16 %v219, %v216
  %v294 = vpack.c.bf16 %v227, %v224
  %v295 = vpack.c.bf16 %v235, %v232
  %v296 = vpack.c.bf16 %v243, %v240
  %v297 = vpack.c.bf16 %v251, %v248
  %v298 = vpack.c.bf16 %v259, %v256
  %v299 = vpack.c.bf16 %v267, %v264
  %v300 = vpack.c.bf16 %v275, %v272
  %v301 = vpack.c.bf16 %v283, %v280
  %v318 = vunpack.c.l.b16 %v286
  %v319 = vunpack.c.h.b16 %v286
  %v320 = vunpack.c.l.b16 %v287
  %v321 = vunpack.c.h.b16 %v287
  %v322 = vunpack.c.l.b16 %v288
  %v323 = vunpack.c.h.b16 %v288
  %v324 = vunpack.c.l.b16 %v289
  %v325 = vunpack.c.h.b16 %v289
  %v326 = vunpack.c.l.b16 %v290
  %v327 = vunpack.c.h.b16 %v290
  %v328 = vunpack.c.l.b16 %v291
  %v329 = vunpack.c.h.b16 %v291
  %v330 = vunpack.c.l.b16 %v292
  %v331 = vunpack.c.h.b16 %v292
  %v332 = vunpack.c.l.b16 %v293
  %v333 = vunpack.c.h.b16 %v293
  %v334 = vunpack.c.l.b16 %v294
  %v335 = vunpack.c.h.b16 %v294
  %v336 = vunpack.c.l.b16 %v295
  %v337 = vunpack.c.h.b16 %v295
  %v338 = vunpack.c.l.b16 %v296
  %v339 = vunpack.c.h.b16 %v296
  %v340 = vunpack.c.l.b16 %v297
  %v341 = vunpack.c.h.b16 %v297
  %v342 = vunpack.c.l.b16 %v298
  %v343 = vunpack.c.h.b16 %v298
  %v344 = vunpack.c.l.b16 %v299
  %v345 = vunpack.c.h.b16 %v299
  %v346 = vunpack.c.l.b16 %v300
  %v347 = vunpack.c.h.b16 %v300
  %v348 = vunpack.c.l.b16 %v301
  %v349 = vunpack.c.h.b16 %v301
  %v350 = vpack.c.b16 %v318, %v318
  %v351 = vpack.c.b16 %v319, %v319
  %v352 = vpack.c.b16 %v320, %v320
  %v353 = vpack.c.b16 %v321, %v321
  %v354 = vpack.c.b16 %v322, %v322
  %v355 = vpack.c.b16 %v323, %v323
  %v356 = vpack.c.b16 %v324, %v324
  %v357 = vpack.c.b16 %v325, %v325
  %v358 = vpack.c.b16 %v326, %v326
  %v359 = vpack.c.b16 %v327, %v327
  %v360 = vpack.c.b16 %v328, %v328
  %v361 = vpack.c.b16 %v329, %v329
  %v362 = vpack.c.b16 %v330, %v330
  %v363 = vpack.c.b16 %v331, %v331
  %v364 = vpack.c.b16 %v332, %v332
  %v365 = vpack.c.b16 %v333, %v333
  %v366 = vpack.c.b16 %v334, %v334
  %v367 = vpack.c.b16 %v335, %v335
  %v368 = vpack.c.b16 %v336, %v336
  %v369 = vpack.c.b16 %v337, %v337
  %v370 = vpack.c.b16 %v338, %v338
  %v371 = vpack.c.b16 %v339, %v339
  %v372 = vpack.c.b16 %v340, %v340
  %v373 = vpack.c.b16 %v341, %v341
  %v374 = vpack.c.b16 %v342, %v342
  %v375 = vpack.c.b16 %v343, %v343
  %v376 = vpack.c.b16 %v344, %v344
  %v377 = vpack.c.b16 %v345, %v345
  %v378 = vpack.c.b16 %v346, %v346
  %v379 = vpack.c.b16 %v347, %v347
  %v380 = vpack.c.b16 %v348, %v348
  %v381 = vpack.c.b16 %v349, %v349
  %414 = vst [vmem:[%s4] sm:$0xf] %v350
  %415 = vst [vmem:[%s4 + $0x4] sm:$0xf] %v351
  %416 = vst [vmem:[%s4 + $0x8] sm:$0xf] %v352
  %417 = vst [vmem:[%s4 + $0xc] sm:$0xf] %v353
  %418 = vst [vmem:[%s4 + $0x10] sm:$0xf] %v354
  %419 = vst [vmem:[%s4 + $0x14] sm:$0xf] %v355
  %420 = vst [vmem:[%s4 + $0x18] sm:$0xf] %v356
  %421 = vst [vmem:[%s4 + $0x1c] sm:$0xf] %v357
  %422 = vst [vmem:[%s4 + $0x20] sm:$0xf] %v358
  %423 = vst [vmem:[%s4 + $0x24] sm:$0xf] %v359
  %424 = vst [vmem:[%s4 + $0x28] sm:$0xf] %v360
  %425 = vst [vmem:[%s4 + $0x2c] sm:$0xf] %v361
  %426 = vst [vmem:[%s4 + $0x30] sm:$0xf] %v362
  %427 = vst [vmem:[%s4 + $0x34] sm:$0xf] %v363
  %428 = vst [vmem:[%s4 + $0x38] sm:$0xf] %v364
  %429 = vst [vmem:[%s4 + $0x3c] sm:$0xf] %v365
  %430 = vst [vmem:[%s4 + $0x40] sm:$0xf] %v366
  %431 = vst [vmem:[%s4 + $0x44] sm:$0xf] %v367
  %432 = vst [vmem:[%s4 + $0x48] sm:$0xf] %v368
  %433 = vst [vmem:[%s4 + $0x4c] sm:$0xf] %v369
  %434 = vst [vmem:[%s4 + $0x50] sm:$0xf] %v370
  %435 = vst [vmem:[%s4 + $0x54] sm:$0xf] %v371
  %436 = vst [vmem:[%s4 + $0x58] sm:$0xf] %v372
  %437 = vst [vmem:[%s4 + $0x5c] sm:$0xf] %v373
  %438 = vst [vmem:[%s4 + $0x60] sm:$0xf] %v374
  %439 = vst [vmem:[%s4 + $0x64] sm:$0xf] %v375
  %440 = vst [vmem:[%s4 + $0x68] sm:$0xf] %v376
  %441 = vst [vmem:[%s4 + $0x6c] sm:$0xf] %v377
  %442 = vst [vmem:[%s4 + $0x70] sm:$0xf] %v378
  %443 = vst [vmem:[%s4 + $0x74] sm:$0xf] %v379
  %444 = vst [vmem:[%s4 + $0x78] sm:$0xf] %v380
  %445 = vst [vmem:[%s4 + $0x7c] sm:$0xf] %v381
  %446 = vmatprep.subr.mxu0 0.0
  %447 = vmatpush1.msra.mxu0 %v160
  %448 = vmatprep.subr.mxu0 0.0
  %449 = vmatpush1.msra.mxu0 %v163
  %450 = vmatprep.subr.mxu0 0.0
  %451 = vmatpush1.msra.mxu0 %v168
  %452 = vmatprep.subr.mxu0 0.0
  %453 = vmatpush1.msra.mxu0 %v171
  %454 = vmatprep.subr.mxu0 0.0
  %455 = vmatpush1.msra.mxu0 %v176
  %456 = vmatprep.subr.mxu0 0.0
  %457 = vmatpush1.msra.mxu0 %v179
  %458 = vmatprep.subr.mxu0 0.0
  %459 = vmatpush1.msra.mxu0 %v184
  %460 = vmatprep.subr.mxu0 0.0
  %461 = vmatpush1.msra.mxu0 %v187
  %462 = vmatprep.subr.mxu0 0.0
  %463 = vmatpush1.msra.mxu0 %v192
  %464 = vmatprep.subr.mxu0 0.0
  %465 = vmatpush1.msra.mxu0 %v195
  %466 = vmatprep.subr.mxu0 0.0
  %467 = vmatpush1.msra.mxu0 %v200
  %468 = vmatprep.subr.mxu0 0.0
  %469 = vmatpush1.msra.mxu0 %v203
  %470 = vmatprep.subr.mxu0 0.0
  %471 = vmatpush1.msra.mxu0 %v208
  %472 = vmatprep.subr.mxu0 0.0
  %473 = vmatpush1.msra.mxu0 %v211
  %474 = vmatprep.subr.mxu0 0.0
  %475 = vmatpush1.msra.mxu0 %v216
  %476 = vmatprep.subr.mxu0 0.0
  %477 = vmatpush1.msra.mxu0 %v219
  %478 = vmatprep.subr.mxu0 0.0
  %479 = vmatpush1.msra.mxu0 %v224
  %480 = vmatprep.subr.mxu0 0.0
  %481 = vmatpush1.msra.mxu0 %v227
  %482 = vmatprep.subr.mxu0 0.0
  %483 = vmatpush1.msra.mxu0 %v232
  %484 = vmatprep.subr.mxu0 0.0
  %485 = vmatpush1.msra.mxu0 %v235
  %486 = vmatprep.subr.mxu0 0.0
  %487 = vmatpush1.msra.mxu0 %v240
  %488 = vmatprep.subr.mxu0 0.0
  %489 = vmatpush1.msra.mxu0 %v243
  %490 = vmatprep.subr.mxu0 0.0
  %491 = vmatpush1.msra.mxu0 %v248
  %492 = vmatprep.subr.mxu0 0.0
  %493 = vmatpush1.msra.mxu0 %v251
  %494 = vmatprep.subr.mxu0 0.0
  %495 = vmatpush1.msra.mxu0 %v256
  %496 = vmatprep.subr.mxu0 0.0
  %497 = vmatpush1.msra.mxu0 %v259
  %498 = vmatprep.subr.mxu0 0.0
  %499 = vmatpush1.msra.mxu0 %v264
  %500 = vmatprep.subr.mxu0 0.0
  %501 = vmatpush1.msra.mxu0 %v267
  %502 = vmatprep.subr.mxu0 0.0
  %503 = vmatpush1.msra.mxu0 %v272
  %504 = vmatprep.subr.mxu0 0.0
  %505 = vmatpush1.msra.mxu0 %v275
  %506 = vmatprep.subr.mxu0 0.0
  %507 = vmatpush1.msra.mxu0 %v280
  %508 = vmatprep.subr.mxu0 0.0
  %509 = vmatpush1.msra.mxu0 %v283
  %510 = vmatprep.mubr.f32.mxu0 1.0
  %511 = vmatmul.mubr.f32.gmra.mrb[0].mxu0 1.0
  %v512 = vpop.f32.mrb[0].mxu0
  %v513 = vadd.f32 0.0, %v512
  %v514 = vpop.f32.mrb[0].mxu0
  %515 = vdwg.mxu0
  %516 = vst [vmem:[%s5] sm:$0x1] %v513
  %v517 = vmul.f32 %v160, %v160
  %v518 = vmul.f32 %v163, %v163
  %v519 = vmul.f32 %v168, %v168
  %v520 = vmul.f32 %v171, %v171
  %v521 = vmul.f32 %v176, %v176
  %v522 = vmul.f32 %v179, %v179
  %v523 = vmul.f32 %v184, %v184
  %v524 = vmul.f32 %v187, %v187
  %v525 = vmul.f32 %v192, %v192
  %v526 = vmul.f32 %v195, %v195
  %v527 = vmul.f32 %v200, %v200
  %v528 = vmul.f32 %v203, %v203
  %v529 = vmul.f32 %v208, %v208
  %v530 = vmul.f32 %v211, %v211
  %v531 = vmul.f32 %v216, %v216
  %v532 = vmul.f32 %v219, %v219
  %v533 = vmul.f32 %v224, %v224
  %v534 = vmul.f32 %v227, %v227
  %v535 = vmul.f32 %v232, %v232
  %v536 = vmul.f32 %v235, %v235
  %v537 = vmul.f32 %v240, %v240
  %v538 = vmul.f32 %v243, %v243
  %v539 = vmul.f32 %v248, %v248
  %v540 = vmul.f32 %v251, %v251
  %v541 = vmul.f32 %v256, %v256
  %v542 = vmul.f32 %v259, %v259
  %v543 = vmul.f32 %v264, %v264
  %v544 = vmul.f32 %v267, %v267
  %v545 = vmul.f32 %v272, %v272
  %v546 = vmul.f32 %v275, %v275
  %v547 = vmul.f32 %v280, %v280
  %v548 = vmul.f32 %v283, %v283
  %549 = vmatprep.subr.mxu0 0.0
  %550 = vmatpush1.msra.mxu0 %v517
  %551 = vmatprep.subr.mxu0 0.0
  %552 = vmatpush1.msra.mxu0 %v518
  %553 = vmatprep.subr.mxu0 0.0
  %554 = vmatpush1.msra.mxu0 %v519
  %555 = vmatprep.subr.mxu0 0.0
  %556 = vmatpush1.msra.mxu0 %v520
  %557 = vmatprep.subr.mxu0 0.0
  %558 = vmatpush1.msra.mxu0 %v521
  %559 = vmatprep.subr.mxu0 0.0
  %560 = vmatpush1.msra.mxu0 %v522
  %561 = vmatprep.subr.mxu0 0.0
  %562 = vmatpush1.msra.mxu0 %v523
  %563 = vmatprep.subr.mxu0 0.0
  %564 = vmatpush1.msra.mxu0 %v524
  %565 = vmatprep.subr.mxu0 0.0
  %566 = vmatpush1.msra.mxu0 %v525
  %567 = vmatprep.subr.mxu0 0.0
  %568 = vmatpush1.msra.mxu0 %v526
  %569 = vmatprep.subr.mxu0 0.0
  %570 = vmatpush1.msra.mxu0 %v527
  %571 = vmatprep.subr.mxu0 0.0
  %572 = vmatpush1.msra.mxu0 %v528
  %573 = vmatprep.subr.mxu0 0.0
  %574 = vmatpush1.msra.mxu0 %v529
  %575 = vmatprep.subr.mxu0 0.0
  %576 = vmatpush1.msra.mxu0 %v530
  %577 = vmatprep.subr.mxu0 0.0
  %578 = vmatpush1.msra.mxu0 %v531
  %579 = vmatprep.subr.mxu0 0.0
  %580 = vmatpush1.msra.mxu0 %v532
  %581 = vmatprep.subr.mxu0 0.0
  %582 = vmatpush1.msra.mxu0 %v533
  %583 = vmatprep.subr.mxu0 0.0
  %584 = vmatpush1.msra.mxu0 %v534
  %585 = vmatprep.subr.mxu0 0.0
  %586 = vmatpush1.msra.mxu0 %v535
  %587 = vmatprep.subr.mxu0 0.0
  %588 = vmatpush1.msra.mxu0 %v536
  %589 = vmatprep.subr.mxu0 0.0
  %590 = vmatpush1.msra.mxu0 %v537
  %591 = vmatprep.subr.mxu0 0.0
  %592 = vmatpush1.msra.mxu0 %v538
  %593 = vmatprep.subr.mxu0 0.0
  %594 = vmatpush1.msra.mxu0 %v539
  %595 = vmatprep.subr.mxu0 0.0
  %596 = vmatpush1.msra.mxu0 %v540
  %597 = vmatprep.subr.mxu0 0.0
  %598 = vmatpush1.msra.mxu0 %v541
  %599 = vmatprep.subr.mxu0 0.0
  %600 = vmatpush1.msra.mxu0 %v542
  %601 = vmatprep.subr.mxu0 0.0
  %602 = vmatpush1.msra.mxu0 %v543
  %603 = vmatprep.subr.mxu0 0.0
  %604 = vmatpush1.msra.mxu0 %v544
  %605 = vmatprep.subr.mxu0 0.0
  %606 = vmatpush1.msra.mxu0 %v545
  %607 = vmatprep.subr.mxu0 0.0
  %608 = vmatpush1.msra.mxu0 %v546
  %609 = vmatprep.subr.mxu0 0.0
  %610 = vmatpush1.msra.mxu0 %v547
  %611 = vmatprep.subr.mxu0 0.0
  %612 = vmatpush1.msra.mxu0 %v548
  %613 = vmatprep.mubr.f32.mxu0 1.0
  %614 = vmatmul.mubr.f32.gmra.mrb[0].mxu0 1.0
  %v615 = vpop.f32.mrb[0].mxu0
  %v616 = vadd.f32 0.0, %v615
  %v617 = vpop.f32.mrb[0].mxu0
  %618 = vdwg.mxu0
  %619 = vst [vmem:[%s5 + $0x1] sm:$0x1] %v616
  // Predicated region
  $region18: #{_lambda_.10} parent=0 // pred_check
    _
  $region19: #{_lambda_.10} parent=0 // pred_check_branch
    %621 = sbr.rel (0) target = $region21
  $region20: #{_lambda_.10} parent=0 // pred_region
    _
  $region21: #{_lambda_.10} parent=0 // pred_fallthru
    _
  // Predicated region
  $region22: #{_lambda_.10} parent=0 // pred_check
    _
  $region23: #{_lambda_.10} parent=0 // pred_check_branch
    %623 = sbr.rel (0) target = $region25
  $region24: #{_lambda_.10} parent=0 // pred_region
    _
  $region25: #{_lambda_.10} parent=0 // pred_fallthru
    _
  // Predicated region
  $region26: #{_lambda_.10} parent=0 // pred_check
    _
  $region27: #{_lambda_.10} parent=0 // pred_check_branch
    %625 = sbr.rel (0) target = $region29
  $region28: #{_lambda_.10} parent=0 // pred_region
    _
  $region29: #{_lambda_.10} parent=0 // pred_fallthru
    _
  // Predicated region
  $region30: #{_lambda_.10} parent=0 // pred_check
    _
  $region31: #{_lambda_.10} parent=0 // pred_check_branch
    %627 = sbr.rel (0) target = $region33
  $region32: #{_lambda_.10} parent=0 // pred_region
    _
  $region33: #{_lambda_.10} parent=0 // pred_fallthru
    _

// kernel: _lambda_.12
$region0: #{_lambda_.12}
  #allocation0 [shape = 'u32[]', space=smem, size = 0x4, offset = 0x4, fixed_abs, tag = 'smem constant byte address 0x4 - core index']
  #allocation1 [shape = 'u32[144,128]{1,0:T(1,128)}', space=vmem, size = 0x12000, scoped, tag = 'internal scratch']
  %s0 = inlined_call_operand.vmem [shape: bf16[2,128,128], index: 0, kind: input, shape index: {}]
  %s1 = inlined_call_operand.vmem [shape: bf16[1,128,1024], index: 1, kind: input, shape index: {}]
  %s2 = inlined_call_operand.vmem [shape: f32[1,128], index: 2, kind: input, shape index: {}]
  %s3 = inlined_call_operand.vmem [shape: f32[1,128], index: 3, kind: input, shape index: {}]
  %s4 = inlined_call_operand.vmem [shape: f32[2,1,4,1024], index: 4, kind: output, shape index: {}]
  %s5 = sld [smem:[#allocation0]]
  $region49: #{_lambda_.12} parent=0
    _
  %s7 = ssub.s32 1, %s5
  %s8 = scalar_select 0, %s7, %s5
  loop: start=0, step=1, limit=4
  $region2: #{_lambda_.12} parent=0 // loop_pre_header
    _
  $region3: #{_lambda_.12} parent=0 // loop_header
    %s10 = sphi 0, %s14
    %p11 = scmp.ge.s32.totalorder %s10, 4
    %s17 = sphi 0, %s29
    %s18 = sphi 0, %s25
    %s19 = sphi 0, %s17
    %s20 = sphi 0, %s18
    %s21 = sphi 0, %s19
    %s22 = sphi 0, %s20
    %s34 = sphi 0, %s36
    %s37 = sphi 0, %s34
    %s38 = sphi 0, %s37
    %s54 = sphi 0, %s38
    %s58 = sphi 0, %s58
    %s60 = sphi 0, %s58
    %s61 = sphi 0, %s60
    %s75 = sphi 0, %s61
    %s79 = sphi 0, %s79
    %s81 = sphi 0, %s79
    %s82 = sphi 0, %s81
    %s96 = sphi 0, %s82
    %s100 = sphi 0, %s100
    %s102 = sphi 0, %s100
    %s103 = sphi 0, %s102
    %s117 = sphi 0, %s103
    %s125 = sphi 0, %s127
    %s128 = sphi 0, %s125
    %s129 = sphi 0, %s128
    %s145 = sphi 0, %s129
  $region4: #{_lambda_.12} parent=0 // loop_header_branch
    %13 = sbr.rel (%p11) target = $region8
  $region5: #{_lambda_.12} parent=0 // loop_body
    %s15 = ssub.s32 %s10, 1
    %s16 = ssub.s32 %s10, 2
    %s23 = sadd.s32 1, %s18
    %p24 = scmp.ge.s32.totalorder %s23, 1
    %s25 = scalar_select %p24, 0, %s23
    %s26 = sadd.s32 1, %s17
    %s27 = scalar_select %p24, %s26, %s17
    %p28 = scmp.ge.s32.totalorder %s27, 2
    %s29 = scalar_select %p28, 0, %s27
    %s30 = ssub.s32 %s17, %s29
    %s31 = ssub.s32 %s18, %s25
    %s32 = sor.u32 %s30, %s31
    %p33 = scmp.eq.s32.totalorder %s32, 0
    %s35 = sadd.s32 %s34, 1
    %s36 = scalar_select %p33, %s34, %s35
    %p39 = pneg %p33
    %p40 = scmp.eq.s32.totalorder %s10, 1
    %p41 = por %p39, %p40
    %p42 = scmp.ne.s32.totalorder %s34, %s37
    %p43 = scmp.eq.s32.totalorder %s10, 0
    %p44 = por %p42, %p43
    %p45 = scmp.ne.s32.totalorder %s34, %s37
    %p46 = scmp.eq.s32.totalorder %s15, 1
    %p47 = por %p45, %p46
    %p48 = scmp.ne.s32.totalorder %s37, %s38
    %p49 = scmp.eq.s32.totalorder %s15, 0
    %p50 = por %p48, %p49
    %p51 = scmp.ne.s32.totalorder %s37, %s38
    %p52 = scmp.eq.s32.totalorder %s16, 1
    %p53 = por %p51, %p52
    %p55 = scmp.ne.s32.totalorder %s38, %s54
    %p56 = scmp.eq.s32.totalorder %s16, 0
    %p57 = por %p55, %p56
    %s59 = sadd.s32 %s58, 1
    %p62 = scmp.eq.s32.totalorder %s10, 1
    %p63 = scmp.ne.s32.totalorder %s58, %s60
    %p64 = scmp.eq.s32.totalorder %s10, 0
    %p65 = por %p63, %p64
    %p66 = scmp.ne.s32.totalorder %s58, %s60
    %p67 = scmp.eq.s32.totalorder %s15, 1
    %p68 = por %p66, %p67
    %p69 = scmp.ne.s32.totalorder %s60, %s61
    %p70 = scmp.eq.s32.totalorder %s15, 0
    %p71 = por %p69, %p70
    %p72 = scmp.ne.s32.totalorder %s60, %s61
    %p73 = scmp.eq.s32.totalorder %s16, 1
    %p74 = por %p72, %p73
    %p76 = scmp.ne.s32.totalorder %s61, %s75
    %p77 = scmp.eq.s32.totalorder %s16, 0
    %p78 = por %p76, %p77
    %s80 = sadd.s32 %s79, 1
    %p83 = scmp.eq.s32.totalorder %s10, 1
    %p84 = scmp.ne.s32.totalorder %s79, %s81
    %p85 = scmp.eq.s32.totalorder %s10, 0
    %p86 = por %p84, %p85
    %p87 = scmp.ne.s32.totalorder %s79, %s81
    %p88 = scmp.eq.s32.totalorder %s15, 1
    %p89 = por %p87, %p88
    %p90 = scmp.ne.s32.totalorder %s81, %s82
    %p91 = scmp.eq.s32.totalorder %s15, 0
    %p92 = por %p90, %p91
    %p93 = scmp.ne.s32.totalorder %s81, %s82
    %p94 = scmp.eq.s32.totalorder %s16, 1
    %p95 = por %p93, %p94
    %p97 = scmp.ne.s32.totalorder %s82, %s96
    %p98 = scmp.eq.s32.totalorder %s16, 0
    %p99 = por %p97, %p98
    %s101 = sadd.s32 %s100, 1
    %p104 = scmp.eq.s32.totalorder %s10, 1
    %p105 = scmp.ne.s32.totalorder %s100, %s102
    %p106 = scmp.eq.s32.totalorder %s10, 0
    %p107 = por %p105, %p106
    %p108 = scmp.ne.s32.totalorder %s100, %s102
    %p109 = scmp.eq.s32.totalorder %s15, 1
    %p110 = por %p108, %p109
    %p111 = scmp.ne.s32.totalorder %s102, %s103
    %p112 = scmp.eq.s32.totalorder %s15, 0
    %p113 = por %p111, %p112
    %p114 = scmp.ne.s32.totalorder %s102, %s103
    %p115 = scmp.eq.s32.totalorder %s16, 1
    %p116 = por %p114, %p115
    %p118 = scmp.ne.s32.totalorder %s103, %s117
    %p119 = scmp.eq.s32.totalorder %s16, 0
    %p120 = por %p118, %p119
    %s121 = ssub.s32 %s17, %s29
    %s122 = ssub.s32 %s18, %s25
    %s123 = sor.u32 %s121, %s122
    %p124 = scmp.eq.s32.totalorder %s123, 0
    %s126 = sadd.s32 %s125, 1
    %s127 = scalar_select %p124, %s125, %s126
    %p130 = pneg %p124
    %p131 = scmp.eq.s32.totalorder %s10, 1
    %p132 = por %p130, %p131
    %p133 = scmp.ne.s32.totalorder %s125, %s128
    %p134 = scmp.eq.s32.totalorder %s10, 0
    %p135 = por %p133, %p134
    %p136 = scmp.ne.s32.totalorder %s125, %s128
    %p137 = scmp.eq.s32.totalorder %s15, 1
    %p138 = por %p136, %p137
    %p139 = scmp.ne.s32.totalorder %s128, %s129
    %p140 = scmp.eq.s32.totalorder %s15, 0
    %p141 = por %p139, %p140
    %p142 = scmp.ne.s32.totalorder %s128, %s129
    %p143 = scmp.eq.s32.totalorder %s16, 1
    %p144 = por %p142, %p143
    %p146 = scmp.ne.s32.totalorder %s129, %s145
    %p147 = scmp.eq.s32.totalorder %s16, 0
    %p148 = por %p146, %p147
    %p149 = scmp.le.s32.totalorder 1, %s10
    %p150 = scmp.lt.s32.totalorder %s10, 3
    %p151 = pnand %p149, %p150
    %p152 = pneg %p151
    // Predicated region
    $region9: #{_lambda_.12} parent=5 // pred_check
      _
    $region10: #{_lambda_.12} parent=5 // pred_check_branch
      %154 = sbr.rel (%p151) target = $region12
    $region11: #{_lambda_.12} parent=5 // pred_region
      %s155 = ssub.s32 %s10, 1
      // Predicated region
      $region13: #{_lambda_.12} parent=11 // pred_check
        %p156 = pneg %p71
      $region14: #{_lambda_.12} parent=11 // pred_check_branch
        %158 = sbr.rel (%p156) target = $region16
      $region15: #{_lambda_.12} parent=11 // pred_region
        _
      $region16: #{_lambda_.12} parent=11 // pred_fallthru
        _
      // Predicated region
      $region17: #{_lambda_.12} parent=11 // pred_check
        %p159 = pneg %p92
      $region18: #{_lambda_.12} parent=11 // pred_check_branch
        %161 = sbr.rel (%p159) target = $region20
      $region19: #{_lambda_.12} parent=11 // pred_region
        _
      $region20: #{_lambda_.12} parent=11 // pred_fallthru
        _
      // Predicated region
      $region21: #{_lambda_.12} parent=11 // pred_check
        %p162 = pneg %p113
      $region22: #{_lambda_.12} parent=11 // pred_check_branch
        %164 = sbr.rel (%p162) target = $region24
      $region23: #{_lambda_.12} parent=11 // pred_region
        _
      $region24: #{_lambda_.12} parent=11 // pred_fallthru
        _
    $region12: #{_lambda_.12} parent=5 // pred_fallthru
      _
    %p165 = scmp.lt.s32.totalorder %s10, 2
    // Predicated region
    $region25: #{_lambda_.12} parent=5 // pred_check
      %p166 = pneg %p165
    $region26: #{_lambda_.12} parent=5 // pred_check_branch
      %168 = sbr.rel (%p166) target = $region28
    $region27: #{_lambda_.12} parent=5 // pred_region
      // Predicated region
      $region29: #{_lambda_.12} parent=27 // pred_check
        %p169 = pneg %p44
      $region30: #{_lambda_.12} parent=27 // pred_check_branch
        %171 = sbr.rel (%p169) target = $region32
      $region31: #{_lambda_.12} parent=27 // pred_region
        %s172 = smul.u32 16, %s18
        %p173 = scmp.lt.s32.totalorder %s17, 1
        %s174 = scalar_select %p173, %s17, 1
        %p175 = scmp.lt.s32.totalorder %s172, 15
        %s176 = scalar_select %p175, %s172, 15
        %s177 = smul.addr %s174, 16
        %s178 = sadd.s32 %s176, %s177
        %s179 = smul.addr %s178, 4
        %s180 = scalar_lea.vmem %s0, %s179
        %s181 = smul.u32 16, %s18
      $region32: #{_lambda_.12} parent=27 // pred_fallthru
        _
    $region28: #{_lambda_.12} parent=5 // pred_fallthru
      _
    %p182 = scmp.le.s32.totalorder 1, %s10
    %p183 = scmp.lt.s32.totalorder %s10, 3
    %p184 = pnand %p182, %p183
    %p185 = pneg %p184
    // Predicated region
    $region33: #{_lambda_.12} parent=5 // pred_check
      _
    $region34: #{_lambda_.12} parent=5 // pred_check_branch
      %187 = sbr.rel (%p184) target = $region36
    $region35: #{_lambda_.12} parent=5 // pred_region
      %s188 = ssub.s32 %s10, 1
      %s189 = smul.u32 16, %s20
      %p190 = scmp.lt.s32.totalorder %s19, 1
      %s191 = scalar_select %p190, %s19, 1
      %p192 = scmp.lt.s32.totalorder %s189, 15
      %s193 = scalar_select %p192, %s189, 15
      %s194 = smul.addr %s191, 16
      %s195 = sadd.s32 %s193, %s194
      %s196 = smul.addr %s195, 4
      %s197 = scalar_lea.vmem %s0, %s196
      %p198 = pneg %p50
      %p199 = pneg %p47
      %p200 = pneg %p71
      %p201 = pneg %p68
      %p202 = pneg %p92
      %p203 = pneg %p89
      %p204 = pneg %p113
      %p205 = pneg %p110
      %p206 = pneg %p141
      %p207 = pneg %p138
      %p208 = scmp.lt.s32.totalorder %s19, 1
      %s209 = scalar_select %p208, %s19, 1
      %p210 = scmp.lt.s32.totalorder %s20, 0
      %s211 = scalar_select %p210, %s20, 0
      %s212 = smul.addr %s211, 8
      %s213 = smul.addr %s209, 8
      %s214 = sadd.s32 %s212, %s213
      %s215 = smul.addr %s214, 4
      %s216 = scalar_lea.vmem %s4, %s215
      %s217 = smul.u32 16, %s20
      %p218 = scmp.lt.s32.totalorder %s19, 1
      %s219 = scalar_select %p218, %s19, 1
      %p220 = scmp.lt.s32.totalorder %s217, 15
      %s221 = scalar_select %p220, %s217, 15
      %s222 = smul.addr %s219, 16
      %s223 = sadd.s32 %s221, %s222
      %s224 = smul.addr %s223, 4
      %s225 = scalar_lea.vmem %s0, %s224
      %s226 = smul.u32 16, %s20
      %p227 = scmp.lt.s32.totalorder %s19, 1
      %s228 = scalar_select %p227, %s19, 1
      %p229 = scmp.lt.s32.totalorder %s20, 0
      %s230 = scalar_select %p229, %s20, 0
      %s231 = smul.addr %s230, 8
      %s232 = smul.addr %s228, 8
      %s233 = sadd.s32 %s231, %s232
      %s234 = smul.addr %s233, 4
      %s235 = scalar_lea.vmem %s4, %s234
      %v237 = vld [vmem:[%s225] sm:$0xf]
      %v238 = vld [vmem:[%s225 + $0x4] sm:$0xf]
      %v239 = vld [vmem:[%s225 + $0x8] sm:$0xf]
      %v240 = vld [vmem:[%s225 + $0xc] sm:$0xf]
      %v241 = vld [vmem:[%s225 + $0x10] sm:$0xf]
      %v242 = vld [vmem:[%s225 + $0x14] sm:$0xf]
      %v243 = vld [vmem:[%s225 + $0x18] sm:$0xf]
      %v244 = vld [vmem:[%s225 + $0x1c] sm:$0xf]
      %v245 = vld [vmem:[%s225 + $0x20] sm:$0xf]
      %v246 = vld [vmem:[%s225 + $0x24] sm:$0xf]
      %v247 = vld [vmem:[%s225 + $0x28] sm:$0xf]
      %v248 = vld [vmem:[%s225 + $0x2c] sm:$0xf]
      %v249 = vld [vmem:[%s225 + $0x30] sm:$0xf]
      %v250 = vld [vmem:[%s225 + $0x34] sm:$0xf]
      %v251 = vld [vmem:[%s225 + $0x38] sm:$0xf]
      %v252 = vld [vmem:[%s225 + $0x3c] sm:$0xf]
      %v253 = vunpack.c.l.bf16 %v237
      %v254 = vunpack.c.l.bf16 %v238
      %v255 = vunpack.c.l.bf16 %v239
      %v256 = vunpack.c.l.bf16 %v240
      %v257 = vunpack.c.l.bf16 %v241
      %v258 = vunpack.c.l.bf16 %v242
      %v259 = vunpack.c.l.bf16 %v243
      %v260 = vunpack.c.l.bf16 %v244
      %v261 = vunpack.c.l.bf16 %v245
      %v262 = vunpack.c.l.bf16 %v246
      %v263 = vunpack.c.l.bf16 %v247
      %v264 = vunpack.c.l.bf16 %v248
      %v265 = vunpack.c.l.bf16 %v249
      %v266 = vunpack.c.l.bf16 %v250
      %v267 = vunpack.c.l.bf16 %v251
      %v268 = vunpack.c.l.bf16 %v252
      %v269 = vld [vmem:[%s2] sm:$0x1]
      %v271 = vlaneseq
      %v272 = vshrl.u32 %v271, 7
      %v273 = vsub.s32 0, %v272
      %v274 = vrot.slane %v269, %v273
      %v276 = vmul.f32 %v253, %v274
      %v277 = vmul.f32 %v254, %v274
      %v278 = vmul.f32 %v255, %v274
      %v279 = vmul.f32 %v256, %v274
      %v280 = vmul.f32 %v257, %v274
      %v281 = vmul.f32 %v258, %v274
      %v282 = vmul.f32 %v259, %v274
      %v283 = vmul.f32 %v260, %v274
      %v284 = vmul.f32 %v261, %v274
      %v285 = vmul.f32 %v262, %v274
      %v286 = vmul.f32 %v263, %v274
      %v287 = vmul.f32 %v264, %v274
      %v288 = vmul.f32 %v265, %v274
      %v289 = vmul.f32 %v266, %v274
      %v290 = vmul.f32 %v267, %v274
      %v291 = vmul.f32 %v268, %v274
      %v292 = vld [vmem:[%s3] sm:$0x1]
      %v294 = vlaneseq
      %v295 = vshrl.u32 %v294, 7
      %v296 = vsub.s32 0, %v295
      %v297 = vrot.slane %v292, %v296
      %v299 = vadd.f32 %v276, %v297
      %v300 = vadd.f32 %v277, %v297
      %v301 = vadd.f32 %v278, %v297
      %v302 = vadd.f32 %v279, %v297
      %v303 = vadd.f32 %v280, %v297
      %v304 = vadd.f32 %v281, %v297
      %v305 = vadd.f32 %v282, %v297
      %v306 = vadd.f32 %v283, %v297
      %v307 = vadd.f32 %v284, %v297
      %v308 = vadd.f32 %v285, %v297
      %v309 = vadd.f32 %v286, %v297
      %v310 = vadd.f32 %v287, %v297
      %v311 = vadd.f32 %v288, %v297
      %v312 = vadd.f32 %v289, %v297
      %v313 = vadd.f32 %v290, %v297
      %v314 = vadd.f32 %v291, %v297
      %v315 = vmax.f32 %v299, 0.0
      %v316 = vmax.f32 %v300, 0.0
      %v317 = vmax.f32 %v301, 0.0
      %v318 = vmax.f32 %v302, 0.0
      %v319 = vmax.f32 %v303, 0.0
      %v320 = vmax.f32 %v304, 0.0
      %v321 = vmax.f32 %v305, 0.0
      %v322 = vmax.f32 %v306, 0.0
      %v323 = vmax.f32 %v307, 0.0
      %v324 = vmax.f32 %v308, 0.0
      %v325 = vmax.f32 %v309, 0.0
      %v326 = vmax.f32 %v310, 0.0
      %v327 = vmax.f32 %v311, 0.0
      %v328 = vmax.f32 %v312, 0.0
      %v329 = vmax.f32 %v313, 0.0
      %v330 = vmax.f32 %v314, 0.0
      %v331 = vpack.c.bf16 %v316, %v315
      %v332 = vpack.c.bf16 %v318, %v317
      %v333 = vpack.c.bf16 %v320, %v319
      %v334 = vpack.c.bf16 %v322, %v321
      %v335 = vpack.c.bf16 %v324, %v323
      %v336 = vpack.c.bf16 %v326, %v325
      %v337 = vpack.c.bf16 %v328, %v327
      %v338 = vpack.c.bf16 %v330, %v329
      %v339 = vld [vmem:[%s1] sm:$0xff]
      %v340 = vld [vmem:[%s1 + $0x8] sm:$0xff]
      %v341 = vld [vmem:[%s1 + $0x10] sm:$0xff]
      %v342 = vld [vmem:[%s1 + $0x18] sm:$0xff]
      %v343 = vld [vmem:[%s1 + $0x20] sm:$0xff]
      %v344 = vld [vmem:[%s1 + $0x28] sm:$0xff]
      %v345 = vld [vmem:[%s1 + $0x30] sm:$0xff]
      %v346 = vld [vmem:[%s1 + $0x38] sm:$0xff]
      %v347 = vld [vmem:[%s1 + $0x40] sm:$0xff]
      %v348 = vld [vmem:[%s1 + $0x48] sm:$0xff]
      %v349 = vld [vmem:[%s1 + $0x50] sm:$0xff]
      %v350 = vld [vmem:[%s1 + $0x58] sm:$0xff]
      %v351 = vld [vmem:[%s1 + $0x60] sm:$0xff]
      %v352 = vld [vmem:[%s1 + $0x68] sm:$0xff]
      %v353 = vld [vmem:[%s1 + $0x70] sm:$0xff]
      %v354 = vld [vmem:[%s1 + $0x78] sm:$0xff]
      %v355 = vld [vmem:[%s1 + $0x80] sm:$0xff]
      %v356 = vld [vmem:[%s1 + $0x88] sm:$0xff]
      %v357 = vld [vmem:[%s1 + $0x90] sm:$0xff]
      %v358 = vld [vmem:[%s1 + $0x98] sm:$0xff]
      %v359 = vld [vmem:[%s1 + $0xa0] sm:$0xff]
      %v360 = vld [vmem:[%s1 + $0xa8] sm:$0xff]
      %v361 = vld [vmem:[%s1 + $0xb0] sm:$0xff]
      %v362 = vld [vmem:[%s1 + $0xb8] sm:$0xff]
      %v363 = vld [vmem:[%s1 + $0xc0] sm:$0xff]
      %v364 = vld [vmem:[%s1 + $0xc8] sm:$0xff]
      %v365 = vld [vmem:[%s1 + $0xd0] sm:$0xff]
      %v366 = vld [vmem:[%s1 + $0xd8] sm:$0xff]
      %v367 = vld [vmem:[%s1 + $0xe0] sm:$0xff]
      %v368 = vld [vmem:[%s1 + $0xe8] sm:$0xff]
      %v369 = vld [vmem:[%s1 + $0xf0] sm:$0xff]
      %v370 = vld [vmem:[%s1 + $0xf8] sm:$0xff]
      %v371 = vld [vmem:[%s1 + $0x100] sm:$0xff]
      %v372 = vld [vmem:[%s1 + $0x108] sm:$0xff]
      %v373 = vld [vmem:[%s1 + $0x110] sm:$0xff]
      %v374 = vld [vmem:[%s1 + $0x118] sm:$0xff]
      %v375 = vld [vmem:[%s1 + $0x120] sm:$0xff]
      %v376 = vld [vmem:[%s1 + $0x128] sm:$0xff]
      %v377 = vld [vmem:[%s1 + $0x130] sm:$0xff]
      %v378 = vld [vmem:[%s1 + $0x138] sm:$0xff]
      %v379 = vld [vmem:[%s1 + $0x140] sm:$0xff]
      %v380 = vld [vmem:[%s1 + $0x148] sm:$0xff]
      %v381 = vld [vmem:[%s1 + $0x150] sm:$0xff]
      %v382 = vld [vmem:[%s1 + $0x158] sm:$0xff]
      %v383 = vld [vmem:[%s1 + $0x160] sm:$0xff]
      %v384 = vld [vmem:[%s1 + $0x168] sm:$0xff]
      %v385 = vld [vmem:[%s1 + $0x170] sm:$0xff]
      %v386 = vld [vmem:[%s1 + $0x178] sm:$0xff]
      %v387 = vld [vmem:[%s1 + $0x180] sm:$0xff]
      %v388 = vld [vmem:[%s1 + $0x188] sm:$0xff]
      %v389 = vld [vmem:[%s1 + $0x190] sm:$0xff]
      %v390 = vld [vmem:[%s1 + $0x198] sm:$0xff]
      %v391 = vld [vmem:[%s1 + $0x1a0] sm:$0xff]
      %v392 = vld [vmem:[%s1 + $0x1a8] sm:$0xff]
      %v393 = vld [vmem:[%s1 + $0x1b0] sm:$0xff]
      %v394 = vld [vmem:[%s1 + $0x1b8] sm:$0xff]
      %v395 = vld [vmem:[%s1 + $0x1c0] sm:$0xff]
      %v396 = vld [vmem:[%s1 + $0x1c8] sm:$0xff]
      %v397 = vld [vmem:[%s1 + $0x1d0] sm:$0xff]
      %v398 = vld [vmem:[%s1 + $0x1d8] sm:$0xff]
      %v399 = vld [vmem:[%s1 + $0x1e0] sm:$0xff]
      %v400 = vld [vmem:[%s1 + $0x1e8] sm:$0xff]
      %v401 = vld [vmem:[%s1 + $0x1f0] sm:$0xff]
      %v402 = vld [vmem:[%s1 + $0x1f8] sm:$0xff]
      %v467 = vunpack.c.l.b16 %v339
      %v468 = vunpack.c.h.b16 %v339
      %v469 = vunpack.c.l.b16 %v340
      %v470 = vunpack.c.h.b16 %v340
      %v471 = vunpack.c.l.b16 %v341
      %v472 = vunpack.c.h.b16 %v341
      %v473 = vunpack.c.l.b16 %v342
      %v474 = vunpack.c.h.b16 %v342
      %v475 = vunpack.c.l.b16 %v343
      %v476 = vunpack.c.h.b16 %v343
      %v477 = vunpack.c.l.b16 %v344
      %v478 = vunpack.c.h.b16 %v344
      %v479 = vunpack.c.l.b16 %v345
      %v480 = vunpack.c.h.b16 %v345
      %v481 = vunpack.c.l.b16 %v346
      %v482 = vunpack.c.h.b16 %v346
      %v483 = vunpack.c.l.b16 %v347
      %v484 = vunpack.c.h.b16 %v347
      %v485 = vunpack.c.l.b16 %v348
      %v486 = vunpack.c.h.b16 %v348
      %v487 = vunpack.c.l.b16 %v349
      %v488 = vunpack.c.h.b16 %v349
      %v489 = vunpack.c.l.b16 %v350
      %v490 = vunpack.c.h.b16 %v350
      %v491 = vunpack.c.l.b16 %v351
      %v492 = vunpack.c.h.b16 %v351
      %v493 = vunpack.c.l.b16 %v352
      %v494 = vunpack.c.h.b16 %v352
      %v495 = vunpack.c.l.b16 %v353
      %v496 = vunpack.c.h.b16 %v353
      %v497 = vunpack.c.l.b16 %v354
      %v498 = vunpack.c.h.b16 %v354
      %v499 = vunpack.c.l.b16 %v355
      %v500 = vunpack.c.h.b16 %v355
      %v501 = vunpack.c.l.b16 %v356
      %v502 = vunpack.c.h.b16 %v356
      %v503 = vunpack.c.l.b16 %v357
      %v504 = vunpack.c.h.b16 %v357
      %v505 = vunpack.c.l.b16 %v358
      %v506 = vunpack.c.h.b16 %v358
      %v507 = vunpack.c.l.b16 %v359
      %v508 = vunpack.c.h.b16 %v359
      %v509 = vunpack.c.l.b16 %v360
      %v510 = vunpack.c.h.b16 %v360
      %v511 = vunpack.c.l.b16 %v361
      %v512 = vunpack.c.h.b16 %v361
      %v513 = vunpack.c.l.b16 %v362
      %v514 = vunpack.c.h.b16 %v362
      %v515 = vunpack.c.l.b16 %v363
      %v516 = vunpack.c.h.b16 %v363
      %v517 = vunpack.c.l.b16 %v364
      %v518 = vunpack.c.h.b16 %v364
      %v519 = vunpack.c.l.b16 %v365
      %v520 = vunpack.c.h.b16 %v365
      %v521 = vunpack.c.l.b16 %v366
      %v522 = vunpack.c.h.b16 %v366
      %v523 = vunpack.c.l.b16 %v367
      %v524 = vunpack.c.h.b16 %v367
      %v525 = vunpack.c.l.b16 %v368
      %v526 = vunpack.c.h.b16 %v368
      %v527 = vunpack.c.l.b16 %v369
      %v528 = vunpack.c.h.b16 %v369
      %v529 = vunpack.c.l.b16 %v370
      %v530 = vunpack.c.h.b16 %v370
      %v531 = vunpack.c.l.b16 %v371
      %v532 = vunpack.c.h.b16 %v371
      %v533 = vunpack.c.l.b16 %v372
      %v534 = vunpack.c.h.b16 %v372
      %v535 = vunpack.c.l.b16 %v373
      %v536 = vunpack.c.h.b16 %v373
      %v537 = vunpack.c.l.b16 %v374
      %v538 = vunpack.c.h.b16 %v374
      %v539 = vunpack.c.l.b16 %v375
      %v540 = vunpack.c.h.b16 %v375
      %v541 = vunpack.c.l.b16 %v376
      %v542 = vunpack.c.h.b16 %v376
      %v543 = vunpack.c.l.b16 %v377
      %v544 = vunpack.c.h.b16 %v377
      %v545 = vunpack.c.l.b16 %v378
      %v546 = vunpack.c.h.b16 %v378
      %v547 = vunpack.c.l.b16 %v379
      %v548 = vunpack.c.h.b16 %v379
      %v549 = vunpack.c.l.b16 %v380
      %v550 = vunpack.c.h.b16 %v380
      %v551 = vunpack.c.l.b16 %v381
      %v552 = vunpack.c.h.b16 %v381
      %v553 = vunpack.c.l.b16 %v382
      %v554 = vunpack.c.h.b16 %v382
      %v555 = vunpack.c.l.b16 %v383
      %v556 = vunpack.c.h.b16 %v383
      %v557 = vunpack.c.l.b16 %v384
      %v558 = vunpack.c.h.b16 %v384
      %v559 = vunpack.c.l.b16 %v385
      %v560 = vunpack.c.h.b16 %v385
      %v561 = vunpack.c.l.b16 %v386
      %v562 = vunpack.c.h.b16 %v386
      %v563 = vunpack.c.l.b16 %v387
      %v564 = vunpack.c.h.b16 %v387
      %v565 = vunpack.c.l.b16 %v388
      %v566 = vunpack.c.h.b16 %v388
      %v567 = vunpack.c.l.b16 %v389
      %v568 = vunpack.c.h.b16 %v389
      %v569 = vunpack.c.l.b16 %v390
      %v570 = vunpack.c.h.b16 %v390
      %v571 = vunpack.c.l.b16 %v391
      %v572 = vunpack.c.h.b16 %v391
      %v573 = vunpack.c.l.b16 %v392
      %v574 = vunpack.c.h.b16 %v392
      %v575 = vunpack.c.l.b16 %v393
      %v576 = vunpack.c.h.b16 %v393
      %v577 = vunpack.c.l.b16 %v394
      %v578 = vunpack.c.h.b16 %v394
      %v579 = vunpack.c.l.b16 %v395
      %v580 = vunpack.c.h.b16 %v395
      %v581 = vunpack.c.l.b16 %v396
      %v582 = vunpack.c.h.b16 %v396
      %v583 = vunpack.c.l.b16 %v397
      %v584 = vunpack.c.h.b16 %v397
      %v585 = vunpack.c.l.b16 %v398
      %v586 = vunpack.c.h.b16 %v398
      %v587 = vunpack.c.l.b16 %v399
      %v588 = vunpack.c.h.b16 %v399
      %v589 = vunpack.c.l.b16 %v400
      %v590 = vunpack.c.h.b16 %v400
      %v591 = vunpack.c.l.b16 %v401
      %v592 = vunpack.c.h.b16 %v401
      %v593 = vunpack.c.l.b16 %v402
      %v594 = vunpack.c.h.b16 %v402
      %v595 = vpack.c.b16 %v475, %v467
      %v596 = vpack.c.b16 %v476, %v468
      %v597 = vpack.c.b16 %v477, %v469
      %v598 = vpack.c.b16 %v478, %v470
      %v599 = vpack.c.b16 %v479, %v471
      %v600 = vpack.c.b16 %v480, %v472
      %v601 = vpack.c.b16 %v481, %v473
      %v602 = vpack.c.b16 %v482, %v474
      %v603 = vpack.c.b16 %v491, %v483
      %v604 = vpack.c.b16 %v492, %v484
      %v605 = vpack.c.b16 %v493, %v485
      %v606 = vpack.c.b16 %v494, %v486
      %v607 = vpack.c.b16 %v495, %v487
      %v608 = vpack.c.b16 %v496, %v488
      %v609 = vpack.c.b16 %v497, %v489
      %v610 = vpack.c.b16 %v498, %v490
      %v611 = vpack.c.b16 %v507, %v499
      %v612 = vpack.c.b16 %v508, %v500
      %v613 = vpack.c.b16 %v509, %v501
      %v614 = vpack.c.b16 %v510, %v502
      %v615 = vpack.c.b16 %v511, %v503
      %v616 = vpack.c.b16 %v512, %v504
      %v617 = vpack.c.b16 %v513, %v505
      %v618 = vpack.c.b16 %v514, %v506
      %v619 = vpack.c.b16 %v523, %v515
      %v620 = vpack.c.b16 %v524, %v516
      %v621 = vpack.c.b16 %v525, %v517
      %v622 = vpack.c.b16 %v526, %v518
      %v623 = vpack.c.b16 %v527, %v519
      %v624 = vpack.c.b16 %v528, %v520
      %v625 = vpack.c.b16 %v529, %v521
      %v626 = vpack.c.b16 %v530, %v522
      %v627 = vpack.c.b16 %v539, %v531
      %v628 = vpack.c.b16 %v540, %v532
      %v629 = vpack.c.b16 %v541, %v533
      %v630 = vpack.c.b16 %v542, %v534
      %v631 = vpack.c.b16 %v543, %v535
      %v632 = vpack.c.b16 %v544, %v536
      %v633 = vpack.c.b16 %v545, %v537
      %v634 = vpack.c.b16 %v546, %v538
      %v635 = vpack.c.b16 %v555, %v547
      %v636 = vpack.c.b16 %v556, %v548
      %v637 = vpack.c.b16 %v557, %v549
      %v638 = vpack.c.b16 %v558, %v550
      %v639 = vpack.c.b16 %v559, %v551
      %v640 = vpack.c.b16 %v560, %v552
      %v641 = vpack.c.b16 %v561, %v553
      %v642 = vpack.c.b16 %v562, %v554
      %v643 = vpack.c.b16 %v571, %v563
      %v644 = vpack.c.b16 %v572, %v564
      %v645 = vpack.c.b16 %v573, %v565
      %v646 = vpack.c.b16 %v574, %v566
      %v647 = vpack.c.b16 %v575, %v567
      %v648 = vpack.c.b16 %v576, %v568
      %v649 = vpack.c.b16 %v577, %v569
      %v650 = vpack.c.b16 %v578, %v570
      %v651 = vpack.c.b16 %v587, %v579
      %v652 = vpack.c.b16 %v588, %v580
      %v653 = vpack.c.b16 %v589, %v581
      %v654 = vpack.c.b16 %v590, %v582
      %v655 = vpack.c.b16 %v591, %v583
      %v656 = vpack.c.b16 %v592, %v584
      %v657 = vpack.c.b16 %v593, %v585
      %v658 = vpack.c.b16 %v594, %v586
      %723 = vmatprep.subr.bf16.mxu0 %v596
      %724 = vmatpush1.bf16.msra.mxu0 %v595
      %725 = vmatprep.subr.bf16.mxu0 %v604
      %726 = vmatpush1.bf16.msra.mxu0 %v603
      %727 = vmatprep.subr.bf16.mxu0 %v612
      %728 = vmatpush1.bf16.msra.mxu0 %v611
      %729 = vmatprep.subr.bf16.mxu0 %v620
      %730 = vmatpush1.bf16.msra.mxu0 %v619
      %731 = vmatprep.subr.bf16.mxu0 %v628
      %732 = vmatpush1.bf16.msra.mxu0 %v627
      %733 = vmatprep.subr.bf16.mxu0 %v636
      %734 = vmatpush1.bf16.msra.mxu0 %v635
      %735 = vmatprep.subr.bf16.mxu0 %v644
      %736 = vmatpush1.bf16.msra.mxu0 %v643
      %737 = vmatprep.subr.bf16.mxu0 %v652
      %738 = vmatpush1.bf16.msra.mxu0 %v651
      %739 = vmatprep.subr.bf16.mxu0 0
      %740 = vmatpush1.bf16.msra.mxu0 0
      %741 = vmatprep.subr.bf16.mxu0 0
      %742 = vmatpush1.bf16.msra.mxu0 0
      %743 = vmatprep.subr.bf16.mxu0 0
      %744 = vmatpush1.bf16.msra.mxu0 0
      %745 = vmatprep.subr.bf16.mxu0 0
      %746 = vmatpush1.bf16.msra.mxu0 0
      %747 = vmatprep.subr.bf16.mxu0 0
      %748 = vmatpush1.bf16.msra.mxu0 0
      %749 = vmatprep.subr.bf16.mxu0 0
      %750 = vmatpush1.bf16.msra.mxu0 0
      %751 = vmatprep.subr.bf16.mxu0 0
      %752 = vmatpush1.bf16.msra.mxu0 0
      %753 = vmatprep.subr.bf16.mxu0 0
      %754 = vmatpush1.bf16.msra.mxu0 0
      %755 = vmatprep.mubr.bf16.mxu0 0
      %756 = vmatmul.mubr.bf16.gmra.mrb[0].mxu0 %v331
      %v757 = vpop.f32.mrb[0].mxu0
      %v758 = vadd.f32 0.0, %v757
      %v759 = vpop.f32.mrb[0].mxu0
      %v760 = vadd.f32 0.0, %v759
      %v761 = vpop.f32.mrb[0].mxu0
      %v762 = vadd.f32 0.0, %v761
      %v763 = vpop.f32.mrb[0].mxu0
      %v764 = vadd.f32 0.0, %v763
      %765 = vmatprep.mubr.bf16.mxu0 0
      %766 = vmatmul.mubr.bf16.gmra.mrb[0].mxu0 %v332
      %v767 = vpop.f32.mrb[0].mxu0
      %v768 = vadd.f32 0.0, %v767
      %v769 = vpop.f32.mrb[0].mxu0
      %v770 = vadd.f32 0.0, %v769
      %v771 = vpop.f32.mrb[0].mxu0
      %v772 = vadd.f32 0.0, %v771
      %v773 = vpop.f32.mrb[0].mxu0
      %v774 = vadd.f32 0.0, %v773
      %775 = vmatprep.mubr.bf16.mxu0 0
      %776 = vmatmul.mubr.bf16.gmra.mrb[0].mxu0 %v333
      %v777 = vpop.f32.mrb[0].mxu0
      %v778 = vadd.f32 0.0, %v777
      %v779 = vpop.f32.mrb[0].mxu0
      %v780 = vadd.f32 0.0, %v779
      %v781 = vpop.f32.mrb[0].mxu0
      %v782 = vadd.f32 0.0, %v781
      %v783 = vpop.f32.mrb[0].mxu0
      %v784 = vadd.f32 0.0, %v783
      %785 = vmatprep.mubr.bf16.mxu0 0
      %786 = vmatmul.mubr.bf16.gmra.mrb[0].mxu0 %v334
      %v787 = vpop.f32.mrb[0].mxu0
      %v788 = vadd.f32 0.0, %v787
      %v789 = vpop.f32.mrb[0].mxu0
      %v790 = vadd.f32 0.0, %v789
      %v791 = vpop.f32.mrb[0].mxu0
      %v792 = vadd.f32 0.0, %v791
      %v793 = vpop.f32.mrb[0].mxu0
      %v794 = vadd.f32 0.0, %v793
      %795 = vmatprep.mubr.bf16.mxu0 0
      %796 = vmatmul.mubr.bf16.gmra.mrb[0].mxu0 %v335
      %v797 = vpop.f32.mrb[0].mxu0
      %v798 = vadd.f32 0.0, %v797
      %v799 = vpop.f32.mrb[0].mxu0
      %v800 = vadd.f32 0.0, %v799
      %v801 = vpop.f32.mrb[0].mxu0
      %v802 = vadd.f32 0.0, %v801
      %v803 = vpop.f32.mrb[0].mxu0
      %v804 = vadd.f32 0.0, %v803
      %805 = vmatprep.mubr.bf16.mxu0 0
      %806 = vmatmul.mubr.bf16.gmra.mrb[0].mxu0 %v336
      %v807 = vpop.f32.mrb[0].mxu0
      %v808 = vadd.f32 0.0, %v807
      %v809 = vpop.f32.mrb[0].mxu0
      %v810 = vadd.f32 0.0, %v809
      %v811 = vpop.f32.mrb[0].mxu0
      %v812 = vadd.f32 0.0, %v811
      %v813 = vpop.f32.mrb[0].mxu0
      %v814 = vadd.f32 0.0, %v813
      %815 = vmatprep.mubr.bf16.mxu0 0
      %816 = vmatmul.mubr.bf16.gmra.mrb[0].mxu0 %v337
      %v817 = vpop.f32.mrb[0].mxu0
      %v818 = vadd.f32 0.0, %v817
      %v819 = vpop.f32.mrb[0].mxu0
      %v820 = vadd.f32 0.0, %v819
      %v821 = vpop.f32.mrb[0].mxu0
      %v822 = vadd.f32 0.0, %v821
      %v823 = vpop.f32.mrb[0].mxu0
      %v824 = vadd.f32 0.0, %v823
      %825 = vmatprep.mubr.bf16.mxu0 0
      %826 = vmatmul.mubr.bf16.gmra.mrb[0].mxu0 %v338
      %v827 = vpop.f32.mrb[0].mxu0
      %v828 = vadd.f32 0.0, %v827
      %v829 = vpop.f32.mrb[0].mxu0
      %v830 = vadd.f32 0.0, %v829
      %v831 = vpop.f32.mrb[0].mxu0
      %v832 = vadd.f32 0.0, %v831
      %v833 = vpop.f32.mrb[0].mxu0
      %v834 = vadd.f32 0.0, %v833
      %835 = vdwg.mxu0
      %836 = vmatprep.subr.bf16.mxu0 %v598
      %837 = vmatpush1.bf16.msra.mxu0 %v597
      %838 = vmatprep.subr.bf16.mxu0 %v606
      %839 = vmatpush1.bf16.msra.mxu0 %v605
      %840 = vmatprep.subr.bf16.mxu0 %v614
      %841 = vmatpush1.bf16.msra.mxu0 %v613
      %842 = vmatprep.subr.bf16.mxu0 %v622
      %843 = vmatpush1.bf16.msra.mxu0 %v621
      %844 = vmatprep.subr.bf16.mxu0 %v630
      %845 = vmatpush1.bf16.msra.mxu0 %v629
      %846 = vmatprep.subr.bf16.mxu0 %v638
      %847 = vmatpush1.bf16.msra.mxu0 %v637
      %848 = vmatprep.subr.bf16.mxu0 %v646
      %849 = vmatpush1.bf16.msra.mxu0 %v645
      %850 = vmatprep.subr.bf16.mxu0 %v654
      %851 = vmatpush1.bf16.msra.mxu0 %v653
      %852 = vmatprep.subr.bf16.mxu0 0
      %853 = vmatpush1.bf16.msra.mxu0 0
      %854 = vmatprep.subr.bf16.mxu0 0
      %855 = vmatpush1.bf16.msra.mxu0 0
      %856 = vmatprep.subr.bf16.mxu0 0
      %857 = vmatpush1.bf16.msra.mxu0 0
      %858 = vmatprep.subr.bf16.mxu0 0
      %859 = vmatpush1.bf16.msra.mxu0 0
      %860 = vmatprep.subr.bf16.mxu0 0
      %861 = vmatpush1.bf16.msra.mxu0 0
      %862 = vmatprep.subr.bf16.mxu0 0
      %863 = vmatpush1.bf16.msra.mxu0 0
      %864 = vmatprep.subr.bf16.mxu0 0
      %865 = vmatpush1.bf16.msra.mxu0 0
      %866 = vmatprep.subr.bf16.mxu0 0
      %867 = vmatpush1.bf16.msra.mxu0 0
      %868 = vmatprep.mubr.bf16.mxu0 0
      %869 = vmatmul.mubr.bf16.gmra.mrb[0].mxu0 %v331
      %v870 = vpop.f32.mrb[0].mxu0
      %v871 = vadd.f32 0.0, %v870
      %v872 = vpop.f32.mrb[0].mxu0
      %v873 = vadd.f32 0.0, %v872
      %v874 = vpop.f32.mrb[0].mxu0
      %v875 = vadd.f32 0.0, %v874
      %v876 = vpop.f32.mrb[0].mxu0
      %v877 = vadd.f32 0.0, %v876
      %878 = vmatprep.mubr.bf16.mxu0 0
      %879 = vmatmul.mubr.bf16.gmra.mrb[0].mxu0 %v332
      %v880 = vpop.f32.mrb[0].mxu0
      %v881 = vadd.f32 0.0, %v880
      %v882 = vpop.f32.mrb[0].mxu0
      %v883 = vadd.f32 0.0, %v882
      %v884 = vpop.f32.mrb[0].mxu0
      %v885 = vadd.f32 0.0, %v884
      %v886 = vpop.f32.mrb[0].mxu0
      %v887 = vadd.f32 0.0, %v886
      %888 = vmatprep.mubr.bf16.mxu0 0
      %889 = vmatmul.mubr.bf16.gmra.mrb[0].mxu0 %v333
      %v890 = vpop.f32.mrb[0].mxu0
      %v891 = vadd.f32 0.0, %v890
      %v892 = vpop.f32.mrb[0].mxu0
      %v893 = vadd.f32 0.0, %v892
      %v894 = vpop.f32.mrb[0].mxu0
      %v895 = vadd.f32 0.0, %v894
      %v896 = vpop.f32.mrb[0].mxu0
      %v897 = vadd.f32 0.0, %v896
      %898 = vmatprep.mubr.bf16.mxu0 0
      %899 = vmatmul.mubr.bf16.gmra.mrb[0].mxu0 %v334
      %v900 = vpop.f32.mrb[0].mxu0
      %v901 = vadd.f32 0.0, %v900
      %v902 = vpop.f32.mrb[0].mxu0
      %v903 = vadd.f32 0.0, %v902
      %v904 = vpop.f32.mrb[0].mxu0
      %v905 = vadd.f32 0.0, %v904
      %v906 = vpop.f32.mrb[0].mxu0
      %v907 = vadd.f32 0.0, %v906
      %908 = vmatprep.mubr.bf16.mxu0 0
      %909 = vmatmul.mubr.bf16.gmra.mrb[0].mxu0 %v335
      %v910 = vpop.f32.mrb[0].mxu0
      %v911 = vadd.f32 0.0, %v910
      %v912 = vpop.f32.mrb[0].mxu0
      %v913 = vadd.f32 0.0, %v912
      %v914 = vpop.f32.mrb[0].mxu0
      %v915 = vadd.f32 0.0, %v914
      %v916 = vpop.f32.mrb[0].mxu0
      %v917 = vadd.f32 0.0, %v916
      %918 = vmatprep.mubr.bf16.mxu0 0
      %919 = vmatmul.mubr.bf16.gmra.mrb[0].mxu0 %v336
      %v920 = vpop.f32.mrb[0].mxu0
      %v921 = vadd.f32 0.0, %v920
      %v922 = vpop.f32.mrb[0].mxu0
      %v923 = vadd.f32 0.0, %v922
      %v924 = vpop.f32.mrb[0].mxu0
      %v925 = vadd.f32 0.0, %v924
      %v926 = vpop.f32.mrb[0].mxu0
      %v927 = vadd.f32 0.0, %v926
      %928 = vmatprep.mubr.bf16.mxu0 0
      %929 = vmatmul.mubr.bf16.gmra.mrb[0].mxu0 %v337
      %v930 = vpop.f32.mrb[0].mxu0
      %v931 = vadd.f32 0.0, %v930
      %v932 = vpop.f32.mrb[0].mxu0
      %v933 = vadd.f32 0.0, %v932
      %v934 = vpop.f32.mrb[0].mxu0
      %v935 = vadd.f32 0.0, %v934
      %v936 = vpop.f32.mrb[0].mxu0
      %v937 = vadd.f32 0.0, %v936
      %938 = vmatprep.mubr.bf16.mxu0 0
      %939 = vmatmul.mubr.bf16.gmra.mrb[0].mxu0 %v338
      %v940 = vpop.f32.mrb[0].mxu0
      %v941 = vadd.f32 0.0, %v940
      %v942 = vpop.f32.mrb[0].mxu0
      %v943 = vadd.f32 0.0, %v942
      %v944 = vpop.f32.mrb[0].mxu0
      %v945 = vadd.f32 0.0, %v944
      %v946 = vpop.f32.mrb[0].mxu0
      %v947 = vadd.f32 0.0, %v946
      %948 = vdwg.mxu0
      %949 = vmatprep.subr.bf16.mxu0 %v600
      %950 = vmatpush1.bf16.msra.mxu0 %v599
      %951 = vmatprep.subr.bf16.mxu0 %v608
      %952 = vmatpush1.bf16.msra.mxu0 %v607
      %953 = vmatprep.subr.bf16.mxu0 %v616
      %954 = vmatpush1.bf16.msra.mxu0 %v615
      %955 = vmatprep.subr.bf16.mxu0 %v624
      %956 = vmatpush1.bf16.msra.mxu0 %v623
      %957 = vmatprep.subr.bf16.mxu0 %v632
      %958 = vmatpush1.bf16.msra.mxu0 %v631
      %959 = vmatprep.subr.bf16.mxu0 %v640
      %960 = vmatpush1.bf16.msra.mxu0 %v639
      %961 = vmatprep.subr.bf16.mxu0 %v648
      %962 = vmatpush1.bf16.msra.mxu0 %v647
      %963 = vmatprep.subr.bf16.mxu0 %v656
      %964 = vmatpush1.bf16.msra.mxu0 %v655
      %965 = vmatprep.subr.bf16.mxu0 0
      %966 = vmatpush1.bf16.msra.mxu0 0
      %967 = vmatprep.subr.bf16.mxu0 0
      %968 = vmatpush1.bf16.msra.mxu0 0
      %969 = vmatprep.subr.bf16.mxu0 0
      %970 = vmatpush1.bf16.msra.mxu0 0
      %971 = vmatprep.subr.bf16.mxu0 0
      %972 = vmatpush1.bf16.msra.mxu0 0
      %973 = vmatprep.subr.bf16.mxu0 0
      %974 = vmatpush1.bf16.msra.mxu0 0
      %975 = vmatprep.subr.bf16.mxu0 0
      %976 = vmatpush1.bf16.msra.mxu0 0
      %977 = vmatprep.subr.bf16.mxu0 0
      %978 = vmatpush1.bf16.msra.mxu0 0
      %979 = vmatprep.subr.bf16.mxu0 0
      %980 = vmatpush1.bf16.msra.mxu0 0
      %981 = vmatprep.mubr.bf16.mxu0 0
      %982 = vmatmul.mubr.bf16.gmra.mrb[0].mxu0 %v331
      %v983 = vpop.f32.mrb[0].mxu0
      %v984 = vadd.f32 0.0, %v983
      %v985 = vpop.f32.mrb[0].mxu0
      %v986 = vadd.f32 0.0, %v985
      %v987 = vpop.f32.mrb[0].mxu0
      %v988 = vadd.f32 0.0, %v987
      %v989 = vpop.f32.mrb[0].mxu0
      %v990 = vadd.f32 0.0, %v989
      %991 = vmatprep.mubr.bf16.mxu0 0
      %992 = vmatmul.mubr.bf16.gmra.mrb[0].mxu0 %v332
      %v993 = vpop.f32.mrb[0].mxu0
      %v994 = vadd.f32 0.0, %v993
      %v995 = vpop.f32.mrb[0].mxu0
      %v996 = vadd.f32 0.0, %v995
      %v997 = vpop.f32.mrb[0].mxu0
      %v998 = vadd.f32 0.0, %v997
      %v999 = vpop.f32.mrb[0].mxu0
      %v1000 = vadd.f32 0.0, %v999
      %1001 = vmatprep.mubr.bf16.mxu0 0
      %1002 = vmatmul.mubr.bf16.gmra.mrb[0].mxu0 %v333
      %v1003 = vpop.f32.mrb[0].mxu0
      %v1004 = vadd.f32 0.0, %v1003
      %v1005 = vpop.f32.mrb[0].mxu0
      %v1006 = vadd.f32 0.0, %v1005
      %v1007 = vpop.f32.mrb[0].mxu0
      %v1008 = vadd.f32 0.0, %v1007
      %v1009 = vpop.f32.mrb[0].mxu0
      %v1010 = vadd.f32 0.0, %v1009
      %1011 = vmatprep.mubr.bf16.mxu0 0
      %1012 = vmatmul.mubr.bf16.gmra.mrb[0].mxu0 %v334
      %v1013 = vpop.f32.mrb[0].mxu0
      %v1014 = vadd.f32 0.0, %v1013
      %v1015 = vpop.f32.mrb[0].mxu0
      %v1016 = vadd.f32 0.0, %v1015
      %v1017 = vpop.f32.mrb[0].mxu0
      %v1018 = vadd.f32 0.0, %v1017
      %v1019 = vpop.f32.mrb[0].mxu0
      %v1020 = vadd.f32 0.0, %v1019
      %1021 = vmatprep.mubr.bf16.mxu0 0
      %1022 = vmatmul.mubr.bf16.gmra.mrb[0].mxu0 %v335
      %v1023 = vpop.f32.mrb[0].mxu0
      %v1024 = vadd.f32 0.0, %v1023
      %v1025 = vpop.f32.mrb[0].mxu0
      %v1026 = vadd.f32 0.0, %v1025
      %v1027 = vpop.f32.mrb[0].mxu0
      %v1028 = vadd.f32 0.0, %v1027
      %v1029 = vpop.f32.mrb[0].mxu0
      %v1030 = vadd.f32 0.0, %v1029
      %1031 = vmatprep.mubr.bf16.mxu0 0
      %1032 = vmatmul.mubr.bf16.gmra.mrb[0].mxu0 %v336
      %v1033 = vpop.f32.mrb[0].mxu0
      %v1034 = vadd.f32 0.0, %v1033
      %v1035 = vpop.f32.mrb[0].mxu0
      %v1036 = vadd.f32 0.0, %v1035
      %v1037 = vpop.f32.mrb[0].mxu0
      %v1038 = vadd.f32 0.0, %v1037
      %v1039 = vpop.f32.mrb[0].mxu0
      %v1040 = vadd.f32 0.0, %v1039
      %1041 = vmatprep.mubr.bf16.mxu0 0
      %1042 = vmatmul.mubr.bf16.gmra.mrb[0].mxu0 %v337
      %v1043 = vpop.f32.mrb[0].mxu0
      %v1044 = vadd.f32 0.0, %v1043
      %v1045 = vpop.f32.mrb[0].mxu0
      %v1046 = vadd.f32 0.0, %v1045
      %v1047 = vpop.f32.mrb[0].mxu0
      %v1048 = vadd.f32 0.0, %v1047
      %v1049 = vpop.f32.mrb[0].mxu0
      %v1050 = vadd.f32 0.0, %v1049
      %1051 = vmatprep.mubr.bf16.mxu0 0
      %1052 = vmatmul.mubr.bf16.gmra.mrb[0].mxu0 %v338
      %v1053 = vpop.f32.mrb[0].mxu0
      %v1054 = vadd.f32 0.0, %v1053
      %v1055 = vpop.f32.mrb[0].mxu0
      %v1056 = vadd.f32 0.0, %v1055
      %v1057 = vpop.f32.mrb[0].mxu0
      %v1058 = vadd.f32 0.0, %v1057
      %v1059 = vpop.f32.mrb[0].mxu0
      %v1060 = vadd.f32 0.0, %v1059
      %1061 = vdwg.mxu0
      %1062 = vmatprep.subr.bf16.mxu0 %v602
      %1063 = vmatpush1.bf16.msra.mxu0 %v601
      %1064 = vmatprep.subr.bf16.mxu0 %v610
      %1065 = vmatpush1.bf16.msra.mxu0 %v609
      %1066 = vmatprep.subr.bf16.mxu0 %v618
      %1067 = vmatpush1.bf16.msra.mxu0 %v617
      %1068 = vmatprep.subr.bf16.mxu0 %v626
      %1069 = vmatpush1.bf16.msra.mxu0 %v625
      %1070 = vmatprep.subr.bf16.mxu0 %v634
      %1071 = vmatpush1.bf16.msra.mxu0 %v633
      %1072 = vmatprep.subr.bf16.mxu0 %v642
      %1073 = vmatpush1.bf16.msra.mxu0 %v641
      %1074 = vmatprep.subr.bf16.mxu0 %v650
      %1075 = vmatpush1.bf16.msra.mxu0 %v649
      %1076 = vmatprep.subr.bf16.mxu0 %v658
      %1077 = vmatpush1.bf16.msra.mxu0 %v657
      %1078 = vmatprep.subr.bf16.mxu0 0
      %1079 = vmatpush1.bf16.msra.mxu0 0
      %1080 = vmatprep.subr.bf16.mxu0 0
      %1081 = vmatpush1.bf16.msra.mxu0 0
      %1082 = vmatprep.subr.bf16.mxu0 0
      %1083 = vmatpush1.bf16.msra.mxu0 0
      %1084 = vmatprep.subr.bf16.mxu0 0
      %1085 = vmatpush1.bf16.msra.mxu0 0
      %1086 = vmatprep.subr.bf16.mxu0 0
      %1087 = vmatpush1.bf16.msra.mxu0 0
      %1088 = vmatprep.subr.bf16.mxu0 0
      %1089 = vmatpush1.bf16.msra.mxu0 0
      %1090 = vmatprep.subr.bf16.mxu0 0
      %1091 = vmatpush1.bf16.msra.mxu0 0
      %1092 = vmatprep.subr.bf16.mxu0 0
      %1093 = vmatpush1.bf16.msra.mxu0 0
      %1094 = vmatprep.mubr.bf16.mxu0 0
      %1095 = vmatmul.mubr.bf16.gmra.mrb[0].mxu0 %v331
      %v1096 = vpop.f32.mrb[0].mxu0
      %v1097 = vadd.f32 0.0, %v1096
      %v1098 = vpop.f32.mrb[0].mxu0
      %v1099 = vadd.f32 0.0, %v1098
      %v1100 = vpop.f32.mrb[0].mxu0
      %v1101 = vadd.f32 0.0, %v1100
      %v1102 = vpop.f32.mrb[0].mxu0
      %v1103 = vadd.f32 0.0, %v1102
      %1104 = vmatprep.mubr.bf16.mxu0 0
      %1105 = vmatmul.mubr.bf16.gmra.mrb[0].mxu0 %v332
      %v1106 = vpop.f32.mrb[0].mxu0
      %v1107 = vadd.f32 0.0, %v1106
      %v1108 = vpop.f32.mrb[0].mxu0
      %v1109 = vadd.f32 0.0, %v1108
      %v1110 = vpop.f32.mrb[0].mxu0
      %v1111 = vadd.f32 0.0, %v1110
      %v1112 = vpop.f32.mrb[0].mxu0
      %v1113 = vadd.f32 0.0, %v1112
      %1114 = vmatprep.mubr.bf16.mxu0 0
      %1115 = vmatmul.mubr.bf16.gmra.mrb[0].mxu0 %v333
      %v1116 = vpop.f32.mrb[0].mxu0
      %v1117 = vadd.f32 0.0, %v1116
      %v1118 = vpop.f32.mrb[0].mxu0
      %v1119 = vadd.f32 0.0, %v1118
      %v1120 = vpop.f32.mrb[0].mxu0
      %v1121 = vadd.f32 0.0, %v1120
      %v1122 = vpop.f32.mrb[0].mxu0
      %v1123 = vadd.f32 0.0, %v1122
      %1124 = vmatprep.mubr.bf16.mxu0 0
      %1125 = vmatmul.mubr.bf16.gmra.mrb[0].mxu0 %v334
      %v1126 = vpop.f32.mrb[0].mxu0
      %v1127 = vadd.f32 0.0, %v1126
      %v1128 = vpop.f32.mrb[0].mxu0
      %v1129 = vadd.f32 0.0, %v1128
      %v1130 = vpop.f32.mrb[0].mxu0
      %v1131 = vadd.f32 0.0, %v1130
      %v1132 = vpop.f32.mrb[0].mxu0
      %v1133 = vadd.f32 0.0, %v1132
      %1134 = vmatprep.mubr.bf16.mxu0 0
      %1135 = vmatmul.mubr.bf16.gmra.mrb[0].mxu0 %v335
      %v1136 = vpop.f32.mrb[0].mxu0
      %v1137 = vadd.f32 0.0, %v1136
      %v1138 = vpop.f32.mrb[0].mxu0
      %v1139 = vadd.f32 0.0, %v1138
      %v1140 = vpop.f32.mrb[0].mxu0
      %v1141 = vadd.f32 0.0, %v1140
      %v1142 = vpop.f32.mrb[0].mxu0
      %v1143 = vadd.f32 0.0, %v1142
      %1144 = vmatprep.mubr.bf16.mxu0 0
      %1145 = vmatmul.mubr.bf16.gmra.mrb[0].mxu0 %v336
      %v1146 = vpop.f32.mrb[0].mxu0
      %v1147 = vadd.f32 0.0, %v1146
      %v1148 = vpop.f32.mrb[0].mxu0
      %v1149 = vadd.f32 0.0, %v1148
      %v1150 = vpop.f32.mrb[0].mxu0
      %v1151 = vadd.f32 0.0, %v1150
      %v1152 = vpop.f32.mrb[0].mxu0
      %v1153 = vadd.f32 0.0, %v1152
      %1154 = vmatprep.mubr.bf16.mxu0 0
      %1155 = vmatmul.mubr.bf16.gmra.mrb[0].mxu0 %v337
      %v1156 = vpop.f32.mrb[0].mxu0
      %v1157 = vadd.f32 0.0, %v1156
      %v1158 = vpop.f32.mrb[0].mxu0
      %v1159 = vadd.f32 0.0, %v1158
      %v1160 = vpop.f32.mrb[0].mxu0
      %v1161 = vadd.f32 0.0, %v1160
      %v1162 = vpop.f32.mrb[0].mxu0
      %v1163 = vadd.f32 0.0, %v1162
      %1164 = vmatprep.mubr.bf16.mxu0 0
      %1165 = vmatmul.mubr.bf16.gmra.mrb[0].mxu0 %v338
      %v1166 = vpop.f32.mrb[0].mxu0
      %v1167 = vadd.f32 0.0, %v1166
      %v1168 = vpop.f32.mrb[0].mxu0
      %v1169 = vadd.f32 0.0, %v1168
      %v1170 = vpop.f32.mrb[0].mxu0
      %v1171 = vadd.f32 0.0, %v1170
      %v1172 = vpop.f32.mrb[0].mxu0
      %v1173 = vadd.f32 0.0, %v1172
      %1174 = vdwg.mxu0
      %1175 = vmatprep.subr.mxu0 %v760
      %1176 = vmatpush1.msra.mxu0 %v758
      %1177 = vmatprep.subr.mxu0 %v764
      %1178 = vmatpush1.msra.mxu0 %v762
      %1179 = vmatprep.subr.mxu0 %v770
      %1180 = vmatpush1.msra.mxu0 %v768
      %1181 = vmatprep.subr.mxu0 %v774
      %1182 = vmatpush1.msra.mxu0 %v772
      %1183 = vmatprep.subr.mxu0 %v780
      %1184 = vmatpush1.msra.mxu0 %v778
      %1185 = vmatprep.subr.mxu0 %v784
      %1186 = vmatpush1.msra.mxu0 %v782
      %1187 = vmatprep.subr.mxu0 %v790
      %1188 = vmatpush1.msra.mxu0 %v788
      %1189 = vmatprep.subr.mxu0 %v794
      %1190 = vmatpush1.msra.mxu0 %v792
      %1191 = vmatprep.subr.mxu0 %v800
      %1192 = vmatpush1.msra.mxu0 %v798
      %1193 = vmatprep.subr.mxu0 %v804
      %1194 = vmatpush1.msra.mxu0 %v802
      %1195 = vmatprep.subr.mxu0 %v810
      %1196 = vmatpush1.msra.mxu0 %v808
      %1197 = vmatprep.subr.mxu0 %v814
      %1198 = vmatpush1.msra.mxu0 %v812
      %1199 = vmatprep.subr.mxu0 %v820
      %1200 = vmatpush1.msra.mxu0 %v818
      %1201 = vmatprep.subr.mxu0 %v824
      %1202 = vmatpush1.msra.mxu0 %v822
      %1203 = vmatprep.subr.mxu0 %v830
      %1204 = vmatpush1.msra.mxu0 %v828
      %1205 = vmatprep.subr.mxu0 %v834
      %1206 = vmatpush1.msra.mxu0 %v832
      %1207 = vmatprep.subr.mxu0 0.0
      %1208 = vmatpush1.msra.mxu0 0.0
      %1209 = vmatprep.subr.mxu0 0.0
      %1210 = vmatpush1.msra.mxu0 0.0
      %1211 = vmatprep.subr.mxu0 0.0
      %1212 = vmatpush1.msra.mxu0 0.0
      %1213 = vmatprep.subr.mxu0 0.0
      %1214 = vmatpush1.msra.mxu0 0.0
      %1215 = vmatprep.subr.mxu0 0.0
      %1216 = vmatpush1.msra.mxu0 0.0
      %1217 = vmatprep.subr.mxu0 0.0
      %1218 = vmatpush1.msra.mxu0 0.0
      %1219 = vmatprep.subr.mxu0 0.0
      %1220 = vmatpush1.msra.mxu0 0.0
      %1221 = vmatprep.subr.mxu0 0.0
      %1222 = vmatpush1.msra.mxu0 0.0
      %1223 = vmatprep.subr.mxu0 0.0
      %1224 = vmatpush1.msra.mxu0 0.0
      %1225 = vmatprep.subr.mxu0 0.0
      %1226 = vmatpush1.msra.mxu0 0.0
      %1227 = vmatprep.subr.mxu0 0.0
      %1228 = vmatpush1.msra.mxu0 0.0
      %1229 = vmatprep.subr.mxu0 0.0
      %1230 = vmatpush1.msra.mxu0 0.0
      %1231 = vmatprep.subr.mxu0 0.0
      %1232 = vmatpush1.msra.mxu0 0.0
      %1233 = vmatprep.subr.mxu0 0.0
      %1234 = vmatpush1.msra.mxu0 0.0
      %1235 = vmatprep.subr.mxu0 0.0
      %1236 = vmatpush1.msra.mxu0 0.0
      %1237 = vmatprep.subr.mxu0 0.0
      %1238 = vmatpush1.msra.mxu0 0.0
      %1239 = vmatprep.mubr.f32.mxu0 0.0
      %1240 = vmatmul.mubr.f32.gmra.mrb[0].mxu0 1.0
      %v1241 = vpop.f32.mrb[0].mxu0
      %v1242 = vadd.f32 0.0, %v1241
      %v1243 = vpop.f32.mrb[0].mxu0
      %v1244 = vadd.f32 0.0, %v1243
      %1245 = vdwg.mxu0
      %1246 = vmatprep.subr.mxu0 %v873
      %1247 = vmatpush1.msra.mxu0 %v871
      %1248 = vmatprep.subr.mxu0 %v877
      %1249 = vmatpush1.msra.mxu0 %v875
      %1250 = vmatprep.subr.mxu0 %v883
      %1251 = vmatpush1.msra.mxu0 %v881
      %1252 = vmatprep.subr.mxu0 %v887
      %1253 = vmatpush1.msra.mxu0 %v885
      %1254 = vmatprep.subr.mxu0 %v893
      %1255 = vmatpush1.msra.mxu0 %v891
      %1256 = vmatprep.subr.mxu0 %v897
      %1257 = vmatpush1.msra.mxu0 %v895
      %1258 = vmatprep.subr.mxu0 %v903
      %1259 = vmatpush1.msra.mxu0 %v901
      %1260 = vmatprep.subr.mxu0 %v907
      %1261 = vmatpush1.msra.mxu0 %v905
      %1262 = vmatprep.subr.mxu0 %v913
      %1263 = vmatpush1.msra.mxu0 %v911
      %1264 = vmatprep.subr.mxu0 %v917
      %1265 = vmatpush1.msra.mxu0 %v915
      %1266 = vmatprep.subr.mxu0 %v923
      %1267 = vmatpush1.msra.mxu0 %v921
      %1268 = vmatprep.subr.mxu0 %v927
      %1269 = vmatpush1.msra.mxu0 %v925
      %1270 = vmatprep.subr.mxu0 %v933
      %1271 = vmatpush1.msra.mxu0 %v931
      %1272 = vmatprep.subr.mxu0 %v937
      %1273 = vmatpush1.msra.mxu0 %v935
      %1274 = vmatprep.subr.mxu0 %v943
      %1275 = vmatpush1.msra.mxu0 %v941
      %1276 = vmatprep.subr.mxu0 %v947
      %1277 = vmatpush1.msra.mxu0 %v945
      %1278 = vmatprep.subr.mxu0 0.0
      %1279 = vmatpush1.msra.mxu0 0.0
      %1280 = vmatprep.subr.mxu0 0.0
      %1281 = vmatpush1.msra.mxu0 0.0
      %1282 = vmatprep.subr.mxu0 0.0
      %1283 = vmatpush1.msra.mxu0 0.0
      %1284 = vmatprep.subr.mxu0 0.0
      %1285 = vmatpush1.msra.mxu0 0.0
      %1286 = vmatprep.subr.mxu0 0.0
      %1287 = vmatpush1.msra.mxu0 0.0
      %1288 = vmatprep.subr.mxu0 0.0
      %1289 = vmatpush1.msra.mxu0 0.0
      %1290 = vmatprep.subr.mxu0 0.0
      %1291 = vmatpush1.msra.mxu0 0.0
      %1292 = vmatprep.subr.mxu0 0.0
      %1293 = vmatpush1.msra.mxu0 0.0
      %1294 = vmatprep.subr.mxu0 0.0
      %1295 = vmatpush1.msra.mxu0 0.0
      %1296 = vmatprep.subr.mxu0 0.0
      %1297 = vmatpush1.msra.mxu0 0.0
      %1298 = vmatprep.subr.mxu0 0.0
      %1299 = vmatpush1.msra.mxu0 0.0
      %1300 = vmatprep.subr.mxu0 0.0
      %1301 = vmatpush1.msra.mxu0 0.0
      %1302 = vmatprep.subr.mxu0 0.0
      %1303 = vmatpush1.msra.mxu0 0.0
      %1304 = vmatprep.subr.mxu0 0.0
      %1305 = vmatpush1.msra.mxu0 0.0
      %1306 = vmatprep.subr.mxu0 0.0
      %1307 = vmatpush1.msra.mxu0 0.0
      %1308 = vmatprep.subr.mxu0 0.0
      %1309 = vmatpush1.msra.mxu0 0.0
      %1310 = vmatprep.mubr.f32.mxu0 0.0
      %1311 = vmatmul.mubr.f32.gmra.mrb[0].mxu0 1.0
      %v1312 = vpop.f32.mrb[0].mxu0
      %v1313 = vadd.f32 0.0, %v1312
      %v1314 = vpop.f32.mrb[0].mxu0
      %v1315 = vadd.f32 0.0, %v1314
      %1316 = vdwg.mxu0
      %1317 = vmatprep.subr.mxu0 %v986
      %1318 = vmatpush1.msra.mxu0 %v984
      %1319 = vmatprep.subr.mxu0 %v990
      %1320 = vmatpush1.msra.mxu0 %v988
      %1321 = vmatprep.subr.mxu0 %v996
      %1322 = vmatpush1.msra.mxu0 %v994
      %1323 = vmatprep.subr.mxu0 %v1000
      %1324 = vmatpush1.msra.mxu0 %v998
      %1325 = vmatprep.subr.mxu0 %v1006
      %1326 = vmatpush1.msra.mxu0 %v1004
      %1327 = vmatprep.subr.mxu0 %v1010
      %1328 = vmatpush1.msra.mxu0 %v1008
      %1329 = vmatprep.subr.mxu0 %v1016
      %1330 = vmatpush1.msra.mxu0 %v1014
      %1331 = vmatprep.subr.mxu0 %v1020
      %1332 = vmatpush1.msra.mxu0 %v1018
      %1333 = vmatprep.subr.mxu0 %v1026
      %1334 = vmatpush1.msra.mxu0 %v1024
      %1335 = vmatprep.subr.mxu0 %v1030
      %1336 = vmatpush1.msra.mxu0 %v1028
      %1337 = vmatprep.subr.mxu0 %v1036
      %1338 = vmatpush1.msra.mxu0 %v1034
      %1339 = vmatprep.subr.mxu0 %v1040
      %1340 = vmatpush1.msra.mxu0 %v1038
      %1341 = vmatprep.subr.mxu0 %v1046
      %1342 = vmatpush1.msra.mxu0 %v1044
      %1343 = vmatprep.subr.mxu0 %v1050
      %1344 = vmatpush1.msra.mxu0 %v1048
      %1345 = vmatprep.subr.mxu0 %v1056
      %1346 = vmatpush1.msra.mxu0 %v1054
      %1347 = vmatprep.subr.mxu0 %v1060
      %1348 = vmatpush1.msra.mxu0 %v1058
      %1349 = vmatprep.subr.mxu0 0.0
      %1350 = vmatpush1.msra.mxu0 0.0
      %1351 = vmatprep.subr.mxu0 0.0
      %1352 = vmatpush1.msra.mxu0 0.0
      %1353 = vmatprep.subr.mxu0 0.0
      %1354 = vmatpush1.msra.mxu0 0.0
      %1355 = vmatprep.subr.mxu0 0.0
      %1356 = vmatpush1.msra.mxu0 0.0
      %1357 = vmatprep.subr.mxu0 0.0
      %1358 = vmatpush1.msra.mxu0 0.0
      %1359 = vmatprep.subr.mxu0 0.0
      %1360 = vmatpush1.msra.mxu0 0.0
      %1361 = vmatprep.subr.mxu0 0.0
      %1362 = vmatpush1.msra.mxu0 0.0
      %1363 = vmatprep.subr.mxu0 0.0
      %1364 = vmatpush1.msra.mxu0 0.0
      %1365 = vmatprep.subr.mxu0 0.0
      %1366 = vmatpush1.msra.mxu0 0.0
      %1367 = vmatprep.subr.mxu0 0.0
      %1368 = vmatpush1.msra.mxu0 0.0
      %1369 = vmatprep.subr.mxu0 0.0
      %1370 = vmatpush1.msra.mxu0 0.0
      %1371 = vmatprep.subr.mxu0 0.0
      %1372 = vmatpush1.msra.mxu0 0.0
      %1373 = vmatprep.subr.mxu0 0.0
      %1374 = vmatpush1.msra.mxu0 0.0
      %1375 = vmatprep.subr.mxu0 0.0
      %1376 = vmatpush1.msra.mxu0 0.0
      %1377 = vmatprep.subr.mxu0 0.0
      %1378 = vmatpush1.msra.mxu0 0.0
      %1379 = vmatprep.subr.mxu0 0.0
      %1380 = vmatpush1.msra.mxu0 0.0
      %1381 = vmatprep.mubr.f32.mxu0 0.0
      %1382 = vmatmul.mubr.f32.gmra.mrb[0].mxu0 1.0
      %v1383 = vpop.f32.mrb[0].mxu0
      %v1384 = vadd.f32 0.0, %v1383
      %v1385 = vpop.f32.mrb[0].mxu0
      %v1386 = vadd.f32 0.0, %v1385
      %1387 = vdwg.mxu0
      %1388 = vmatprep.subr.mxu0 %v1099
      %1389 = vmatpush1.msra.mxu0 %v1097
      %1390 = vmatprep.subr.mxu0 %v1103
      %1391 = vmatpush1.msra.mxu0 %v1101
      %1392 = vmatprep.subr.mxu0 %v1109
      %1393 = vmatpush1.msra.mxu0 %v1107
      %1394 = vmatprep.subr.mxu0 %v1113
      %1395 = vmatpush1.msra.mxu0 %v1111
      %1396 = vmatprep.subr.mxu0 %v1119
      %1397 = vmatpush1.msra.mxu0 %v1117
      %1398 = vmatprep.subr.mxu0 %v1123
      %1399 = vmatpush1.msra.mxu0 %v1121
      %1400 = vmatprep.subr.mxu0 %v1129
      %1401 = vmatpush1.msra.mxu0 %v1127
      %1402 = vmatprep.subr.mxu0 %v1133
      %1403 = vmatpush1.msra.mxu0 %v1131
      %1404 = vmatprep.subr.mxu0 %v1139
      %1405 = vmatpush1.msra.mxu0 %v1137
      %1406 = vmatprep.subr.mxu0 %v1143
      %1407 = vmatpush1.msra.mxu0 %v1141
      %1408 = vmatprep.subr.mxu0 %v1149
      %1409 = vmatpush1.msra.mxu0 %v1147
      %1410 = vmatprep.subr.mxu0 %v1153
      %1411 = vmatpush1.msra.mxu0 %v1151
      %1412 = vmatprep.subr.mxu0 %v1159
      %1413 = vmatpush1.msra.mxu0 %v1157
      %1414 = vmatprep.subr.mxu0 %v1163
      %1415 = vmatpush1.msra.mxu0 %v1161
      %1416 = vmatprep.subr.mxu0 %v1169
      %1417 = vmatpush1.msra.mxu0 %v1167
      %1418 = vmatprep.subr.mxu0 %v1173
      %1419 = vmatpush1.msra.mxu0 %v1171
      %1420 = vmatprep.subr.mxu0 0.0
      %1421 = vmatpush1.msra.mxu0 0.0
      %1422 = vmatprep.subr.mxu0 0.0
      %1423 = vmatpush1.msra.mxu0 0.0
      %1424 = vmatprep.subr.mxu0 0.0
      %1425 = vmatpush1.msra.mxu0 0.0
      %1426 = vmatprep.subr.mxu0 0.0
      %1427 = vmatpush1.msra.mxu0 0.0
      %1428 = vmatprep.subr.mxu0 0.0
      %1429 = vmatpush1.msra.mxu0 0.0
      %1430 = vmatprep.subr.mxu0 0.0
      %1431 = vmatpush1.msra.mxu0 0.0
      %1432 = vmatprep.subr.mxu0 0.0
      %1433 = vmatpush1.msra.mxu0 0.0
      %1434 = vmatprep.subr.mxu0 0.0
      %1435 = vmatpush1.msra.mxu0 0.0
      %1436 = vmatprep.subr.mxu0 0.0
      %1437 = vmatpush1.msra.mxu0 0.0
      %1438 = vmatprep.subr.mxu0 0.0
      %1439 = vmatpush1.msra.mxu0 0.0
      %1440 = vmatprep.subr.mxu0 0.0
      %1441 = vmatpush1.msra.mxu0 0.0
      %1442 = vmatprep.subr.mxu0 0.0
      %1443 = vmatpush1.msra.mxu0 0.0
      %1444 = vmatprep.subr.mxu0 0.0
      %1445 = vmatpush1.msra.mxu0 0.0
      %1446 = vmatprep.subr.mxu0 0.0
      %1447 = vmatpush1.msra.mxu0 0.0
      %1448 = vmatprep.subr.mxu0 0.0
      %1449 = vmatpush1.msra.mxu0 0.0
      %1450 = vmatprep.subr.mxu0 0.0
      %1451 = vmatpush1.msra.mxu0 0.0
      %1452 = vmatprep.mubr.f32.mxu0 0.0
      %1453 = vmatmul.mubr.f32.gmra.mrb[0].mxu0 1.0
      %v1454 = vpop.f32.mrb[0].mxu0
      %v1455 = vadd.f32 0.0, %v1454
      %v1456 = vpop.f32.mrb[0].mxu0
      %v1457 = vadd.f32 0.0, %v1456
      %1458 = vdwg.mxu0
      %v1467 = vcombine.low %v1242, %v1244
      %v1468 = vcombine.low %v1313, %v1315
      %v1469 = vcombine.low %v1384, %v1386
      %v1470 = vcombine.low %v1455, %v1457
      %v1472 = vunpack.c.l.s4 1966171168
      %v1473 = vunpack.c.0.s8 %v1472
      %v1474 = vlaneseq
      %v1475 = vshrl.u32 %v1474, 7
      %v1476 = vsub.s32 %v1473, %v1475
      %v1477 = vrot.slane %v1467, %v1476
      %v1479 = vunpack.c.l.s4 1966171168
      %v1480 = vunpack.c.0.s8 %v1479
      %v1481 = vlaneseq
      %v1482 = vshrl.u32 %v1481, 7
      %v1483 = vsub.s32 %v1480, %v1482
      %v1484 = vrot.slane %v1468, %v1483
      %v1486 = vunpack.c.l.s4 1966171168
      %v1487 = vunpack.c.0.s8 %v1486
      %v1488 = vlaneseq
      %v1489 = vshrl.u32 %v1488, 7
      %v1490 = vsub.s32 %v1487, %v1489
      %v1491 = vrot.slane %v1469, %v1490
      %v1493 = vunpack.c.l.s4 1966171168
      %v1494 = vunpack.c.0.s8 %v1493
      %v1495 = vlaneseq
      %v1496 = vshrl.u32 %v1495, 7
      %v1497 = vsub.s32 %v1494, %v1496
      %v1498 = vrot.slane %v1470, %v1497
      %v1499 = vcombine.low %v1477, %v1484
      %v1500 = vcombine.low %v1491, %v1498
      %v1502 = vunpack.c.l.s4 1966171168
      %v1503 = vunpack.c.0.s8 %v1502
      %v1504 = vlaneseq
      %v1505 = vshrl.u32 %v1504, 7
      %v1506 = vsub.s32 %v1503, %v1505
      %v1507 = vrot.slane %v1499, %v1506
      %v1509 = vunpack.c.l.s4 1966171168
      %v1510 = vunpack.c.0.s8 %v1509
      %v1511 = vlaneseq
      %v1512 = vshrl.u32 %v1511, 7
      %v1513 = vsub.s32 %v1510, %v1512
      %v1514 = vrot.slane %v1500, %v1513
      %v1515 = vcombine.low %v1507, %v1514
      %1517 = vst [vmem:[%s235] ss:$4 sm:$0xff] %v1515
      %v1518 = vmul.f32 %v758, %v758
      %v1519 = vmul.f32 %v760, %v760
      %v1520 = vmul.f32 %v871, %v871
      %v1521 = vmul.f32 %v873, %v873
      %v1522 = vmul.f32 %v984, %v984
      %v1523 = vmul.f32 %v986, %v986
      %v1524 = vmul.f32 %v1097, %v1097
      %v1525 = vmul.f32 %v1099, %v1099
      %v1526 = vmul.f32 %v762, %v762
      %v1527 = vmul.f32 %v764, %v764
      %v1528 = vmul.f32 %v875, %v875
      %v1529 = vmul.f32 %v877, %v877
      %v1530 = vmul.f32 %v988, %v988
      %v1531 = vmul.f32 %v990, %v990
      %v1532 = vmul.f32 %v1101, %v1101
      %v1533 = vmul.f32 %v1103, %v1103
      %v1534 = vmul.f32 %v768, %v768
      %v1535 = vmul.f32 %v770, %v770
      %v1536 = vmul.f32 %v881, %v881
      %v1537 = vmul.f32 %v883, %v883
      %v1538 = vmul.f32 %v994, %v994
      %v1539 = vmul.f32 %v996, %v996
      %v1540 = vmul.f32 %v1107, %v1107
      %v1541 = vmul.f32 %v1109, %v1109
      %v1542 = vmul.f32 %v772, %v772
      %v1543 = vmul.f32 %v774, %v774
      %v1544 = vmul.f32 %v885, %v885
      %v1545 = vmul.f32 %v887, %v887
      %v1546 = vmul.f32 %v998, %v998
      %v1547 = vmul.f32 %v1000, %v1000
      %v1548 = vmul.f32 %v1111, %v1111
      %v1549 = vmul.f32 %v1113, %v1113
      %v1550 = vmul.f32 %v778, %v778
      %v1551 = vmul.f32 %v780, %v780
      %v1552 = vmul.f32 %v891, %v891
      %v1553 = vmul.f32 %v893, %v893
      %v1554 = vmul.f32 %v1004, %v1004
      %v1555 = vmul.f32 %v1006, %v1006
      %v1556 = vmul.f32 %v1117, %v1117
      %v1557 = vmul.f32 %v1119, %v1119
      %v1558 = vmul.f32 %v782, %v782
      %v1559 = vmul.f32 %v784, %v784
      %v1560 = vmul.f32 %v895, %v895
      %v1561 = vmul.f32 %v897, %v897
      %v1562 = vmul.f32 %v1008, %v1008
      %v1563 = vmul.f32 %v1010, %v1010
      %v1564 = vmul.f32 %v1121, %v1121
      %v1565 = vmul.f32 %v1123, %v1123
      %v1566 = vmul.f32 %v788, %v788
      %v1567 = vmul.f32 %v790, %v790
      %v1568 = vmul.f32 %v901, %v901
      %v1569 = vmul.f32 %v903, %v903
      %v1570 = vmul.f32 %v1014, %v1014
      %v1571 = vmul.f32 %v1016, %v1016
      %v1572 = vmul.f32 %v1127, %v1127
      %v1573 = vmul.f32 %v1129, %v1129
      %v1574 = vmul.f32 %v792, %v792
      %v1575 = vmul.f32 %v794, %v794
      %v1576 = vmul.f32 %v905, %v905
      %v1577 = vmul.f32 %v907, %v907
      %v1578 = vmul.f32 %v1018, %v1018
      %v1579 = vmul.f32 %v1020, %v1020
      %v1580 = vmul.f32 %v1131, %v1131
      %v1581 = vmul.f32 %v1133, %v1133
      %v1582 = vmul.f32 %v798, %v798
      %v1583 = vmul.f32 %v800, %v800
      %v1584 = vmul.f32 %v911, %v911
      %v1585 = vmul.f32 %v913, %v913
      %v1586 = vmul.f32 %v1024, %v1024
      %v1587 = vmul.f32 %v1026, %v1026
      %v1588 = vmul.f32 %v1137, %v1137
      %v1589 = vmul.f32 %v1139, %v1139
      %v1590 = vmul.f32 %v802, %v802
      %v1591 = vmul.f32 %v804, %v804
      %v1592 = vmul.f32 %v915, %v915
      %v1593 = vmul.f32 %v917, %v917
      %v1594 = vmul.f32 %v1028, %v1028
      %v1595 = vmul.f32 %v1030, %v1030
      %v1596 = vmul.f32 %v1141, %v1141
      %v1597 = vmul.f32 %v1143, %v1143
      %v1598 = vmul.f32 %v808, %v808
      %v1599 = vmul.f32 %v810, %v810
      %v1600 = vmul.f32 %v921, %v921
      %v1601 = vmul.f32 %v923, %v923
      %v1602 = vmul.f32 %v1034, %v1034
      %v1603 = vmul.f32 %v1036, %v1036
      %v1604 = vmul.f32 %v1147, %v1147
      %v1605 = vmul.f32 %v1149, %v1149
      %v1606 = vmul.f32 %v812, %v812
      %v1607 = vmul.f32 %v814, %v814
      %v1608 = vmul.f32 %v925, %v925
      %v1609 = vmul.f32 %v927, %v927
      %v1610 = vmul.f32 %v1038, %v1038
      %v1611 = vmul.f32 %v1040, %v1040
      %v1612 = vmul.f32 %v1151, %v1151
      %v1613 = vmul.f32 %v1153, %v1153
      %v1614 = vmul.f32 %v818, %v818
      %v1615 = vmul.f32 %v820, %v820
      %v1616 = vmul.f32 %v931, %v931
      %v1617 = vmul.f32 %v933, %v933
      %v1618 = vmul.f32 %v1044, %v1044
      %v1619 = vmul.f32 %v1046, %v1046
      %v1620 = vmul.f32 %v1157, %v1157
      %v1621 = vmul.f32 %v1159, %v1159
      %v1622 = vmul.f32 %v822, %v822
      %v1623 = vmul.f32 %v824, %v824
      %v1624 = vmul.f32 %v935, %v935
      %v1625 = vmul.f32 %v937, %v937
      %v1626 = vmul.f32 %v1048, %v1048
      %v1627 = vmul.f32 %v1050, %v1050
      %v1628 = vmul.f32 %v1161, %v1161
      %v1629 = vmul.f32 %v1163, %v1163
      %v1630 = vmul.f32 %v828, %v828
      %v1631 = vmul.f32 %v830, %v830
      %v1632 = vmul.f32 %v941, %v941
      %v1633 = vmul.f32 %v943, %v943
      %v1634 = vmul.f32 %v1054, %v1054
      %v1635 = vmul.f32 %v1056, %v1056
      %v1636 = vmul.f32 %v1167, %v1167
      %v1637 = vmul.f32 %v1169, %v1169
      %v1638 = vmul.f32 %v832, %v832
      %v1639 = vmul.f32 %v834, %v834
      %v1640 = vmul.f32 %v945, %v945
      %v1641 = vmul.f32 %v947, %v947
      %v1642 = vmul.f32 %v1058, %v1058
      %v1643 = vmul.f32 %v1060, %v1060
      %v1644 = vmul.f32 %v1171, %v1171
      %v1645 = vmul.f32 %v1173, %v1173
      %1646 = vmatprep.subr.mxu0 %v1519
      %1647 = vmatpush1.msra.mxu0 %v1518
      %1648 = vmatprep.subr.mxu0 %v1527
      %1649 = vmatpush1.msra.mxu0 %v1526
      %1650 = vmatprep.subr.mxu0 %v1535
      %1651 = vmatpush1.msra.mxu0 %v1534
      %1652 = vmatprep.subr.mxu0 %v1543
      %1653 = vmatpush1.msra.mxu0 %v1542
      %1654 = vmatprep.subr.mxu0 %v1551
      %1655 = vmatpush1.msra.mxu0 %v1550
      %1656 = vmatprep.subr.mxu0 %v1559
      %1657 = vmatpush1.msra.mxu0 %v1558
      %1658 = vmatprep.subr.mxu0 %v1567
      %1659 = vmatpush1.msra.mxu0 %v1566
      %1660 = vmatprep.subr.mxu0 %v1575
      %1661 = vmatpush1.msra.mxu0 %v1574
      %1662 = vmatprep.subr.mxu0 %v1583
      %1663 = vmatpush1.msra.mxu0 %v1582
      %1664 = vmatprep.subr.mxu0 %v1591
      %1665 = vmatpush1.msra.mxu0 %v1590
      %1666 = vmatprep.subr.mxu0 %v1599
      %1667 = vmatpush1.msra.mxu0 %v1598
      %1668 = vmatprep.subr.mxu0 %v1607
      %1669 = vmatpush1.msra.mxu0 %v1606
      %1670 = vmatprep.subr.mxu0 %v1615
      %1671 = vmatpush1.msra.mxu0 %v1614
      %1672 = vmatprep.subr.mxu0 %v1623
      %1673 = vmatpush1.msra.mxu0 %v1622
      %1674 = vmatprep.subr.mxu0 %v1631
      %1675 = vmatpush1.msra.mxu0 %v1630
      %1676 = vmatprep.subr.mxu0 %v1639
      %1677 = vmatpush1.msra.mxu0 %v1638
      %1678 = vmatprep.subr.mxu0 0.0
      %1679 = vmatpush1.msra.mxu0 0.0
      %1680 = vmatprep.subr.mxu0 0.0
      %1681 = vmatpush1.msra.mxu0 0.0
      %1682 = vmatprep.subr.mxu0 0.0
      %1683 = vmatpush1.msra.mxu0 0.0
      %1684 = vmatprep.subr.mxu0 0.0
      %1685 = vmatpush1.msra.mxu0 0.0
      %1686 = vmatprep.subr.mxu0 0.0
      %1687 = vmatpush1.msra.mxu0 0.0
      %1688 = vmatprep.subr.mxu0 0.0
      %1689 = vmatpush1.msra.mxu0 0.0
      %1690 = vmatprep.subr.mxu0 0.0
      %1691 = vmatpush1.msra.mxu0 0.0
      %1692 = vmatprep.subr.mxu0 0.0
      %1693 = vmatpush1.msra.mxu0 0.0
      %1694 = vmatprep.subr.mxu0 0.0
      %1695 = vmatpush1.msra.mxu0 0.0
      %1696 = vmatprep.subr.mxu0 0.0
      %1697 = vmatpush1.msra.mxu0 0.0
      %1698 = vmatprep.subr.mxu0 0.0
      %1699 = vmatpush1.msra.mxu0 0.0
      %1700 = vmatprep.subr.mxu0 0.0
      %1701 = vmatpush1.msra.mxu0 0.0
      %1702 = vmatprep.subr.mxu0 0.0
      %1703 = vmatpush1.msra.mxu0 0.0
      %1704 = vmatprep.subr.mxu0 0.0
      %1705 = vmatpush1.msra.mxu0 0.0
      %1706 = vmatprep.subr.mxu0 0.0
      %1707 = vmatpush1.msra.mxu0 0.0
      %1708 = vmatprep.subr.mxu0 0.0
      %1709 = vmatpush1.msra.mxu0 0.0
      %1710 = vmatprep.mubr.f32.mxu0 0.0
      %1711 = vmatmul.mubr.f32.gmra.mrb[0].mxu0 1.0
      %v1712 = vpop.f32.mrb[0].mxu0
      %v1713 = vadd.f32 0.0, %v1712
      %v1714 = vpop.f32.mrb[0].mxu0
      %v1715 = vadd.f32 0.0, %v1714
      %1716 = vdwg.mxu0
      %1717 = vmatprep.subr.mxu0 %v1521
      %1718 = vmatpush1.msra.mxu0 %v1520
      %1719 = vmatprep.subr.mxu0 %v1529
      %1720 = vmatpush1.msra.mxu0 %v1528
      %1721 = vmatprep.subr.mxu0 %v1537
      %1722 = vmatpush1.msra.mxu0 %v1536
      %1723 = vmatprep.subr.mxu0 %v1545
      %1724 = vmatpush1.msra.mxu0 %v1544
      %1725 = vmatprep.subr.mxu0 %v1553
      %1726 = vmatpush1.msra.mxu0 %v1552
      %1727 = vmatprep.subr.mxu0 %v1561
      %1728 = vmatpush1.msra.mxu0 %v1560
      %1729 = vmatprep.subr.mxu0 %v1569
      %1730 = vmatpush1.msra.mxu0 %v1568
      %1731 = vmatprep.subr.mxu0 %v1577
      %1732 = vmatpush1.msra.mxu0 %v1576
      %1733 = vmatprep.subr.mxu0 %v1585
      %1734 = vmatpush1.msra.mxu0 %v1584
      %1735 = vmatprep.subr.mxu0 %v1593
      %1736 = vmatpush1.msra.mxu0 %v1592
      %1737 = vmatprep.subr.mxu0 %v1601
      %1738 = vmatpush1.msra.mxu0 %v1600
      %1739 = vmatprep.subr.mxu0 %v1609
      %1740 = vmatpush1.msra.mxu0 %v1608
      %1741 = vmatprep.subr.mxu0 %v1617
      %1742 = vmatpush1.msra.mxu0 %v1616
      %1743 = vmatprep.subr.mxu0 %v1625
      %1744 = vmatpush1.msra.mxu0 %v1624
      %1745 = vmatprep.subr.mxu0 %v1633
      %1746 = vmatpush1.msra.mxu0 %v1632
      %1747 = vmatprep.subr.mxu0 %v1641
      %1748 = vmatpush1.msra.mxu0 %v1640
      %1749 = vmatprep.subr.mxu0 0.0
      %1750 = vmatpush1.msra.mxu0 0.0
      %1751 = vmatprep.subr.mxu0 0.0
      %1752 = vmatpush1.msra.mxu0 0.0
      %1753 = vmatprep.subr.mxu0 0.0
      %1754 = vmatpush1.msra.mxu0 0.0
      %1755 = vmatprep.subr.mxu0 0.0
      %1756 = vmatpush1.msra.mxu0 0.0
      %1757 = vmatprep.subr.mxu0 0.0
      %1758 = vmatpush1.msra.mxu0 0.0
      %1759 = vmatprep.subr.mxu0 0.0
      %1760 = vmatpush1.msra.mxu0 0.0
      %1761 = vmatprep.subr.mxu0 0.0
      %1762 = vmatpush1.msra.mxu0 0.0
      %1763 = vmatprep.subr.mxu0 0.0
      %1764 = vmatpush1.msra.mxu0 0.0
      %1765 = vmatprep.subr.mxu0 0.0
      %1766 = vmatpush1.msra.mxu0 0.0
      %1767 = vmatprep.subr.mxu0 0.0
      %1768 = vmatpush1.msra.mxu0 0.0
      %1769 = vmatprep.subr.mxu0 0.0
      %1770 = vmatpush1.msra.mxu0 0.0
      %1771 = vmatprep.subr.mxu0 0.0
      %1772 = vmatpush1.msra.mxu0 0.0
      %1773 = vmatprep.subr.mxu0 0.0
      %1774 = vmatpush1.msra.mxu0 0.0
      %1775 = vmatprep.subr.mxu0 0.0
      %1776 = vmatpush1.msra.mxu0 0.0
      %1777 = vmatprep.subr.mxu0 0.0
      %1778 = vmatpush1.msra.mxu0 0.0
      %1779 = vmatprep.subr.mxu0 0.0
      %1780 = vmatpush1.msra.mxu0 0.0
      %1781 = vmatprep.mubr.f32.mxu0 0.0
      %1782 = vmatmul.mubr.f32.gmra.mrb[0].mxu0 1.0
      %v1783 = vpop.f32.mrb[0].mxu0
      %v1784 = vadd.f32 0.0, %v1783
      %v1785 = vpop.f32.mrb[0].mxu0
      %v1786 = vadd.f32 0.0, %v1785
      %1787 = vdwg.mxu0
      %1788 = vmatprep.subr.mxu0 %v1523
      %1789 = vmatpush1.msra.mxu0 %v1522
      %1790 = vmatprep.subr.mxu0 %v1531
      %1791 = vmatpush1.msra.mxu0 %v1530
      %1792 = vmatprep.subr.mxu0 %v1539
      %1793 = vmatpush1.msra.mxu0 %v1538
      %1794 = vmatprep.subr.mxu0 %v1547
      %1795 = vmatpush1.msra.mxu0 %v1546
      %1796 = vmatprep.subr.mxu0 %v1555
      %1797 = vmatpush1.msra.mxu0 %v1554
      %1798 = vmatprep.subr.mxu0 %v1563
      %1799 = vmatpush1.msra.mxu0 %v1562
      %1800 = vmatprep.subr.mxu0 %v1571
      %1801 = vmatpush1.msra.mxu0 %v1570
      %1802 = vmatprep.subr.mxu0 %v1579
      %1803 = vmatpush1.msra.mxu0 %v1578
      %1804 = vmatprep.subr.mxu0 %v1587
      %1805 = vmatpush1.msra.mxu0 %v1586
      %1806 = vmatprep.subr.mxu0 %v1595
      %1807 = vmatpush1.msra.mxu0 %v1594
      %1808 = vmatprep.subr.mxu0 %v1603
      %1809 = vmatpush1.msra.mxu0 %v1602
      %1810 = vmatprep.subr.mxu0 %v1611
      %1811 = vmatpush1.msra.mxu0 %v1610
      %1812 = vmatprep.subr.mxu0 %v1619
      %1813 = vmatpush1.msra.mxu0 %v1618
      %1814 = vmatprep.subr.mxu0 %v1627
      %1815 = vmatpush1.msra.mxu0 %v1626
      %1816 = vmatprep.subr.mxu0 %v1635
      %1817 = vmatpush1.msra.mxu0 %v1634
      %1818 = vmatprep.subr.mxu0 %v1643
      %1819 = vmatpush1.msra.mxu0 %v1642
      %1820 = vmatprep.subr.mxu0 0.0
      %1821 = vmatpush1.msra.mxu0 0.0
      %1822 = vmatprep.subr.mxu0 0.0
      %1823 = vmatpush1.msra.mxu0 0.0
      %1824 = vmatprep.subr.mxu0 0.0
      %1825 = vmatpush1.msra.mxu0 0.0
      %1826 = vmatprep.subr.mxu0 0.0
      %1827 = vmatpush1.msra.mxu0 0.0
      %1828 = vmatprep.subr.mxu0 0.0
      %1829 = vmatpush1.msra.mxu0 0.0
      %1830 = vmatprep.subr.mxu0 0.0
      %1831 = vmatpush1.msra.mxu0 0.0
      %1832 = vmatprep.subr.mxu0 0.0
      %1833 = vmatpush1.msra.mxu0 0.0
      %1834 = vmatprep.subr.mxu0 0.0
      %1835 = vmatpush1.msra.mxu0 0.0
      %1836 = vmatprep.subr.mxu0 0.0
      %1837 = vmatpush1.msra.mxu0 0.0
      %1838 = vmatprep.subr.mxu0 0.0
      %1839 = vmatpush1.msra.mxu0 0.0
      %1840 = vmatprep.subr.mxu0 0.0
      %1841 = vmatpush1.msra.mxu0 0.0
      %1842 = vmatprep.subr.mxu0 0.0
      %1843 = vmatpush1.msra.mxu0 0.0
      %1844 = vmatprep.subr.mxu0 0.0
      %1845 = vmatpush1.msra.mxu0 0.0
      %1846 = vmatprep.subr.mxu0 0.0
      %1847 = vmatpush1.msra.mxu0 0.0
      %1848 = vmatprep.subr.mxu0 0.0
      %1849 = vmatpush1.msra.mxu0 0.0
      %1850 = vmatprep.subr.mxu0 0.0
      %1851 = vmatpush1.msra.mxu0 0.0
      %1852 = vmatprep.mubr.f32.mxu0 0.0
      %1853 = vmatmul.mubr.f32.gmra.mrb[0].mxu0 1.0
      %v1854 = vpop.f32.mrb[0].mxu0
      %v1855 = vadd.f32 0.0, %v1854
      %v1856 = vpop.f32.mrb[0].mxu0
      %v1857 = vadd.f32 0.0, %v1856
      %1858 = vdwg.mxu0
      %1859 = vmatprep.subr.mxu0 %v1525
      %1860 = vmatpush1.msra.mxu0 %v1524
      %1861 = vmatprep.subr.mxu0 %v1533
      %1862 = vmatpush1.msra.mxu0 %v1532
      %1863 = vmatprep.subr.mxu0 %v1541
      %1864 = vmatpush1.msra.mxu0 %v1540
      %1865 = vmatprep.subr.mxu0 %v1549
      %1866 = vmatpush1.msra.mxu0 %v1548
      %1867 = vmatprep.subr.mxu0 %v1557
      %1868 = vmatpush1.msra.mxu0 %v1556
      %1869 = vmatprep.subr.mxu0 %v1565
      %1870 = vmatpush1.msra.mxu0 %v1564
      %1871 = vmatprep.subr.mxu0 %v1573
      %1872 = vmatpush1.msra.mxu0 %v1572
      %1873 = vmatprep.subr.mxu0 %v1581
      %1874 = vmatpush1.msra.mxu0 %v1580
      %1875 = vmatprep.subr.mxu0 %v1589
      %1876 = vmatpush1.msra.mxu0 %v1588
      %1877 = vmatprep.subr.mxu0 %v1597
      %1878 = vmatpush1.msra.mxu0 %v1596
      %1879 = vmatprep.subr.mxu0 %v1605
      %1880 = vmatpush1.msra.mxu0 %v1604
      %1881 = vmatprep.subr.mxu0 %v1613
      %1882 = vmatpush1.msra.mxu0 %v1612
      %1883 = vmatprep.subr.mxu0 %v1621
      %1884 = vmatpush1.msra.mxu0 %v1620
      %1885 = vmatprep.subr.mxu0 %v1629
      %1886 = vmatpush1.msra.mxu0 %v1628
      %1887 = vmatprep.subr.mxu0 %v1637
      %1888 = vmatpush1.msra.mxu0 %v1636
      %1889 = vmatprep.subr.mxu0 %v1645
      %1890 = vmatpush1.msra.mxu0 %v1644
      %1891 = vmatprep.subr.mxu0 0.0
      %1892 = vmatpush1.msra.mxu0 0.0
      %1893 = vmatprep.subr.mxu0 0.0
      %1894 = vmatpush1.msra.mxu0 0.0
      %1895 = vmatprep.subr.mxu0 0.0
      %1896 = vmatpush1.msra.mxu0 0.0
      %1897 = vmatprep.subr.mxu0 0.0
      %1898 = vmatpush1.msra.mxu0 0.0
      %1899 = vmatprep.subr.mxu0 0.0
      %1900 = vmatpush1.msra.mxu0 0.0
      %1901 = vmatprep.subr.mxu0 0.0
      %1902 = vmatpush1.msra.mxu0 0.0
      %1903 = vmatprep.subr.mxu0 0.0
      %1904 = vmatpush1.msra.mxu0 0.0
      %1905 = vmatprep.subr.mxu0 0.0
      %1906 = vmatpush1.msra.mxu0 0.0
      %1907 = vmatprep.subr.mxu0 0.0
      %1908 = vmatpush1.msra.mxu0 0.0
      %1909 = vmatprep.subr.mxu0 0.0
      %1910 = vmatpush1.msra.mxu0 0.0
      %1911 = vmatprep.subr.mxu0 0.0
      %1912 = vmatpush1.msra.mxu0 0.0
      %1913 = vmatprep.subr.mxu0 0.0
      %1914 = vmatpush1.msra.mxu0 0.0
      %1915 = vmatprep.subr.mxu0 0.0
      %1916 = vmatpush1.msra.mxu0 0.0
      %1917 = vmatprep.subr.mxu0 0.0
      %1918 = vmatpush1.msra.mxu0 0.0
      %1919 = vmatprep.subr.mxu0 0.0
      %1920 = vmatpush1.msra.mxu0 0.0
      %1921 = vmatprep.subr.mxu0 0.0
      %1922 = vmatpush1.msra.mxu0 0.0
      %1923 = vmatprep.mubr.f32.mxu0 0.0
      %1924 = vmatmul.mubr.f32.gmra.mrb[0].mxu0 1.0
      %v1925 = vpop.f32.mrb[0].mxu0
      %v1926 = vadd.f32 0.0, %v1925
      %v1927 = vpop.f32.mrb[0].mxu0
      %v1928 = vadd.f32 0.0, %v1927
      %1929 = vdwg.mxu0
      %v1938 = vcombine.low %v1713, %v1715
      %v1939 = vcombine.low %v1784, %v1786
      %v1940 = vcombine.low %v1855, %v1857
      %v1941 = vcombine.low %v1926, %v1928
      %v1943 = vunpack.c.l.s4 1966171168
      %v1944 = vunpack.c.0.s8 %v1943
      %v1945 = vlaneseq
      %v1946 = vshrl.u32 %v1945, 7
      %v1947 = vsub.s32 %v1944, %v1946
      %v1948 = vrot.slane %v1938, %v1947
      %v1950 = vunpack.c.l.s4 1966171168
      %v1951 = vunpack.c.0.s8 %v1950
      %v1952 = vlaneseq
      %v1953 = vshrl.u32 %v1952, 7
      %v1954 = vsub.s32 %v1951, %v1953
      %v1955 = vrot.slane %v1939, %v1954
      %v1957 = vunpack.c.l.s4 1966171168
      %v1958 = vunpack.c.0.s8 %v1957
      %v1959 = vlaneseq
      %v1960 = vshrl.u32 %v1959, 7
      %v1961 = vsub.s32 %v1958, %v1960
      %v1962 = vrot.slane %v1940, %v1961
      %v1964 = vunpack.c.l.s4 1966171168
      %v1965 = vunpack.c.0.s8 %v1964
      %v1966 = vlaneseq
      %v1967 = vshrl.u32 %v1966, 7
      %v1968 = vsub.s32 %v1965, %v1967
      %v1969 = vrot.slane %v1941, %v1968
      %v1970 = vcombine.low %v1948, %v1955
      %v1971 = vcombine.low %v1962, %v1969
      %v1973 = vunpack.c.l.s4 1966171168
      %v1974 = vunpack.c.0.s8 %v1973
      %v1975 = vlaneseq
      %v1976 = vshrl.u32 %v1975, 7
      %v1977 = vsub.s32 %v1974, %v1976
      %v1978 = vrot.slane %v1970, %v1977
      %v1980 = vunpack.c.l.s4 1966171168
      %v1981 = vunpack.c.0.s8 %v1980
      %v1982 = vlaneseq
      %v1983 = vshrl.u32 %v1982, 7
      %v1984 = vsub.s32 %v1981, %v1983
      %v1985 = vrot.slane %v1971, %v1984
      %v1986 = vcombine.low %v1978, %v1985
      %s1988 = scalar_lea.vmem %s235, 1
      %1989 = vst [vmem:[%s1988] ss:$4 sm:$0xff] %v1986
      %v1990 = vmax.f32 %v758, %v762
      %v1991 = vmax.f32 %v1990, %v768
      %v1992 = vmax.f32 %v1991, %v772
      %v1993 = vmax.f32 %v1992, %v778
      %v1994 = vmax.f32 %v1993, %v782
      %v1995 = vmax.f32 %v1994, %v788
      %v1996 = vmax.f32 %v1995, %v792
      %v1997 = vmax.f32 %v1996, %v798
      %v1998 = vmax.f32 %v1997, %v802
      %v1999 = vmax.f32 %v1998, %v808
      %v2000 = vmax.f32 %v1999, %v812
      %v2001 = vmax.f32 %v2000, %v818
      %v2002 = vmax.f32 %v2001, %v822
      %v2003 = vmax.f32 %v2002, %v828
      %v2004 = vmax.f32 %v2003, %v832
      %v2005 = vrot.slane %v2004, 4
      %v2006 = vmax.f32 %v2004, %v2005
      %v2007 = vrot.slane %v2006, 2
      %v2008 = vmax.f32 %v2006, %v2007
      %v2009 = vrot.slane %v2008, 1
      %v2010 = vmax.f32 %v2008, %v2009
      %v2011 = vmax.f32 %v760, %v764
      %v2012 = vmax.f32 %v2011, %v770
      %v2013 = vmax.f32 %v2012, %v774
      %v2014 = vmax.f32 %v2013, %v780
      %v2015 = vmax.f32 %v2014, %v784
      %v2016 = vmax.f32 %v2015, %v790
      %v2017 = vmax.f32 %v2016, %v794
      %v2018 = vmax.f32 %v2017, %v800
      %v2019 = vmax.f32 %v2018, %v804
      %v2020 = vmax.f32 %v2019, %v810
      %v2021 = vmax.f32 %v2020, %v814
      %v2022 = vmax.f32 %v2021, %v820
      %v2023 = vmax.f32 %v2022, %v824
      %v2024 = vmax.f32 %v2023, %v830
      %v2025 = vmax.f32 %v2024, %v834
      %v2026 = vrot.slane %v2025, 4
      %v2027 = vmax.f32 %v2025, %v2026
      %v2028 = vrot.slane %v2027, 2
      %v2029 = vmax.f32 %v2027, %v2028
      %v2030 = vrot.slane %v2029, 1
      %v2031 = vmax.f32 %v2029, %v2030
      %v2032 = vmax.f32 %v871, %v875
      %v2033 = vmax.f32 %v2032, %v881
      %v2034 = vmax.f32 %v2033, %v885
      %v2035 = vmax.f32 %v2034, %v891
      %v2036 = vmax.f32 %v2035, %v895
      %v2037 = vmax.f32 %v2036, %v901
      %v2038 = vmax.f32 %v2037, %v905
      %v2039 = vmax.f32 %v2038, %v911
      %v2040 = vmax.f32 %v2039, %v915
      %v2041 = vmax.f32 %v2040, %v921
      %v2042 = vmax.f32 %v2041, %v925
      %v2043 = vmax.f32 %v2042, %v931
      %v2044 = vmax.f32 %v2043, %v935
      %v2045 = vmax.f32 %v2044, %v941
      %v2046 = vmax.f32 %v2045, %v945
      %v2047 = vrot.slane %v2046, 4
      %v2048 = vmax.f32 %v2046, %v2047
      %v2049 = vrot.slane %v2048, 2
      %v2050 = vmax.f32 %v2048, %v2049
      %v2051 = vrot.slane %v2050, 1
      %v2052 = vmax.f32 %v2050, %v2051
      %v2053 = vmax.f32 %v873, %v877
      %v2054 = vmax.f32 %v2053, %v883
      %v2055 = vmax.f32 %v2054, %v887
      %v2056 = vmax.f32 %v2055, %v893
      %v2057 = vmax.f32 %v2056, %v897
      %v2058 = vmax.f32 %v2057, %v903
      %v2059 = vmax.f32 %v2058, %v907
      %v2060 = vmax.f32 %v2059, %v913
      %v2061 = vmax.f32 %v2060, %v917
      %v2062 = vmax.f32 %v2061, %v923
      %v2063 = vmax.f32 %v2062, %v927
      %v2064 = vmax.f32 %v2063, %v933
      %v2065 = vmax.f32 %v2064, %v937
      %v2066 = vmax.f32 %v2065, %v943
      %v2067 = vmax.f32 %v2066, %v947
      %v2068 = vrot.slane %v2067, 4
      %v2069 = vmax.f32 %v2067, %v2068
      %v2070 = vrot.slane %v2069, 2
      %v2071 = vmax.f32 %v2069, %v2070
      %v2072 = vrot.slane %v2071, 1
      %v2073 = vmax.f32 %v2071, %v2072
      %v2074 = vmax.f32 %v984, %v988
      %v2075 = vmax.f32 %v2074, %v994
      %v2076 = vmax.f32 %v2075, %v998
      %v2077 = vmax.f32 %v2076, %v1004
      %v2078 = vmax.f32 %v2077, %v1008
      %v2079 = vmax.f32 %v2078, %v1014
      %v2080 = vmax.f32 %v2079, %v1018
      %v2081 = vmax.f32 %v2080, %v1024
      %v2082 = vmax.f32 %v2081, %v1028
      %v2083 = vmax.f32 %v2082, %v1034
      %v2084 = vmax.f32 %v2083, %v1038
      %v2085 = vmax.f32 %v2084, %v1044
      %v2086 = vmax.f32 %v2085, %v1048
      %v2087 = vmax.f32 %v2086, %v1054
      %v2088 = vmax.f32 %v2087, %v1058
      %v2089 = vrot.slane %v2088, 4
      %v2090 = vmax.f32 %v2088, %v2089
      %v2091 = vrot.slane %v2090, 2
      %v2092 = vmax.f32 %v2090, %v2091
      %v2093 = vrot.slane %v2092, 1
      %v2094 = vmax.f32 %v2092, %v2093
      %v2095 = vmax.f32 %v986, %v990
      %v2096 = vmax.f32 %v2095, %v996
      %v2097 = vmax.f32 %v2096, %v1000
      %v2098 = vmax.f32 %v2097, %v1006
      %v2099 = vmax.f32 %v2098, %v1010
      %v2100 = vmax.f32 %v2099, %v1016
      %v2101 = vmax.f32 %v2100, %v1020
      %v2102 = vmax.f32 %v2101, %v1026
      %v2103 = vmax.f32 %v2102, %v1030
      %v2104 = vmax.f32 %v2103, %v1036
      %v2105 = vmax.f32 %v2104, %v1040
      %v2106 = vmax.f32 %v2105, %v1046
      %v2107 = vmax.f32 %v2106, %v1050
      %v2108 = vmax.f32 %v2107, %v1056
      %v2109 = vmax.f32 %v2108, %v1060
      %v2110 = vrot.slane %v2109, 4
      %v2111 = vmax.f32 %v2109, %v2110
      %v2112 = vrot.slane %v2111, 2
      %v2113 = vmax.f32 %v2111, %v2112
      %v2114 = vrot.slane %v2113, 1
      %v2115 = vmax.f32 %v2113, %v2114
      %v2116 = vmax.f32 %v1097, %v1101
      %v2117 = vmax.f32 %v2116, %v1107
      %v2118 = vmax.f32 %v2117, %v1111
      %v2119 = vmax.f32 %v2118, %v1117
      %v2120 = vmax.f32 %v2119, %v1121
      %v2121 = vmax.f32 %v2120, %v1127
      %v2122 = vmax.f32 %v2121, %v1131
      %v2123 = vmax.f32 %v2122, %v1137
      %v2124 = vmax.f32 %v2123, %v1141
      %v2125 = vmax.f32 %v2124, %v1147
      %v2126 = vmax.f32 %v2125, %v1151
      %v2127 = vmax.f32 %v2126, %v1157
      %v2128 = vmax.f32 %v2127, %v1161
      %v2129 = vmax.f32 %v2128, %v1167
      %v2130 = vmax.f32 %v2129, %v1171
      %v2131 = vrot.slane %v2130, 4
      %v2132 = vmax.f32 %v2130, %v2131
      %v2133 = vrot.slane %v2132, 2
      %v2134 = vmax.f32 %v2132, %v2133
      %v2135 = vrot.slane %v2134, 1
      %v2136 = vmax.f32 %v2134, %v2135
      %v2137 = vmax.f32 %v1099, %v1103
      %v2138 = vmax.f32 %v2137, %v1109
      %v2139 = vmax.f32 %v2138, %v1113
      %v2140 = vmax.f32 %v2139, %v1119
      %v2141 = vmax.f32 %v2140, %v1123
      %v2142 = vmax.f32 %v2141, %v1129
      %v2143 = vmax.f32 %v2142, %v1133
      %v2144 = vmax.f32 %v2143, %v1139
      %v2145 = vmax.f32 %v2144, %v1143
      %v2146 = vmax.f32 %v2145, %v1149
      %v2147 = vmax.f32 %v2146, %v1153
      %v2148 = vmax.f32 %v2147, %v1159
      %v2149 = vmax.f32 %v2148, %v1163
      %v2150 = vmax.f32 %v2149, %v1169
      %v2151 = vmax.f32 %v2150, %v1173
      %v2152 = vrot.slane %v2151, 4
      %v2153 = vmax.f32 %v2151, %v2152
      %v2154 = vrot.slane %v2153, 2
      %v2155 = vmax.f32 %v2153, %v2154
      %v2156 = vrot.slane %v2155, 1
      %v2157 = vmax.f32 %v2155, %v2156
      %v2158 = vmin.f32 %v758, %v762
      %v2159 = vmin.f32 %v2158, %v768
      %v2160 = vmin.f32 %v2159, %v772
      %v2161 = vmin.f32 %v2160, %v778
      %v2162 = vmin.f32 %v2161, %v782
      %v2163 = vmin.f32 %v2162, %v788
      %v2164 = vmin.f32 %v2163, %v792
      %v2165 = vmin.f32 %v2164, %v798
      %v2166 = vmin.f32 %v2165, %v802
      %v2167 = vmin.f32 %v2166, %v808
      %v2168 = vmin.f32 %v2167, %v812
      %v2169 = vmin.f32 %v2168, %v818
      %v2170 = vmin.f32 %v2169, %v822
      %v2171 = vmin.f32 %v2170, %v828
      %v2172 = vmin.f32 %v2171, %v832
      %v2173 = vrot.slane %v2172, 4
      %v2174 = vmin.f32 %v2172, %v2173
      %v2175 = vrot.slane %v2174, 2
      %v2176 = vmin.f32 %v2174, %v2175
      %v2177 = vrot.slane %v2176, 1
      %v2178 = vmin.f32 %v2176, %v2177
      %v2179 = vmin.f32 %v760, %v764
      %v2180 = vmin.f32 %v2179, %v770
      %v2181 = vmin.f32 %v2180, %v774
      %v2182 = vmin.f32 %v2181, %v780
      %v2183 = vmin.f32 %v2182, %v784
      %v2184 = vmin.f32 %v2183, %v790
      %v2185 = vmin.f32 %v2184, %v794
      %v2186 = vmin.f32 %v2185, %v800
      %v2187 = vmin.f32 %v2186, %v804
      %v2188 = vmin.f32 %v2187, %v810
      %v2189 = vmin.f32 %v2188, %v814
      %v2190 = vmin.f32 %v2189, %v820
      %v2191 = vmin.f32 %v2190, %v824
      %v2192 = vmin.f32 %v2191, %v830
      %v2193 = vmin.f32 %v2192, %v834
      %v2194 = vrot.slane %v2193, 4
      %v2195 = vmin.f32 %v2193, %v2194
      %v2196 = vrot.slane %v2195, 2
      %v2197 = vmin.f32 %v2195, %v2196
      %v2198 = vrot.slane %v2197, 1
      %v2199 = vmin.f32 %v2197, %v2198
      %v2200 = vmin.f32 %v871, %v875
      %v2201 = vmin.f32 %v2200, %v881
      %v2202 = vmin.f32 %v2201, %v885
      %v2203 = vmin.f32 %v2202, %v891
      %v2204 = vmin.f32 %v2203, %v895
      %v2205 = vmin.f32 %v2204, %v901
      %v2206 = vmin.f32 %v2205, %v905
      %v2207 = vmin.f32 %v2206, %v911
      %v2208 = vmin.f32 %v2207, %v915
      %v2209 = vmin.f32 %v2208, %v921
      %v2210 = vmin.f32 %v2209, %v925
      %v2211 = vmin.f32 %v2210, %v931
      %v2212 = vmin.f32 %v2211, %v935
      %v2213 = vmin.f32 %v2212, %v941
      %v2214 = vmin.f32 %v2213, %v945
      %v2215 = vrot.slane %v2214, 4
      %v2216 = vmin.f32 %v2214, %v2215
      %v2217 = vrot.slane %v2216, 2
      %v2218 = vmin.f32 %v2216, %v2217
      %v2219 = vrot.slane %v2218, 1
      %v2220 = vmin.f32 %v2218, %v2219
      %v2221 = vmin.f32 %v873, %v877
      %v2222 = vmin.f32 %v2221, %v883
      %v2223 = vmin.f32 %v2222, %v887
      %v2224 = vmin.f32 %v2223, %v893
      %v2225 = vmin.f32 %v2224, %v897
      %v2226 = vmin.f32 %v2225, %v903
      %v2227 = vmin.f32 %v2226, %v907
      %v2228 = vmin.f32 %v2227, %v913
      %v2229 = vmin.f32 %v2228, %v917
      %v2230 = vmin.f32 %v2229, %v923
      %v2231 = vmin.f32 %v2230, %v927
      %v2232 = vmin.f32 %v2231, %v933
      %v2233 = vmin.f32 %v2232, %v937
      %v2234 = vmin.f32 %v2233, %v943
      %v2235 = vmin.f32 %v2234, %v947
      %v2236 = vrot.slane %v2235, 4
      %v2237 = vmin.f32 %v2235, %v2236
      %v2238 = vrot.slane %v2237, 2
      %v2239 = vmin.f32 %v2237, %v2238
      %v2240 = vrot.slane %v2239, 1
      %v2241 = vmin.f32 %v2239, %v2240
      %v2242 = vmin.f32 %v984, %v988
      %v2243 = vmin.f32 %v2242, %v994
      %v2244 = vmin.f32 %v2243, %v998
      %v2245 = vmin.f32 %v2244, %v1004
      %v2246 = vmin.f32 %v2245, %v1008
      %v2247 = vmin.f32 %v2246, %v1014
      %v2248 = vmin.f32 %v2247, %v1018
      %v2249 = vmin.f32 %v2248, %v1024
      %v2250 = vmin.f32 %v2249, %v1028
      %v2251 = vmin.f32 %v2250, %v1034
      %v2252 = vmin.f32 %v2251, %v1038
      %v2253 = vmin.f32 %v2252, %v1044
      %v2254 = vmin.f32 %v2253, %v1048
      %v2255 = vmin.f32 %v2254, %v1054
      %v2256 = vmin.f32 %v2255, %v1058
      %v2257 = vrot.slane %v2256, 4
      %v2258 = vmin.f32 %v2256, %v2257
      %v2259 = vrot.slane %v2258, 2
      %v2260 = vmin.f32 %v2258, %v2259
      %v2261 = vrot.slane %v2260, 1
      %v2262 = vmin.f32 %v2260, %v2261
      %v2263 = vmin.f32 %v986, %v990
      %v2264 = vmin.f32 %v2263, %v996
      %v2265 = vmin.f32 %v2264, %v1000
      %v2266 = vmin.f32 %v2265, %v1006
      %v2267 = vmin.f32 %v2266, %v1010
      %v2268 = vmin.f32 %v2267, %v1016
      %v2269 = vmin.f32 %v2268, %v1020
      %v2270 = vmin.f32 %v2269, %v1026
      %v2271 = vmin.f32 %v2270, %v1030
      %v2272 = vmin.f32 %v2271, %v1036
      %v2273 = vmin.f32 %v2272, %v1040
      %v2274 = vmin.f32 %v2273, %v1046
      %v2275 = vmin.f32 %v2274, %v1050
      %v2276 = vmin.f32 %v2275, %v1056
      %v2277 = vmin.f32 %v2276, %v1060
      %v2278 = vrot.slane %v2277, 4
      %v2279 = vmin.f32 %v2277, %v2278
      %v2280 = vrot.slane %v2279, 2
      %v2281 = vmin.f32 %v2279, %v2280
      %v2282 = vrot.slane %v2281, 1
      %v2283 = vmin.f32 %v2281, %v2282
      %v2284 = vmin.f32 %v1097, %v1101
      %v2285 = vmin.f32 %v2284, %v1107
      %v2286 = vmin.f32 %v2285, %v1111
      %v2287 = vmin.f32 %v2286, %v1117
      %v2288 = vmin.f32 %v2287, %v1121
      %v2289 = vmin.f32 %v2288, %v1127
      %v2290 = vmin.f32 %v2289, %v1131
      %v2291 = vmin.f32 %v2290, %v1137
      %v2292 = vmin.f32 %v2291, %v1141
      %v2293 = vmin.f32 %v2292, %v1147
      %v2294 = vmin.f32 %v2293, %v1151
      %v2295 = vmin.f32 %v2294, %v1157
      %v2296 = vmin.f32 %v2295, %v1161
      %v2297 = vmin.f32 %v2296, %v1167
      %v2298 = vmin.f32 %v2297, %v1171
      %v2299 = vrot.slane %v2298, 4
      %v2300 = vmin.f32 %v2298, %v2299
      %v2301 = vrot.slane %v2300, 2
      %v2302 = vmin.f32 %v2300, %v2301
      %v2303 = vrot.slane %v2302, 1
      %v2304 = vmin.f32 %v2302, %v2303
      %v2305 = vmin.f32 %v1099, %v1103
      %v2306 = vmin.f32 %v2305, %v1109
      %v2307 = vmin.f32 %v2306, %v1113
      %v2308 = vmin.f32 %v2307, %v1119
      %v2309 = vmin.f32 %v2308, %v1123
      %v2310 = vmin.f32 %v2309, %v1129
      %v2311 = vmin.f32 %v2310, %v1133
      %v2312 = vmin.f32 %v2311, %v1139
      %v2313 = vmin.f32 %v2312, %v1143
      %v2314 = vmin.f32 %v2313, %v1149
      %v2315 = vmin.f32 %v2314, %v1153
      %v2316 = vmin.f32 %v2315, %v1159
      %v2317 = vmin.f32 %v2316, %v1163
      %v2318 = vmin.f32 %v2317, %v1169
      %v2319 = vmin.f32 %v2318, %v1173
      %v2320 = vrot.slane %v2319, 4
      %v2321 = vmin.f32 %v2319, %v2320
      %v2322 = vrot.slane %v2321, 2
      %v2323 = vmin.f32 %v2321, %v2322
      %v2324 = vrot.slane %v2323, 1
      %v2325 = vmin.f32 %v2323, %v2324
      %v2334 = vcombine.low %v2010, %v2031
      %v2335 = vcombine.low %v2052, %v2073
      %v2336 = vcombine.low %v2094, %v2115
      %v2337 = vcombine.low %v2136, %v2157
      %v2339 = vunpack.c.l.s4 1966171168
      %v2340 = vunpack.c.0.s8 %v2339
      %v2341 = vlaneseq
      %v2342 = vshrl.u32 %v2341, 7
      %v2343 = vsub.s32 %v2340, %v2342
      %v2344 = vrot.slane %v2334, %v2343
      %v2346 = vunpack.c.l.s4 1966171168
      %v2347 = vunpack.c.0.s8 %v2346
      %v2348 = vlaneseq
      %v2349 = vshrl.u32 %v2348, 7
      %v2350 = vsub.s32 %v2347, %v2349
      %v2351 = vrot.slane %v2335, %v2350
      %v2353 = vunpack.c.l.s4 1966171168
      %v2354 = vunpack.c.0.s8 %v2353
      %v2355 = vlaneseq
      %v2356 = vshrl.u32 %v2355, 7
      %v2357 = vsub.s32 %v2354, %v2356
      %v2358 = vrot.slane %v2336, %v2357
      %v2360 = vunpack.c.l.s4 1966171168
      %v2361 = vunpack.c.0.s8 %v2360
      %v2362 = vlaneseq
      %v2363 = vshrl.u32 %v2362, 7
      %v2364 = vsub.s32 %v2361, %v2363
      %v2365 = vrot.slane %v2337, %v2364
      %v2366 = vcombine.low %v2344, %v2351
      %v2367 = vcombine.low %v2358, %v2365
      %v2369 = vunpack.c.l.s4 1966171168
      %v2370 = vunpack.c.0.s8 %v2369
      %v2371 = vlaneseq
      %v2372 = vshrl.u32 %v2371, 7
      %v2373 = vsub.s32 %v2370, %v2372
      %v2374 = vrot.slane %v2366, %v2373
      %v2376 = vunpack.c.l.s4 1966171168
      %v2377 = vunpack.c.0.s8 %v2376
      %v2378 = vlaneseq
      %v2379 = vshrl.u32 %v2378, 7
      %v2380 = vsub.s32 %v2377, %v2379
      %v2381 = vrot.slane %v2367, %v2380
      %v2382 = vcombine.low %v2374, %v2381
      %s2384 = scalar_lea.vmem %s235, 2
      %2385 = vst [vmem:[%s2384] ss:$4 sm:$0xff] %v2382
      %v2394 = vcombine.low %v2178, %v2199
      %v2395 = vcombine.low %v2220, %v2241
      %v2396 = vcombine.low %v2262, %v2283
      %v2397 = vcombine.low %v2304, %v2325
      %v2399 = vunpack.c.l.s4 1966171168
      %v2400 = vunpack.c.0.s8 %v2399
      %v2401 = vlaneseq
      %v2402 = vshrl.u32 %v2401, 7
      %v2403 = vsub.s32 %v2400, %v2402
      %v2404 = vrot.slane %v2394, %v2403
      %v2406 = vunpack.c.l.s4 1966171168
      %v2407 = vunpack.c.0.s8 %v2406
      %v2408 = vlaneseq
      %v2409 = vshrl.u32 %v2408, 7
      %v2410 = vsub.s32 %v2407, %v2409
      %v2411 = vrot.slane %v2395, %v2410
      %v2413 = vunpack.c.l.s4 1966171168
      %v2414 = vunpack.c.0.s8 %v2413
      %v2415 = vlaneseq
      %v2416 = vshrl.u32 %v2415, 7
      %v2417 = vsub.s32 %v2414, %v2416
      %v2418 = vrot.slane %v2396, %v2417
      %v2420 = vunpack.c.l.s4 1966171168
      %v2421 = vunpack.c.0.s8 %v2420
      %v2422 = vlaneseq
      %v2423 = vshrl.u32 %v2422, 7
      %v2424 = vsub.s32 %v2421, %v2423
      %v2425 = vrot.slane %v2397, %v2424
      %v2426 = vcombine.low %v2404, %v2411
      %v2427 = vcombine.low %v2418, %v2425
      %v2429 = vunpack.c.l.s4 1966171168
      %v2430 = vunpack.c.0.s8 %v2429
      %v2431 = vlaneseq
      %v2432 = vshrl.u32 %v2431, 7
      %v2433 = vsub.s32 %v2430, %v2432
      %v2434 = vrot.slane %v2426, %v2433
      %v2436 = vunpack.c.l.s4 1966171168
      %v2437 = vunpack.c.0.s8 %v2436
      %v2438 = vlaneseq
      %v2439 = vshrl.u32 %v2438, 7
      %v2440 = vsub.s32 %v2437, %v2439
      %v2441 = vrot.slane %v2427, %v2440
      %v2442 = vcombine.low %v2434, %v2441
      %s2444 = scalar_lea.vmem %s235, 3
      %2445 = vst [vmem:[%s2444] ss:$4 sm:$0xff] %v2442
      %p2446 = scmp.lt.s32.totalorder %s19, 1
      %s2447 = scalar_select %p2446, %s19, 1
      %p2448 = scmp.lt.s32.totalorder %s20, 0
      %s2449 = scalar_select %p2448, %s20, 0
      %s2450 = smul.addr %s2449, 8
      %s2451 = smul.addr %s2447, 8
      %s2452 = sadd.s32 %s2450, %s2451
      %s2453 = smul.addr %s2452, 4
      %s2454 = scalar_lea.vmem %s4, %s2453
      // Predicated region
      $region37: #{_lambda_.12} parent=35 // pred_check
        %p2455 = pneg %p138
      $region38: #{_lambda_.12} parent=35 // pred_check_branch
        %2457 = sbr.rel (%p2455) target = $region40
      $region39: #{_lambda_.12} parent=35 // pred_region
        _
      $region40: #{_lambda_.12} parent=35 // pred_fallthru
        _
    $region36: #{_lambda_.12} parent=5 // pred_fallthru
      _
    %p2458 = scmp.le.s32.totalorder 2, %s10
    // Predicated region
    $region41: #{_lambda_.12} parent=5 // pred_check
      %p2459 = pneg %p2458
    $region42: #{_lambda_.12} parent=5 // pred_check_branch
      %2461 = sbr.rel (%p2459) target = $region44
    $region43: #{_lambda_.12} parent=5 // pred_region
      %s2462 = ssub.s32 %s10, 2
      // Predicated region
      $region45: #{_lambda_.12} parent=43 // pred_check
        %p2463 = pneg %p144
      $region46: #{_lambda_.12} parent=43 // pred_check_branch
        %2465 = sbr.rel (%p2463) target = $region48
      $region47: #{_lambda_.12} parent=43 // pred_region
        %p2466 = scmp.lt.s32.totalorder %s21, 1
        %s2467 = scalar_select %p2466, %s21, 1
        %p2468 = scmp.lt.s32.totalorder %s22, 0
        %s2469 = scalar_select %p2468, %s22, 0
        %s2470 = smul.addr %s2469, 8
        %s2471 = smul.addr %s2467, 8
        %s2472 = sadd.s32 %s2470, %s2471
        %s2473 = smul.addr %s2472, 4
        %s2474 = scalar_lea.vmem %s4, %s2473
      $region48: #{_lambda_.12} parent=43 // pred_fallthru
        _
    $region44: #{_lambda_.12} parent=5 // pred_fallthru
      _
  $region6: #{_lambda_.12} parent=0 // loop_footer
    %s14 = sadd.s32 1, %s10
  $region7: #{_lambda_.12} parent=0 // loop_footer_branch
    %9 = sbr.rel target = $region3
  $region8: #{_lambda_.12} parent=0 // loop_exit
    _

// kernel: _lambda_.13
$region0: #{_lambda_.13}
  #allocation0 [shape = 'u32[]', space=smem, size = 0x4, offset = 0x4, fixed_abs, tag = 'smem constant byte address 0x4 - core index']
  #allocation1 [shape = 'u32[144,128]{1,0:T(1,128)}', space=vmem, size = 0x12000, scoped, tag = 'internal scratch']
  %s0 = inlined_call_operand.vmem [shape: f32[2,128,3], index: 0, kind: input, shape index: {}]
  %s1 = inlined_call_operand.vmem [shape: bf16[2,3,128], index: 1, kind: input, shape index: {}]
  %s2 = inlined_call_operand.vmem [shape: f32[1,3], index: 2, kind: input, shape index: {}]
  %s3 = inlined_call_operand.vmem [shape: f32[1,3], index: 3, kind: input, shape index: {}]
  %s4 = inlined_call_operand.vmem [shape: bf16[2,128,128], index: 4, kind: output, shape index: {0}]
  %s5 = inlined_call_operand.vmem [shape: f32[2,1,2,128], index: 5, kind: output, shape index: {1}]
  %6 = xla_tuple %s4, %s5
  %s7 = sld [smem:[#allocation0]]
  $region57: #{_lambda_.13} parent=0
    _
  %s9 = ssub.s32 1, %s7
  %s10 = scalar_select 0, %s9, %s7
  loop: start=0, step=1, limit=4
  $region2: #{_lambda_.13} parent=0 // loop_pre_header
    _
  $region3: #{_lambda_.13} parent=0 // loop_header
    %s12 = sphi 0, %s16
    %p13 = scmp.ge.s32.totalorder %s12, 4
    %s19 = sphi 0, %s31
    %s20 = sphi 0, %s27
    %s21 = sphi 0, %s19
    %s22 = sphi 0, %s20
    %s23 = sphi 0, %s21
    %s24 = sphi 0, %s22
    %s36 = sphi 0, %s38
    %s39 = sphi 0, %s36
    %s40 = sphi 0, %s39
    %s56 = sphi 0, %s40
    %s62 = sphi 0, %s64
    %s65 = sphi 0, %s62
    %s66 = sphi 0, %s65
    %s82 = sphi 0, %s66
    %s86 = sphi 0, %s86
    %s88 = sphi 0, %s86
    %s89 = sphi 0, %s88
    %s103 = sphi 0, %s89
    %s107 = sphi 0, %s107
    %s109 = sphi 0, %s107
    %s110 = sphi 0, %s109
    %s124 = sphi 0, %s110
    %s132 = sphi 0, %s134
    %s135 = sphi 0, %s132
    %s136 = sphi 0, %s135
    %s152 = sphi 0, %s136
    %s160 = sphi 0, %s162
    %s163 = sphi 0, %s160
    %s164 = sphi 0, %s163
    %s180 = sphi 0, %s164
  $region4: #{_lambda_.13} parent=0 // loop_header_branch
    %15 = sbr.rel (%p13) target = $region8
  $region5: #{_lambda_.13} parent=0 // loop_body
    %s17 = ssub.s32 %s12, 1
    %s18 = ssub.s32 %s12, 2
    %s25 = sadd.s32 1, %s20
    %p26 = scmp.ge.s32.totalorder %s25, 1
    %s27 = scalar_select %p26, 0, %s25
    %s28 = sadd.s32 1, %s19
    %s29 = scalar_select %p26, %s28, %s19
    %p30 = scmp.ge.s32.totalorder %s29, 2
    %s31 = scalar_select %p30, 0, %s29
    %s32 = ssub.s32 %s19, %s31
    %s33 = ssub.s32 %s20, %s27
    %s34 = sor.u32 %s32, %s33
    %p35 = scmp.eq.s32.totalorder %s34, 0
    %s37 = sadd.s32 %s36, 1
    %s38 = scalar_select %p35, %s36, %s37
    %p41 = pneg %p35
    %p42 = scmp.eq.s32.totalorder %s12, 1
    %p43 = por %p41, %p42
    %p44 = scmp.ne.s32.totalorder %s36, %s39
    %p45 = scmp.eq.s32.totalorder %s12, 0
    %p46 = por %p44, %p45
    %p47 = scmp.ne.s32.totalorder %s36, %s39
    %p48 = scmp.eq.s32.totalorder %s17, 1
    %p49 = por %p47, %p48
    %p50 = scmp.ne.s32.totalorder %s39, %s40
    %p51 = scmp.eq.s32.totalorder %s17, 0
    %p52 = por %p50, %p51
    %p53 = scmp.ne.s32.totalorder %s39, %s40
    %p54 = scmp.eq.s32.totalorder %s18, 1
    %p55 = por %p53, %p54
    %p57 = scmp.ne.s32.totalorder %s40, %s56
    %p58 = scmp.eq.s32.totalorder %s18, 0
    %p59 = por %p57, %p58
    %s60 = ssub.s32 %s19, %s31
    %p61 = scmp.eq.s32.totalorder %s60, 0
    %s63 = sadd.s32 %s62, 1
    %s64 = scalar_select %p61, %s62, %s63
    %p67 = pneg %p61
    %p68 = scmp.eq.s32.totalorder %s12, 1
    %p69 = por %p67, %p68
    %p70 = scmp.ne.s32.totalorder %s62, %s65
    %p71 = scmp.eq.s32.totalorder %s12, 0
    %p72 = por %p70, %p71
    %p73 = scmp.ne.s32.totalorder %s62, %s65
    %p74 = scmp.eq.s32.totalorder %s17, 1
    %p75 = por %p73, %p74
    %p76 = scmp.ne.s32.totalorder %s65, %s66
    %p77 = scmp.eq.s32.totalorder %s17, 0
    %p78 = por %p76, %p77
    %p79 = scmp.ne.s32.totalorder %s65, %s66
    %p80 = scmp.eq.s32.totalorder %s18, 1
    %p81 = por %p79, %p80
    %p83 = scmp.ne.s32.totalorder %s66, %s82
    %p84 = scmp.eq.s32.totalorder %s18, 0
    %p85 = por %p83, %p84
    %s87 = sadd.s32 %s86, 1
    %p90 = scmp.eq.s32.totalorder %s12, 1
    %p91 = scmp.ne.s32.totalorder %s86, %s88
    %p92 = scmp.eq.s32.totalorder %s12, 0
    %p93 = por %p91, %p92
    %p94 = scmp.ne.s32.totalorder %s86, %s88
    %p95 = scmp.eq.s32.totalorder %s17, 1
    %p96 = por %p94, %p95
    %p97 = scmp.ne.s32.totalorder %s88, %s89
    %p98 = scmp.eq.s32.totalorder %s17, 0
    %p99 = por %p97, %p98
    %p100 = scmp.ne.s32.totalorder %s88, %s89
    %p101 = scmp.eq.s32.totalorder %s18, 1
    %p102 = por %p100, %p101
    %p104 = scmp.ne.s32.totalorder %s89, %s103
    %p105 = scmp.eq.s32.totalorder %s18, 0
    %p106 = por %p104, %p105
    %s108 = sadd.s32 %s107, 1
    %p111 = scmp.eq.s32.totalorder %s12, 1
    %p112 = scmp.ne.s32.totalorder %s107, %s109
    %p113 = scmp.eq.s32.totalorder %s12, 0
    %p114 = por %p112, %p113
    %p115 = scmp.ne.s32.totalorder %s107, %s109
    %p116 = scmp.eq.s32.totalorder %s17, 1
    %p117 = por %p115, %p116
    %p118 = scmp.ne.s32.totalorder %s109, %s110
    %p119 = scmp.eq.s32.totalorder %s17, 0
    %p120 = por %p118, %p119
    %p121 = scmp.ne.s32.totalorder %s109, %s110
    %p122 = scmp.eq.s32.totalorder %s18, 1
    %p123 = por %p121, %p122
    %p125 = scmp.ne.s32.totalorder %s110, %s124
    %p126 = scmp.eq.s32.totalorder %s18, 0
    %p127 = por %p125, %p126
    %s128 = ssub.s32 %s19, %s31
    %s129 = ssub.s32 %s20, %s27
    %s130 = sor.u32 %s128, %s129
    %p131 = scmp.eq.s32.totalorder %s130, 0
    %s133 = sadd.s32 %s132, 1
    %s134 = scalar_select %p131, %s132, %s133
    %p137 = pneg %p131
    %p138 = scmp.eq.s32.totalorder %s12, 1
    %p139 = por %p137, %p138
    %p140 = scmp.ne.s32.totalorder %s132, %s135
    %p141 = scmp.eq.s32.totalorder %s12, 0
    %p142 = por %p140, %p141
    %p143 = scmp.ne.s32.totalorder %s132, %s135
    %p144 = scmp.eq.s32.totalorder %s17, 1
    %p145 = por %p143, %p144
    %p146 = scmp.ne.s32.totalorder %s135, %s136
    %p147 = scmp.eq.s32.totalorder %s17, 0
    %p148 = por %p146, %p147
    %p149 = scmp.ne.s32.totalorder %s135, %s136
    %p150 = scmp.eq.s32.totalorder %s18, 1
    %p151 = por %p149, %p150
    %p153 = scmp.ne.s32.totalorder %s136, %s152
    %p154 = scmp.eq.s32.totalorder %s18, 0
    %p155 = por %p153, %p154
    %s156 = ssub.s32 %s19, %s31
    %s157 = ssub.s32 %s20, %s27
    %s158 = sor.u32 %s156, %s157
    %p159 = scmp.eq.s32.totalorder %s158, 0
    %s161 = sadd.s32 %s160, 1
    %s162 = scalar_select %p159, %s160, %s161
    %p165 = pneg %p159
    %p166 = scmp.eq.s32.totalorder %s12, 1
    %p167 = por %p165, %p166
    %p168 = scmp.ne.s32.totalorder %s160, %s163
    %p169 = scmp.eq.s32.totalorder %s12, 0
    %p170 = por %p168, %p169
    %p171 = scmp.ne.s32.totalorder %s160, %s163
    %p172 = scmp.eq.s32.totalorder %s17, 1
    %p173 = por %p171, %p172
    %p174 = scmp.ne.s32.totalorder %s163, %s164
    %p175 = scmp.eq.s32.totalorder %s17, 0
    %p176 = por %p174, %p175
    %p177 = scmp.ne.s32.totalorder %s163, %s164
    %p178 = scmp.eq.s32.totalorder %s18, 1
    %p179 = por %p177, %p178
    %p181 = scmp.ne.s32.totalorder %s164, %s180
    %p182 = scmp.eq.s32.totalorder %s18, 0
    %p183 = por %p181, %p182
    %p184 = scmp.le.s32.totalorder 1, %s12
    %p185 = scmp.lt.s32.totalorder %s12, 3
    %p186 = pnand %p184, %p185
    %p187 = pneg %p186
    // Predicated region
    $region9: #{_lambda_.13} parent=5 // pred_check
      _
    $region10: #{_lambda_.13} parent=5 // pred_check_branch
      %189 = sbr.rel (%p186) target = $region12
    $region11: #{_lambda_.13} parent=5 // pred_region
      %s190 = ssub.s32 %s12, 1
      // Predicated region
      $region13: #{_lambda_.13} parent=11 // pred_check
        %p191 = pneg %p99
      $region14: #{_lambda_.13} parent=11 // pred_check_branch
        %193 = sbr.rel (%p191) target = $region16
      $region15: #{_lambda_.13} parent=11 // pred_region
        _
      $region16: #{_lambda_.13} parent=11 // pred_fallthru
        _
      // Predicated region
      $region17: #{_lambda_.13} parent=11 // pred_check
        %p194 = pneg %p120
      $region18: #{_lambda_.13} parent=11 // pred_check_branch
        %196 = sbr.rel (%p194) target = $region20
      $region19: #{_lambda_.13} parent=11 // pred_region
        _
      $region20: #{_lambda_.13} parent=11 // pred_fallthru
        _
    $region12: #{_lambda_.13} parent=5 // pred_fallthru
      _
    %p197 = scmp.lt.s32.totalorder %s12, 2
    // Predicated region
    $region21: #{_lambda_.13} parent=5 // pred_check
      %p198 = pneg %p197
    $region22: #{_lambda_.13} parent=5 // pred_check_branch
      %200 = sbr.rel (%p198) target = $region24
    $region23: #{_lambda_.13} parent=5 // pred_region
      // Predicated region
      $region25: #{_lambda_.13} parent=23 // pred_check
        %p201 = pneg %p46
      $region26: #{_lambda_.13} parent=23 // pred_check_branch
        %203 = sbr.rel (%p201) target = $region28
      $region27: #{_lambda_.13} parent=23 // pred_region
        %s204 = smul.u32 16, %s20
        %p205 = scmp.lt.s32.totalorder %s19, 1
        %s206 = scalar_select %p205, %s19, 1
        %p207 = scmp.lt.s32.totalorder %s204, 15
        %s208 = scalar_select %p207, %s204, 15
        %s209 = smul.addr %s206, 16
        %s210 = sadd.s32 %s208, %s209
        %s211 = smul.addr %s210, 8
        %s212 = scalar_lea.vmem %s0, %s211
        %s213 = smul.u32 16, %s20
      $region28: #{_lambda_.13} parent=23 // pred_fallthru
        _
      // Predicated region
      $region29: #{_lambda_.13} parent=23 // pred_check
        %p214 = pneg %p72
      $region30: #{_lambda_.13} parent=23 // pred_check_branch
        %216 = sbr.rel (%p214) target = $region32
      $region31: #{_lambda_.13} parent=23 // pred_region
        %p217 = scmp.lt.s32.totalorder %s19, 1
        %s218 = scalar_select %p217, %s19, 1
        %s219 = smul.addr %s218, 2
        %s220 = scalar_lea.vmem %s1, %s219
      $region32: #{_lambda_.13} parent=23 // pred_fallthru
        _
    $region24: #{_lambda_.13} parent=5 // pred_fallthru
      _
    %p221 = scmp.le.s32.totalorder 1, %s12
    %p222 = scmp.lt.s32.totalorder %s12, 3
    %p223 = pnand %p221, %p222
    %p224 = pneg %p223
    // Predicated region
    $region33: #{_lambda_.13} parent=5 // pred_check
      _
    $region34: #{_lambda_.13} parent=5 // pred_check_branch
      %226 = sbr.rel (%p223) target = $region36
    $region35: #{_lambda_.13} parent=5 // pred_region
      %s227 = ssub.s32 %s12, 1
      %s228 = smul.u32 16, %s22
      %p229 = scmp.lt.s32.totalorder %s21, 1
      %s230 = scalar_select %p229, %s21, 1
      %p231 = scmp.lt.s32.totalorder %s228, 15
      %s232 = scalar_select %p231, %s228, 15
      %s233 = smul.addr %s230, 16
      %s234 = sadd.s32 %s232, %s233
      %s235 = smul.addr %s234, 8
      %s236 = scalar_lea.vmem %s0, %s235
      %p237 = pneg %p52
      %p238 = pneg %p49
      %p239 = scmp.lt.s32.totalorder %s21, 1
      %s240 = scalar_select %p239, %s21, 1
      %s241 = smul.addr %s240, 2
      %s242 = scalar_lea.vmem %s1, %s241
      %p243 = pneg %p78
      %p244 = pneg %p75
      %p245 = pneg %p99
      %p246 = pneg %p96
      %p247 = pneg %p120
      %p248 = pneg %p117
      %p249 = pneg %p148
      %p250 = pneg %p145
      %s251 = smul.u32 16, %s22
      %p252 = scmp.lt.s32.totalorder %s21, 1
      %s253 = scalar_select %p252, %s21, 1
      %p254 = scmp.lt.s32.totalorder %s251, 15
      %s255 = scalar_select %p254, %s251, 15
      %s256 = smul.addr %s253, 16
      %s257 = sadd.s32 %s255, %s256
      %s258 = smul.addr %s257, 4
      %s259 = scalar_lea.vmem %s4, %s258
      %p260 = pneg %p176
      %p261 = pneg %p173
      %p262 = scmp.lt.s32.totalorder %s21, 1
      %s263 = scalar_select %p262, %s21, 1
      %p264 = scmp.lt.s32.totalorder %s22, 0
      %s265 = scalar_select %p264, %s22, 0
      %s266 = sadd.s32 %s265, %s263
      %s267 = smul.addr %s266, 2
      %s268 = scalar_lea.vmem %s5, %s267
      %s269 = smul.u32 16, %s22
      %p270 = scmp.lt.s32.totalorder %s21, 1
      %s271 = scalar_select %p270, %s21, 1
      %p272 = scmp.lt.s32.totalorder %s269, 15
      %s273 = scalar_select %p272, %s269, 15
      %s274 = smul.addr %s271, 16
      %s275 = sadd.s32 %s273, %s274
      %s276 = smul.addr %s275, 8
      %s277 = scalar_lea.vmem %s0, %s276
      %s278 = smul.u32 16, %s22
      %p279 = scmp.lt.s32.totalorder %s21, 1
      %s280 = scalar_select %p279, %s21, 1
      %s281 = smul.addr %s280, 2
      %s282 = scalar_lea.vmem %s1, %s281
      %s283 = smul.u32 16, %s22
      %p284 = scmp.lt.s32.totalorder %s21, 1
      %s285 = scalar_select %p284, %s21, 1
      %p286 = scmp.lt.s32.totalorder %s283, 15
      %s287 = scalar_select %p286, %s283, 15
      %s288 = smul.addr %s285, 16
      %s289 = sadd.s32 %s287, %s288
      %s290 = smul.addr %s289, 4
      %s291 = scalar_lea.vmem %s4, %s290
      %s292 = smul.u32 16, %s22
      %p293 = scmp.lt.s32.totalorder %s21, 1
      %s294 = scalar_select %p293, %s21, 1
      %p295 = scmp.lt.s32.totalorder %s22, 0
      %s296 = scalar_select %p295, %s22, 0
      %s297 = sadd.s32 %s296, %s294
      %s298 = smul.addr %s297, 2
      %s299 = scalar_lea.vmem %s5, %s298
      %v301 = vld [vmem:[%s277] sm:$0xff]
      %v302 = vld [vmem:[%s277 + $0x8] sm:$0xff]
      %v303 = vld [vmem:[%s277 + $0x10] sm:$0xff]
      %v304 = vld [vmem:[%s277 + $0x18] sm:$0xff]
      %v305 = vld [vmem:[%s277 + $0x20] sm:$0xff]
      %v306 = vld [vmem:[%s277 + $0x28] sm:$0xff]
      %v307 = vld [vmem:[%s277 + $0x30] sm:$0xff]
      %v308 = vld [vmem:[%s277 + $0x38] sm:$0xff]
      %v309 = vld [vmem:[%s277 + $0x40] sm:$0xff]
      %v310 = vld [vmem:[%s277 + $0x48] sm:$0xff]
      %v311 = vld [vmem:[%s277 + $0x50] sm:$0xff]
      %v312 = vld [vmem:[%s277 + $0x58] sm:$0xff]
      %v313 = vld [vmem:[%s277 + $0x60] sm:$0xff]
      %v314 = vld [vmem:[%s277 + $0x68] sm:$0xff]
      %v315 = vld [vmem:[%s277 + $0x70] sm:$0xff]
      %v316 = vld [vmem:[%s277 + $0x78] sm:$0xff]
      %v317 = vpack.c.bf16 %v302, %v301
      %v318 = vpack.c.bf16 %v304, %v303
      %v319 = vpack.c.bf16 %v306, %v305
      %v320 = vpack.c.bf16 %v308, %v307
      %v321 = vpack.c.bf16 %v310, %v309
      %v322 = vpack.c.bf16 %v312, %v311
      %v323 = vpack.c.bf16 %v314, %v313
      %v324 = vpack.c.bf16 %v316, %v315
      %v325 = vld [vmem:[%s282] sm:$0x3]
      %vm326 = vcmask 23552
      %v328 = vsel %vm326, %v317, 0
      %v331 = vsel %vm326, %v318, 0
      %v334 = vsel %vm326, %v319, 0
      %v337 = vsel %vm326, %v320, 0
      %v340 = vsel %vm326, %v321, 0
      %v343 = vsel %vm326, %v322, 0
      %v346 = vsel %vm326, %v323, 0
      %v349 = vsel %vm326, %v324, 0
      %vm351 = vcmask 1040384
      %vm352 = vcmask 1041408
      %v353 = vsel %vm351, 4294967295, 65535
      %v354 = vsel %vm352, %v353, 0
      %v356 = vand.u32 %v325, %v354
      %358 = vmatprep.subr.bf16.mxu0 0
      %359 = vmatpush1.bf16.msra.mxu0 %v356
      %360 = vmatprep.subr.bf16.mxu0 0
      %361 = vmatpush1.bf16.msra.mxu0 0
      %362 = vmatprep.subr.bf16.mxu0 0
      %363 = vmatpush1.bf16.msra.mxu0 0
      %364 = vmatprep.subr.bf16.mxu0 0
      %365 = vmatpush1.bf16.msra.mxu0 0
      %366 = vmatprep.subr.bf16.mxu0 0
      %367 = vmatpush1.bf16.msra.mxu0 0
      %368 = vmatprep.subr.bf16.mxu0 0
      %369 = vmatpush1.bf16.msra.mxu0 0
      %370 = vmatprep.subr.bf16.mxu0 0
      %371 = vmatpush1.bf16.msra.mxu0 0
      %372 = vmatprep.subr.bf16.mxu0 0
      %373 = vmatpush1.bf16.msra.mxu0 0
      %374 = vmatprep.subr.bf16.mxu0 0
      %375 = vmatpush1.bf16.msra.mxu0 0
      %376 = vmatprep.subr.bf16.mxu0 0
      %377 = vmatpush1.bf16.msra.mxu0 0
      %378 = vmatprep.subr.bf16.mxu0 0
      %379 = vmatpush1.bf16.msra.mxu0 0
      %380 = vmatprep.subr.bf16.mxu0 0
      %381 = vmatpush1.bf16.msra.mxu0 0
      %382 = vmatprep.subr.bf16.mxu0 0
      %383 = vmatpush1.bf16.msra.mxu0 0
      %384 = vmatprep.subr.bf16.mxu0 0
      %385 = vmatpush1.bf16.msra.mxu0 0
      %386 = vmatprep.subr.bf16.mxu0 0
      %387 = vmatpush1.bf16.msra.mxu0 0
      %388 = vmatprep.subr.bf16.mxu0 0
      %389 = vmatpush1.bf16.msra.mxu0 0
      %390 = vmatprep.mubr.bf16.mxu0 0
      %391 = vmatmul.mubr.bf16.gmra.mrb[0].mxu0 %v328
      %v392 = vpop.f32.mrb[0].mxu0
      %v393 = vadd.f32 0.0, %v392
      %v394 = vpop.f32.mrb[0].mxu0
      %v395 = vpop.f32.mrb[0].mxu0
      %v396 = vadd.f32 0.0, %v395
      %v397 = vpop.f32.mrb[0].mxu0
      %398 = vmatprep.mubr.bf16.mxu0 0
      %399 = vmatmul.mubr.bf16.gmra.mrb[0].mxu0 %v331
      %v400 = vpop.f32.mrb[0].mxu0
      %v401 = vadd.f32 0.0, %v400
      %v402 = vpop.f32.mrb[0].mxu0
      %v403 = vpop.f32.mrb[0].mxu0
      %v404 = vadd.f32 0.0, %v403
      %v405 = vpop.f32.mrb[0].mxu0
      %406 = vmatprep.mubr.bf16.mxu0 0
      %407 = vmatmul.mubr.bf16.gmra.mrb[0].mxu0 %v334
      %v408 = vpop.f32.mrb[0].mxu0
      %v409 = vadd.f32 0.0, %v408
      %v410 = vpop.f32.mrb[0].mxu0
      %v411 = vpop.f32.mrb[0].mxu0
      %v412 = vadd.f32 0.0, %v411
      %v413 = vpop.f32.mrb[0].mxu0
      %414 = vmatprep.mubr.bf16.mxu0 0
      %415 = vmatmul.mubr.bf16.gmra.mrb[0].mxu0 %v337
      %v416 = vpop.f32.mrb[0].mxu0
      %v417 = vadd.f32 0.0, %v416
      %v418 = vpop.f32.mrb[0].mxu0
      %v419 = vpop.f32.mrb[0].mxu0
      %v420 = vadd.f32 0.0, %v419
      %v421 = vpop.f32.mrb[0].mxu0
      %422 = vmatprep.mubr.bf16.mxu0 0
      %423 = vmatmul.mubr.bf16.gmra.mrb[0].mxu0 %v340
      %v424 = vpop.f32.mrb[0].mxu0
      %v425 = vadd.f32 0.0, %v424
      %v426 = vpop.f32.mrb[0].mxu0
      %v427 = vpop.f32.mrb[0].mxu0
      %v428 = vadd.f32 0.0, %v427
      %v429 = vpop.f32.mrb[0].mxu0
      %430 = vmatprep.mubr.bf16.mxu0 0
      %431 = vmatmul.mubr.bf16.gmra.mrb[0].mxu0 %v343
      %v432 = vpop.f32.mrb[0].mxu0
      %v433 = vadd.f32 0.0, %v432
      %v434 = vpop.f32.mrb[0].mxu0
      %v435 = vpop.f32.mrb[0].mxu0
      %v436 = vadd.f32 0.0, %v435
      %v437 = vpop.f32.mrb[0].mxu0
      %438 = vmatprep.mubr.bf16.mxu0 0
      %439 = vmatmul.mubr.bf16.gmra.mrb[0].mxu0 %v346
      %v440 = vpop.f32.mrb[0].mxu0
      %v441 = vadd.f32 0.0, %v440
      %v442 = vpop.f32.mrb[0].mxu0
      %v443 = vpop.f32.mrb[0].mxu0
      %v444 = vadd.f32 0.0, %v443
      %v445 = vpop.f32.mrb[0].mxu0
      %446 = vmatprep.mubr.bf16.mxu0 0
      %447 = vmatmul.mubr.bf16.gmra.mrb[0].mxu0 %v349
      %v448 = vpop.f32.mrb[0].mxu0
      %v449 = vadd.f32 0.0, %v448
      %v450 = vpop.f32.mrb[0].mxu0
      %v451 = vpop.f32.mrb[0].mxu0
      %v452 = vadd.f32 0.0, %v451
      %v453 = vpop.f32.mrb[0].mxu0
      %454 = vdwg.mxu0
      %v455 = vpack.c.bf16 %v396, %v393
      %v456 = vpack.c.bf16 %v404, %v401
      %v457 = vpack.c.bf16 %v412, %v409
      %v458 = vpack.c.bf16 %v420, %v417
      %v459 = vpack.c.bf16 %v428, %v425
      %v460 = vpack.c.bf16 %v436, %v433
      %v461 = vpack.c.bf16 %v444, %v441
      %v462 = vpack.c.bf16 %v452, %v449
      %v471 = vunpack.c.l.b16 %v455
      %v472 = vunpack.c.h.b16 %v455
      %v473 = vunpack.c.l.b16 %v456
      %v474 = vunpack.c.h.b16 %v456
      %v475 = vunpack.c.l.b16 %v457
      %v476 = vunpack.c.h.b16 %v457
      %v477 = vunpack.c.l.b16 %v458
      %v478 = vunpack.c.h.b16 %v458
      %v479 = vunpack.c.l.b16 %v459
      %v480 = vunpack.c.h.b16 %v459
      %v481 = vunpack.c.l.b16 %v460
      %v482 = vunpack.c.h.b16 %v460
      %v483 = vunpack.c.l.b16 %v461
      %v484 = vunpack.c.h.b16 %v461
      %v485 = vunpack.c.l.b16 %v462
      %v486 = vunpack.c.h.b16 %v462
      %v487 = vpack.c.b16 %v471, %v471
      %v488 = vpack.c.b16 %v472, %v472
      %v489 = vpack.c.b16 %v473, %v473
      %v490 = vpack.c.b16 %v474, %v474
      %v491 = vpack.c.b16 %v475, %v475
      %v492 = vpack.c.b16 %v476, %v476
      %v493 = vpack.c.b16 %v477, %v477
      %v494 = vpack.c.b16 %v478, %v478
      %v495 = vpack.c.b16 %v479, %v479
      %v496 = vpack.c.b16 %v480, %v480
      %v497 = vpack.c.b16 %v481, %v481
      %v498 = vpack.c.b16 %v482, %v482
      %v499 = vpack.c.b16 %v483, %v483
      %v500 = vpack.c.b16 %v484, %v484
      %v501 = vpack.c.b16 %v485, %v485
      %v502 = vpack.c.b16 %v486, %v486
      %519 = vst [vmem:[%s291] sm:$0xf] %v487
      %520 = vst [vmem:[%s291 + $0x4] sm:$0xf] %v488
      %521 = vst [vmem:[%s291 + $0x8] sm:$0xf] %v489
      %522 = vst [vmem:[%s291 + $0xc] sm:$0xf] %v490
      %523 = vst [vmem:[%s291 + $0x10] sm:$0xf] %v491
      %524 = vst [vmem:[%s291 + $0x14] sm:$0xf] %v492
      %525 = vst [vmem:[%s291 + $0x18] sm:$0xf] %v493
      %526 = vst [vmem:[%s291 + $0x1c] sm:$0xf] %v494
      %527 = vst [vmem:[%s291 + $0x20] sm:$0xf] %v495
      %528 = vst [vmem:[%s291 + $0x24] sm:$0xf] %v496
      %529 = vst [vmem:[%s291 + $0x28] sm:$0xf] %v497
      %530 = vst [vmem:[%s291 + $0x2c] sm:$0xf] %v498
      %531 = vst [vmem:[%s291 + $0x30] sm:$0xf] %v499
      %532 = vst [vmem:[%s291 + $0x34] sm:$0xf] %v500
      %533 = vst [vmem:[%s291 + $0x38] sm:$0xf] %v501
      %534 = vst [vmem:[%s291 + $0x3c] sm:$0xf] %v502
      %535 = vmatprep.subr.mxu0 0.0
      %536 = vmatpush1.msra.mxu0 %v393
      %537 = vmatprep.subr.mxu0 0.0
      %538 = vmatpush1.msra.mxu0 %v396
      %539 = vmatprep.subr.mxu0 0.0
      %540 = vmatpush1.msra.mxu0 %v401
      %541 = vmatprep.subr.mxu0 0.0
      %542 = vmatpush1.msra.mxu0 %v404
      %543 = vmatprep.subr.mxu0 0.0
      %544 = vmatpush1.msra.mxu0 %v409
      %545 = vmatprep.subr.mxu0 0.0
      %546 = vmatpush1.msra.mxu0 %v412
      %547 = vmatprep.subr.mxu0 0.0
      %548 = vmatpush1.msra.mxu0 %v417
      %549 = vmatprep.subr.mxu0 0.0
      %550 = vmatpush1.msra.mxu0 %v420
      %551 = vmatprep.subr.mxu0 0.0
      %552 = vmatpush1.msra.mxu0 %v425
      %553 = vmatprep.subr.mxu0 0.0
      %554 = vmatpush1.msra.mxu0 %v428
      %555 = vmatprep.subr.mxu0 0.0
      %556 = vmatpush1.msra.mxu0 %v433
      %557 = vmatprep.subr.mxu0 0.0
      %558 = vmatpush1.msra.mxu0 %v436
      %559 = vmatprep.subr.mxu0 0.0
      %560 = vmatpush1.msra.mxu0 %v441
      %561 = vmatprep.subr.mxu0 0.0
      %562 = vmatpush1.msra.mxu0 %v444
      %563 = vmatprep.subr.mxu0 0.0
      %564 = vmatpush1.msra.mxu0 %v449
      %565 = vmatprep.subr.mxu0 0.0
      %566 = vmatpush1.msra.mxu0 %v452
      %567 = vmatprep.subr.mxu0 0.0
      %568 = vmatpush1.msra.mxu0 0.0
      %569 = vmatprep.subr.mxu0 0.0
      %570 = vmatpush1.msra.mxu0 0.0
      %571 = vmatprep.subr.mxu0 0.0
      %572 = vmatpush1.msra.mxu0 0.0
      %573 = vmatprep.subr.mxu0 0.0
      %574 = vmatpush1.msra.mxu0 0.0
      %575 = vmatprep.subr.mxu0 0.0
      %576 = vmatpush1.msra.mxu0 0.0
      %577 = vmatprep.subr.mxu0 0.0
      %578 = vmatpush1.msra.mxu0 0.0
      %579 = vmatprep.subr.mxu0 0.0
      %580 = vmatpush1.msra.mxu0 0.0
      %581 = vmatprep.subr.mxu0 0.0
      %582 = vmatpush1.msra.mxu0 0.0
      %583 = vmatprep.subr.mxu0 0.0
      %584 = vmatpush1.msra.mxu0 0.0
      %585 = vmatprep.subr.mxu0 0.0
      %586 = vmatpush1.msra.mxu0 0.0
      %587 = vmatprep.subr.mxu0 0.0
      %588 = vmatpush1.msra.mxu0 0.0
      %589 = vmatprep.subr.mxu0 0.0
      %590 = vmatpush1.msra.mxu0 0.0
      %591 = vmatprep.subr.mxu0 0.0
      %592 = vmatpush1.msra.mxu0 0.0
      %593 = vmatprep.subr.mxu0 0.0
      %594 = vmatpush1.msra.mxu0 0.0
      %595 = vmatprep.subr.mxu0 0.0
      %596 = vmatpush1.msra.mxu0 0.0
      %597 = vmatprep.subr.mxu0 0.0
      %598 = vmatpush1.msra.mxu0 0.0
      %599 = vmatprep.mubr.f32.mxu0 0.0
      %600 = vmatmul.mubr.f32.gmra.mrb[0].mxu0 1.0
      %v601 = vpop.f32.mrb[0].mxu0
      %v602 = vadd.f32 0.0, %v601
      %v603 = vpop.f32.mrb[0].mxu0
      %604 = vdwg.mxu0
      %605 = vst [vmem:[%s299] sm:$0x1] %v602
      %v606 = vmul.f32 %v393, %v393
      %v607 = vmul.f32 %v396, %v396
      %v608 = vmul.f32 %v401, %v401
      %v609 = vmul.f32 %v404, %v404
      %v610 = vmul.f32 %v409, %v409
      %v611 = vmul.f32 %v412, %v412
      %v612 = vmul.f32 %v417, %v417
      %v613 = vmul.f32 %v420, %v420
      %v614 = vmul.f32 %v425, %v425
      %v615 = vmul.f32 %v428, %v428
      %v616 = vmul.f32 %v433, %v433
      %v617 = vmul.f32 %v436, %v436
      %v618 = vmul.f32 %v441, %v441
      %v619 = vmul.f32 %v444, %v444
      %v620 = vmul.f32 %v449, %v449
      %v621 = vmul.f32 %v452, %v452
      %622 = vmatprep.subr.mxu0 0.0
      %623 = vmatpush1.msra.mxu0 %v606
      %624 = vmatprep.subr.mxu0 0.0
      %625 = vmatpush1.msra.mxu0 %v607
      %626 = vmatprep.subr.mxu0 0.0
      %627 = vmatpush1.msra.mxu0 %v608
      %628 = vmatprep.subr.mxu0 0.0
      %629 = vmatpush1.msra.mxu0 %v609
      %630 = vmatprep.subr.mxu0 0.0
      %631 = vmatpush1.msra.mxu0 %v610
      %632 = vmatprep.subr.mxu0 0.0
      %633 = vmatpush1.msra.mxu0 %v611
      %634 = vmatprep.subr.mxu0 0.0
      %635 = vmatpush1.msra.mxu0 %v612
      %636 = vmatprep.subr.mxu0 0.0
      %637 = vmatpush1.msra.mxu0 %v613
      %638 = vmatprep.subr.mxu0 0.0
      %639 = vmatpush1.msra.mxu0 %v614
      %640 = vmatprep.subr.mxu0 0.0
      %641 = vmatpush1.msra.mxu0 %v615
      %642 = vmatprep.subr.mxu0 0.0
      %643 = vmatpush1.msra.mxu0 %v616
      %644 = vmatprep.subr.mxu0 0.0
      %645 = vmatpush1.msra.mxu0 %v617
      %646 = vmatprep.subr.mxu0 0.0
      %647 = vmatpush1.msra.mxu0 %v618
      %648 = vmatprep.subr.mxu0 0.0
      %649 = vmatpush1.msra.mxu0 %v619
      %650 = vmatprep.subr.mxu0 0.0
      %651 = vmatpush1.msra.mxu0 %v620
      %652 = vmatprep.subr.mxu0 0.0
      %653 = vmatpush1.msra.mxu0 %v621
      %654 = vmatprep.subr.mxu0 0.0
      %655 = vmatpush1.msra.mxu0 0.0
      %656 = vmatprep.subr.mxu0 0.0
      %657 = vmatpush1.msra.mxu0 0.0
      %658 = vmatprep.subr.mxu0 0.0
      %659 = vmatpush1.msra.mxu0 0.0
      %660 = vmatprep.subr.mxu0 0.0
      %661 = vmatpush1.msra.mxu0 0.0
      %662 = vmatprep.subr.mxu0 0.0
      %663 = vmatpush1.msra.mxu0 0.0
      %664 = vmatprep.subr.mxu0 0.0
      %665 = vmatpush1.msra.mxu0 0.0
      %666 = vmatprep.subr.mxu0 0.0
      %667 = vmatpush1.msra.mxu0 0.0
      %668 = vmatprep.subr.mxu0 0.0
      %669 = vmatpush1.msra.mxu0 0.0
      %670 = vmatprep.subr.mxu0 0.0
      %671 = vmatpush1.msra.mxu0 0.0
      %672 = vmatprep.subr.mxu0 0.0
      %673 = vmatpush1.msra.mxu0 0.0
      %674 = vmatprep.subr.mxu0 0.0
      %675 = vmatpush1.msra.mxu0 0.0
      %676 = vmatprep.subr.mxu0 0.0
      %677 = vmatpush1.msra.mxu0 0.0
      %678 = vmatprep.subr.mxu0 0.0
      %679 = vmatpush1.msra.mxu0 0.0
      %680 = vmatprep.subr.mxu0 0.0
      %681 = vmatpush1.msra.mxu0 0.0
      %682 = vmatprep.subr.mxu0 0.0
      %683 = vmatpush1.msra.mxu0 0.0
      %684 = vmatprep.subr.mxu0 0.0
      %685 = vmatpush1.msra.mxu0 0.0
      %686 = vmatprep.mubr.f32.mxu0 0.0
      %687 = vmatmul.mubr.f32.gmra.mrb[0].mxu0 1.0
      %v688 = vpop.f32.mrb[0].mxu0
      %v689 = vadd.f32 0.0, %v688
      %v690 = vpop.f32.mrb[0].mxu0
      %691 = vdwg.mxu0
      %692 = vst [vmem:[%s299 + $0x1] sm:$0x1] %v689
      %s693 = smul.u32 16, %s22
      %p694 = scmp.lt.s32.totalorder %s21, 1
      %s695 = scalar_select %p694, %s21, 1
      %p696 = scmp.lt.s32.totalorder %s693, 15
      %s697 = scalar_select %p696, %s693, 15
      %s698 = smul.addr %s695, 16
      %s699 = sadd.s32 %s697, %s698
      %s700 = smul.addr %s699, 4
      %s701 = scalar_lea.vmem %s4, %s700
      %p702 = scmp.lt.s32.totalorder %s21, 1
      %s703 = scalar_select %p702, %s21, 1
      %p704 = scmp.lt.s32.totalorder %s22, 0
      %s705 = scalar_select %p704, %s22, 0
      %s706 = sadd.s32 %s705, %s703
      %s707 = smul.addr %s706, 2
      %s708 = scalar_lea.vmem %s5, %s707
      // Predicated region
      $region37: #{_lambda_.13} parent=35 // pred_check
        %p709 = pneg %p145
      $region38: #{_lambda_.13} parent=35 // pred_check_branch
        %711 = sbr.rel (%p709) target = $region40
      $region39: #{_lambda_.13} parent=35 // pred_region
        %s712 = smul.u32 16, %s22
      $region40: #{_lambda_.13} parent=35 // pred_fallthru
        _
      // Predicated region
      $region41: #{_lambda_.13} parent=35 // pred_check
        %p713 = pneg %p173
      $region42: #{_lambda_.13} parent=35 // pred_check_branch
        %715 = sbr.rel (%p713) target = $region44
      $region43: #{_lambda_.13} parent=35 // pred_region
        _
      $region44: #{_lambda_.13} parent=35 // pred_fallthru
        _
    $region36: #{_lambda_.13} parent=5 // pred_fallthru
      _
    %p716 = scmp.le.s32.totalorder 2, %s12
    // Predicated region
    $region45: #{_lambda_.13} parent=5 // pred_check
      %p717 = pneg %p716
    $region46: #{_lambda_.13} parent=5 // pred_check_branch
      %719 = sbr.rel (%p717) target = $region48
    $region47: #{_lambda_.13} parent=5 // pred_region
      %s720 = ssub.s32 %s12, 2
      // Predicated region
      $region49: #{_lambda_.13} parent=47 // pred_check
        %p721 = pneg %p151
      $region50: #{_lambda_.13} parent=47 // pred_check_branch
        %723 = sbr.rel (%p721) target = $region52
      $region51: #{_lambda_.13} parent=47 // pred_region
        %s724 = smul.u32 16, %s24
        %p725 = scmp.lt.s32.totalorder %s23, 1
        %s726 = scalar_select %p725, %s23, 1
        %p727 = scmp.lt.s32.totalorder %s724, 15
        %s728 = scalar_select %p727, %s724, 15
        %s729 = smul.addr %s726, 16
        %s730 = sadd.s32 %s728, %s729
        %s731 = smul.addr %s730, 4
        %s732 = scalar_lea.vmem %s4, %s731
      $region52: #{_lambda_.13} parent=47 // pred_fallthru
        _
      // Predicated region
      $region53: #{_lambda_.13} parent=47 // pred_check
        %p733 = pneg %p179
      $region54: #{_lambda_.13} parent=47 // pred_check_branch
        %735 = sbr.rel (%p733) target = $region56
      $region55: #{_lambda_.13} parent=47 // pred_region
        %p736 = scmp.lt.s32.totalorder %s23, 1
        %s737 = scalar_select %p736, %s23, 1
        %p738 = scmp.lt.s32.totalorder %s24, 0
        %s739 = scalar_select %p738, %s24, 0
        %s740 = sadd.s32 %s739, %s737
        %s741 = smul.addr %s740, 2
        %s742 = scalar_lea.vmem %s5, %s741
      $region56: #{_lambda_.13} parent=47 // pred_fallthru
        _
    $region48: #{_lambda_.13} parent=5 // pred_fallthru
      _
  $region6: #{_lambda_.13} parent=0 // loop_footer
    %s16 = sadd.s32 1, %s12
  $region7: #{_lambda_.13} parent=0 // loop_footer_branch
    %11 = sbr.rel target = $region3
  $region8: #{_lambda_.13} parent=0 // loop_exit
    _

// kernel: _lambda_.17
$region0: #{_lambda_.17}
  #allocation0 [shape = 'u32[]', space=smem, size = 0x4, offset = 0x4, fixed_abs, tag = 'smem constant byte address 0x4 - core index']
  #allocation1 [shape = 'u32[144,128]{1,0:T(1,128)}', space=vmem, size = 0x12000, scoped, tag = 'internal scratch']
  %s0 = inlined_call_operand.vmem [shape: bf16[2,128,128], index: 0, kind: input, shape index: {}]
  %s1 = inlined_call_operand.vmem [shape: bf16[2,128,128], index: 1, kind: input, shape index: {}]
  %s2 = inlined_call_operand.vmem [shape: f32[1,128], index: 2, kind: input, shape index: {}]
  %s3 = inlined_call_operand.vmem [shape: f32[1,128], index: 3, kind: input, shape index: {}]
  %s4 = inlined_call_operand.vmem [shape: bf16[2,128,128], index: 4, kind: output, shape index: {0}]
  %s5 = inlined_call_operand.vmem [shape: f32[2,1,2,128], index: 5, kind: output, shape index: {1}]
  %6 = xla_tuple %s4, %s5
  %s7 = sld [smem:[#allocation0]]
  $region57: #{_lambda_.17} parent=0
    _
  %s9 = ssub.s32 1, %s7
  %s10 = scalar_select 0, %s9, %s7
  loop: start=0, step=1, limit=4
  $region2: #{_lambda_.17} parent=0 // loop_pre_header
    _
  $region3: #{_lambda_.17} parent=0 // loop_header
    %s12 = sphi 0, %s16
    %p13 = scmp.ge.s32.totalorder %s12, 4
    %s19 = sphi 0, %s31
    %s20 = sphi 0, %s27
    %s21 = sphi 0, %s19
    %s22 = sphi 0, %s20
    %s23 = sphi 0, %s21
    %s24 = sphi 0, %s22
    %s36 = sphi 0, %s38
    %s39 = sphi 0, %s36
    %s40 = sphi 0, %s39
    %s56 = sphi 0, %s40
    %s62 = sphi 0, %s64
    %s65 = sphi 0, %s62
    %s66 = sphi 0, %s65
    %s82 = sphi 0, %s66
    %s86 = sphi 0, %s86
    %s88 = sphi 0, %s86
    %s89 = sphi 0, %s88
    %s103 = sphi 0, %s89
    %s107 = sphi 0, %s107
    %s109 = sphi 0, %s107
    %s110 = sphi 0, %s109
    %s124 = sphi 0, %s110
    %s132 = sphi 0, %s134
    %s135 = sphi 0, %s132
    %s136 = sphi 0, %s135
    %s152 = sphi 0, %s136
    %s160 = sphi 0, %s162
    %s163 = sphi 0, %s160
    %s164 = sphi 0, %s163
    %s180 = sphi 0, %s164
  $region4: #{_lambda_.17} parent=0 // loop_header_branch
    %15 = sbr.rel (%p13) target = $region8
  $region5: #{_lambda_.17} parent=0 // loop_body
    %s17 = ssub.s32 %s12, 1
    %s18 = ssub.s32 %s12, 2
    %s25 = sadd.s32 1, %s20
    %p26 = scmp.ge.s32.totalorder %s25, 1
    %s27 = scalar_select %p26, 0, %s25
    %s28 = sadd.s32 1, %s19
    %s29 = scalar_select %p26, %s28, %s19
    %p30 = scmp.ge.s32.totalorder %s29, 2
    %s31 = scalar_select %p30, 0, %s29
    %s32 = ssub.s32 %s19, %s31
    %s33 = ssub.s32 %s20, %s27
    %s34 = sor.u32 %s32, %s33
    %p35 = scmp.eq.s32.totalorder %s34, 0
    %s37 = sadd.s32 %s36, 1
    %s38 = scalar_select %p35, %s36, %s37
    %p41 = pneg %p35
    %p42 = scmp.eq.s32.totalorder %s12, 1
    %p43 = por %p41, %p42
    %p44 = scmp.ne.s32.totalorder %s36, %s39
    %p45 = scmp.eq.s32.totalorder %s12, 0
    %p46 = por %p44, %p45
    %p47 = scmp.ne.s32.totalorder %s36, %s39
    %p48 = scmp.eq.s32.totalorder %s17, 1
    %p49 = por %p47, %p48
    %p50 = scmp.ne.s32.totalorder %s39, %s40
    %p51 = scmp.eq.s32.totalorder %s17, 0
    %p52 = por %p50, %p51
    %p53 = scmp.ne.s32.totalorder %s39, %s40
    %p54 = scmp.eq.s32.totalorder %s18, 1
    %p55 = por %p53, %p54
    %p57 = scmp.ne.s32.totalorder %s40, %s56
    %p58 = scmp.eq.s32.totalorder %s18, 0
    %p59 = por %p57, %p58
    %s60 = ssub.s32 %s19, %s31
    %p61 = scmp.eq.s32.totalorder %s60, 0
    %s63 = sadd.s32 %s62, 1
    %s64 = scalar_select %p61, %s62, %s63
    %p67 = pneg %p61
    %p68 = scmp.eq.s32.totalorder %s12, 1
    %p69 = por %p67, %p68
    %p70 = scmp.ne.s32.totalorder %s62, %s65
    %p71 = scmp.eq.s32.totalorder %s12, 0
    %p72 = por %p70, %p71
    %p73 = scmp.ne.s32.totalorder %s62, %s65
    %p74 = scmp.eq.s32.totalorder %s17, 1
    %p75 = por %p73, %p74
    %p76 = scmp.ne.s32.totalorder %s65, %s66
    %p77 = scmp.eq.s32.totalorder %s17, 0
    %p78 = por %p76, %p77
    %p79 = scmp.ne.s32.totalorder %s65, %s66
    %p80 = scmp.eq.s32.totalorder %s18, 1
    %p81 = por %p79, %p80
    %p83 = scmp.ne.s32.totalorder %s66, %s82
    %p84 = scmp.eq.s32.totalorder %s18, 0
    %p85 = por %p83, %p84
    %s87 = sadd.s32 %s86, 1
    %p90 = scmp.eq.s32.totalorder %s12, 1
    %p91 = scmp.ne.s32.totalorder %s86, %s88
    %p92 = scmp.eq.s32.totalorder %s12, 0
    %p93 = por %p91, %p92
    %p94 = scmp.ne.s32.totalorder %s86, %s88
    %p95 = scmp.eq.s32.totalorder %s17, 1
    %p96 = por %p94, %p95
    %p97 = scmp.ne.s32.totalorder %s88, %s89
    %p98 = scmp.eq.s32.totalorder %s17, 0
    %p99 = por %p97, %p98
    %p100 = scmp.ne.s32.totalorder %s88, %s89
    %p101 = scmp.eq.s32.totalorder %s18, 1
    %p102 = por %p100, %p101
    %p104 = scmp.ne.s32.totalorder %s89, %s103
    %p105 = scmp.eq.s32.totalorder %s18, 0
    %p106 = por %p104, %p105
    %s108 = sadd.s32 %s107, 1
    %p111 = scmp.eq.s32.totalorder %s12, 1
    %p112 = scmp.ne.s32.totalorder %s107, %s109
    %p113 = scmp.eq.s32.totalorder %s12, 0
    %p114 = por %p112, %p113
    %p115 = scmp.ne.s32.totalorder %s107, %s109
    %p116 = scmp.eq.s32.totalorder %s17, 1
    %p117 = por %p115, %p116
    %p118 = scmp.ne.s32.totalorder %s109, %s110
    %p119 = scmp.eq.s32.totalorder %s17, 0
    %p120 = por %p118, %p119
    %p121 = scmp.ne.s32.totalorder %s109, %s110
    %p122 = scmp.eq.s32.totalorder %s18, 1
    %p123 = por %p121, %p122
    %p125 = scmp.ne.s32.totalorder %s110, %s124
    %p126 = scmp.eq.s32.totalorder %s18, 0
    %p127 = por %p125, %p126
    %s128 = ssub.s32 %s19, %s31
    %s129 = ssub.s32 %s20, %s27
    %s130 = sor.u32 %s128, %s129
    %p131 = scmp.eq.s32.totalorder %s130, 0
    %s133 = sadd.s32 %s132, 1
    %s134 = scalar_select %p131, %s132, %s133
    %p137 = pneg %p131
    %p138 = scmp.eq.s32.totalorder %s12, 1
    %p139 = por %p137, %p138
    %p140 = scmp.ne.s32.totalorder %s132, %s135
    %p141 = scmp.eq.s32.totalorder %s12, 0
    %p142 = por %p140, %p141
    %p143 = scmp.ne.s32.totalorder %s132, %s135
    %p144 = scmp.eq.s32.totalorder %s17, 1
    %p145 = por %p143, %p144
    %p146 = scmp.ne.s32.totalorder %s135, %s136
    %p147 = scmp.eq.s32.totalorder %s17, 0
    %p148 = por %p146, %p147
    %p149 = scmp.ne.s32.totalorder %s135, %s136
    %p150 = scmp.eq.s32.totalorder %s18, 1
    %p151 = por %p149, %p150
    %p153 = scmp.ne.s32.totalorder %s136, %s152
    %p154 = scmp.eq.s32.totalorder %s18, 0
    %p155 = por %p153, %p154
    %s156 = ssub.s32 %s19, %s31
    %s157 = ssub.s32 %s20, %s27
    %s158 = sor.u32 %s156, %s157
    %p159 = scmp.eq.s32.totalorder %s158, 0
    %s161 = sadd.s32 %s160, 1
    %s162 = scalar_select %p159, %s160, %s161
    %p165 = pneg %p159
    %p166 = scmp.eq.s32.totalorder %s12, 1
    %p167 = por %p165, %p166
    %p168 = scmp.ne.s32.totalorder %s160, %s163
    %p169 = scmp.eq.s32.totalorder %s12, 0
    %p170 = por %p168, %p169
    %p171 = scmp.ne.s32.totalorder %s160, %s163
    %p172 = scmp.eq.s32.totalorder %s17, 1
    %p173 = por %p171, %p172
    %p174 = scmp.ne.s32.totalorder %s163, %s164
    %p175 = scmp.eq.s32.totalorder %s17, 0
    %p176 = por %p174, %p175
    %p177 = scmp.ne.s32.totalorder %s163, %s164
    %p178 = scmp.eq.s32.totalorder %s18, 1
    %p179 = por %p177, %p178
    %p181 = scmp.ne.s32.totalorder %s164, %s180
    %p182 = scmp.eq.s32.totalorder %s18, 0
    %p183 = por %p181, %p182
    %p184 = scmp.le.s32.totalorder 1, %s12
    %p185 = scmp.lt.s32.totalorder %s12, 3
    %p186 = pnand %p184, %p185
    %p187 = pneg %p186
    // Predicated region
    $region9: #{_lambda_.17} parent=5 // pred_check
      _
    $region10: #{_lambda_.17} parent=5 // pred_check_branch
      %189 = sbr.rel (%p186) target = $region12
    $region11: #{_lambda_.17} parent=5 // pred_region
      %s190 = ssub.s32 %s12, 1
      // Predicated region
      $region13: #{_lambda_.17} parent=11 // pred_check
        %p191 = pneg %p99
      $region14: #{_lambda_.17} parent=11 // pred_check_branch
        %193 = sbr.rel (%p191) target = $region16
      $region15: #{_lambda_.17} parent=11 // pred_region
        _
      $region16: #{_lambda_.17} parent=11 // pred_fallthru
        _
      // Predicated region
      $region17: #{_lambda_.17} parent=11 // pred_check
        %p194 = pneg %p120
      $region18: #{_lambda_.17} parent=11 // pred_check_branch
        %196 = sbr.rel (%p194) target = $region20
      $region19: #{_lambda_.17} parent=11 // pred_region
        _
      $region20: #{_lambda_.17} parent=11 // pred_fallthru
        _
    $region12: #{_lambda_.17} parent=5 // pred_fallthru
      _
    %p197 = scmp.lt.s32.totalorder %s12, 2
    // Predicated region
    $region21: #{_lambda_.17} parent=5 // pred_check
      %p198 = pneg %p197
    $region22: #{_lambda_.17} parent=5 // pred_check_branch
      %200 = sbr.rel (%p198) target = $region24
    $region23: #{_lambda_.17} parent=5 // pred_region
      // Predicated region
      $region25: #{_lambda_.17} parent=23 // pred_check
        %p201 = pneg %p46
      $region26: #{_lambda_.17} parent=23 // pred_check_branch
        %203 = sbr.rel (%p201) target = $region28
      $region27: #{_lambda_.17} parent=23 // pred_region
        %s204 = smul.u32 16, %s20
        %p205 = scmp.lt.s32.totalorder %s19, 1
        %s206 = scalar_select %p205, %s19, 1
        %p207 = scmp.lt.s32.totalorder %s204, 15
        %s208 = scalar_select %p207, %s204, 15
        %s209 = smul.addr %s206, 16
        %s210 = sadd.s32 %s208, %s209
        %s211 = smul.addr %s210, 4
        %s212 = scalar_lea.vmem %s0, %s211
        %s213 = smul.u32 16, %s20
      $region28: #{_lambda_.17} parent=23 // pred_fallthru
        _
      // Predicated region
      $region29: #{_lambda_.17} parent=23 // pred_check
        %p214 = pneg %p72
      $region30: #{_lambda_.17} parent=23 // pred_check_branch
        %216 = sbr.rel (%p214) target = $region32
      $region31: #{_lambda_.17} parent=23 // pred_region
        %p217 = scmp.lt.s32.totalorder %s19, 1
        %s218 = scalar_select %p217, %s19, 1
        %s219 = smul.addr %s218, 16
        %s220 = smul.addr %s219, 4
        %s221 = scalar_lea.vmem %s1, %s220
      $region32: #{_lambda_.17} parent=23 // pred_fallthru
        _
    $region24: #{_lambda_.17} parent=5 // pred_fallthru
      _
    %p222 = scmp.le.s32.totalorder 1, %s12
    %p223 = scmp.lt.s32.totalorder %s12, 3
    %p224 = pnand %p222, %p223
    %p225 = pneg %p224
    // Predicated region
    $region33: #{_lambda_.17} parent=5 // pred_check
      _
    $region34: #{_lambda_.17} parent=5 // pred_check_branch
      %227 = sbr.rel (%p224) target = $region36
    $region35: #{_lambda_.17} parent=5 // pred_region
      %s228 = ssub.s32 %s12, 1
      %s229 = smul.u32 16, %s22
      %p230 = scmp.lt.s32.totalorder %s21, 1
      %s231 = scalar_select %p230, %s21, 1
      %p232 = scmp.lt.s32.totalorder %s229, 15
      %s233 = scalar_select %p232, %s229, 15
      %s234 = smul.addr %s231, 16
      %s235 = sadd.s32 %s233, %s234
      %s236 = smul.addr %s235, 4
      %s237 = scalar_lea.vmem %s0, %s236
      %p238 = pneg %p52
      %p239 = pneg %p49
      %p240 = scmp.lt.s32.totalorder %s21, 1
      %s241 = scalar_select %p240, %s21, 1
      %s242 = smul.addr %s241, 16
      %s243 = smul.addr %s242, 4
      %s244 = scalar_lea.vmem %s1, %s243
      %p245 = pneg %p78
      %p246 = pneg %p75
      %p247 = pneg %p99
      %p248 = pneg %p96
      %p249 = pneg %p120
      %p250 = pneg %p117
      %p251 = pneg %p148
      %p252 = pneg %p145
      %s253 = smul.u32 16, %s22
      %p254 = scmp.lt.s32.totalorder %s21, 1
      %s255 = scalar_select %p254, %s21, 1
      %p256 = scmp.lt.s32.totalorder %s253, 15
      %s257 = scalar_select %p256, %s253, 15
      %s258 = smul.addr %s255, 16
      %s259 = sadd.s32 %s257, %s258
      %s260 = smul.addr %s259, 4
      %s261 = scalar_lea.vmem %s4, %s260
      %p262 = pneg %p176
      %p263 = pneg %p173
      %p264 = scmp.lt.s32.totalorder %s21, 1
      %s265 = scalar_select %p264, %s21, 1
      %p266 = scmp.lt.s32.totalorder %s22, 0
      %s267 = scalar_select %p266, %s22, 0
      %s268 = sadd.s32 %s267, %s265
      %s269 = smul.addr %s268, 2
      %s270 = scalar_lea.vmem %s5, %s269
      %s271 = smul.u32 16, %s22
      %p272 = scmp.lt.s32.totalorder %s21, 1
      %s273 = scalar_select %p272, %s21, 1
      %p274 = scmp.lt.s32.totalorder %s271, 15
      %s275 = scalar_select %p274, %s271, 15
      %s276 = smul.addr %s273, 16
      %s277 = sadd.s32 %s275, %s276
      %s278 = smul.addr %s277, 4
      %s279 = scalar_lea.vmem %s0, %s278
      %s280 = smul.u32 16, %s22
      %p281 = scmp.lt.s32.totalorder %s21, 1
      %s282 = scalar_select %p281, %s21, 1
      %s283 = smul.addr %s282, 16
      %s284 = smul.addr %s283, 4
      %s285 = scalar_lea.vmem %s1, %s284
      %s286 = smul.u32 16, %s22
      %p287 = scmp.lt.s32.totalorder %s21, 1
      %s288 = scalar_select %p287, %s21, 1
      %p289 = scmp.lt.s32.totalorder %s286, 15
      %s290 = scalar_select %p289, %s286, 15
      %s291 = smul.addr %s288, 16
      %s292 = sadd.s32 %s290, %s291
      %s293 = smul.addr %s292, 4
      %s294 = scalar_lea.vmem %s4, %s293
      %s295 = smul.u32 16, %s22
      %p296 = scmp.lt.s32.totalorder %s21, 1
      %s297 = scalar_select %p296, %s21, 1
      %p298 = scmp.lt.s32.totalorder %s22, 0
      %s299 = scalar_select %p298, %s22, 0
      %s300 = sadd.s32 %s299, %s297
      %s301 = smul.addr %s300, 2
      %s302 = scalar_lea.vmem %s5, %s301
      %v304 = vld [vmem:[%s279] sm:$0xf]
      %v305 = vld [vmem:[%s279 + $0x4] sm:$0xf]
      %v306 = vld [vmem:[%s279 + $0x8] sm:$0xf]
      %v307 = vld [vmem:[%s279 + $0xc] sm:$0xf]
      %v308 = vld [vmem:[%s279 + $0x10] sm:$0xf]
      %v309 = vld [vmem:[%s279 + $0x14] sm:$0xf]
      %v310 = vld [vmem:[%s279 + $0x18] sm:$0xf]
      %v311 = vld [vmem:[%s279 + $0x1c] sm:$0xf]
      %v312 = vld [vmem:[%s279 + $0x20] sm:$0xf]
      %v313 = vld [vmem:[%s279 + $0x24] sm:$0xf]
      %v314 = vld [vmem:[%s279 + $0x28] sm:$0xf]
      %v315 = vld [vmem:[%s279 + $0x2c] sm:$0xf]
      %v316 = vld [vmem:[%s279 + $0x30] sm:$0xf]
      %v317 = vld [vmem:[%s279 + $0x34] sm:$0xf]
      %v318 = vld [vmem:[%s279 + $0x38] sm:$0xf]
      %v319 = vld [vmem:[%s279 + $0x3c] sm:$0xf]
      %v320 = vunpack.c.l.bf16 %v304
      %v321 = vunpack.c.l.bf16 %v305
      %v322 = vunpack.c.l.bf16 %v306
      %v323 = vunpack.c.l.bf16 %v307
      %v324 = vunpack.c.l.bf16 %v308
      %v325 = vunpack.c.l.bf16 %v309
      %v326 = vunpack.c.l.bf16 %v310
      %v327 = vunpack.c.l.bf16 %v311
      %v328 = vunpack.c.l.bf16 %v312
      %v329 = vunpack.c.l.bf16 %v313
      %v330 = vunpack.c.l.bf16 %v314
      %v331 = vunpack.c.l.bf16 %v315
      %v332 = vunpack.c.l.bf16 %v316
      %v333 = vunpack.c.l.bf16 %v317
      %v334 = vunpack.c.l.bf16 %v318
      %v335 = vunpack.c.l.bf16 %v319
      %v336 = vld [vmem:[%s2] sm:$0x1]
      %v338 = vlaneseq
      %v339 = vshrl.u32 %v338, 7
      %v340 = vsub.s32 0, %v339
      %v341 = vrot.slane %v336, %v340
      %v343 = vmul.f32 %v320, %v341
      %v344 = vmul.f32 %v321, %v341
      %v345 = vmul.f32 %v322, %v341
      %v346 = vmul.f32 %v323, %v341
      %v347 = vmul.f32 %v324, %v341
      %v348 = vmul.f32 %v325, %v341
      %v349 = vmul.f32 %v326, %v341
      %v350 = vmul.f32 %v327, %v341
      %v351 = vmul.f32 %v328, %v341
      %v352 = vmul.f32 %v329, %v341
      %v353 = vmul.f32 %v330, %v341
      %v354 = vmul.f32 %v331, %v341
      %v355 = vmul.f32 %v332, %v341
      %v356 = vmul.f32 %v333, %v341
      %v357 = vmul.f32 %v334, %v341
      %v358 = vmul.f32 %v335, %v341
      %v359 = vld [vmem:[%s3] sm:$0x1]
      %v361 = vlaneseq
      %v362 = vshrl.u32 %v361, 7
      %v363 = vsub.s32 0, %v362
      %v364 = vrot.slane %v359, %v363
      %v366 = vadd.f32 %v343, %v364
      %v367 = vadd.f32 %v344, %v364
      %v368 = vadd.f32 %v345, %v364
      %v369 = vadd.f32 %v346, %v364
      %v370 = vadd.f32 %v347, %v364
      %v371 = vadd.f32 %v348, %v364
      %v372 = vadd.f32 %v349, %v364
      %v373 = vadd.f32 %v350, %v364
      %v374 = vadd.f32 %v351, %v364
      %v375 = vadd.f32 %v352, %v364
      %v376 = vadd.f32 %v353, %v364
      %v377 = vadd.f32 %v354, %v364
      %v378 = vadd.f32 %v355, %v364
      %v379 = vadd.f32 %v356, %v364
      %v380 = vadd.f32 %v357, %v364
      %v381 = vadd.f32 %v358, %v364
      %v382 = vmax.f32 %v366, 0.0
      %v383 = vmax.f32 %v367, 0.0
      %v384 = vmax.f32 %v368, 0.0
      %v385 = vmax.f32 %v369, 0.0
      %v386 = vmax.f32 %v370, 0.0
      %v387 = vmax.f32 %v371, 0.0
      %v388 = vmax.f32 %v372, 0.0
      %v389 = vmax.f32 %v373, 0.0
      %v390 = vmax.f32 %v374, 0.0
      %v391 = vmax.f32 %v375, 0.0
      %v392 = vmax.f32 %v376, 0.0
      %v393 = vmax.f32 %v377, 0.0
      %v394 = vmax.f32 %v378, 0.0
      %v395 = vmax.f32 %v379, 0.0
      %v396 = vmax.f32 %v380, 0.0
      %v397 = vmax.f32 %v381, 0.0
      %v398 = vpack.c.bf16 %v383, %v382
      %v399 = vpack.c.bf16 %v385, %v384
      %v400 = vpack.c.bf16 %v387, %v386
      %v401 = vpack.c.bf16 %v389, %v388
      %v402 = vpack.c.bf16 %v391, %v390
      %v403 = vpack.c.bf16 %v393, %v392
      %v404 = vpack.c.bf16 %v395, %v394
      %v405 = vpack.c.bf16 %v397, %v396
      %v406 = vld [vmem:[%s285] sm:$0xf]
      %v407 = vld [vmem:[%s285 + $0x4] sm:$0xf]
      %v408 = vld [vmem:[%s285 + $0x8] sm:$0xf]
      %v409 = vld [vmem:[%s285 + $0xc] sm:$0xf]
      %v410 = vld [vmem:[%s285 + $0x10] sm:$0xf]
      %v411 = vld [vmem:[%s285 + $0x14] sm:$0xf]
      %v412 = vld [vmem:[%s285 + $0x18] sm:$0xf]
      %v413 = vld [vmem:[%s285 + $0x1c] sm:$0xf]
      %v414 = vld [vmem:[%s285 + $0x20] sm:$0xf]
      %v415 = vld [vmem:[%s285 + $0x24] sm:$0xf]
      %v416 = vld [vmem:[%s285 + $0x28] sm:$0xf]
      %v417 = vld [vmem:[%s285 + $0x2c] sm:$0xf]
      %v418 = vld [vmem:[%s285 + $0x30] sm:$0xf]
      %v419 = vld [vmem:[%s285 + $0x34] sm:$0xf]
      %v420 = vld [vmem:[%s285 + $0x38] sm:$0xf]
      %v421 = vld [vmem:[%s285 + $0x3c] sm:$0xf]
      %v438 = vunpack.c.l.b16 %v406
      %v439 = vunpack.c.l.b16 %v407
      %v440 = vunpack.c.l.b16 %v408
      %v441 = vunpack.c.l.b16 %v409
      %v442 = vunpack.c.l.b16 %v410
      %v443 = vunpack.c.l.b16 %v411
      %v444 = vunpack.c.l.b16 %v412
      %v445 = vunpack.c.l.b16 %v413
      %v446 = vunpack.c.l.b16 %v414
      %v447 = vunpack.c.l.b16 %v415
      %v448 = vunpack.c.l.b16 %v416
      %v449 = vunpack.c.l.b16 %v417
      %v450 = vunpack.c.l.b16 %v418
      %v451 = vunpack.c.l.b16 %v419
      %v452 = vunpack.c.l.b16 %v420
      %v453 = vunpack.c.l.b16 %v421
      %v454 = vpack.c.b16 %v439, %v438
      %v455 = vpack.c.b16 %v441, %v440
      %v456 = vpack.c.b16 %v443, %v442
      %v457 = vpack.c.b16 %v445, %v444
      %v458 = vpack.c.b16 %v447, %v446
      %v459 = vpack.c.b16 %v449, %v448
      %v460 = vpack.c.b16 %v451, %v450
      %v461 = vpack.c.b16 %v453, %v452
      %470 = vmatprep.subr.bf16.mxu0 0
      %471 = vmatpush1.bf16.msra.mxu0 %v454
      %472 = vmatprep.subr.bf16.mxu0 0
      %473 = vmatpush1.bf16.msra.mxu0 %v455
      %474 = vmatprep.subr.bf16.mxu0 0
      %475 = vmatpush1.bf16.msra.mxu0 %v456
      %476 = vmatprep.subr.bf16.mxu0 0
      %477 = vmatpush1.bf16.msra.mxu0 %v457
      %478 = vmatprep.subr.bf16.mxu0 0
      %479 = vmatpush1.bf16.msra.mxu0 %v458
      %480 = vmatprep.subr.bf16.mxu0 0
      %481 = vmatpush1.bf16.msra.mxu0 %v459
      %482 = vmatprep.subr.bf16.mxu0 0
      %483 = vmatpush1.bf16.msra.mxu0 %v460
      %484 = vmatprep.subr.bf16.mxu0 0
      %485 = vmatpush1.bf16.msra.mxu0 %v461
      %486 = vmatprep.subr.bf16.mxu0 0
      %487 = vmatpush1.bf16.msra.mxu0 0
      %488 = vmatprep.subr.bf16.mxu0 0
      %489 = vmatpush1.bf16.msra.mxu0 0
      %490 = vmatprep.subr.bf16.mxu0 0
      %491 = vmatpush1.bf16.msra.mxu0 0
      %492 = vmatprep.subr.bf16.mxu0 0
      %493 = vmatpush1.bf16.msra.mxu0 0
      %494 = vmatprep.subr.bf16.mxu0 0
      %495 = vmatpush1.bf16.msra.mxu0 0
      %496 = vmatprep.subr.bf16.mxu0 0
      %497 = vmatpush1.bf16.msra.mxu0 0
      %498 = vmatprep.subr.bf16.mxu0 0
      %499 = vmatpush1.bf16.msra.mxu0 0
      %500 = vmatprep.subr.bf16.mxu0 0
      %501 = vmatpush1.bf16.msra.mxu0 0
      %502 = vmatprep.mubr.bf16.mxu0 0
      %503 = vmatmul.mubr.bf16.gmra.mrb[0].mxu0 %v398
      %v504 = vpop.f32.mrb[0].mxu0
      %v505 = vadd.f32 0.0, %v504
      %v506 = vpop.f32.mrb[0].mxu0
      %v507 = vpop.f32.mrb[0].mxu0
      %v508 = vadd.f32 0.0, %v507
      %v509 = vpop.f32.mrb[0].mxu0
      %510 = vmatprep.mubr.bf16.mxu0 0
      %511 = vmatmul.mubr.bf16.gmra.mrb[0].mxu0 %v399
      %v512 = vpop.f32.mrb[0].mxu0
      %v513 = vadd.f32 0.0, %v512
      %v514 = vpop.f32.mrb[0].mxu0
      %v515 = vpop.f32.mrb[0].mxu0
      %v516 = vadd.f32 0.0, %v515
      %v517 = vpop.f32.mrb[0].mxu0
      %518 = vmatprep.mubr.bf16.mxu0 0
      %519 = vmatmul.mubr.bf16.gmra.mrb[0].mxu0 %v400
      %v520 = vpop.f32.mrb[0].mxu0
      %v521 = vadd.f32 0.0, %v520
      %v522 = vpop.f32.mrb[0].mxu0
      %v523 = vpop.f32.mrb[0].mxu0
      %v524 = vadd.f32 0.0, %v523
      %v525 = vpop.f32.mrb[0].mxu0
      %526 = vmatprep.mubr.bf16.mxu0 0
      %527 = vmatmul.mubr.bf16.gmra.mrb[0].mxu0 %v401
      %v528 = vpop.f32.mrb[0].mxu0
      %v529 = vadd.f32 0.0, %v528
      %v530 = vpop.f32.mrb[0].mxu0
      %v531 = vpop.f32.mrb[0].mxu0
      %v532 = vadd.f32 0.0, %v531
      %v533 = vpop.f32.mrb[0].mxu0
      %534 = vmatprep.mubr.bf16.mxu0 0
      %535 = vmatmul.mubr.bf16.gmra.mrb[0].mxu0 %v402
      %v536 = vpop.f32.mrb[0].mxu0
      %v537 = vadd.f32 0.0, %v536
      %v538 = vpop.f32.mrb[0].mxu0
      %v539 = vpop.f32.mrb[0].mxu0
      %v540 = vadd.f32 0.0, %v539
      %v541 = vpop.f32.mrb[0].mxu0
      %542 = vmatprep.mubr.bf16.mxu0 0
      %543 = vmatmul.mubr.bf16.gmra.mrb[0].mxu0 %v403
      %v544 = vpop.f32.mrb[0].mxu0
      %v545 = vadd.f32 0.0, %v544
      %v546 = vpop.f32.mrb[0].mxu0
      %v547 = vpop.f32.mrb[0].mxu0
      %v548 = vadd.f32 0.0, %v547
      %v549 = vpop.f32.mrb[0].mxu0
      %550 = vmatprep.mubr.bf16.mxu0 0
      %551 = vmatmul.mubr.bf16.gmra.mrb[0].mxu0 %v404
      %v552 = vpop.f32.mrb[0].mxu0
      %v553 = vadd.f32 0.0, %v552
      %v554 = vpop.f32.mrb[0].mxu0
      %v555 = vpop.f32.mrb[0].mxu0
      %v556 = vadd.f32 0.0, %v555
      %v557 = vpop.f32.mrb[0].mxu0
      %558 = vmatprep.mubr.bf16.mxu0 0
      %559 = vmatmul.mubr.bf16.gmra.mrb[0].mxu0 %v405
      %v560 = vpop.f32.mrb[0].mxu0
      %v561 = vadd.f32 0.0, %v560
      %v562 = vpop.f32.mrb[0].mxu0
      %v563 = vpop.f32.mrb[0].mxu0
      %v564 = vadd.f32 0.0, %v563
      %v565 = vpop.f32.mrb[0].mxu0
      %566 = vdwg.mxu0
      %v567 = vpack.c.bf16 %v508, %v505
      %v568 = vpack.c.bf16 %v516, %v513
      %v569 = vpack.c.bf16 %v524, %v521
      %v570 = vpack.c.bf16 %v532, %v529
      %v571 = vpack.c.bf16 %v540, %v537
      %v572 = vpack.c.bf16 %v548, %v545
      %v573 = vpack.c.bf16 %v556, %v553
      %v574 = vpack.c.bf16 %v564, %v561
      %v583 = vunpack.c.l.b16 %v567
      %v584 = vunpack.c.h.b16 %v567
      %v585 = vunpack.c.l.b16 %v568
      %v586 = vunpack.c.h.b16 %v568
      %v587 = vunpack.c.l.b16 %v569
      %v588 = vunpack.c.h.b16 %v569
      %v589 = vunpack.c.l.b16 %v570
      %v590 = vunpack.c.h.b16 %v570
      %v591 = vunpack.c.l.b16 %v571
      %v592 = vunpack.c.h.b16 %v571
      %v593 = vunpack.c.l.b16 %v572
      %v594 = vunpack.c.h.b16 %v572
      %v595 = vunpack.c.l.b16 %v573
      %v596 = vunpack.c.h.b16 %v573
      %v597 = vunpack.c.l.b16 %v574
      %v598 = vunpack.c.h.b16 %v574
      %v599 = vpack.c.b16 %v583, %v583
      %v600 = vpack.c.b16 %v584, %v584
      %v601 = vpack.c.b16 %v585, %v585
      %v602 = vpack.c.b16 %v586, %v586
      %v603 = vpack.c.b16 %v587, %v587
      %v604 = vpack.c.b16 %v588, %v588
      %v605 = vpack.c.b16 %v589, %v589
      %v606 = vpack.c.b16 %v590, %v590
      %v607 = vpack.c.b16 %v591, %v591
      %v608 = vpack.c.b16 %v592, %v592
      %v609 = vpack.c.b16 %v593, %v593
      %v610 = vpack.c.b16 %v594, %v594
      %v611 = vpack.c.b16 %v595, %v595
      %v612 = vpack.c.b16 %v596, %v596
      %v613 = vpack.c.b16 %v597, %v597
      %v614 = vpack.c.b16 %v598, %v598
      %631 = vst [vmem:[%s294] sm:$0xf] %v599
      %632 = vst [vmem:[%s294 + $0x4] sm:$0xf] %v600
      %633 = vst [vmem:[%s294 + $0x8] sm:$0xf] %v601
      %634 = vst [vmem:[%s294 + $0xc] sm:$0xf] %v602
      %635 = vst [vmem:[%s294 + $0x10] sm:$0xf] %v603
      %636 = vst [vmem:[%s294 + $0x14] sm:$0xf] %v604
      %637 = vst [vmem:[%s294 + $0x18] sm:$0xf] %v605
      %638 = vst [vmem:[%s294 + $0x1c] sm:$0xf] %v606
      %639 = vst [vmem:[%s294 + $0x20] sm:$0xf] %v607
      %640 = vst [vmem:[%s294 + $0x24] sm:$0xf] %v608
      %641 = vst [vmem:[%s294 + $0x28] sm:$0xf] %v609
      %642 = vst [vmem:[%s294 + $0x2c] sm:$0xf] %v610
      %643 = vst [vmem:[%s294 + $0x30] sm:$0xf] %v611
      %644 = vst [vmem:[%s294 + $0x34] sm:$0xf] %v612
      %645 = vst [vmem:[%s294 + $0x38] sm:$0xf] %v613
      %646 = vst [vmem:[%s294 + $0x3c] sm:$0xf] %v614
      %647 = vmatprep.subr.mxu0 0.0
      %648 = vmatpush1.msra.mxu0 %v505
      %649 = vmatprep.subr.mxu0 0.0
      %650 = vmatpush1.msra.mxu0 %v508
      %651 = vmatprep.subr.mxu0 0.0
      %652 = vmatpush1.msra.mxu0 %v513
      %653 = vmatprep.subr.mxu0 0.0
      %654 = vmatpush1.msra.mxu0 %v516
      %655 = vmatprep.subr.mxu0 0.0
      %656 = vmatpush1.msra.mxu0 %v521
      %657 = vmatprep.subr.mxu0 0.0
      %658 = vmatpush1.msra.mxu0 %v524
      %659 = vmatprep.subr.mxu0 0.0
      %660 = vmatpush1.msra.mxu0 %v529
      %661 = vmatprep.subr.mxu0 0.0
      %662 = vmatpush1.msra.mxu0 %v532
      %663 = vmatprep.subr.mxu0 0.0
      %664 = vmatpush1.msra.mxu0 %v537
      %665 = vmatprep.subr.mxu0 0.0
      %666 = vmatpush1.msra.mxu0 %v540
      %667 = vmatprep.subr.mxu0 0.0
      %668 = vmatpush1.msra.mxu0 %v545
      %669 = vmatprep.subr.mxu0 0.0
      %670 = vmatpush1.msra.mxu0 %v548
      %671 = vmatprep.subr.mxu0 0.0
      %672 = vmatpush1.msra.mxu0 %v553
      %673 = vmatprep.subr.mxu0 0.0
      %674 = vmatpush1.msra.mxu0 %v556
      %675 = vmatprep.subr.mxu0 0.0
      %676 = vmatpush1.msra.mxu0 %v561
      %677 = vmatprep.subr.mxu0 0.0
      %678 = vmatpush1.msra.mxu0 %v564
      %679 = vmatprep.subr.mxu0 0.0
      %680 = vmatpush1.msra.mxu0 0.0
      %681 = vmatprep.subr.mxu0 0.0
      %682 = vmatpush1.msra.mxu0 0.0
      %683 = vmatprep.subr.mxu0 0.0
      %684 = vmatpush1.msra.mxu0 0.0
      %685 = vmatprep.subr.mxu0 0.0
      %686 = vmatpush1.msra.mxu0 0.0
      %687 = vmatprep.subr.mxu0 0.0
      %688 = vmatpush1.msra.mxu0 0.0
      %689 = vmatprep.subr.mxu0 0.0
      %690 = vmatpush1.msra.mxu0 0.0
      %691 = vmatprep.subr.mxu0 0.0
      %692 = vmatpush1.msra.mxu0 0.0
      %693 = vmatprep.subr.mxu0 0.0
      %694 = vmatpush1.msra.mxu0 0.0
      %695 = vmatprep.subr.mxu0 0.0
      %696 = vmatpush1.msra.mxu0 0.0
      %697 = vmatprep.subr.mxu0 0.0
      %698 = vmatpush1.msra.mxu0 0.0
      %699 = vmatprep.subr.mxu0 0.0
      %700 = vmatpush1.msra.mxu0 0.0
      %701 = vmatprep.subr.mxu0 0.0
      %702 = vmatpush1.msra.mxu0 0.0
      %703 = vmatprep.subr.mxu0 0.0
      %704 = vmatpush1.msra.mxu0 0.0
      %705 = vmatprep.subr.mxu0 0.0
      %706 = vmatpush1.msra.mxu0 0.0
      %707 = vmatprep.subr.mxu0 0.0
      %708 = vmatpush1.msra.mxu0 0.0
      %709 = vmatprep.subr.mxu0 0.0
      %710 = vmatpush1.msra.mxu0 0.0
      %711 = vmatprep.mubr.f32.mxu0 0.0
      %712 = vmatmul.mubr.f32.gmra.mrb[0].mxu0 1.0
      %v713 = vpop.f32.mrb[0].mxu0
      %v714 = vadd.f32 0.0, %v713
      %v715 = vpop.f32.mrb[0].mxu0
      %716 = vdwg.mxu0
      %717 = vst [vmem:[%s302] sm:$0x1] %v714
      %v718 = vmul.f32 %v505, %v505
      %v719 = vmul.f32 %v508, %v508
      %v720 = vmul.f32 %v513, %v513
      %v721 = vmul.f32 %v516, %v516
      %v722 = vmul.f32 %v521, %v521
      %v723 = vmul.f32 %v524, %v524
      %v724 = vmul.f32 %v529, %v529
      %v725 = vmul.f32 %v532, %v532
      %v726 = vmul.f32 %v537, %v537
      %v727 = vmul.f32 %v540, %v540
      %v728 = vmul.f32 %v545, %v545
      %v729 = vmul.f32 %v548, %v548
      %v730 = vmul.f32 %v553, %v553
      %v731 = vmul.f32 %v556, %v556
      %v732 = vmul.f32 %v561, %v561
      %v733 = vmul.f32 %v564, %v564
      %734 = vmatprep.subr.mxu0 0.0
      %735 = vmatpush1.msra.mxu0 %v718
      %736 = vmatprep.subr.mxu0 0.0
      %737 = vmatpush1.msra.mxu0 %v719
      %738 = vmatprep.subr.mxu0 0.0
      %739 = vmatpush1.msra.mxu0 %v720
      %740 = vmatprep.subr.mxu0 0.0
      %741 = vmatpush1.msra.mxu0 %v721
      %742 = vmatprep.subr.mxu0 0.0
      %743 = vmatpush1.msra.mxu0 %v722
      %744 = vmatprep.subr.mxu0 0.0
      %745 = vmatpush1.msra.mxu0 %v723
      %746 = vmatprep.subr.mxu0 0.0
      %747 = vmatpush1.msra.mxu0 %v724
      %748 = vmatprep.subr.mxu0 0.0
      %749 = vmatpush1.msra.mxu0 %v725
      %750 = vmatprep.subr.mxu0 0.0
      %751 = vmatpush1.msra.mxu0 %v726
      %752 = vmatprep.subr.mxu0 0.0
      %753 = vmatpush1.msra.mxu0 %v727
      %754 = vmatprep.subr.mxu0 0.0
      %755 = vmatpush1.msra.mxu0 %v728
      %756 = vmatprep.subr.mxu0 0.0
      %757 = vmatpush1.msra.mxu0 %v729
      %758 = vmatprep.subr.mxu0 0.0
      %759 = vmatpush1.msra.mxu0 %v730
      %760 = vmatprep.subr.mxu0 0.0
      %761 = vmatpush1.msra.mxu0 %v731
      %762 = vmatprep.subr.mxu0 0.0
      %763 = vmatpush1.msra.mxu0 %v732
      %764 = vmatprep.subr.mxu0 0.0
      %765 = vmatpush1.msra.mxu0 %v733
      %766 = vmatprep.subr.mxu0 0.0
      %767 = vmatpush1.msra.mxu0 0.0
      %768 = vmatprep.subr.mxu0 0.0
      %769 = vmatpush1.msra.mxu0 0.0
      %770 = vmatprep.subr.mxu0 0.0
      %771 = vmatpush1.msra.mxu0 0.0
      %772 = vmatprep.subr.mxu0 0.0
      %773 = vmatpush1.msra.mxu0 0.0
      %774 = vmatprep.subr.mxu0 0.0
      %775 = vmatpush1.msra.mxu0 0.0
      %776 = vmatprep.subr.mxu0 0.0
      %777 = vmatpush1.msra.mxu0 0.0
      %778 = vmatprep.subr.mxu0 0.0
      %779 = vmatpush1.msra.mxu0 0.0
      %780 = vmatprep.subr.mxu0 0.0
      %781 = vmatpush1.msra.mxu0 0.0
      %782 = vmatprep.subr.mxu0 0.0
      %783 = vmatpush1.msra.mxu0 0.0
      %784 = vmatprep.subr.mxu0 0.0
      %785 = vmatpush1.msra.mxu0 0.0
      %786 = vmatprep.subr.mxu0 0.0
      %787 = vmatpush1.msra.mxu0 0.0
      %788 = vmatprep.subr.mxu0 0.0
      %789 = vmatpush1.msra.mxu0 0.0
      %790 = vmatprep.subr.mxu0 0.0
      %791 = vmatpush1.msra.mxu0 0.0
      %792 = vmatprep.subr.mxu0 0.0
      %793 = vmatpush1.msra.mxu0 0.0
      %794 = vmatprep.subr.mxu0 0.0
      %795 = vmatpush1.msra.mxu0 0.0
      %796 = vmatprep.subr.mxu0 0.0
      %797 = vmatpush1.msra.mxu0 0.0
      %798 = vmatprep.mubr.f32.mxu0 0.0
      %799 = vmatmul.mubr.f32.gmra.mrb[0].mxu0 1.0
      %v800 = vpop.f32.mrb[0].mxu0
      %v801 = vadd.f32 0.0, %v800
      %v802 = vpop.f32.mrb[0].mxu0
      %803 = vdwg.mxu0
      %804 = vst [vmem:[%s302 + $0x1] sm:$0x1] %v801
      %s805 = smul.u32 16, %s22
      %p806 = scmp.lt.s32.totalorder %s21, 1
      %s807 = scalar_select %p806, %s21, 1
      %p808 = scmp.lt.s32.totalorder %s805, 15
      %s809 = scalar_select %p808, %s805, 15
      %s810 = smul.addr %s807, 16
      %s811 = sadd.s32 %s809, %s810
      %s812 = smul.addr %s811, 4
      %s813 = scalar_lea.vmem %s4, %s812
      %p814 = scmp.lt.s32.totalorder %s21, 1
      %s815 = scalar_select %p814, %s21, 1
      %p816 = scmp.lt.s32.totalorder %s22, 0
      %s817 = scalar_select %p816, %s22, 0
      %s818 = sadd.s32 %s817, %s815
      %s819 = smul.addr %s818, 2
      %s820 = scalar_lea.vmem %s5, %s819
      // Predicated region
      $region37: #{_lambda_.17} parent=35 // pred_check
        %p821 = pneg %p145
      $region38: #{_lambda_.17} parent=35 // pred_check_branch
        %823 = sbr.rel (%p821) target = $region40
      $region39: #{_lambda_.17} parent=35 // pred_region
        %s824 = smul.u32 16, %s22
      $region40: #{_lambda_.17} parent=35 // pred_fallthru
        _
      // Predicated region
      $region41: #{_lambda_.17} parent=35 // pred_check
        %p825 = pneg %p173
      $region42: #{_lambda_.17} parent=35 // pred_check_branch
        %827 = sbr.rel (%p825) target = $region44
      $region43: #{_lambda_.17} parent=35 // pred_region
        _
      $region44: #{_lambda_.17} parent=35 // pred_fallthru
        _
    $region36: #{_lambda_.17} parent=5 // pred_fallthru
      _
    %p828 = scmp.le.s32.totalorder 2, %s12
    // Predicated region
    $region45: #{_lambda_.17} parent=5 // pred_check
      %p829 = pneg %p828
    $region46: #{_lambda_.17} parent=5 // pred_check_branch
      %831 = sbr.rel (%p829) target = $region48
    $region47: #{_lambda_.17} parent=5 // pred_region
      %s832 = ssub.s32 %s12, 2
      // Predicated region
      $region49: #{_lambda_.17} parent=47 // pred_check
        %p833 = pneg %p151
      $region50: #{_lambda_.17} parent=47 // pred_check_branch
        %835 = sbr.rel (%p833) target = $region52
      $region51: #{_lambda_.17} parent=47 // pred_region
        %s836 = smul.u32 16, %s24
        %p837 = scmp.lt.s32.totalorder %s23, 1
        %s838 = scalar_select %p837, %s23, 1
        %p839 = scmp.lt.s32.totalorder %s836, 15
        %s840 = scalar_select %p839, %s836, 15
        %s841 = smul.addr %s838, 16
        %s842 = sadd.s32 %s840, %s841
        %s843 = smul.addr %s842, 4
        %s844 = scalar_lea.vmem %s4, %s843
      $region52: #{_lambda_.17} parent=47 // pred_fallthru
        _
      // Predicated region
      $region53: #{_lambda_.17} parent=47 // pred_check
        %p845 = pneg %p179
      $region54: #{_lambda_.17} parent=47 // pred_check_branch
        %847 = sbr.rel (%p845) target = $region56
      $region55: #{_lambda_.17} parent=47 // pred_region
        %p848 = scmp.lt.s32.totalorder %s23, 1
        %s849 = scalar_select %p848, %s23, 1
        %p850 = scmp.lt.s32.totalorder %s24, 0
        %s851 = scalar_select %p850, %s24, 0
        %s852 = sadd.s32 %s851, %s849
        %s853 = smul.addr %s852, 2
        %s854 = scalar_lea.vmem %s5, %s853
      $region56: #{_lambda_.17} parent=47 // pred_fallthru
        _
    $region48: #{_lambda_.17} parent=5 // pred_fallthru
      _
  $region6: #{_lambda_.17} parent=0 // loop_footer
    %s16 = sadd.s32 1, %s12
  $region7: #{_lambda_.17} parent=0 // loop_footer_branch
    %11 = sbr.rel target = $region3
  $region8: #{_lambda_.17} parent=0 // loop_exit
    _

// kernel: _lambda_.19
$region0: #{_lambda_.19}
  #allocation0 [shape = 'u32[]', space=smem, size = 0x4, offset = 0x4, fixed_abs, tag = 'smem constant byte address 0x4 - core index']
  #allocation1 [shape = 'u32[144,128]{1,0:T(1,128)}', space=vmem, size = 0x12000, scoped, tag = 'internal scratch']
  %s0 = inlined_call_operand.vmem [shape: bf16[2,128,1024], index: 0, kind: input, shape index: {}]
  %s1 = inlined_call_operand.vmem [shape: f32[1,1024], index: 1, kind: input, shape index: {}]
  %s2 = inlined_call_operand.vmem [shape: f32[1,1024], index: 2, kind: input, shape index: {}]
  %s3 = inlined_call_operand.hbm [shape: f32[2,1024,128], index: 3, kind: output, shape index: {}]
  %s4 = sld [smem:[#allocation0]]
  $region45: #{_lambda_.19} parent=0
    _
  %s6 = ssub.s32 1, %s4
  %s7 = scalar_select 0, %s6, %s4
  $region1: #{_lambda_.19} parent=0
    #allocation2 [shape = 'u8[1048576]{0}', space=vmem, size = 0x100000, scoped, tag = 'output window, operand 0']
    #allocation3 [shape = 's32[2]{0}', space=sflag, size = 0x8, scoped, tag = 'scoped memory for _lambda_.19']
    %8 = vsyncpa [#allocation3], 0
    %s9 = scalar_lea.sflag [#allocation3], 1
    %10 = vsyncpa %s9, 0
    loop: start=0, step=1, limit=4
    $region2: #{_lambda_.19} parent=1 // loop_pre_header
      _
    $region3: #{_lambda_.19} parent=1 // loop_header
      %s12 = sphi 0, %s16
      %p13 = scmp.ge.s32.totalorder %s12, 4
      %s19 = sphi 0, %s31
      %s20 = sphi 0, %s27
      %s21 = sphi 0, %s19
      %s22 = sphi 0, %s20
      %s23 = sphi 0, %s21
      %s24 = sphi 0, %s22
      %s36 = sphi 0, %s38
      %s39 = sphi 0, %s36
      %s40 = sphi 0, %s39
      %s56 = sphi 0, %s40
      %s60 = sphi 0, %s60
      %s62 = sphi 0, %s60
      %s63 = sphi 0, %s62
      %s77 = sphi 0, %s63
      %s81 = sphi 0, %s81
      %s83 = sphi 0, %s81
      %s84 = sphi 0, %s83
      %s98 = sphi 0, %s84
      %s106 = sphi 0, %s108
      %s109 = sphi 0, %s106
      %s110 = sphi 0, %s109
      %s126 = sphi 0, %s110
    $region4: #{_lambda_.19} parent=1 // loop_header_branch
      %15 = sbr.rel (%p13) target = $region8
    $region5: #{_lambda_.19} parent=1 // loop_body
      %s17 = ssub.s32 %s12, 1
      %s18 = ssub.s32 %s12, 2
      %s25 = sadd.s32 1, %s20
      %p26 = scmp.ge.s32.totalorder %s25, 1
      %s27 = scalar_select %p26, 0, %s25
      %s28 = sadd.s32 1, %s19
      %s29 = scalar_select %p26, %s28, %s19
      %p30 = scmp.ge.s32.totalorder %s29, 2
      %s31 = scalar_select %p30, 0, %s29
      %s32 = ssub.s32 %s19, %s31
      %s33 = ssub.s32 %s20, %s27
      %s34 = sor.u32 %s32, %s33
      %p35 = scmp.eq.s32.totalorder %s34, 0
      %s37 = sadd.s32 %s36, 1
      %s38 = scalar_select %p35, %s36, %s37
      %p41 = pneg %p35
      %p42 = scmp.eq.s32.totalorder %s12, 1
      %p43 = por %p41, %p42
      %p44 = scmp.ne.s32.totalorder %s36, %s39
      %p45 = scmp.eq.s32.totalorder %s12, 0
      %p46 = por %p44, %p45
      %p47 = scmp.ne.s32.totalorder %s36, %s39
      %p48 = scmp.eq.s32.totalorder %s17, 1
      %p49 = por %p47, %p48
      %p50 = scmp.ne.s32.totalorder %s39, %s40
      %p51 = scmp.eq.s32.totalorder %s17, 0
      %p52 = por %p50, %p51
      %p53 = scmp.ne.s32.totalorder %s39, %s40
      %p54 = scmp.eq.s32.totalorder %s18, 1
      %p55 = por %p53, %p54
      %p57 = scmp.ne.s32.totalorder %s40, %s56
      %p58 = scmp.eq.s32.totalorder %s18, 0
      %p59 = por %p57, %p58
      %s61 = sadd.s32 %s60, 1
      %p64 = scmp.eq.s32.totalorder %s12, 1
      %p65 = scmp.ne.s32.totalorder %s60, %s62
      %p66 = scmp.eq.s32.totalorder %s12, 0
      %p67 = por %p65, %p66
      %p68 = scmp.ne.s32.totalorder %s60, %s62
      %p69 = scmp.eq.s32.totalorder %s17, 1
      %p70 = por %p68, %p69
      %p71 = scmp.ne.s32.totalorder %s62, %s63
      %p72 = scmp.eq.s32.totalorder %s17, 0
      %p73 = por %p71, %p72
      %p74 = scmp.ne.s32.totalorder %s62, %s63
      %p75 = scmp.eq.s32.totalorder %s18, 1
      %p76 = por %p74, %p75
      %p78 = scmp.ne.s32.totalorder %s63, %s77
      %p79 = scmp.eq.s32.totalorder %s18, 0
      %p80 = por %p78, %p79
      %s82 = sadd.s32 %s81, 1
      %p85 = scmp.eq.s32.totalorder %s12, 1
      %p86 = scmp.ne.s32.totalorder %s81, %s83
      %p87 = scmp.eq.s32.totalorder %s12, 0
      %p88 = por %p86, %p87
      %p89 = scmp.ne.s32.totalorder %s81, %s83
      %p90 = scmp.eq.s32.totalorder %s17, 1
      %p91 = por %p89, %p90
      %p92 = scmp.ne.s32.totalorder %s83, %s84
      %p93 = scmp.eq.s32.totalorder %s17, 0
      %p94 = por %p92, %p93
      %p95 = scmp.ne.s32.totalorder %s83, %s84
      %p96 = scmp.eq.s32.totalorder %s18, 1
      %p97 = por %p95, %p96
      %p99 = scmp.ne.s32.totalorder %s84, %s98
      %p100 = scmp.eq.s32.totalorder %s18, 0
      %p101 = por %p99, %p100
      %s102 = ssub.s32 %s19, %s31
      %s103 = ssub.s32 %s20, %s27
      %s104 = sor.u32 %s102, %s103
      %p105 = scmp.eq.s32.totalorder %s104, 0
      %s107 = sadd.s32 %s106, 1
      %s108 = scalar_select %p105, %s106, %s107
      %p111 = pneg %p105
      %p112 = scmp.eq.s32.totalorder %s12, 1
      %p113 = por %p111, %p112
      %p114 = scmp.ne.s32.totalorder %s106, %s109
      %p115 = scmp.eq.s32.totalorder %s12, 0
      %p116 = por %p114, %p115
      %p117 = scmp.ne.s32.totalorder %s106, %s109
      %p118 = scmp.eq.s32.totalorder %s17, 1
      %p119 = por %p117, %p118
      %p120 = scmp.ne.s32.totalorder %s109, %s110
      %p121 = scmp.eq.s32.totalorder %s17, 0
      %p122 = por %p120, %p121
      %p123 = scmp.ne.s32.totalorder %s109, %s110
      %p124 = scmp.eq.s32.totalorder %s18, 1
      %p125 = por %p123, %p124
      %p127 = scmp.ne.s32.totalorder %s110, %s126
      %p128 = scmp.eq.s32.totalorder %s18, 0
      %p129 = por %p127, %p128
      %p130 = scmp.le.s32.totalorder 1, %s12
      %p131 = scmp.lt.s32.totalorder %s12, 3
      %p132 = pnand %p130, %p131
      %p133 = pneg %p132
      // Predicated region
      $region9: #{_lambda_.19} parent=5 // pred_check
        _
      $region10: #{_lambda_.19} parent=5 // pred_check_branch
        %135 = sbr.rel (%p132) target = $region12
      $region11: #{_lambda_.19} parent=5 // pred_region
        %s136 = ssub.s32 %s12, 1
        // Predicated region
        $region13: #{_lambda_.19} parent=11 // pred_check
          %p137 = pneg %p73
        $region14: #{_lambda_.19} parent=11 // pred_check_branch
          %139 = sbr.rel (%p137) target = $region16
        $region15: #{_lambda_.19} parent=11 // pred_region
          _
        $region16: #{_lambda_.19} parent=11 // pred_fallthru
          _
        // Predicated region
        $region17: #{_lambda_.19} parent=11 // pred_check
          %p140 = pneg %p94
        $region18: #{_lambda_.19} parent=11 // pred_check_branch
          %142 = sbr.rel (%p140) target = $region20
        $region19: #{_lambda_.19} parent=11 // pred_region
          _
        $region20: #{_lambda_.19} parent=11 // pred_fallthru
          _
      $region12: #{_lambda_.19} parent=5 // pred_fallthru
        _
      %p143 = scmp.lt.s32.totalorder %s12, 2
      // Predicated region
      $region21: #{_lambda_.19} parent=5 // pred_check
        %p144 = pneg %p143
      $region22: #{_lambda_.19} parent=5 // pred_check_branch
        %146 = sbr.rel (%p144) target = $region24
      $region23: #{_lambda_.19} parent=5 // pred_region
        // Predicated region
        $region25: #{_lambda_.19} parent=23 // pred_check
          %p147 = pneg %p46
        $region26: #{_lambda_.19} parent=23 // pred_check_branch
          %149 = sbr.rel (%p147) target = $region28
        $region27: #{_lambda_.19} parent=23 // pred_region
          %s150 = smul.u32 16, %s20
          %p151 = scmp.lt.s32.totalorder %s19, 1
          %s152 = scalar_select %p151, %s19, 1
          %p153 = scmp.lt.s32.totalorder %s150, 15
          %s154 = scalar_select %p153, %s150, 15
          %s155 = smul.addr %s154, 8
          %s156 = smul.addr %s152, 128
          %s157 = sadd.s32 %s155, %s156
          %s158 = smul.addr %s157, 4
          %s159 = scalar_lea.vmem %s0, %s158
          %s160 = smul.u32 16, %s20
        $region28: #{_lambda_.19} parent=23 // pred_fallthru
          _
      $region24: #{_lambda_.19} parent=5 // pred_fallthru
        _
      %p161 = scmp.le.s32.totalorder 1, %s12
      %p162 = scmp.lt.s32.totalorder %s12, 3
      %p163 = pnand %p161, %p162
      %p164 = pneg %p163
      // Predicated region
      $region29: #{_lambda_.19} parent=5 // pred_check
        _
      $region30: #{_lambda_.19} parent=5 // pred_check_branch
        %166 = sbr.rel (%p163) target = $region32
      $region31: #{_lambda_.19} parent=5 // pred_region
        %s167 = ssub.s32 %s12, 1
        %s168 = smul.u32 16, %s22
        %p169 = scmp.lt.s32.totalorder %s21, 1
        %s170 = scalar_select %p169, %s21, 1
        %p171 = scmp.lt.s32.totalorder %s168, 15
        %s172 = scalar_select %p171, %s168, 15
        %s173 = smul.addr %s172, 8
        %s174 = smul.addr %s170, 128
        %s175 = sadd.s32 %s173, %s174
        %s176 = smul.addr %s175, 4
        %s177 = scalar_lea.vmem %s0, %s176
        %p178 = pneg %p52
        %p179 = pneg %p49
        %p180 = pneg %p73
        %p181 = pneg %p70
        %p182 = pneg %p94
        %p183 = pneg %p91
        %p184 = pneg %p122
        %p185 = pneg %p119
        %s186 = sand.u32 %s109, 1
        %s187 = scalar_lea.sflag [#allocation3], %s186
        %s188 = sand.u32 %s109, 1
        %s189 = smul.addr %s188, 1024
        %s190 = scalar_lea.vmem [#allocation2], %s189
        %s191 = smul.u32 16, %s22
        %p192 = scmp.lt.s32.totalorder %s21, 1
        %s193 = scalar_select %p192, %s21, 1
        %p194 = scmp.lt.s32.totalorder %s191, 15
        %s195 = scalar_select %p194, %s191, 15
        %s196 = smul.addr %s195, 8
        %s197 = smul.addr %s193, 128
        %s198 = sadd.s32 %s196, %s197
        %s199 = smul.addr %s198, 4
        %s200 = scalar_lea.vmem %s0, %s199
        %s201 = smul.u32 16, %s22
        %v202 = vld [vmem:[%s200] sm:$0xff]
        %v203 = vld [vmem:[%s200 + $0x8] sm:$0xff]
        %v204 = vld [vmem:[%s200 + $0x10] sm:$0xff]
        %v205 = vld [vmem:[%s200 + $0x18] sm:$0xff]
        %v206 = vld [vmem:[%s200 + $0x20] sm:$0xff]
        %v207 = vld [vmem:[%s200 + $0x28] sm:$0xff]
        %v208 = vld [vmem:[%s200 + $0x30] sm:$0xff]
        %v209 = vld [vmem:[%s200 + $0x38] sm:$0xff]
        %v210 = vld [vmem:[%s200 + $0x40] sm:$0xff]
        %v211 = vld [vmem:[%s200 + $0x48] sm:$0xff]
        %v212 = vld [vmem:[%s200 + $0x50] sm:$0xff]
        %v213 = vld [vmem:[%s200 + $0x58] sm:$0xff]
        %v214 = vld [vmem:[%s200 + $0x60] sm:$0xff]
        %v215 = vld [vmem:[%s200 + $0x68] sm:$0xff]
        %v216 = vld [vmem:[%s200 + $0x70] sm:$0xff]
        %v217 = vld [vmem:[%s200 + $0x78] sm:$0xff]
        %v218 = vld [vmem:[%s200 + $0x80] sm:$0xff]
        %v219 = vld [vmem:[%s200 + $0x88] sm:$0xff]
        %v220 = vld [vmem:[%s200 + $0x90] sm:$0xff]
        %v221 = vld [vmem:[%s200 + $0x98] sm:$0xff]
        %v222 = vld [vmem:[%s200 + $0xa0] sm:$0xff]
        %v223 = vld [vmem:[%s200 + $0xa8] sm:$0xff]
        %v224 = vld [vmem:[%s200 + $0xb0] sm:$0xff]
        %v225 = vld [vmem:[%s200 + $0xb8] sm:$0xff]
        %v226 = vld [vmem:[%s200 + $0xc0] sm:$0xff]
        %v227 = vld [vmem:[%s200 + $0xc8] sm:$0xff]
        %v228 = vld [vmem:[%s200 + $0xd0] sm:$0xff]
        %v229 = vld [vmem:[%s200 + $0xd8] sm:$0xff]
        %v230 = vld [vmem:[%s200 + $0xe0] sm:$0xff]
        %v231 = vld [vmem:[%s200 + $0xe8] sm:$0xff]
        %v232 = vld [vmem:[%s200 + $0xf0] sm:$0xff]
        %v233 = vld [vmem:[%s200 + $0xf8] sm:$0xff]
        %v234 = vld [vmem:[%s200 + $0x100] sm:$0xff]
        %v235 = vld [vmem:[%s200 + $0x108] sm:$0xff]
        %v236 = vld [vmem:[%s200 + $0x110] sm:$0xff]
        %v237 = vld [vmem:[%s200 + $0x118] sm:$0xff]
        %v238 = vld [vmem:[%s200 + $0x120] sm:$0xff]
        %v239 = vld [vmem:[%s200 + $0x128] sm:$0xff]
        %v240 = vld [vmem:[%s200 + $0x130] sm:$0xff]
        %v241 = vld [vmem:[%s200 + $0x138] sm:$0xff]
        %v242 = vld [vmem:[%s200 + $0x140] sm:$0xff]
        %v243 = vld [vmem:[%s200 + $0x148] sm:$0xff]
        %v244 = vld [vmem:[%s200 + $0x150] sm:$0xff]
        %v245 = vld [vmem:[%s200 + $0x158] sm:$0xff]
        %v246 = vld [vmem:[%s200 + $0x160] sm:$0xff]
        %v247 = vld [vmem:[%s200 + $0x168] sm:$0xff]
        %v248 = vld [vmem:[%s200 + $0x170] sm:$0xff]
        %v249 = vld [vmem:[%s200 + $0x178] sm:$0xff]
        %v250 = vld [vmem:[%s200 + $0x180] sm:$0xff]
        %v251 = vld [vmem:[%s200 + $0x188] sm:$0xff]
        %v252 = vld [vmem:[%s200 + $0x190] sm:$0xff]
        %v253 = vld [vmem:[%s200 + $0x198] sm:$0xff]
        %v254 = vld [vmem:[%s200 + $0x1a0] sm:$0xff]
        %v255 = vld [vmem:[%s200 + $0x1a8] sm:$0xff]
        %v256 = vld [vmem:[%s200 + $0x1b0] sm:$0xff]
        %v257 = vld [vmem:[%s200 + $0x1b8] sm:$0xff]
        %v258 = vld [vmem:[%s200 + $0x1c0] sm:$0xff]
        %v259 = vld [vmem:[%s200 + $0x1c8] sm:$0xff]
        %v260 = vld [vmem:[%s200 + $0x1d0] sm:$0xff]
        %v261 = vld [vmem:[%s200 + $0x1d8] sm:$0xff]
        %v262 = vld [vmem:[%s200 + $0x1e0] sm:$0xff]
        %v263 = vld [vmem:[%s200 + $0x1e8] sm:$0xff]
        %v264 = vld [vmem:[%s200 + $0x1f0] sm:$0xff]
        %v265 = vld [vmem:[%s200 + $0x1f8] sm:$0xff]
        %v266 = vunpack.c.l.bf16 %v202
        %v267 = vunpack.c.h.bf16 %v202
        %v268 = vunpack.c.l.bf16 %v203
        %v269 = vunpack.c.h.bf16 %v203
        %v270 = vunpack.c.l.bf16 %v204
        %v271 = vunpack.c.h.bf16 %v204
        %v272 = vunpack.c.l.bf16 %v205
        %v273 = vunpack.c.h.bf16 %v205
        %v274 = vunpack.c.l.bf16 %v206
        %v275 = vunpack.c.h.bf16 %v206
        %v276 = vunpack.c.l.bf16 %v207
        %v277 = vunpack.c.h.bf16 %v207
        %v278 = vunpack.c.l.bf16 %v208
        %v279 = vunpack.c.h.bf16 %v208
        %v280 = vunpack.c.l.bf16 %v209
        %v281 = vunpack.c.h.bf16 %v209
        %v282 = vunpack.c.l.bf16 %v210
        %v283 = vunpack.c.h.bf16 %v210
        %v284 = vunpack.c.l.bf16 %v211
        %v285 = vunpack.c.h.bf16 %v211
        %v286 = vunpack.c.l.bf16 %v212
        %v287 = vunpack.c.h.bf16 %v212
        %v288 = vunpack.c.l.bf16 %v213
        %v289 = vunpack.c.h.bf16 %v213
        %v290 = vunpack.c.l.bf16 %v214
        %v291 = vunpack.c.h.bf16 %v214
        %v292 = vunpack.c.l.bf16 %v215
        %v293 = vunpack.c.h.bf16 %v215
        %v294 = vunpack.c.l.bf16 %v216
        %v295 = vunpack.c.h.bf16 %v216
        %v296 = vunpack.c.l.bf16 %v217
        %v297 = vunpack.c.h.bf16 %v217
        %v298 = vunpack.c.l.bf16 %v218
        %v299 = vunpack.c.h.bf16 %v218
        %v300 = vunpack.c.l.bf16 %v219
        %v301 = vunpack.c.h.bf16 %v219
        %v302 = vunpack.c.l.bf16 %v220
        %v303 = vunpack.c.h.bf16 %v220
        %v304 = vunpack.c.l.bf16 %v221
        %v305 = vunpack.c.h.bf16 %v221
        %v306 = vunpack.c.l.bf16 %v222
        %v307 = vunpack.c.h.bf16 %v222
        %v308 = vunpack.c.l.bf16 %v223
        %v309 = vunpack.c.h.bf16 %v223
        %v310 = vunpack.c.l.bf16 %v224
        %v311 = vunpack.c.h.bf16 %v224
        %v312 = vunpack.c.l.bf16 %v225
        %v313 = vunpack.c.h.bf16 %v225
        %v314 = vunpack.c.l.bf16 %v226
        %v315 = vunpack.c.h.bf16 %v226
        %v316 = vunpack.c.l.bf16 %v227
        %v317 = vunpack.c.h.bf16 %v227
        %v318 = vunpack.c.l.bf16 %v228
        %v319 = vunpack.c.h.bf16 %v228
        %v320 = vunpack.c.l.bf16 %v229
        %v321 = vunpack.c.h.bf16 %v229
        %v322 = vunpack.c.l.bf16 %v230
        %v323 = vunpack.c.h.bf16 %v230
        %v324 = vunpack.c.l.bf16 %v231
        %v325 = vunpack.c.h.bf16 %v231
        %v326 = vunpack.c.l.bf16 %v232
        %v327 = vunpack.c.h.bf16 %v232
        %v328 = vunpack.c.l.bf16 %v233
        %v329 = vunpack.c.h.bf16 %v233
        %v330 = vunpack.c.l.bf16 %v234
        %v331 = vunpack.c.h.bf16 %v234
        %v332 = vunpack.c.l.bf16 %v235
        %v333 = vunpack.c.h.bf16 %v235
        %v334 = vunpack.c.l.bf16 %v236
        %v335 = vunpack.c.h.bf16 %v236
        %v336 = vunpack.c.l.bf16 %v237
        %v337 = vunpack.c.h.bf16 %v237
        %v338 = vunpack.c.l.bf16 %v238
        %v339 = vunpack.c.h.bf16 %v238
        %v340 = vunpack.c.l.bf16 %v239
        %v341 = vunpack.c.h.bf16 %v239
        %v342 = vunpack.c.l.bf16 %v240
        %v343 = vunpack.c.h.bf16 %v240
        %v344 = vunpack.c.l.bf16 %v241
        %v345 = vunpack.c.h.bf16 %v241
        %v346 = vunpack.c.l.bf16 %v242
        %v347 = vunpack.c.h.bf16 %v242
        %v348 = vunpack.c.l.bf16 %v243
        %v349 = vunpack.c.h.bf16 %v243
        %v350 = vunpack.c.l.bf16 %v244
        %v351 = vunpack.c.h.bf16 %v244
        %v352 = vunpack.c.l.bf16 %v245
        %v353 = vunpack.c.h.bf16 %v245
        %v354 = vunpack.c.l.bf16 %v246
        %v355 = vunpack.c.h.bf16 %v246
        %v356 = vunpack.c.l.bf16 %v247
        %v357 = vunpack.c.h.bf16 %v247
        %v358 = vunpack.c.l.bf16 %v248
        %v359 = vunpack.c.h.bf16 %v248
        %v360 = vunpack.c.l.bf16 %v249
        %v361 = vunpack.c.h.bf16 %v249
        %v362 = vunpack.c.l.bf16 %v250
        %v363 = vunpack.c.h.bf16 %v250
        %v364 = vunpack.c.l.bf16 %v251
        %v365 = vunpack.c.h.bf16 %v251
        %v366 = vunpack.c.l.bf16 %v252
        %v367 = vunpack.c.h.bf16 %v252
        %v368 = vunpack.c.l.bf16 %v253
        %v369 = vunpack.c.h.bf16 %v253
        %v370 = vunpack.c.l.bf16 %v254
        %v371 = vunpack.c.h.bf16 %v254
        %v372 = vunpack.c.l.bf16 %v255
        %v373 = vunpack.c.h.bf16 %v255
        %v374 = vunpack.c.l.bf16 %v256
        %v375 = vunpack.c.h.bf16 %v256
        %v376 = vunpack.c.l.bf16 %v257
        %v377 = vunpack.c.h.bf16 %v257
        %v378 = vunpack.c.l.bf16 %v258
        %v379 = vunpack.c.h.bf16 %v258
        %v380 = vunpack.c.l.bf16 %v259
        %v381 = vunpack.c.h.bf16 %v259
        %v382 = vunpack.c.l.bf16 %v260
        %v383 = vunpack.c.h.bf16 %v260
        %v384 = vunpack.c.l.bf16 %v261
        %v385 = vunpack.c.h.bf16 %v261
        %v386 = vunpack.c.l.bf16 %v262
        %v387 = vunpack.c.h.bf16 %v262
        %v388 = vunpack.c.l.bf16 %v263
        %v389 = vunpack.c.h.bf16 %v263
        %v390 = vunpack.c.l.bf16 %v264
        %v391 = vunpack.c.h.bf16 %v264
        %v392 = vunpack.c.l.bf16 %v265
        %v393 = vunpack.c.h.bf16 %v265
        %v394 = vld [vmem:[%s1] sm:$0xff]
        %v396 = vlaneseq
        %v397 = vshrl.u32 %v396, 7
        %v398 = vsub.s32 0, %v397
        %v399 = vrot.slane %v394, %v398
        %v400 = vlaneseq
        %v401 = vshrl.u32 %v400, 7
        %v402 = vsub.s32 1, %v401
        %v403 = vrot.slane %v394, %v402
        %v404 = vlaneseq
        %v405 = vshrl.u32 %v404, 7
        %v406 = vsub.s32 2, %v405
        %v407 = vrot.slane %v394, %v406
        %v408 = vlaneseq
        %v409 = vshrl.u32 %v408, 7
        %v410 = vsub.s32 3, %v409
        %v411 = vrot.slane %v394, %v410
        %v412 = vlaneseq
        %v413 = vshrl.u32 %v412, 7
        %v414 = vsub.s32 4, %v413
        %v415 = vrot.slane %v394, %v414
        %v416 = vlaneseq
        %v417 = vshrl.u32 %v416, 7
        %v418 = vsub.s32 5, %v417
        %v419 = vrot.slane %v394, %v418
        %v420 = vlaneseq
        %v421 = vshrl.u32 %v420, 7
        %v422 = vsub.s32 6, %v421
        %v423 = vrot.slane %v394, %v422
        %v424 = vlaneseq
        %v425 = vshrl.u32 %v424, 7
        %v426 = vsub.s32 7, %v425
        %v427 = vrot.slane %v394, %v426
        %v436 = vmul.f32 %v266, %v399
        %v437 = vmul.f32 %v267, %v403
        %v438 = vmul.f32 %v268, %v407
        %v439 = vmul.f32 %v269, %v411
        %v440 = vmul.f32 %v270, %v415
        %v441 = vmul.f32 %v271, %v419
        %v442 = vmul.f32 %v272, %v423
        %v443 = vmul.f32 %v273, %v427
        %v444 = vmul.f32 %v274, %v399
        %v445 = vmul.f32 %v275, %v403
        %v446 = vmul.f32 %v276, %v407
        %v447 = vmul.f32 %v277, %v411
        %v448 = vmul.f32 %v278, %v415
        %v449 = vmul.f32 %v279, %v419
        %v450 = vmul.f32 %v280, %v423
        %v451 = vmul.f32 %v281, %v427
        %v452 = vmul.f32 %v282, %v399
        %v453 = vmul.f32 %v283, %v403
        %v454 = vmul.f32 %v284, %v407
        %v455 = vmul.f32 %v285, %v411
        %v456 = vmul.f32 %v286, %v415
        %v457 = vmul.f32 %v287, %v419
        %v458 = vmul.f32 %v288, %v423
        %v459 = vmul.f32 %v289, %v427
        %v460 = vmul.f32 %v290, %v399
        %v461 = vmul.f32 %v291, %v403
        %v462 = vmul.f32 %v292, %v407
        %v463 = vmul.f32 %v293, %v411
        %v464 = vmul.f32 %v294, %v415
        %v465 = vmul.f32 %v295, %v419
        %v466 = vmul.f32 %v296, %v423
        %v467 = vmul.f32 %v297, %v427
        %v468 = vmul.f32 %v298, %v399
        %v469 = vmul.f32 %v299, %v403
        %v470 = vmul.f32 %v300, %v407
        %v471 = vmul.f32 %v301, %v411
        %v472 = vmul.f32 %v302, %v415
        %v473 = vmul.f32 %v303, %v419
        %v474 = vmul.f32 %v304, %v423
        %v475 = vmul.f32 %v305, %v427
        %v476 = vmul.f32 %v306, %v399
        %v477 = vmul.f32 %v307, %v403
        %v478 = vmul.f32 %v308, %v407
        %v479 = vmul.f32 %v309, %v411
        %v480 = vmul.f32 %v310, %v415
        %v481 = vmul.f32 %v311, %v419
        %v482 = vmul.f32 %v312, %v423
        %v483 = vmul.f32 %v313, %v427
        %v484 = vmul.f32 %v314, %v399
        %v485 = vmul.f32 %v315, %v403
        %v486 = vmul.f32 %v316, %v407
        %v487 = vmul.f32 %v317, %v411
        %v488 = vmul.f32 %v318, %v415
        %v489 = vmul.f32 %v319, %v419
        %v490 = vmul.f32 %v320, %v423
        %v491 = vmul.f32 %v321, %v427
        %v492 = vmul.f32 %v322, %v399
        %v493 = vmul.f32 %v323, %v403
        %v494 = vmul.f32 %v324, %v407
        %v495 = vmul.f32 %v325, %v411
        %v496 = vmul.f32 %v326, %v415
        %v497 = vmul.f32 %v327, %v419
        %v498 = vmul.f32 %v328, %v423
        %v499 = vmul.f32 %v329, %v427
        %v500 = vmul.f32 %v330, %v399
        %v501 = vmul.f32 %v331, %v403
        %v502 = vmul.f32 %v332, %v407
        %v503 = vmul.f32 %v333, %v411
        %v504 = vmul.f32 %v334, %v415
        %v505 = vmul.f32 %v335, %v419
        %v506 = vmul.f32 %v336, %v423
        %v507 = vmul.f32 %v337, %v427
        %v508 = vmul.f32 %v338, %v399
        %v509 = vmul.f32 %v339, %v403
        %v510 = vmul.f32 %v340, %v407
        %v511 = vmul.f32 %v341, %v411
        %v512 = vmul.f32 %v342, %v415
        %v513 = vmul.f32 %v343, %v419
        %v514 = vmul.f32 %v344, %v423
        %v515 = vmul.f32 %v345, %v427
        %v516 = vmul.f32 %v346, %v399
        %v517 = vmul.f32 %v347, %v403
        %v518 = vmul.f32 %v348, %v407
        %v519 = vmul.f32 %v349, %v411
        %v520 = vmul.f32 %v350, %v415
        %v521 = vmul.f32 %v351, %v419
        %v522 = vmul.f32 %v352, %v423
        %v523 = vmul.f32 %v353, %v427
        %v524 = vmul.f32 %v354, %v399
        %v525 = vmul.f32 %v355, %v403
        %v526 = vmul.f32 %v356, %v407
        %v527 = vmul.f32 %v357, %v411
        %v528 = vmul.f32 %v358, %v415
        %v529 = vmul.f32 %v359, %v419
        %v530 = vmul.f32 %v360, %v423
        %v531 = vmul.f32 %v361, %v427
        %v532 = vmul.f32 %v362, %v399
        %v533 = vmul.f32 %v363, %v403
        %v534 = vmul.f32 %v364, %v407
        %v535 = vmul.f32 %v365, %v411
        %v536 = vmul.f32 %v366, %v415
        %v537 = vmul.f32 %v367, %v419
        %v538 = vmul.f32 %v368, %v423
        %v539 = vmul.f32 %v369, %v427
        %v540 = vmul.f32 %v370, %v399
        %v541 = vmul.f32 %v371, %v403
        %v542 = vmul.f32 %v372, %v407
        %v543 = vmul.f32 %v373, %v411
        %v544 = vmul.f32 %v374, %v415
        %v545 = vmul.f32 %v375, %v419
        %v546 = vmul.f32 %v376, %v423
        %v547 = vmul.f32 %v377, %v427
        %v548 = vmul.f32 %v378, %v399
        %v549 = vmul.f32 %v379, %v403
        %v550 = vmul.f32 %v380, %v407
        %v551 = vmul.f32 %v381, %v411
        %v552 = vmul.f32 %v382, %v415
        %v553 = vmul.f32 %v383, %v419
        %v554 = vmul.f32 %v384, %v423
        %v555 = vmul.f32 %v385, %v427
        %v556 = vmul.f32 %v386, %v399
        %v557 = vmul.f32 %v387, %v403
        %v558 = vmul.f32 %v388, %v407
        %v559 = vmul.f32 %v389, %v411
        %v560 = vmul.f32 %v390, %v415
        %v561 = vmul.f32 %v391, %v419
        %v562 = vmul.f32 %v392, %v423
        %v563 = vmul.f32 %v393, %v427
        %v564 = vld [vmem:[%s2] sm:$0xff]
        %v566 = vlaneseq
        %v567 = vshrl.u32 %v566, 7
        %v568 = vsub.s32 0, %v567
        %v569 = vrot.slane %v564, %v568
        %v570 = vlaneseq
        %v571 = vshrl.u32 %v570, 7
        %v572 = vsub.s32 1, %v571
        %v573 = vrot.slane %v564, %v572
        %v574 = vlaneseq
        %v575 = vshrl.u32 %v574, 7
        %v576 = vsub.s32 2, %v575
        %v577 = vrot.slane %v564, %v576
        %v578 = vlaneseq
        %v579 = vshrl.u32 %v578, 7
        %v580 = vsub.s32 3, %v579
        %v581 = vrot.slane %v564, %v580
        %v582 = vlaneseq
        %v583 = vshrl.u32 %v582, 7
        %v584 = vsub.s32 4, %v583
        %v585 = vrot.slane %v564, %v584
        %v586 = vlaneseq
        %v587 = vshrl.u32 %v586, 7
        %v588 = vsub.s32 5, %v587
        %v589 = vrot.slane %v564, %v588
        %v590 = vlaneseq
        %v591 = vshrl.u32 %v590, 7
        %v592 = vsub.s32 6, %v591
        %v593 = vrot.slane %v564, %v592
        %v594 = vlaneseq
        %v595 = vshrl.u32 %v594, 7
        %v596 = vsub.s32 7, %v595
        %v597 = vrot.slane %v564, %v596
        %v606 = vadd.f32 %v436, %v569
        %v607 = vadd.f32 %v437, %v573
        %v608 = vadd.f32 %v438, %v577
        %v609 = vadd.f32 %v439, %v581
        %v610 = vadd.f32 %v440, %v585
        %v611 = vadd.f32 %v441, %v589
        %v612 = vadd.f32 %v442, %v593
        %v613 = vadd.f32 %v443, %v597
        %v614 = vadd.f32 %v444, %v569
        %v615 = vadd.f32 %v445, %v573
        %v616 = vadd.f32 %v446, %v577
        %v617 = vadd.f32 %v447, %v581
        %v618 = vadd.f32 %v448, %v585
        %v619 = vadd.f32 %v449, %v589
        %v620 = vadd.f32 %v450, %v593
        %v621 = vadd.f32 %v451, %v597
        %v622 = vadd.f32 %v452, %v569
        %v623 = vadd.f32 %v453, %v573
        %v624 = vadd.f32 %v454, %v577
        %v625 = vadd.f32 %v455, %v581
        %v626 = vadd.f32 %v456, %v585
        %v627 = vadd.f32 %v457, %v589
        %v628 = vadd.f32 %v458, %v593
        %v629 = vadd.f32 %v459, %v597
        %v630 = vadd.f32 %v460, %v569
        %v631 = vadd.f32 %v461, %v573
        %v632 = vadd.f32 %v462, %v577
        %v633 = vadd.f32 %v463, %v581
        %v634 = vadd.f32 %v464, %v585
        %v635 = vadd.f32 %v465, %v589
        %v636 = vadd.f32 %v466, %v593
        %v637 = vadd.f32 %v467, %v597
        %v638 = vadd.f32 %v468, %v569
        %v639 = vadd.f32 %v469, %v573
        %v640 = vadd.f32 %v470, %v577
        %v641 = vadd.f32 %v471, %v581
        %v642 = vadd.f32 %v472, %v585
        %v643 = vadd.f32 %v473, %v589
        %v644 = vadd.f32 %v474, %v593
        %v645 = vadd.f32 %v475, %v597
        %v646 = vadd.f32 %v476, %v569
        %v647 = vadd.f32 %v477, %v573
        %v648 = vadd.f32 %v478, %v577
        %v649 = vadd.f32 %v479, %v581
        %v650 = vadd.f32 %v480, %v585
        %v651 = vadd.f32 %v481, %v589
        %v652 = vadd.f32 %v482, %v593
        %v653 = vadd.f32 %v483, %v597
        %v654 = vadd.f32 %v484, %v569
        %v655 = vadd.f32 %v485, %v573
        %v656 = vadd.f32 %v486, %v577
        %v657 = vadd.f32 %v487, %v581
        %v658 = vadd.f32 %v488, %v585
        %v659 = vadd.f32 %v489, %v589
        %v660 = vadd.f32 %v490, %v593
        %v661 = vadd.f32 %v491, %v597
        %v662 = vadd.f32 %v492, %v569
        %v663 = vadd.f32 %v493, %v573
        %v664 = vadd.f32 %v494, %v577
        %v665 = vadd.f32 %v495, %v581
        %v666 = vadd.f32 %v496, %v585
        %v667 = vadd.f32 %v497, %v589
        %v668 = vadd.f32 %v498, %v593
        %v669 = vadd.f32 %v499, %v597
        %v670 = vadd.f32 %v500, %v569
        %v671 = vadd.f32 %v501, %v573
        %v672 = vadd.f32 %v502, %v577
        %v673 = vadd.f32 %v503, %v581
        %v674 = vadd.f32 %v504, %v585
        %v675 = vadd.f32 %v505, %v589
        %v676 = vadd.f32 %v506, %v593
        %v677 = vadd.f32 %v507, %v597
        %v678 = vadd.f32 %v508, %v569
        %v679 = vadd.f32 %v509, %v573
        %v680 = vadd.f32 %v510, %v577
        %v681 = vadd.f32 %v511, %v581
        %v682 = vadd.f32 %v512, %v585
        %v683 = vadd.f32 %v513, %v589
        %v684 = vadd.f32 %v514, %v593
        %v685 = vadd.f32 %v515, %v597
        %v686 = vadd.f32 %v516, %v569
        %v687 = vadd.f32 %v517, %v573
        %v688 = vadd.f32 %v518, %v577
        %v689 = vadd.f32 %v519, %v581
        %v690 = vadd.f32 %v520, %v585
        %v691 = vadd.f32 %v521, %v589
        %v692 = vadd.f32 %v522, %v593
        %v693 = vadd.f32 %v523, %v597
        %v694 = vadd.f32 %v524, %v569
        %v695 = vadd.f32 %v525, %v573
        %v696 = vadd.f32 %v526, %v577
        %v697 = vadd.f32 %v527, %v581
        %v698 = vadd.f32 %v528, %v585
        %v699 = vadd.f32 %v529, %v589
        %v700 = vadd.f32 %v530, %v593
        %v701 = vadd.f32 %v531, %v597
        %v702 = vadd.f32 %v532, %v569
        %v703 = vadd.f32 %v533, %v573
        %v704 = vadd.f32 %v534, %v577
        %v705 = vadd.f32 %v535, %v581
        %v706 = vadd.f32 %v536, %v585
        %v707 = vadd.f32 %v537, %v589
        %v708 = vadd.f32 %v538, %v593
        %v709 = vadd.f32 %v539, %v597
        %v710 = vadd.f32 %v540, %v569
        %v711 = vadd.f32 %v541, %v573
        %v712 = vadd.f32 %v542, %v577
        %v713 = vadd.f32 %v543, %v581
        %v714 = vadd.f32 %v544, %v585
        %v715 = vadd.f32 %v545, %v589
        %v716 = vadd.f32 %v546, %v593
        %v717 = vadd.f32 %v547, %v597
        %v718 = vadd.f32 %v548, %v569
        %v719 = vadd.f32 %v549, %v573
        %v720 = vadd.f32 %v550, %v577
        %v721 = vadd.f32 %v551, %v581
        %v722 = vadd.f32 %v552, %v585
        %v723 = vadd.f32 %v553, %v589
        %v724 = vadd.f32 %v554, %v593
        %v725 = vadd.f32 %v555, %v597
        %v726 = vadd.f32 %v556, %v569
        %v727 = vadd.f32 %v557, %v573
        %v728 = vadd.f32 %v558, %v577
        %v729 = vadd.f32 %v559, %v581
        %v730 = vadd.f32 %v560, %v585
        %v731 = vadd.f32 %v561, %v589
        %v732 = vadd.f32 %v562, %v593
        %v733 = vadd.f32 %v563, %v597
        %734 = vxpose.xlu0.b32.start [1/16] %v606, 128
        %735 = vxpose.xlu0.b32.cont [2/16] %v614, 128
        %736 = vxpose.xlu0.b32.cont [3/16] %v622, 128
        %737 = vxpose.xlu0.b32.cont [4/16] %v630, 128
        %738 = vxpose.xlu0.b32.cont [5/16] %v638, 128
        %739 = vxpose.xlu0.b32.cont [6/16] %v646, 128
        %740 = vxpose.xlu0.b32.cont [7/16] %v654, 128
        %741 = vxpose.xlu0.b32.cont [8/16] %v662, 128
        %742 = vxpose.xlu0.b32.cont [9/16] %v670, 128
        %743 = vxpose.xlu0.b32.cont [10/16] %v678, 128
        %744 = vxpose.xlu0.b32.cont [11/16] %v686, 128
        %745 = vxpose.xlu0.b32.cont [12/16] %v694, 128
        %746 = vxpose.xlu0.b32.cont [13/16] %v702, 128
        %747 = vxpose.xlu0.b32.cont [14/16] %v710, 128
        %748 = vxpose.xlu0.b32.cont [15/16] %v718, 128
        %749 = vxpose.xlu0.b32.end [16/16] %v726, 128
        %v750 = vpop.trf.xlu0
        %v751 = vpop.trf.xlu0
        %v752 = vpop.trf.xlu0
        %v753 = vpop.trf.xlu0
        %v754 = vpop.trf.xlu0
        %v755 = vpop.trf.xlu0
        %v756 = vpop.trf.xlu0
        %v757 = vpop.trf.xlu0
        %v758 = vpop.trf.xlu0
        %v759 = vpop.trf.xlu0
        %v760 = vpop.trf.xlu0
        %v761 = vpop.trf.xlu0
        %v762 = vpop.trf.xlu0
        %v763 = vpop.trf.xlu0
        %v764 = vpop.trf.xlu0
        %v765 = vpop.trf.xlu0
        %766 = vxpose.xlu0.b32.start [1/16] %v607, 128
        %767 = vxpose.xlu0.b32.cont [2/16] %v615, 128
        %768 = vxpose.xlu0.b32.cont [3/16] %v623, 128
        %769 = vxpose.xlu0.b32.cont [4/16] %v631, 128
        %770 = vxpose.xlu0.b32.cont [5/16] %v639, 128
        %771 = vxpose.xlu0.b32.cont [6/16] %v647, 128
        %772 = vxpose.xlu0.b32.cont [7/16] %v655, 128
        %773 = vxpose.xlu0.b32.cont [8/16] %v663, 128
        %774 = vxpose.xlu0.b32.cont [9/16] %v671, 128
        %775 = vxpose.xlu0.b32.cont [10/16] %v679, 128
        %776 = vxpose.xlu0.b32.cont [11/16] %v687, 128
        %777 = vxpose.xlu0.b32.cont [12/16] %v695, 128
        %778 = vxpose.xlu0.b32.cont [13/16] %v703, 128
        %779 = vxpose.xlu0.b32.cont [14/16] %v711, 128
        %780 = vxpose.xlu0.b32.cont [15/16] %v719, 128
        %781 = vxpose.xlu0.b32.end [16/16] %v727, 128
        %v782 = vpop.trf.xlu0
        %v783 = vpop.trf.xlu0
        %v784 = vpop.trf.xlu0
        %v785 = vpop.trf.xlu0
        %v786 = vpop.trf.xlu0
        %v787 = vpop.trf.xlu0
        %v788 = vpop.trf.xlu0
        %v789 = vpop.trf.xlu0
        %v790 = vpop.trf.xlu0
        %v791 = vpop.trf.xlu0
        %v792 = vpop.trf.xlu0
        %v793 = vpop.trf.xlu0
        %v794 = vpop.trf.xlu0
        %v795 = vpop.trf.xlu0
        %v796 = vpop.trf.xlu0
        %v797 = vpop.trf.xlu0
        %798 = vxpose.xlu0.b32.start [1/16] %v608, 128
        %799 = vxpose.xlu0.b32.cont [2/16] %v616, 128
        %800 = vxpose.xlu0.b32.cont [3/16] %v624, 128
        %801 = vxpose.xlu0.b32.cont [4/16] %v632, 128
        %802 = vxpose.xlu0.b32.cont [5/16] %v640, 128
        %803 = vxpose.xlu0.b32.cont [6/16] %v648, 128
        %804 = vxpose.xlu0.b32.cont [7/16] %v656, 128
        %805 = vxpose.xlu0.b32.cont [8/16] %v664, 128
        %806 = vxpose.xlu0.b32.cont [9/16] %v672, 128
        %807 = vxpose.xlu0.b32.cont [10/16] %v680, 128
        %808 = vxpose.xlu0.b32.cont [11/16] %v688, 128
        %809 = vxpose.xlu0.b32.cont [12/16] %v696, 128
        %810 = vxpose.xlu0.b32.cont [13/16] %v704, 128
        %811 = vxpose.xlu0.b32.cont [14/16] %v712, 128
        %812 = vxpose.xlu0.b32.cont [15/16] %v720, 128
        %813 = vxpose.xlu0.b32.end [16/16] %v728, 128
        %v814 = vpop.trf.xlu0
        %v815 = vpop.trf.xlu0
        %v816 = vpop.trf.xlu0
        %v817 = vpop.trf.xlu0
        %v818 = vpop.trf.xlu0
        %v819 = vpop.trf.xlu0
        %v820 = vpop.trf.xlu0
        %v821 = vpop.trf.xlu0
        %v822 = vpop.trf.xlu0
        %v823 = vpop.trf.xlu0
        %v824 = vpop.trf.xlu0
        %v825 = vpop.trf.xlu0
        %v826 = vpop.trf.xlu0
        %v827 = vpop.trf.xlu0
        %v828 = vpop.trf.xlu0
        %v829 = vpop.trf.xlu0
        %830 = vxpose.xlu0.b32.start [1/16] %v609, 128
        %831 = vxpose.xlu0.b32.cont [2/16] %v617, 128
        %832 = vxpose.xlu0.b32.cont [3/16] %v625, 128
        %833 = vxpose.xlu0.b32.cont [4/16] %v633, 128
        %834 = vxpose.xlu0.b32.cont [5/16] %v641, 128
        %835 = vxpose.xlu0.b32.cont [6/16] %v649, 128
        %836 = vxpose.xlu0.b32.cont [7/16] %v657, 128
        %837 = vxpose.xlu0.b32.cont [8/16] %v665, 128
        %838 = vxpose.xlu0.b32.cont [9/16] %v673, 128
        %839 = vxpose.xlu0.b32.cont [10/16] %v681, 128
        %840 = vxpose.xlu0.b32.cont [11/16] %v689, 128
        %841 = vxpose.xlu0.b32.cont [12/16] %v697, 128
        %842 = vxpose.xlu0.b32.cont [13/16] %v705, 128
        %843 = vxpose.xlu0.b32.cont [14/16] %v713, 128
        %844 = vxpose.xlu0.b32.cont [15/16] %v721, 128
        %845 = vxpose.xlu0.b32.end [16/16] %v729, 128
        %v846 = vpop.trf.xlu0
        %v847 = vpop.trf.xlu0
        %v848 = vpop.trf.xlu0
        %v849 = vpop.trf.xlu0
        %v850 = vpop.trf.xlu0
        %v851 = vpop.trf.xlu0
        %v852 = vpop.trf.xlu0
        %v853 = vpop.trf.xlu0
        %v854 = vpop.trf.xlu0
        %v855 = vpop.trf.xlu0
        %v856 = vpop.trf.xlu0
        %v857 = vpop.trf.xlu0
        %v858 = vpop.trf.xlu0
        %v859 = vpop.trf.xlu0
        %v860 = vpop.trf.xlu0
        %v861 = vpop.trf.xlu0
        %862 = vxpose.xlu0.b32.start [1/16] %v610, 128
        %863 = vxpose.xlu0.b32.cont [2/16] %v618, 128
        %864 = vxpose.xlu0.b32.cont [3/16] %v626, 128
        %865 = vxpose.xlu0.b32.cont [4/16] %v634, 128
        %866 = vxpose.xlu0.b32.cont [5/16] %v642, 128
        %867 = vxpose.xlu0.b32.cont [6/16] %v650, 128
        %868 = vxpose.xlu0.b32.cont [7/16] %v658, 128
        %869 = vxpose.xlu0.b32.cont [8/16] %v666, 128
        %870 = vxpose.xlu0.b32.cont [9/16] %v674, 128
        %871 = vxpose.xlu0.b32.cont [10/16] %v682, 128
        %872 = vxpose.xlu0.b32.cont [11/16] %v690, 128
        %873 = vxpose.xlu0.b32.cont [12/16] %v698, 128
        %874 = vxpose.xlu0.b32.cont [13/16] %v706, 128
        %875 = vxpose.xlu0.b32.cont [14/16] %v714, 128
        %876 = vxpose.xlu0.b32.cont [15/16] %v722, 128
        %877 = vxpose.xlu0.b32.end [16/16] %v730, 128
        %v878 = vpop.trf.xlu0
        %v879 = vpop.trf.xlu0
        %v880 = vpop.trf.xlu0
        %v881 = vpop.trf.xlu0
        %v882 = vpop.trf.xlu0
        %v883 = vpop.trf.xlu0
        %v884 = vpop.trf.xlu0
        %v885 = vpop.trf.xlu0
        %v886 = vpop.trf.xlu0
        %v887 = vpop.trf.xlu0
        %v888 = vpop.trf.xlu0
        %v889 = vpop.trf.xlu0
        %v890 = vpop.trf.xlu0
        %v891 = vpop.trf.xlu0
        %v892 = vpop.trf.xlu0
        %v893 = vpop.trf.xlu0
        %894 = vxpose.xlu0.b32.start [1/16] %v611, 128
        %895 = vxpose.xlu0.b32.cont [2/16] %v619, 128
        %896 = vxpose.xlu0.b32.cont [3/16] %v627, 128
        %897 = vxpose.xlu0.b32.cont [4/16] %v635, 128
        %898 = vxpose.xlu0.b32.cont [5/16] %v643, 128
        %899 = vxpose.xlu0.b32.cont [6/16] %v651, 128
        %900 = vxpose.xlu0.b32.cont [7/16] %v659, 128
        %901 = vxpose.xlu0.b32.cont [8/16] %v667, 128
        %902 = vxpose.xlu0.b32.cont [9/16] %v675, 128
        %903 = vxpose.xlu0.b32.cont [10/16] %v683, 128
        %904 = vxpose.xlu0.b32.cont [11/16] %v691, 128
        %905 = vxpose.xlu0.b32.cont [12/16] %v699, 128
        %906 = vxpose.xlu0.b32.cont [13/16] %v707, 128
        %907 = vxpose.xlu0.b32.cont [14/16] %v715, 128
        %908 = vxpose.xlu0.b32.cont [15/16] %v723, 128
        %909 = vxpose.xlu0.b32.end [16/16] %v731, 128
        %v910 = vpop.trf.xlu0
        %v911 = vpop.trf.xlu0
        %v912 = vpop.trf.xlu0
        %v913 = vpop.trf.xlu0
        %v914 = vpop.trf.xlu0
        %v915 = vpop.trf.xlu0
        %v916 = vpop.trf.xlu0
        %v917 = vpop.trf.xlu0
        %v918 = vpop.trf.xlu0
        %v919 = vpop.trf.xlu0
        %v920 = vpop.trf.xlu0
        %v921 = vpop.trf.xlu0
        %v922 = vpop.trf.xlu0
        %v923 = vpop.trf.xlu0
        %v924 = vpop.trf.xlu0
        %v925 = vpop.trf.xlu0
        %926 = vxpose.xlu0.b32.start [1/16] %v612, 128
        %927 = vxpose.xlu0.b32.cont [2/16] %v620, 128
        %928 = vxpose.xlu0.b32.cont [3/16] %v628, 128
        %929 = vxpose.xlu0.b32.cont [4/16] %v636, 128
        %930 = vxpose.xlu0.b32.cont [5/16] %v644, 128
        %931 = vxpose.xlu0.b32.cont [6/16] %v652, 128
        %932 = vxpose.xlu0.b32.cont [7/16] %v660, 128
        %933 = vxpose.xlu0.b32.cont [8/16] %v668, 128
        %934 = vxpose.xlu0.b32.cont [9/16] %v676, 128
        %935 = vxpose.xlu0.b32.cont [10/16] %v684, 128
        %936 = vxpose.xlu0.b32.cont [11/16] %v692, 128
        %937 = vxpose.xlu0.b32.cont [12/16] %v700, 128
        %938 = vxpose.xlu0.b32.cont [13/16] %v708, 128
        %939 = vxpose.xlu0.b32.cont [14/16] %v716, 128
        %940 = vxpose.xlu0.b32.cont [15/16] %v724, 128
        %941 = vxpose.xlu0.b32.end [16/16] %v732, 128
        %v942 = vpop.trf.xlu0
        %v943 = vpop.trf.xlu0
        %v944 = vpop.trf.xlu0
        %v945 = vpop.trf.xlu0
        %v946 = vpop.trf.xlu0
        %v947 = vpop.trf.xlu0
        %v948 = vpop.trf.xlu0
        %v949 = vpop.trf.xlu0
        %v950 = vpop.trf.xlu0
        %v951 = vpop.trf.xlu0
        %v952 = vpop.trf.xlu0
        %v953 = vpop.trf.xlu0
        %v954 = vpop.trf.xlu0
        %v955 = vpop.trf.xlu0
        %v956 = vpop.trf.xlu0
        %v957 = vpop.trf.xlu0
        %958 = vxpose.xlu0.b32.start [1/16] %v613, 128
        %959 = vxpose.xlu0.b32.cont [2/16] %v621, 128
        %960 = vxpose.xlu0.b32.cont [3/16] %v629, 128
        %961 = vxpose.xlu0.b32.cont [4/16] %v637, 128
        %962 = vxpose.xlu0.b32.cont [5/16] %v645, 128
        %963 = vxpose.xlu0.b32.cont [6/16] %v653, 128
        %964 = vxpose.xlu0.b32.cont [7/16] %v661, 128
        %965 = vxpose.xlu0.b32.cont [8/16] %v669, 128
        %966 = vxpose.xlu0.b32.cont [9/16] %v677, 128
        %967 = vxpose.xlu0.b32.cont [10/16] %v685, 128
        %968 = vxpose.xlu0.b32.cont [11/16] %v693, 128
        %969 = vxpose.xlu0.b32.cont [12/16] %v701, 128
        %970 = vxpose.xlu0.b32.cont [13/16] %v709, 128
        %971 = vxpose.xlu0.b32.cont [14/16] %v717, 128
        %972 = vxpose.xlu0.b32.cont [15/16] %v725, 128
        %973 = vxpose.xlu0.b32.end [16/16] %v733, 128
        %v974 = vpop.trf.xlu0
        %v975 = vpop.trf.xlu0
        %v976 = vpop.trf.xlu0
        %v977 = vpop.trf.xlu0
        %v978 = vpop.trf.xlu0
        %v979 = vpop.trf.xlu0
        %v980 = vpop.trf.xlu0
        %v981 = vpop.trf.xlu0
        %v982 = vpop.trf.xlu0
        %v983 = vpop.trf.xlu0
        %v984 = vpop.trf.xlu0
        %v985 = vpop.trf.xlu0
        %v986 = vpop.trf.xlu0
        %v987 = vpop.trf.xlu0
        %v988 = vpop.trf.xlu0
        %v989 = vpop.trf.xlu0
        %990 = vst [vmem:[%s190] sm:$0xff] %v750
        %991 = vst [vmem:[%s190 + $0x8] sm:$0xff] %v751
        %992 = vst [vmem:[%s190 + $0x10] sm:$0xff] %v752
        %993 = vst [vmem:[%s190 + $0x18] sm:$0xff] %v753
        %994 = vst [vmem:[%s190 + $0x20] sm:$0xff] %v754
        %995 = vst [vmem:[%s190 + $0x28] sm:$0xff] %v755
        %996 = vst [vmem:[%s190 + $0x30] sm:$0xff] %v756
        %997 = vst [vmem:[%s190 + $0x38] sm:$0xff] %v757
        %998 = vst [vmem:[%s190 + $0x40] sm:$0xff] %v758
        %999 = vst [vmem:[%s190 + $0x48] sm:$0xff] %v759
        %1000 = vst [vmem:[%s190 + $0x50] sm:$0xff] %v760
        %1001 = vst [vmem:[%s190 + $0x58] sm:$0xff] %v761
        %1002 = vst [vmem:[%s190 + $0x60] sm:$0xff] %v762
        %1003 = vst [vmem:[%s190 + $0x68] sm:$0xff] %v763
        %1004 = vst [vmem:[%s190 + $0x70] sm:$0xff] %v764
        %1005 = vst [vmem:[%s190 + $0x78] sm:$0xff] %v765
        %1006 = vst [vmem:[%s190 + $0x80] sm:$0xff] %v782
        %1007 = vst [vmem:[%s190 + $0x88] sm:$0xff] %v783
        %1008 = vst [vmem:[%s190 + $0x90] sm:$0xff] %v784
        %1009 = vst [vmem:[%s190 + $0x98] sm:$0xff] %v785
        %1010 = vst [vmem:[%s190 + $0xa0] sm:$0xff] %v786
        %1011 = vst [vmem:[%s190 + $0xa8] sm:$0xff] %v787
        %1012 = vst [vmem:[%s190 + $0xb0] sm:$0xff] %v788
        %1013 = vst [vmem:[%s190 + $0xb8] sm:$0xff] %v789
        %1014 = vst [vmem:[%s190 + $0xc0] sm:$0xff] %v790
        %1015 = vst [vmem:[%s190 + $0xc8] sm:$0xff] %v791
        %1016 = vst [vmem:[%s190 + $0xd0] sm:$0xff] %v792
        %1017 = vst [vmem:[%s190 + $0xd8] sm:$0xff] %v793
        %1018 = vst [vmem:[%s190 + $0xe0] sm:$0xff] %v794
        %1019 = vst [vmem:[%s190 + $0xe8] sm:$0xff] %v795
        %1020 = vst [vmem:[%s190 + $0xf0] sm:$0xff] %v796
        %1021 = vst [vmem:[%s190 + $0xf8] sm:$0xff] %v797
        %1022 = vst [vmem:[%s190 + $0x100] sm:$0xff] %v814
        %1023 = vst [vmem:[%s190 + $0x108] sm:$0xff] %v815
        %1024 = vst [vmem:[%s190 + $0x110] sm:$0xff] %v816
        %1025 = vst [vmem:[%s190 + $0x118] sm:$0xff] %v817
        %1026 = vst [vmem:[%s190 + $0x120] sm:$0xff] %v818
        %1027 = vst [vmem:[%s190 + $0x128] sm:$0xff] %v819
        %1028 = vst [vmem:[%s190 + $0x130] sm:$0xff] %v820
        %1029 = vst [vmem:[%s190 + $0x138] sm:$0xff] %v821
        %1030 = vst [vmem:[%s190 + $0x140] sm:$0xff] %v822
        %1031 = vst [vmem:[%s190 + $0x148] sm:$0xff] %v823
        %1032 = vst [vmem:[%s190 + $0x150] sm:$0xff] %v824
        %1033 = vst [vmem:[%s190 + $0x158] sm:$0xff] %v825
        %1034 = vst [vmem:[%s190 + $0x160] sm:$0xff] %v826
        %1035 = vst [vmem:[%s190 + $0x168] sm:$0xff] %v827
        %1036 = vst [vmem:[%s190 + $0x170] sm:$0xff] %v828
        %1037 = vst [vmem:[%s190 + $0x178] sm:$0xff] %v829
        %1038 = vst [vmem:[%s190 + $0x180] sm:$0xff] %v846
        %1039 = vst [vmem:[%s190 + $0x188] sm:$0xff] %v847
        %1040 = vst [vmem:[%s190 + $0x190] sm:$0xff] %v848
        %1041 = vst [vmem:[%s190 + $0x198] sm:$0xff] %v849
        %1042 = vst [vmem:[%s190 + $0x1a0] sm:$0xff] %v850
        %1043 = vst [vmem:[%s190 + $0x1a8] sm:$0xff] %v851
        %1044 = vst [vmem:[%s190 + $0x1b0] sm:$0xff] %v852
        %1045 = vst [vmem:[%s190 + $0x1b8] sm:$0xff] %v853
        %1046 = vst [vmem:[%s190 + $0x1c0] sm:$0xff] %v854
        %1047 = vst [vmem:[%s190 + $0x1c8] sm:$0xff] %v855
        %1048 = vst [vmem:[%s190 + $0x1d0] sm:$0xff] %v856
        %1049 = vst [vmem:[%s190 + $0x1d8] sm:$0xff] %v857
        %1050 = vst [vmem:[%s190 + $0x1e0] sm:$0xff] %v858
        %1051 = vst [vmem:[%s190 + $0x1e8] sm:$0xff] %v859
        %1052 = vst [vmem:[%s190 + $0x1f0] sm:$0xff] %v860
        %1053 = vst [vmem:[%s190 + $0x1f8] sm:$0xff] %v861
        %1054 = vst [vmem:[%s190 + $0x200] sm:$0xff] %v878
        %1055 = vst [vmem:[%s190 + $0x208] sm:$0xff] %v879
        %1056 = vst [vmem:[%s190 + $0x210] sm:$0xff] %v880
        %1057 = vst [vmem:[%s190 + $0x218] sm:$0xff] %v881
        %1058 = vst [vmem:[%s190 + $0x220] sm:$0xff] %v882
        %1059 = vst [vmem:[%s190 + $0x228] sm:$0xff] %v883
        %1060 = vst [vmem:[%s190 + $0x230] sm:$0xff] %v884
        %1061 = vst [vmem:[%s190 + $0x238] sm:$0xff] %v885
        %1062 = vst [vmem:[%s190 + $0x240] sm:$0xff] %v886
        %1063 = vst [vmem:[%s190 + $0x248] sm:$0xff] %v887
        %1064 = vst [vmem:[%s190 + $0x250] sm:$0xff] %v888
        %1065 = vst [vmem:[%s190 + $0x258] sm:$0xff] %v889
        %1066 = vst [vmem:[%s190 + $0x260] sm:$0xff] %v890
        %1067 = vst [vmem:[%s190 + $0x268] sm:$0xff] %v891
        %1068 = vst [vmem:[%s190 + $0x270] sm:$0xff] %v892
        %1069 = vst [vmem:[%s190 + $0x278] sm:$0xff] %v893
        %1070 = vst [vmem:[%s190 + $0x280] sm:$0xff] %v910
        %1071 = vst [vmem:[%s190 + $0x288] sm:$0xff] %v911
        %1072 = vst [vmem:[%s190 + $0x290] sm:$0xff] %v912
        %1073 = vst [vmem:[%s190 + $0x298] sm:$0xff] %v913
        %1074 = vst [vmem:[%s190 + $0x2a0] sm:$0xff] %v914
        %1075 = vst [vmem:[%s190 + $0x2a8] sm:$0xff] %v915
        %1076 = vst [vmem:[%s190 + $0x2b0] sm:$0xff] %v916
        %1077 = vst [vmem:[%s190 + $0x2b8] sm:$0xff] %v917
        %1078 = vst [vmem:[%s190 + $0x2c0] sm:$0xff] %v918
        %1079 = vst [vmem:[%s190 + $0x2c8] sm:$0xff] %v919
        %1080 = vst [vmem:[%s190 + $0x2d0] sm:$0xff] %v920
        %1081 = vst [vmem:[%s190 + $0x2d8] sm:$0xff] %v921
        %1082 = vst [vmem:[%s190 + $0x2e0] sm:$0xff] %v922
        %1083 = vst [vmem:[%s190 + $0x2e8] sm:$0xff] %v923
        %1084 = vst [vmem:[%s190 + $0x2f0] sm:$0xff] %v924
        %1085 = vst [vmem:[%s190 + $0x2f8] sm:$0xff] %v925
        %1086 = vst [vmem:[%s190 + $0x300] sm:$0xff] %v942
        %1087 = vst [vmem:[%s190 + $0x308] sm:$0xff] %v943
        %1088 = vst [vmem:[%s190 + $0x310] sm:$0xff] %v944
        %1089 = vst [vmem:[%s190 + $0x318] sm:$0xff] %v945
        %1090 = vst [vmem:[%s190 + $0x320] sm:$0xff] %v946
        %1091 = vst [vmem:[%s190 + $0x328] sm:$0xff] %v947
        %1092 = vst [vmem:[%s190 + $0x330] sm:$0xff] %v948
        %1093 = vst [vmem:[%s190 + $0x338] sm:$0xff] %v949
        %1094 = vst [vmem:[%s190 + $0x340] sm:$0xff] %v950
        %1095 = vst [vmem:[%s190 + $0x348] sm:$0xff] %v951
        %1096 = vst [vmem:[%s190 + $0x350] sm:$0xff] %v952
        %1097 = vst [vmem:[%s190 + $0x358] sm:$0xff] %v953
        %1098 = vst [vmem:[%s190 + $0x360] sm:$0xff] %v954
        %1099 = vst [vmem:[%s190 + $0x368] sm:$0xff] %v955
        %1100 = vst [vmem:[%s190 + $0x370] sm:$0xff] %v956
        %1101 = vst [vmem:[%s190 + $0x378] sm:$0xff] %v957
        %1102 = vst [vmem:[%s190 + $0x380] sm:$0xff] %v974
        %1103 = vst [vmem:[%s190 + $0x388] sm:$0xff] %v975
        %1104 = vst [vmem:[%s190 + $0x390] sm:$0xff] %v976
        %1105 = vst [vmem:[%s190 + $0x398] sm:$0xff] %v977
        %1106 = vst [vmem:[%s190 + $0x3a0] sm:$0xff] %v978
        %1107 = vst [vmem:[%s190 + $0x3a8] sm:$0xff] %v979
        %1108 = vst [vmem:[%s190 + $0x3b0] sm:$0xff] %v980
        %1109 = vst [vmem:[%s190 + $0x3b8] sm:$0xff] %v981
        %1110 = vst [vmem:[%s190 + $0x3c0] sm:$0xff] %v982
        %1111 = vst [vmem:[%s190 + $0x3c8] sm:$0xff] %v983
        %1112 = vst [vmem:[%s190 + $0x3d0] sm:$0xff] %v984
        %1113 = vst [vmem:[%s190 + $0x3d8] sm:$0xff] %v985
        %1114 = vst [vmem:[%s190 + $0x3e0] sm:$0xff] %v986
        %1115 = vst [vmem:[%s190 + $0x3e8] sm:$0xff] %v987
        %1116 = vst [vmem:[%s190 + $0x3f0] sm:$0xff] %v988
        %1117 = vst [vmem:[%s190 + $0x3f8] sm:$0xff] %v989
        %s1118 = sand.u32 %s109, 1
        %s1119 = scalar_lea.sflag [#allocation3], %s1118
        %s1120 = sand.u32 %s109, 1
        %s1121 = smul.addr %s1120, 1024
        %s1122 = scalar_lea.vmem [#allocation2], %s1121
        // Predicated region
        $region33: #{_lambda_.19} parent=31 // pred_check
          %p1123 = pneg %p119
        $region34: #{_lambda_.19} parent=31 // pred_check_branch
          %1125 = sbr.rel (%p1123) target = $region36
        $region35: #{_lambda_.19} parent=31 // pred_region
          %s1127 = ssub.s32 16384, 16384
          %1128 = vsyncadd %s1119, %s1127
          %s1129 = smul.addr %s21, 128
          %s1130 = sadd.s32 %s22, %s1129
          %s1131 = smul.addr %s1130, 128
          %s1132 = scalar_lea.hbm %s3, %s1131
          %s1133 = sshll.u32 %s1122, 4
          %s1134 = int_to_ptr.vmem [resolvable:$true] %s1133
          %1139 = dma.vmem_to_hbm [thread:$0]  %s1134, 16384, %s1132, %s1119, 128, 128, 8
        $region36: #{_lambda_.19} parent=31 // pred_fallthru
          _
      $region32: #{_lambda_.19} parent=5 // pred_fallthru
        _
      %p1140 = scmp.le.s32.totalorder 2, %s12
      // Predicated region
      $region37: #{_lambda_.19} parent=5 // pred_check
        %p1141 = pneg %p1140
      $region38: #{_lambda_.19} parent=5 // pred_check_branch
        %1143 = sbr.rel (%p1141) target = $region40
      $region39: #{_lambda_.19} parent=5 // pred_region
        %s1144 = ssub.s32 %s12, 2
        // Predicated region
        $region41: #{_lambda_.19} parent=39 // pred_check
          %p1145 = pneg %p125
        $region42: #{_lambda_.19} parent=39 // pred_check_branch
          %1147 = sbr.rel (%p1145) target = $region44
        $region43: #{_lambda_.19} parent=39 // pred_region
          %s1148 = sand.u32 %s110, 1
          %s1149 = scalar_lea.sflag [#allocation3], %s1148
          %s1150 = sand.u32 %s110, 1
          %s1151 = smul.addr %s1150, 1024
          %s1152 = scalar_lea.vmem [#allocation2], %s1151
          %1153 = dma.done %s1149, 16384
        $region44: #{_lambda_.19} parent=39 // pred_fallthru
          _
      $region40: #{_lambda_.19} parent=5 // pred_fallthru
        _
    $region6: #{_lambda_.19} parent=1 // loop_footer
      %s16 = sadd.s32 1, %s12
    $region7: #{_lambda_.19} parent=1 // loop_footer_branch
      %11 = sbr.rel target = $region3
    $region8: #{_lambda_.19} parent=1 // loop_exit
      _
    %1154 = vsyncpa [#allocation3], 1
    %s1155 = scalar_lea.sflag [#allocation3], 1
    %1156 = vsyncpa %s1155, 1

// kernel: _lambda_.18
$region0: #{_lambda_.18}
  #allocation0 [shape = 'u32[]', space=smem, size = 0x4, offset = 0x4, fixed_abs, tag = 'smem constant byte address 0x4 - core index']
  #allocation1 [shape = 'u32[144,128]{1,0:T(1,128)}', space=vmem, size = 0x12000, scoped, tag = 'internal scratch']
  %s0 = inlined_call_operand.vmem [shape: bf16[1,256,128], index: 0, kind: input, shape index: {}]
  %s1 = inlined_call_operand.vmem [shape: bf16[1,128,1024], index: 1, kind: input, shape index: {}]
  %s2 = inlined_call_operand.vmem [shape: f32[1,128], index: 2, kind: input, shape index: {}]
  %s3 = inlined_call_operand.vmem [shape: f32[1,128], index: 3, kind: input, shape index: {}]
  %s4 = inlined_call_operand.vmem [shape: bf16[1,256,1024], index: 4, kind: output, shape index: {0}]
  %s5 = inlined_call_operand.vmem [shape: f32[1,1,2,1024], index: 5, kind: output, shape index: {1}]
  %6 = xla_tuple %s4, %s5
  %s7 = sld [smem:[#allocation0]]
  $region34: #{_lambda_.18} parent=0
    _
  %s9 = ssub.s32 1, %s7
  %s10 = scalar_select 0, %s9, %s7
  // Predicated region
  $region2: #{_lambda_.18} parent=0 // pred_check
    _
  $region3: #{_lambda_.18} parent=0 // pred_check_branch
    %12 = sbr.rel (0) target = $region5
  $region4: #{_lambda_.18} parent=0 // pred_region
    _
  $region5: #{_lambda_.18} parent=0 // pred_fallthru
    _
  // Predicated region
  $region6: #{_lambda_.18} parent=0 // pred_check
    _
  $region7: #{_lambda_.18} parent=0 // pred_check_branch
    %14 = sbr.rel (0) target = $region9
  $region8: #{_lambda_.18} parent=0 // pred_region
    _
  $region9: #{_lambda_.18} parent=0 // pred_fallthru
    _
  // Predicated region
  $region10: #{_lambda_.18} parent=0 // pred_check
    _
  $region11: #{_lambda_.18} parent=0 // pred_check_branch
    %16 = sbr.rel (0) target = $region13
  $region12: #{_lambda_.18} parent=0 // pred_region
    _
  $region13: #{_lambda_.18} parent=0 // pred_fallthru
    _
  // Predicated region
  $region14: #{_lambda_.18} parent=0 // pred_check
    _
  $region15: #{_lambda_.18} parent=0 // pred_check_branch
    %18 = sbr.rel (0) target = $region17
  $region16: #{_lambda_.18} parent=0 // pred_region
    _
  $region17: #{_lambda_.18} parent=0 // pred_fallthru
    _
  %v20 = vld [vmem:[%s0] sm:$0xf]
  %v21 = vld [vmem:[%s0 + $0x4] sm:$0xf]
  %v22 = vld [vmem:[%s0 + $0x8] sm:$0xf]
  %v23 = vld [vmem:[%s0 + $0xc] sm:$0xf]
  %v24 = vld [vmem:[%s0 + $0x10] sm:$0xf]
  %v25 = vld [vmem:[%s0 + $0x14] sm:$0xf]
  %v26 = vld [vmem:[%s0 + $0x18] sm:$0xf]
  %v27 = vld [vmem:[%s0 + $0x1c] sm:$0xf]
  %v28 = vld [vmem:[%s0 + $0x20] sm:$0xf]
  %v29 = vld [vmem:[%s0 + $0x24] sm:$0xf]
  %v30 = vld [vmem:[%s0 + $0x28] sm:$0xf]
  %v31 = vld [vmem:[%s0 + $0x2c] sm:$0xf]
  %v32 = vld [vmem:[%s0 + $0x30] sm:$0xf]
  %v33 = vld [vmem:[%s0 + $0x34] sm:$0xf]
  %v34 = vld [vmem:[%s0 + $0x38] sm:$0xf]
  %v35 = vld [vmem:[%s0 + $0x3c] sm:$0xf]
  %v36 = vld [vmem:[%s0 + $0x40] sm:$0xf]
  %v37 = vld [vmem:[%s0 + $0x44] sm:$0xf]
  %v38 = vld [vmem:[%s0 + $0x48] sm:$0xf]
  %v39 = vld [vmem:[%s0 + $0x4c] sm:$0xf]
  %v40 = vld [vmem:[%s0 + $0x50] sm:$0xf]
  %v41 = vld [vmem:[%s0 + $0x54] sm:$0xf]
  %v42 = vld [vmem:[%s0 + $0x58] sm:$0xf]
  %v43 = vld [vmem:[%s0 + $0x5c] sm:$0xf]
  %v44 = vld [vmem:[%s0 + $0x60] sm:$0xf]
  %v45 = vld [vmem:[%s0 + $0x64] sm:$0xf]
  %v46 = vld [vmem:[%s0 + $0x68] sm:$0xf]
  %v47 = vld [vmem:[%s0 + $0x6c] sm:$0xf]
  %v48 = vld [vmem:[%s0 + $0x70] sm:$0xf]
  %v49 = vld [vmem:[%s0 + $0x74] sm:$0xf]
  %v50 = vld [vmem:[%s0 + $0x78] sm:$0xf]
  %v51 = vld [vmem:[%s0 + $0x7c] sm:$0xf]
  %v52 = vunpack.c.l.bf16 %v20
  %v53 = vunpack.c.l.bf16 %v21
  %v54 = vunpack.c.l.bf16 %v22
  %v55 = vunpack.c.l.bf16 %v23
  %v56 = vunpack.c.l.bf16 %v24
  %v57 = vunpack.c.l.bf16 %v25
  %v58 = vunpack.c.l.bf16 %v26
  %v59 = vunpack.c.l.bf16 %v27
  %v60 = vunpack.c.l.bf16 %v28
  %v61 = vunpack.c.l.bf16 %v29
  %v62 = vunpack.c.l.bf16 %v30
  %v63 = vunpack.c.l.bf16 %v31
  %v64 = vunpack.c.l.bf16 %v32
  %v65 = vunpack.c.l.bf16 %v33
  %v66 = vunpack.c.l.bf16 %v34
  %v67 = vunpack.c.l.bf16 %v35
  %v68 = vunpack.c.l.bf16 %v36
  %v69 = vunpack.c.l.bf16 %v37
  %v70 = vunpack.c.l.bf16 %v38
  %v71 = vunpack.c.l.bf16 %v39
  %v72 = vunpack.c.l.bf16 %v40
  %v73 = vunpack.c.l.bf16 %v41
  %v74 = vunpack.c.l.bf16 %v42
  %v75 = vunpack.c.l.bf16 %v43
  %v76 = vunpack.c.l.bf16 %v44
  %v77 = vunpack.c.l.bf16 %v45
  %v78 = vunpack.c.l.bf16 %v46
  %v79 = vunpack.c.l.bf16 %v47
  %v80 = vunpack.c.l.bf16 %v48
  %v81 = vunpack.c.l.bf16 %v49
  %v82 = vunpack.c.l.bf16 %v50
  %v83 = vunpack.c.l.bf16 %v51
  %v84 = vld [vmem:[%s2] sm:$0x1]
  %v86 = vlaneseq
  %v87 = vshrl.u32 %v86, 7
  %v88 = vsub.s32 0, %v87
  %v89 = vrot.slane %v84, %v88
  %v91 = vmul.f32 %v52, %v89
  %v92 = vmul.f32 %v53, %v89
  %v93 = vmul.f32 %v54, %v89
  %v94 = vmul.f32 %v55, %v89
  %v95 = vmul.f32 %v56, %v89
  %v96 = vmul.f32 %v57, %v89
  %v97 = vmul.f32 %v58, %v89
  %v98 = vmul.f32 %v59, %v89
  %v99 = vmul.f32 %v60, %v89
  %v100 = vmul.f32 %v61, %v89
  %v101 = vmul.f32 %v62, %v89
  %v102 = vmul.f32 %v63, %v89
  %v103 = vmul.f32 %v64, %v89
  %v104 = vmul.f32 %v65, %v89
  %v105 = vmul.f32 %v66, %v89
  %v106 = vmul.f32 %v67, %v89
  %v107 = vmul.f32 %v68, %v89
  %v108 = vmul.f32 %v69, %v89
  %v109 = vmul.f32 %v70, %v89
  %v110 = vmul.f32 %v71, %v89
  %v111 = vmul.f32 %v72, %v89
  %v112 = vmul.f32 %v73, %v89
  %v113 = vmul.f32 %v74, %v89
  %v114 = vmul.f32 %v75, %v89
  %v115 = vmul.f32 %v76, %v89
  %v116 = vmul.f32 %v77, %v89
  %v117 = vmul.f32 %v78, %v89
  %v118 = vmul.f32 %v79, %v89
  %v119 = vmul.f32 %v80, %v89
  %v120 = vmul.f32 %v81, %v89
  %v121 = vmul.f32 %v82, %v89
  %v122 = vmul.f32 %v83, %v89
  %v123 = vld [vmem:[%s3] sm:$0x1]
  %v125 = vlaneseq
  %v126 = vshrl.u32 %v125, 7
  %v127 = vsub.s32 0, %v126
  %v128 = vrot.slane %v123, %v127
  %v130 = vadd.f32 %v91, %v128
  %v131 = vadd.f32 %v92, %v128
  %v132 = vadd.f32 %v93, %v128
  %v133 = vadd.f32 %v94, %v128
  %v134 = vadd.f32 %v95, %v128
  %v135 = vadd.f32 %v96, %v128
  %v136 = vadd.f32 %v97, %v128
  %v137 = vadd.f32 %v98, %v128
  %v138 = vadd.f32 %v99, %v128
  %v139 = vadd.f32 %v100, %v128
  %v140 = vadd.f32 %v101, %v128
  %v141 = vadd.f32 %v102, %v128
  %v142 = vadd.f32 %v103, %v128
  %v143 = vadd.f32 %v104, %v128
  %v144 = vadd.f32 %v105, %v128
  %v145 = vadd.f32 %v106, %v128
  %v146 = vadd.f32 %v107, %v128
  %v147 = vadd.f32 %v108, %v128
  %v148 = vadd.f32 %v109, %v128
  %v149 = vadd.f32 %v110, %v128
  %v150 = vadd.f32 %v111, %v128
  %v151 = vadd.f32 %v112, %v128
  %v152 = vadd.f32 %v113, %v128
  %v153 = vadd.f32 %v114, %v128
  %v154 = vadd.f32 %v115, %v128
  %v155 = vadd.f32 %v116, %v128
  %v156 = vadd.f32 %v117, %v128
  %v157 = vadd.f32 %v118, %v128
  %v158 = vadd.f32 %v119, %v128
  %v159 = vadd.f32 %v120, %v128
  %v160 = vadd.f32 %v121, %v128
  %v161 = vadd.f32 %v122, %v128
  %v162 = vmax.f32 %v130, 0.0
  %v163 = vmax.f32 %v131, 0.0
  %v164 = vmax.f32 %v132, 0.0
  %v165 = vmax.f32 %v133, 0.0
  %v166 = vmax.f32 %v134, 0.0
  %v167 = vmax.f32 %v135, 0.0
  %v168 = vmax.f32 %v136, 0.0
  %v169 = vmax.f32 %v137, 0.0
  %v170 = vmax.f32 %v138, 0.0
  %v171 = vmax.f32 %v139, 0.0
  %v172 = vmax.f32 %v140, 0.0
  %v173 = vmax.f32 %v141, 0.0
  %v174 = vmax.f32 %v142, 0.0
  %v175 = vmax.f32 %v143, 0.0
  %v176 = vmax.f32 %v144, 0.0
  %v177 = vmax.f32 %v145, 0.0
  %v178 = vmax.f32 %v146, 0.0
  %v179 = vmax.f32 %v147, 0.0
  %v180 = vmax.f32 %v148, 0.0
  %v181 = vmax.f32 %v149, 0.0
  %v182 = vmax.f32 %v150, 0.0
  %v183 = vmax.f32 %v151, 0.0
  %v184 = vmax.f32 %v152, 0.0
  %v185 = vmax.f32 %v153, 0.0
  %v186 = vmax.f32 %v154, 0.0
  %v187 = vmax.f32 %v155, 0.0
  %v188 = vmax.f32 %v156, 0.0
  %v189 = vmax.f32 %v157, 0.0
  %v190 = vmax.f32 %v158, 0.0
  %v191 = vmax.f32 %v159, 0.0
  %v192 = vmax.f32 %v160, 0.0
  %v193 = vmax.f32 %v161, 0.0
  %v194 = vpack.c.bf16 %v163, %v162
  %v195 = vpack.c.bf16 %v165, %v164
  %v196 = vpack.c.bf16 %v167, %v166
  %v197 = vpack.c.bf16 %v169, %v168
  %v198 = vpack.c.bf16 %v171, %v170
  %v199 = vpack.c.bf16 %v173, %v172
  %v200 = vpack.c.bf16 %v175, %v174
  %v201 = vpack.c.bf16 %v177, %v176
  %v202 = vpack.c.bf16 %v179, %v178
  %v203 = vpack.c.bf16 %v181, %v180
  %v204 = vpack.c.bf16 %v183, %v182
  %v205 = vpack.c.bf16 %v185, %v184
  %v206 = vpack.c.bf16 %v187, %v186
  %v207 = vpack.c.bf16 %v189, %v188
  %v208 = vpack.c.bf16 %v191, %v190
  %v209 = vpack.c.bf16 %v193, %v192
  %v210 = vld [vmem:[%s1] sm:$0xff]
  %v211 = vld [vmem:[%s1 + $0x8] sm:$0xff]
  %v212 = vld [vmem:[%s1 + $0x10] sm:$0xff]
  %v213 = vld [vmem:[%s1 + $0x18] sm:$0xff]
  %v214 = vld [vmem:[%s1 + $0x20] sm:$0xff]
  %v215 = vld [vmem:[%s1 + $0x28] sm:$0xff]
  %v216 = vld [vmem:[%s1 + $0x30] sm:$0xff]
  %v217 = vld [vmem:[%s1 + $0x38] sm:$0xff]
  %v218 = vld [vmem:[%s1 + $0x40] sm:$0xff]
  %v219 = vld [vmem:[%s1 + $0x48] sm:$0xff]
  %v220 = vld [vmem:[%s1 + $0x50] sm:$0xff]
  %v221 = vld [vmem:[%s1 + $0x58] sm:$0xff]
  %v222 = vld [vmem:[%s1 + $0x60] sm:$0xff]
  %v223 = vld [vmem:[%s1 + $0x68] sm:$0xff]
  %v224 = vld [vmem:[%s1 + $0x70] sm:$0xff]
  %v225 = vld [vmem:[%s1 + $0x78] sm:$0xff]
  %v226 = vld [vmem:[%s1 + $0x80] sm:$0xff]
  %v227 = vld [vmem:[%s1 + $0x88] sm:$0xff]
  %v228 = vld [vmem:[%s1 + $0x90] sm:$0xff]
  %v229 = vld [vmem:[%s1 + $0x98] sm:$0xff]
  %v230 = vld [vmem:[%s1 + $0xa0] sm:$0xff]
  %v231 = vld [vmem:[%s1 + $0xa8] sm:$0xff]
  %v232 = vld [vmem:[%s1 + $0xb0] sm:$0xff]
  %v233 = vld [vmem:[%s1 + $0xb8] sm:$0xff]
  %v234 = vld [vmem:[%s1 + $0xc0] sm:$0xff]
  %v235 = vld [vmem:[%s1 + $0xc8] sm:$0xff]
  %v236 = vld [vmem:[%s1 + $0xd0] sm:$0xff]
  %v237 = vld [vmem:[%s1 + $0xd8] sm:$0xff]
  %v238 = vld [vmem:[%s1 + $0xe0] sm:$0xff]
  %v239 = vld [vmem:[%s1 + $0xe8] sm:$0xff]
  %v240 = vld [vmem:[%s1 + $0xf0] sm:$0xff]
  %v241 = vld [vmem:[%s1 + $0xf8] sm:$0xff]
  %v242 = vld [vmem:[%s1 + $0x100] sm:$0xff]
  %v243 = vld [vmem:[%s1 + $0x108] sm:$0xff]
  %v244 = vld [vmem:[%s1 + $0x110] sm:$0xff]
  %v245 = vld [vmem:[%s1 + $0x118] sm:$0xff]
  %v246 = vld [vmem:[%s1 + $0x120] sm:$0xff]
  %v247 = vld [vmem:[%s1 + $0x128] sm:$0xff]
  %v248 = vld [vmem:[%s1 + $0x130] sm:$0xff]
  %v249 = vld [vmem:[%s1 + $0x138] sm:$0xff]
  %v250 = vld [vmem:[%s1 + $0x140] sm:$0xff]
  %v251 = vld [vmem:[%s1 + $0x148] sm:$0xff]
  %v252 = vld [vmem:[%s1 + $0x150] sm:$0xff]
  %v253 = vld [vmem:[%s1 + $0x158] sm:$0xff]
  %v254 = vld [vmem:[%s1 + $0x160] sm:$0xff]
  %v255 = vld [vmem:[%s1 + $0x168] sm:$0xff]
  %v256 = vld [vmem:[%s1 + $0x170] sm:$0xff]
  %v257 = vld [vmem:[%s1 + $0x178] sm:$0xff]
  %v258 = vld [vmem:[%s1 + $0x180] sm:$0xff]
  %v259 = vld [vmem:[%s1 + $0x188] sm:$0xff]
  %v260 = vld [vmem:[%s1 + $0x190] sm:$0xff]
  %v261 = vld [vmem:[%s1 + $0x198] sm:$0xff]
  %v262 = vld [vmem:[%s1 + $0x1a0] sm:$0xff]
  %v263 = vld [vmem:[%s1 + $0x1a8] sm:$0xff]
  %v264 = vld [vmem:[%s1 + $0x1b0] sm:$0xff]
  %v265 = vld [vmem:[%s1 + $0x1b8] sm:$0xff]
  %v266 = vld [vmem:[%s1 + $0x1c0] sm:$0xff]
  %v267 = vld [vmem:[%s1 + $0x1c8] sm:$0xff]
  %v268 = vld [vmem:[%s1 + $0x1d0] sm:$0xff]
  %v269 = vld [vmem:[%s1 + $0x1d8] sm:$0xff]
  %v270 = vld [vmem:[%s1 + $0x1e0] sm:$0xff]
  %v271 = vld [vmem:[%s1 + $0x1e8] sm:$0xff]
  %v272 = vld [vmem:[%s1 + $0x1f0] sm:$0xff]
  %v273 = vld [vmem:[%s1 + $0x1f8] sm:$0xff]
  %v338 = vunpack.c.l.b16 %v210
  %v339 = vunpack.c.h.b16 %v210
  %v340 = vunpack.c.l.b16 %v211
  %v341 = vunpack.c.h.b16 %v211
  %v342 = vunpack.c.l.b16 %v212
  %v343 = vunpack.c.h.b16 %v212
  %v344 = vunpack.c.l.b16 %v213
  %v345 = vunpack.c.h.b16 %v213
  %v346 = vunpack.c.l.b16 %v214
  %v347 = vunpack.c.h.b16 %v214
  %v348 = vunpack.c.l.b16 %v215
  %v349 = vunpack.c.h.b16 %v215
  %v350 = vunpack.c.l.b16 %v216
  %v351 = vunpack.c.h.b16 %v216
  %v352 = vunpack.c.l.b16 %v217
  %v353 = vunpack.c.h.b16 %v217
  %v354 = vunpack.c.l.b16 %v218
  %v355 = vunpack.c.h.b16 %v218
  %v356 = vunpack.c.l.b16 %v219
  %v357 = vunpack.c.h.b16 %v219
  %v358 = vunpack.c.l.b16 %v220
  %v359 = vunpack.c.h.b16 %v220
  %v360 = vunpack.c.l.b16 %v221
  %v361 = vunpack.c.h.b16 %v221
  %v362 = vunpack.c.l.b16 %v222
  %v363 = vunpack.c.h.b16 %v222
  %v364 = vunpack.c.l.b16 %v223
  %v365 = vunpack.c.h.b16 %v223
  %v366 = vunpack.c.l.b16 %v224
  %v367 = vunpack.c.h.b16 %v224
  %v368 = vunpack.c.l.b16 %v225
  %v369 = vunpack.c.h.b16 %v225
  %v370 = vunpack.c.l.b16 %v226
  %v371 = vunpack.c.h.b16 %v226
  %v372 = vunpack.c.l.b16 %v227
  %v373 = vunpack.c.h.b16 %v227
  %v374 = vunpack.c.l.b16 %v228
  %v375 = vunpack.c.h.b16 %v228
  %v376 = vunpack.c.l.b16 %v229
  %v377 = vunpack.c.h.b16 %v229
  %v378 = vunpack.c.l.b16 %v230
  %v379 = vunpack.c.h.b16 %v230
  %v380 = vunpack.c.l.b16 %v231
  %v381 = vunpack.c.h.b16 %v231
  %v382 = vunpack.c.l.b16 %v232
  %v383 = vunpack.c.h.b16 %v232
  %v384 = vunpack.c.l.b16 %v233
  %v385 = vunpack.c.h.b16 %v233
  %v386 = vunpack.c.l.b16 %v234
  %v387 = vunpack.c.h.b16 %v234
  %v388 = vunpack.c.l.b16 %v235
  %v389 = vunpack.c.h.b16 %v235
  %v390 = vunpack.c.l.b16 %v236
  %v391 = vunpack.c.h.b16 %v236
  %v392 = vunpack.c.l.b16 %v237
  %v393 = vunpack.c.h.b16 %v237
  %v394 = vunpack.c.l.b16 %v238
  %v395 = vunpack.c.h.b16 %v238
  %v396 = vunpack.c.l.b16 %v239
  %v397 = vunpack.c.h.b16 %v239
  %v398 = vunpack.c.l.b16 %v240
  %v399 = vunpack.c.h.b16 %v240
  %v400 = vunpack.c.l.b16 %v241
  %v401 = vunpack.c.h.b16 %v241
  %v402 = vunpack.c.l.b16 %v242
  %v403 = vunpack.c.h.b16 %v242
  %v404 = vunpack.c.l.b16 %v243
  %v405 = vunpack.c.h.b16 %v243
  %v406 = vunpack.c.l.b16 %v244
  %v407 = vunpack.c.h.b16 %v244
  %v408 = vunpack.c.l.b16 %v245
  %v409 = vunpack.c.h.b16 %v245
  %v410 = vunpack.c.l.b16 %v246
  %v411 = vunpack.c.h.b16 %v246
  %v412 = vunpack.c.l.b16 %v247
  %v413 = vunpack.c.h.b16 %v247
  %v414 = vunpack.c.l.b16 %v248
  %v415 = vunpack.c.h.b16 %v248
  %v416 = vunpack.c.l.b16 %v249
  %v417 = vunpack.c.h.b16 %v249
  %v418 = vunpack.c.l.b16 %v250
  %v419 = vunpack.c.h.b16 %v250
  %v420 = vunpack.c.l.b16 %v251
  %v421 = vunpack.c.h.b16 %v251
  %v422 = vunpack.c.l.b16 %v252
  %v423 = vunpack.c.h.b16 %v252
  %v424 = vunpack.c.l.b16 %v253
  %v425 = vunpack.c.h.b16 %v253
  %v426 = vunpack.c.l.b16 %v254
  %v427 = vunpack.c.h.b16 %v254
  %v428 = vunpack.c.l.b16 %v255
  %v429 = vunpack.c.h.b16 %v255
  %v430 = vunpack.c.l.b16 %v256
  %v431 = vunpack.c.h.b16 %v256
  %v432 = vunpack.c.l.b16 %v257
  %v433 = vunpack.c.h.b16 %v257
  %v434 = vunpack.c.l.b16 %v258
  %v435 = vunpack.c.h.b16 %v258
  %v436 = vunpack.c.l.b16 %v259
  %v437 = vunpack.c.h.b16 %v259
  %v438 = vunpack.c.l.b16 %v260
  %v439 = vunpack.c.h.b16 %v260
  %v440 = vunpack.c.l.b16 %v261
  %v441 = vunpack.c.h.b16 %v261
  %v442 = vunpack.c.l.b16 %v262
  %v443 = vunpack.c.h.b16 %v262
  %v444 = vunpack.c.l.b16 %v263
  %v445 = vunpack.c.h.b16 %v263
  %v446 = vunpack.c.l.b16 %v264
  %v447 = vunpack.c.h.b16 %v264
  %v448 = vunpack.c.l.b16 %v265
  %v449 = vunpack.c.h.b16 %v265
  %v450 = vunpack.c.l.b16 %v266
  %v451 = vunpack.c.h.b16 %v266
  %v452 = vunpack.c.l.b16 %v267
  %v453 = vunpack.c.h.b16 %v267
  %v454 = vunpack.c.l.b16 %v268
  %v455 = vunpack.c.h.b16 %v268
  %v456 = vunpack.c.l.b16 %v269
  %v457 = vunpack.c.h.b16 %v269
  %v458 = vunpack.c.l.b16 %v270
  %v459 = vunpack.c.h.b16 %v270
  %v460 = vunpack.c.l.b16 %v271
  %v461 = vunpack.c.h.b16 %v271
  %v462 = vunpack.c.l.b16 %v272
  %v463 = vunpack.c.h.b16 %v272
  %v464 = vunpack.c.l.b16 %v273
  %v465 = vunpack.c.h.b16 %v273
  %v466 = vpack.c.b16 %v346, %v338
  %v467 = vpack.c.b16 %v347, %v339
  %v468 = vpack.c.b16 %v348, %v340
  %v469 = vpack.c.b16 %v349, %v341
  %v470 = vpack.c.b16 %v350, %v342
  %v471 = vpack.c.b16 %v351, %v343
  %v472 = vpack.c.b16 %v352, %v344
  %v473 = vpack.c.b16 %v353, %v345
  %v474 = vpack.c.b16 %v362, %v354
  %v475 = vpack.c.b16 %v363, %v355
  %v476 = vpack.c.b16 %v364, %v356
  %v477 = vpack.c.b16 %v365, %v357
  %v478 = vpack.c.b16 %v366, %v358
  %v479 = vpack.c.b16 %v367, %v359
  %v480 = vpack.c.b16 %v368, %v360
  %v481 = vpack.c.b16 %v369, %v361
  %v482 = vpack.c.b16 %v378, %v370
  %v483 = vpack.c.b16 %v379, %v371
  %v484 = vpack.c.b16 %v380, %v372
  %v485 = vpack.c.b16 %v381, %v373
  %v486 = vpack.c.b16 %v382, %v374
  %v487 = vpack.c.b16 %v383, %v375
  %v488 = vpack.c.b16 %v384, %v376
  %v489 = vpack.c.b16 %v385, %v377
  %v490 = vpack.c.b16 %v394, %v386
  %v491 = vpack.c.b16 %v395, %v387
  %v492 = vpack.c.b16 %v396, %v388
  %v493 = vpack.c.b16 %v397, %v389
  %v494 = vpack.c.b16 %v398, %v390
  %v495 = vpack.c.b16 %v399, %v391
  %v496 = vpack.c.b16 %v400, %v392
  %v497 = vpack.c.b16 %v401, %v393
  %v498 = vpack.c.b16 %v410, %v402
  %v499 = vpack.c.b16 %v411, %v403
  %v500 = vpack.c.b16 %v412, %v404
  %v501 = vpack.c.b16 %v413, %v405
  %v502 = vpack.c.b16 %v414, %v406
  %v503 = vpack.c.b16 %v415, %v407
  %v504 = vpack.c.b16 %v416, %v408
  %v505 = vpack.c.b16 %v417, %v409
  %v506 = vpack.c.b16 %v426, %v418
  %v507 = vpack.c.b16 %v427, %v419
  %v508 = vpack.c.b16 %v428, %v420
  %v509 = vpack.c.b16 %v429, %v421
  %v510 = vpack.c.b16 %v430, %v422
  %v511 = vpack.c.b16 %v431, %v423
  %v512 = vpack.c.b16 %v432, %v424
  %v513 = vpack.c.b16 %v433, %v425
  %v514 = vpack.c.b16 %v442, %v434
  %v515 = vpack.c.b16 %v443, %v435
  %v516 = vpack.c.b16 %v444, %v436
  %v517 = vpack.c.b16 %v445, %v437
  %v518 = vpack.c.b16 %v446, %v438
  %v519 = vpack.c.b16 %v447, %v439
  %v520 = vpack.c.b16 %v448, %v440
  %v521 = vpack.c.b16 %v449, %v441
  %v522 = vpack.c.b16 %v458, %v450
  %v523 = vpack.c.b16 %v459, %v451
  %v524 = vpack.c.b16 %v460, %v452
  %v525 = vpack.c.b16 %v461, %v453
  %v526 = vpack.c.b16 %v462, %v454
  %v527 = vpack.c.b16 %v463, %v455
  %v528 = vpack.c.b16 %v464, %v456
  %v529 = vpack.c.b16 %v465, %v457
  %594 = vmatprep.subr.bf16.mxu0 %v467
  %595 = vmatpush1.bf16.msra.mxu0 %v466
  %596 = vmatprep.subr.bf16.mxu0 %v475
  %597 = vmatpush1.bf16.msra.mxu0 %v474
  %598 = vmatprep.subr.bf16.mxu0 %v483
  %599 = vmatpush1.bf16.msra.mxu0 %v482
  %600 = vmatprep.subr.bf16.mxu0 %v491
  %601 = vmatpush1.bf16.msra.mxu0 %v490
  %602 = vmatprep.subr.bf16.mxu0 %v499
  %603 = vmatpush1.bf16.msra.mxu0 %v498
  %604 = vmatprep.subr.bf16.mxu0 %v507
  %605 = vmatpush1.bf16.msra.mxu0 %v506
  %606 = vmatprep.subr.bf16.mxu0 %v515
  %607 = vmatpush1.bf16.msra.mxu0 %v514
  %608 = vmatprep.subr.bf16.mxu0 %v523
  %609 = vmatpush1.bf16.msra.mxu0 %v522
  %610 = vmatprep.subr.bf16.mxu0 0
  %611 = vmatpush1.bf16.msra.mxu0 0
  %612 = vmatprep.subr.bf16.mxu0 0
  %613 = vmatpush1.bf16.msra.mxu0 0
  %614 = vmatprep.subr.bf16.mxu0 0
  %615 = vmatpush1.bf16.msra.mxu0 0
  %616 = vmatprep.subr.bf16.mxu0 0
  %617 = vmatpush1.bf16.msra.mxu0 0
  %618 = vmatprep.subr.bf16.mxu0 0
  %619 = vmatpush1.bf16.msra.mxu0 0
  %620 = vmatprep.subr.bf16.mxu0 0
  %621 = vmatpush1.bf16.msra.mxu0 0
  %622 = vmatprep.subr.bf16.mxu0 0
  %623 = vmatpush1.bf16.msra.mxu0 0
  %624 = vmatprep.subr.bf16.mxu0 0
  %625 = vmatpush1.bf16.msra.mxu0 0
  %626 = vmatprep.mubr.bf16.mxu0 0
  %627 = vmatmul.mubr.bf16.gmra.mrb[0].mxu0 %v194
  %v628 = vpop.f32.mrb[0].mxu0
  %v629 = vadd.f32 0.0, %v628
  %v630 = vpop.f32.mrb[0].mxu0
  %v631 = vadd.f32 0.0, %v630
  %v632 = vpop.f32.mrb[0].mxu0
  %v633 = vadd.f32 0.0, %v632
  %v634 = vpop.f32.mrb[0].mxu0
  %v635 = vadd.f32 0.0, %v634
  %636 = vmatprep.mubr.bf16.mxu0 0
  %637 = vmatmul.mubr.bf16.gmra.mrb[0].mxu0 %v195
  %v638 = vpop.f32.mrb[0].mxu0
  %v639 = vadd.f32 0.0, %v638
  %v640 = vpop.f32.mrb[0].mxu0
  %v641 = vadd.f32 0.0, %v640
  %v642 = vpop.f32.mrb[0].mxu0
  %v643 = vadd.f32 0.0, %v642
  %v644 = vpop.f32.mrb[0].mxu0
  %v645 = vadd.f32 0.0, %v644
  %646 = vmatprep.mubr.bf16.mxu0 0
  %647 = vmatmul.mubr.bf16.gmra.mrb[0].mxu0 %v196
  %v648 = vpop.f32.mrb[0].mxu0
  %v649 = vadd.f32 0.0, %v648
  %v650 = vpop.f32.mrb[0].mxu0
  %v651 = vadd.f32 0.0, %v650
  %v652 = vpop.f32.mrb[0].mxu0
  %v653 = vadd.f32 0.0, %v652
  %v654 = vpop.f32.mrb[0].mxu0
  %v655 = vadd.f32 0.0, %v654
  %656 = vmatprep.mubr.bf16.mxu0 0
  %657 = vmatmul.mubr.bf16.gmra.mrb[0].mxu0 %v197
  %v658 = vpop.f32.mrb[0].mxu0
  %v659 = vadd.f32 0.0, %v658
  %v660 = vpop.f32.mrb[0].mxu0
  %v661 = vadd.f32 0.0, %v660
  %v662 = vpop.f32.mrb[0].mxu0
  %v663 = vadd.f32 0.0, %v662
  %v664 = vpop.f32.mrb[0].mxu0
  %v665 = vadd.f32 0.0, %v664
  %666 = vmatprep.mubr.bf16.mxu0 0
  %667 = vmatmul.mubr.bf16.gmra.mrb[0].mxu0 %v198
  %v668 = vpop.f32.mrb[0].mxu0
  %v669 = vadd.f32 0.0, %v668
  %v670 = vpop.f32.mrb[0].mxu0
  %v671 = vadd.f32 0.0, %v670
  %v672 = vpop.f32.mrb[0].mxu0
  %v673 = vadd.f32 0.0, %v672
  %v674 = vpop.f32.mrb[0].mxu0
  %v675 = vadd.f32 0.0, %v674
  %676 = vmatprep.mubr.bf16.mxu0 0
  %677 = vmatmul.mubr.bf16.gmra.mrb[0].mxu0 %v199
  %v678 = vpop.f32.mrb[0].mxu0
  %v679 = vadd.f32 0.0, %v678
  %v680 = vpop.f32.mrb[0].mxu0
  %v681 = vadd.f32 0.0, %v680
  %v682 = vpop.f32.mrb[0].mxu0
  %v683 = vadd.f32 0.0, %v682
  %v684 = vpop.f32.mrb[0].mxu0
  %v685 = vadd.f32 0.0, %v684
  %686 = vmatprep.mubr.bf16.mxu0 0
  %687 = vmatmul.mubr.bf16.gmra.mrb[0].mxu0 %v200
  %v688 = vpop.f32.mrb[0].mxu0
  %v689 = vadd.f32 0.0, %v688
  %v690 = vpop.f32.mrb[0].mxu0
  %v691 = vadd.f32 0.0, %v690
  %v692 = vpop.f32.mrb[0].mxu0
  %v693 = vadd.f32 0.0, %v692
  %v694 = vpop.f32.mrb[0].mxu0
  %v695 = vadd.f32 0.0, %v694
  %696 = vmatprep.mubr.bf16.mxu0 0
  %697 = vmatmul.mubr.bf16.gmra.mrb[0].mxu0 %v201
  %v698 = vpop.f32.mrb[0].mxu0
  %v699 = vadd.f32 0.0, %v698
  %v700 = vpop.f32.mrb[0].mxu0
  %v701 = vadd.f32 0.0, %v700
  %v702 = vpop.f32.mrb[0].mxu0
  %v703 = vadd.f32 0.0, %v702
  %v704 = vpop.f32.mrb[0].mxu0
  %v705 = vadd.f32 0.0, %v704
  %706 = vmatprep.mubr.bf16.mxu0 0
  %707 = vmatmul.mubr.bf16.gmra.mrb[0].mxu0 %v202
  %v708 = vpop.f32.mrb[0].mxu0
  %v709 = vadd.f32 0.0, %v708
  %v710 = vpop.f32.mrb[0].mxu0
  %v711 = vadd.f32 0.0, %v710
  %v712 = vpop.f32.mrb[0].mxu0
  %v713 = vadd.f32 0.0, %v712
  %v714 = vpop.f32.mrb[0].mxu0
  %v715 = vadd.f32 0.0, %v714
  %716 = vmatprep.mubr.bf16.mxu0 0
  %717 = vmatmul.mubr.bf16.gmra.mrb[0].mxu0 %v203
  %v718 = vpop.f32.mrb[0].mxu0
  %v719 = vadd.f32 0.0, %v718
  %v720 = vpop.f32.mrb[0].mxu0
  %v721 = vadd.f32 0.0, %v720
  %v722 = vpop.f32.mrb[0].mxu0
  %v723 = vadd.f32 0.0, %v722
  %v724 = vpop.f32.mrb[0].mxu0
  %v725 = vadd.f32 0.0, %v724
  %726 = vmatprep.mubr.bf16.mxu0 0
  %727 = vmatmul.mubr.bf16.gmra.mrb[0].mxu0 %v204
  %v728 = vpop.f32.mrb[0].mxu0
  %v729 = vadd.f32 0.0, %v728
  %v730 = vpop.f32.mrb[0].mxu0
  %v731 = vadd.f32 0.0, %v730
  %v732 = vpop.f32.mrb[0].mxu0
  %v733 = vadd.f32 0.0, %v732
  %v734 = vpop.f32.mrb[0].mxu0
  %v735 = vadd.f32 0.0, %v734
  %736 = vmatprep.mubr.bf16.mxu0 0
  %737 = vmatmul.mubr.bf16.gmra.mrb[0].mxu0 %v205
  %v738 = vpop.f32.mrb[0].mxu0
  %v739 = vadd.f32 0.0, %v738
  %v740 = vpop.f32.mrb[0].mxu0
  %v741 = vadd.f32 0.0, %v740
  %v742 = vpop.f32.mrb[0].mxu0
  %v743 = vadd.f32 0.0, %v742
  %v744 = vpop.f32.mrb[0].mxu0
  %v745 = vadd.f32 0.0, %v744
  %746 = vmatprep.mubr.bf16.mxu0 0
  %747 = vmatmul.mubr.bf16.gmra.mrb[0].mxu0 %v206
  %v748 = vpop.f32.mrb[0].mxu0
  %v749 = vadd.f32 0.0, %v748
  %v750 = vpop.f32.mrb[0].mxu0
  %v751 = vadd.f32 0.0, %v750
  %v752 = vpop.f32.mrb[0].mxu0
  %v753 = vadd.f32 0.0, %v752
  %v754 = vpop.f32.mrb[0].mxu0
  %v755 = vadd.f32 0.0, %v754
  %756 = vmatprep.mubr.bf16.mxu0 0
  %757 = vmatmul.mubr.bf16.gmra.mrb[0].mxu0 %v207
  %v758 = vpop.f32.mrb[0].mxu0
  %v759 = vadd.f32 0.0, %v758
  %v760 = vpop.f32.mrb[0].mxu0
  %v761 = vadd.f32 0.0, %v760
  %v762 = vpop.f32.mrb[0].mxu0
  %v763 = vadd.f32 0.0, %v762
  %v764 = vpop.f32.mrb[0].mxu0
  %v765 = vadd.f32 0.0, %v764
  %766 = vmatprep.mubr.bf16.mxu0 0
  %767 = vmatmul.mubr.bf16.gmra.mrb[0].mxu0 %v208
  %v768 = vpop.f32.mrb[0].mxu0
  %v769 = vadd.f32 0.0, %v768
  %v770 = vpop.f32.mrb[0].mxu0
  %v771 = vadd.f32 0.0, %v770
  %v772 = vpop.f32.mrb[0].mxu0
  %v773 = vadd.f32 0.0, %v772
  %v774 = vpop.f32.mrb[0].mxu0
  %v775 = vadd.f32 0.0, %v774
  %776 = vmatprep.mubr.bf16.mxu0 0
  %777 = vmatmul.mubr.bf16.gmra.mrb[0].mxu0 %v209
  %v778 = vpop.f32.mrb[0].mxu0
  %v779 = vadd.f32 0.0, %v778
  %v780 = vpop.f32.mrb[0].mxu0
  %v781 = vadd.f32 0.0, %v780
  %v782 = vpop.f32.mrb[0].mxu0
  %v783 = vadd.f32 0.0, %v782
  %v784 = vpop.f32.mrb[0].mxu0
  %v785 = vadd.f32 0.0, %v784
  %786 = vdwg.mxu0
  %787 = vmatprep.subr.bf16.mxu0 %v469
  %788 = vmatpush1.bf16.msra.mxu0 %v468
  %789 = vmatprep.subr.bf16.mxu0 %v477
  %790 = vmatpush1.bf16.msra.mxu0 %v476
  %791 = vmatprep.subr.bf16.mxu0 %v485
  %792 = vmatpush1.bf16.msra.mxu0 %v484
  %793 = vmatprep.subr.bf16.mxu0 %v493
  %794 = vmatpush1.bf16.msra.mxu0 %v492
  %795 = vmatprep.subr.bf16.mxu0 %v501
  %796 = vmatpush1.bf16.msra.mxu0 %v500
  %797 = vmatprep.subr.bf16.mxu0 %v509
  %798 = vmatpush1.bf16.msra.mxu0 %v508
  %799 = vmatprep.subr.bf16.mxu0 %v517
  %800 = vmatpush1.bf16.msra.mxu0 %v516
  %801 = vmatprep.subr.bf16.mxu0 %v525
  %802 = vmatpush1.bf16.msra.mxu0 %v524
  %803 = vmatprep.subr.bf16.mxu0 0
  %804 = vmatpush1.bf16.msra.mxu0 0
  %805 = vmatprep.subr.bf16.mxu0 0
  %806 = vmatpush1.bf16.msra.mxu0 0
  %807 = vmatprep.subr.bf16.mxu0 0
  %808 = vmatpush1.bf16.msra.mxu0 0
  %809 = vmatprep.subr.bf16.mxu0 0
  %810 = vmatpush1.bf16.msra.mxu0 0
  %811 = vmatprep.subr.bf16.mxu0 0
  %812 = vmatpush1.bf16.msra.mxu0 0
  %813 = vmatprep.subr.bf16.mxu0 0
  %814 = vmatpush1.bf16.msra.mxu0 0
  %815 = vmatprep.subr.bf16.mxu0 0
  %816 = vmatpush1.bf16.msra.mxu0 0
  %817 = vmatprep.subr.bf16.mxu0 0
  %818 = vmatpush1.bf16.msra.mxu0 0
  %819 = vmatprep.mubr.bf16.mxu0 0
  %820 = vmatmul.mubr.bf16.gmra.mrb[0].mxu0 %v194
  %v821 = vpop.f32.mrb[0].mxu0
  %v822 = vadd.f32 0.0, %v821
  %v823 = vpop.f32.mrb[0].mxu0
  %v824 = vadd.f32 0.0, %v823
  %v825 = vpop.f32.mrb[0].mxu0
  %v826 = vadd.f32 0.0, %v825
  %v827 = vpop.f32.mrb[0].mxu0
  %v828 = vadd.f32 0.0, %v827
  %829 = vmatprep.mubr.bf16.mxu0 0
  %830 = vmatmul.mubr.bf16.gmra.mrb[0].mxu0 %v195
  %v831 = vpop.f32.mrb[0].mxu0
  %v832 = vadd.f32 0.0, %v831
  %v833 = vpop.f32.mrb[0].mxu0
  %v834 = vadd.f32 0.0, %v833
  %v835 = vpop.f32.mrb[0].mxu0
  %v836 = vadd.f32 0.0, %v835
  %v837 = vpop.f32.mrb[0].mxu0
  %v838 = vadd.f32 0.0, %v837
  %839 = vmatprep.mubr.bf16.mxu0 0
  %840 = vmatmul.mubr.bf16.gmra.mrb[0].mxu0 %v196
  %v841 = vpop.f32.mrb[0].mxu0
  %v842 = vadd.f32 0.0, %v841
  %v843 = vpop.f32.mrb[0].mxu0
  %v844 = vadd.f32 0.0, %v843
  %v845 = vpop.f32.mrb[0].mxu0
  %v846 = vadd.f32 0.0, %v845
  %v847 = vpop.f32.mrb[0].mxu0
  %v848 = vadd.f32 0.0, %v847
  %849 = vmatprep.mubr.bf16.mxu0 0
  %850 = vmatmul.mubr.bf16.gmra.mrb[0].mxu0 %v197
  %v851 = vpop.f32.mrb[0].mxu0
  %v852 = vadd.f32 0.0, %v851
  %v853 = vpop.f32.mrb[0].mxu0
  %v854 = vadd.f32 0.0, %v853
  %v855 = vpop.f32.mrb[0].mxu0
  %v856 = vadd.f32 0.0, %v855
  %v857 = vpop.f32.mrb[0].mxu0
  %v858 = vadd.f32 0.0, %v857
  %859 = vmatprep.mubr.bf16.mxu0 0
  %860 = vmatmul.mubr.bf16.gmra.mrb[0].mxu0 %v198
  %v861 = vpop.f32.mrb[0].mxu0
  %v862 = vadd.f32 0.0, %v861
  %v863 = vpop.f32.mrb[0].mxu0
  %v864 = vadd.f32 0.0, %v863
  %v865 = vpop.f32.mrb[0].mxu0
  %v866 = vadd.f32 0.0, %v865
  %v867 = vpop.f32.mrb[0].mxu0
  %v868 = vadd.f32 0.0, %v867
  %869 = vmatprep.mubr.bf16.mxu0 0
  %870 = vmatmul.mubr.bf16.gmra.mrb[0].mxu0 %v199
  %v871 = vpop.f32.mrb[0].mxu0
  %v872 = vadd.f32 0.0, %v871
  %v873 = vpop.f32.mrb[0].mxu0
  %v874 = vadd.f32 0.0, %v873
  %v875 = vpop.f32.mrb[0].mxu0
  %v876 = vadd.f32 0.0, %v875
  %v877 = vpop.f32.mrb[0].mxu0
  %v878 = vadd.f32 0.0, %v877
  %879 = vmatprep.mubr.bf16.mxu0 0
  %880 = vmatmul.mubr.bf16.gmra.mrb[0].mxu0 %v200
  %v881 = vpop.f32.mrb[0].mxu0
  %v882 = vadd.f32 0.0, %v881
  %v883 = vpop.f32.mrb[0].mxu0
  %v884 = vadd.f32 0.0, %v883
  %v885 = vpop.f32.mrb[0].mxu0
  %v886 = vadd.f32 0.0, %v885
  %v887 = vpop.f32.mrb[0].mxu0
  %v888 = vadd.f32 0.0, %v887
  %889 = vmatprep.mubr.bf16.mxu0 0
  %890 = vmatmul.mubr.bf16.gmra.mrb[0].mxu0 %v201
  %v891 = vpop.f32.mrb[0].mxu0
  %v892 = vadd.f32 0.0, %v891
  %v893 = vpop.f32.mrb[0].mxu0
  %v894 = vadd.f32 0.0, %v893
  %v895 = vpop.f32.mrb[0].mxu0
  %v896 = vadd.f32 0.0, %v895
  %v897 = vpop.f32.mrb[0].mxu0
  %v898 = vadd.f32 0.0, %v897
  %899 = vmatprep.mubr.bf16.mxu0 0
  %900 = vmatmul.mubr.bf16.gmra.mrb[0].mxu0 %v202
  %v901 = vpop.f32.mrb[0].mxu0
  %v902 = vadd.f32 0.0, %v901
  %v903 = vpop.f32.mrb[0].mxu0
  %v904 = vadd.f32 0.0, %v903
  %v905 = vpop.f32.mrb[0].mxu0
  %v906 = vadd.f32 0.0, %v905
  %v907 = vpop.f32.mrb[0].mxu0
  %v908 = vadd.f32 0.0, %v907
  %909 = vmatprep.mubr.bf16.mxu0 0
  %910 = vmatmul.mubr.bf16.gmra.mrb[0].mxu0 %v203
  %v911 = vpop.f32.mrb[0].mxu0
  %v912 = vadd.f32 0.0, %v911
  %v913 = vpop.f32.mrb[0].mxu0
  %v914 = vadd.f32 0.0, %v913
  %v915 = vpop.f32.mrb[0].mxu0
  %v916 = vadd.f32 0.0, %v915
  %v917 = vpop.f32.mrb[0].mxu0
  %v918 = vadd.f32 0.0, %v917
  %919 = vmatprep.mubr.bf16.mxu0 0
  %920 = vmatmul.mubr.bf16.gmra.mrb[0].mxu0 %v204
  %v921 = vpop.f32.mrb[0].mxu0
  %v922 = vadd.f32 0.0, %v921
  %v923 = vpop.f32.mrb[0].mxu0
  %v924 = vadd.f32 0.0, %v923
  %v925 = vpop.f32.mrb[0].mxu0
  %v926 = vadd.f32 0.0, %v925
  %v927 = vpop.f32.mrb[0].mxu0
  %v928 = vadd.f32 0.0, %v927
  %929 = vmatprep.mubr.bf16.mxu0 0
  %930 = vmatmul.mubr.bf16.gmra.mrb[0].mxu0 %v205
  %v931 = vpop.f32.mrb[0].mxu0
  %v932 = vadd.f32 0.0, %v931
  %v933 = vpop.f32.mrb[0].mxu0
  %v934 = vadd.f32 0.0, %v933
  %v935 = vpop.f32.mrb[0].mxu0
  %v936 = vadd.f32 0.0, %v935
  %v937 = vpop.f32.mrb[0].mxu0
  %v938 = vadd.f32 0.0, %v937
  %939 = vmatprep.mubr.bf16.mxu0 0
  %940 = vmatmul.mubr.bf16.gmra.mrb[0].mxu0 %v206
  %v941 = vpop.f32.mrb[0].mxu0
  %v942 = vadd.f32 0.0, %v941
  %v943 = vpop.f32.mrb[0].mxu0
  %v944 = vadd.f32 0.0, %v943
  %v945 = vpop.f32.mrb[0].mxu0
  %v946 = vadd.f32 0.0, %v945
  %v947 = vpop.f32.mrb[0].mxu0
  %v948 = vadd.f32 0.0, %v947
  %949 = vmatprep.mubr.bf16.mxu0 0
  %950 = vmatmul.mubr.bf16.gmra.mrb[0].mxu0 %v207
  %v951 = vpop.f32.mrb[0].mxu0
  %v952 = vadd.f32 0.0, %v951
  %v953 = vpop.f32.mrb[0].mxu0
  %v954 = vadd.f32 0.0, %v953
  %v955 = vpop.f32.mrb[0].mxu0
  %v956 = vadd.f32 0.0, %v955
  %v957 = vpop.f32.mrb[0].mxu0
  %v958 = vadd.f32 0.0, %v957
  %959 = vmatprep.mubr.bf16.mxu0 0
  %960 = vmatmul.mubr.bf16.gmra.mrb[0].mxu0 %v208
  %v961 = vpop.f32.mrb[0].mxu0
  %v962 = vadd.f32 0.0, %v961
  %v963 = vpop.f32.mrb[0].mxu0
  %v964 = vadd.f32 0.0, %v963
  %v965 = vpop.f32.mrb[0].mxu0
  %v966 = vadd.f32 0.0, %v965
  %v967 = vpop.f32.mrb[0].mxu0
  %v968 = vadd.f32 0.0, %v967
  %969 = vmatprep.mubr.bf16.mxu0 0
  %970 = vmatmul.mubr.bf16.gmra.mrb[0].mxu0 %v209
  %v971 = vpop.f32.mrb[0].mxu0
  %v972 = vadd.f32 0.0, %v971
  %v973 = vpop.f32.mrb[0].mxu0
  %v974 = vadd.f32 0.0, %v973
  %v975 = vpop.f32.mrb[0].mxu0
  %v976 = vadd.f32 0.0, %v975
  %v977 = vpop.f32.mrb[0].mxu0
  %v978 = vadd.f32 0.0, %v977
  %979 = vdwg.mxu0
  %980 = vmatprep.subr.bf16.mxu0 %v471
  %981 = vmatpush1.bf16.msra.mxu0 %v470
  %982 = vmatprep.subr.bf16.mxu0 %v479
  %983 = vmatpush1.bf16.msra.mxu0 %v478
  %984 = vmatprep.subr.bf16.mxu0 %v487
  %985 = vmatpush1.bf16.msra.mxu0 %v486
  %986 = vmatprep.subr.bf16.mxu0 %v495
  %987 = vmatpush1.bf16.msra.mxu0 %v494
  %988 = vmatprep.subr.bf16.mxu0 %v503
  %989 = vmatpush1.bf16.msra.mxu0 %v502
  %990 = vmatprep.subr.bf16.mxu0 %v511
  %991 = vmatpush1.bf16.msra.mxu0 %v510
  %992 = vmatprep.subr.bf16.mxu0 %v519
  %993 = vmatpush1.bf16.msra.mxu0 %v518
  %994 = vmatprep.subr.bf16.mxu0 %v527
  %995 = vmatpush1.bf16.msra.mxu0 %v526
  %996 = vmatprep.subr.bf16.mxu0 0
  %997 = vmatpush1.bf16.msra.mxu0 0
  %998 = vmatprep.subr.bf16.mxu0 0
  %999 = vmatpush1.bf16.msra.mxu0 0
  %1000 = vmatprep.subr.bf16.mxu0 0
  %1001 = vmatpush1.bf16.msra.mxu0 0
  %1002 = vmatprep.subr.bf16.mxu0 0
  %1003 = vmatpush1.bf16.msra.mxu0 0
  %1004 = vmatprep.subr.bf16.mxu0 0
  %1005 = vmatpush1.bf16.msra.mxu0 0
  %1006 = vmatprep.subr.bf16.mxu0 0
  %1007 = vmatpush1.bf16.msra.mxu0 0
  %1008 = vmatprep.subr.bf16.mxu0 0
  %1009 = vmatpush1.bf16.msra.mxu0 0
  %1010 = vmatprep.subr.bf16.mxu0 0
  %1011 = vmatpush1.bf16.msra.mxu0 0
  %1012 = vmatprep.mubr.bf16.mxu0 0
  %1013 = vmatmul.mubr.bf16.gmra.mrb[0].mxu0 %v194
  %v1014 = vpop.f32.mrb[0].mxu0
  %v1015 = vadd.f32 0.0, %v1014
  %v1016 = vpop.f32.mrb[0].mxu0
  %v1017 = vadd.f32 0.0, %v1016
  %v1018 = vpop.f32.mrb[0].mxu0
  %v1019 = vadd.f32 0.0, %v1018
  %v1020 = vpop.f32.mrb[0].mxu0
  %v1021 = vadd.f32 0.0, %v1020
  %1022 = vmatprep.mubr.bf16.mxu0 0
  %1023 = vmatmul.mubr.bf16.gmra.mrb[0].mxu0 %v195
  %v1024 = vpop.f32.mrb[0].mxu0
  %v1025 = vadd.f32 0.0, %v1024
  %v1026 = vpop.f32.mrb[0].mxu0
  %v1027 = vadd.f32 0.0, %v1026
  %v1028 = vpop.f32.mrb[0].mxu0
  %v1029 = vadd.f32 0.0, %v1028
  %v1030 = vpop.f32.mrb[0].mxu0
  %v1031 = vadd.f32 0.0, %v1030
  %1032 = vmatprep.mubr.bf16.mxu0 0
  %1033 = vmatmul.mubr.bf16.gmra.mrb[0].mxu0 %v196
  %v1034 = vpop.f32.mrb[0].mxu0
  %v1035 = vadd.f32 0.0, %v1034
  %v1036 = vpop.f32.mrb[0].mxu0
  %v1037 = vadd.f32 0.0, %v1036
  %v1038 = vpop.f32.mrb[0].mxu0
  %v1039 = vadd.f32 0.0, %v1038
  %v1040 = vpop.f32.mrb[0].mxu0
  %v1041 = vadd.f32 0.0, %v1040
  %1042 = vmatprep.mubr.bf16.mxu0 0
  %1043 = vmatmul.mubr.bf16.gmra.mrb[0].mxu0 %v197
  %v1044 = vpop.f32.mrb[0].mxu0
  %v1045 = vadd.f32 0.0, %v1044
  %v1046 = vpop.f32.mrb[0].mxu0
  %v1047 = vadd.f32 0.0, %v1046
  %v1048 = vpop.f32.mrb[0].mxu0
  %v1049 = vadd.f32 0.0, %v1048
  %v1050 = vpop.f32.mrb[0].mxu0
  %v1051 = vadd.f32 0.0, %v1050
  %1052 = vmatprep.mubr.bf16.mxu0 0
  %1053 = vmatmul.mubr.bf16.gmra.mrb[0].mxu0 %v198
  %v1054 = vpop.f32.mrb[0].mxu0
  %v1055 = vadd.f32 0.0, %v1054
  %v1056 = vpop.f32.mrb[0].mxu0
  %v1057 = vadd.f32 0.0, %v1056
  %v1058 = vpop.f32.mrb[0].mxu0
  %v1059 = vadd.f32 0.0, %v1058
  %v1060 = vpop.f32.mrb[0].mxu0
  %v1061 = vadd.f32 0.0, %v1060
  %1062 = vmatprep.mubr.bf16.mxu0 0
  %1063 = vmatmul.mubr.bf16.gmra.mrb[0].mxu0 %v199
  %v1064 = vpop.f32.mrb[0].mxu0
  %v1065 = vadd.f32 0.0, %v1064
  %v1066 = vpop.f32.mrb[0].mxu0
  %v1067 = vadd.f32 0.0, %v1066
  %v1068 = vpop.f32.mrb[0].mxu0
  %v1069 = vadd.f32 0.0, %v1068
  %v1070 = vpop.f32.mrb[0].mxu0
  %v1071 = vadd.f32 0.0, %v1070
  %1072 = vmatprep.mubr.bf16.mxu0 0
  %1073 = vmatmul.mubr.bf16.gmra.mrb[0].mxu0 %v200
  %v1074 = vpop.f32.mrb[0].mxu0
  %v1075 = vadd.f32 0.0, %v1074
  %v1076 = vpop.f32.mrb[0].mxu0
  %v1077 = vadd.f32 0.0, %v1076
  %v1078 = vpop.f32.mrb[0].mxu0
  %v1079 = vadd.f32 0.0, %v1078
  %v1080 = vpop.f32.mrb[0].mxu0
  %v1081 = vadd.f32 0.0, %v1080
  %1082 = vmatprep.mubr.bf16.mxu0 0
  %1083 = vmatmul.mubr.bf16.gmra.mrb[0].mxu0 %v201
  %v1084 = vpop.f32.mrb[0].mxu0
  %v1085 = vadd.f32 0.0, %v1084
  %v1086 = vpop.f32.mrb[0].mxu0
  %v1087 = vadd.f32 0.0, %v1086
  %v1088 = vpop.f32.mrb[0].mxu0
  %v1089 = vadd.f32 0.0, %v1088
  %v1090 = vpop.f32.mrb[0].mxu0
  %v1091 = vadd.f32 0.0, %v1090
  %1092 = vmatprep.mubr.bf16.mxu0 0
  %1093 = vmatmul.mubr.bf16.gmra.mrb[0].mxu0 %v202
  %v1094 = vpop.f32.mrb[0].mxu0
  %v1095 = vadd.f32 0.0, %v1094
  %v1096 = vpop.f32.mrb[0].mxu0
  %v1097 = vadd.f32 0.0, %v1096
  %v1098 = vpop.f32.mrb[0].mxu0
  %v1099 = vadd.f32 0.0, %v1098
  %v1100 = vpop.f32.mrb[0].mxu0
  %v1101 = vadd.f32 0.0, %v1100
  %1102 = vmatprep.mubr.bf16.mxu0 0
  %1103 = vmatmul.mubr.bf16.gmra.mrb[0].mxu0 %v203
  %v1104 = vpop.f32.mrb[0].mxu0
  %v1105 = vadd.f32 0.0, %v1104
  %v1106 = vpop.f32.mrb[0].mxu0
  %v1107 = vadd.f32 0.0, %v1106
  %v1108 = vpop.f32.mrb[0].mxu0
  %v1109 = vadd.f32 0.0, %v1108
  %v1110 = vpop.f32.mrb[0].mxu0
  %v1111 = vadd.f32 0.0, %v1110
  %1112 = vmatprep.mubr.bf16.mxu0 0
  %1113 = vmatmul.mubr.bf16.gmra.mrb[0].mxu0 %v204
  %v1114 = vpop.f32.mrb[0].mxu0
  %v1115 = vadd.f32 0.0, %v1114
  %v1116 = vpop.f32.mrb[0].mxu0
  %v1117 = vadd.f32 0.0, %v1116
  %v1118 = vpop.f32.mrb[0].mxu0
  %v1119 = vadd.f32 0.0, %v1118
  %v1120 = vpop.f32.mrb[0].mxu0
  %v1121 = vadd.f32 0.0, %v1120
  %1122 = vmatprep.mubr.bf16.mxu0 0
  %1123 = vmatmul.mubr.bf16.gmra.mrb[0].mxu0 %v205
  %v1124 = vpop.f32.mrb[0].mxu0
  %v1125 = vadd.f32 0.0, %v1124
  %v1126 = vpop.f32.mrb[0].mxu0
  %v1127 = vadd.f32 0.0, %v1126
  %v1128 = vpop.f32.mrb[0].mxu0
  %v1129 = vadd.f32 0.0, %v1128
  %v1130 = vpop.f32.mrb[0].mxu0
  %v1131 = vadd.f32 0.0, %v1130
  %1132 = vmatprep.mubr.bf16.mxu0 0
  %1133 = vmatmul.mubr.bf16.gmra.mrb[0].mxu0 %v206
  %v1134 = vpop.f32.mrb[0].mxu0
  %v1135 = vadd.f32 0.0, %v1134
  %v1136 = vpop.f32.mrb[0].mxu0
  %v1137 = vadd.f32 0.0, %v1136
  %v1138 = vpop.f32.mrb[0].mxu0
  %v1139 = vadd.f32 0.0, %v1138
  %v1140 = vpop.f32.mrb[0].mxu0
  %v1141 = vadd.f32 0.0, %v1140
  %1142 = vmatprep.mubr.bf16.mxu0 0
  %1143 = vmatmul.mubr.bf16.gmra.mrb[0].mxu0 %v207
  %v1144 = vpop.f32.mrb[0].mxu0
  %v1145 = vadd.f32 0.0, %v1144
  %v1146 = vpop.f32.mrb[0].mxu0
  %v1147 = vadd.f32 0.0, %v1146
  %v1148 = vpop.f32.mrb[0].mxu0
  %v1149 = vadd.f32 0.0, %v1148
  %v1150 = vpop.f32.mrb[0].mxu0
  %v1151 = vadd.f32 0.0, %v1150
  %1152 = vmatprep.mubr.bf16.mxu0 0
  %1153 = vmatmul.mubr.bf16.gmra.mrb[0].mxu0 %v208
  %v1154 = vpop.f32.mrb[0].mxu0
  %v1155 = vadd.f32 0.0, %v1154
  %v1156 = vpop.f32.mrb[0].mxu0
  %v1157 = vadd.f32 0.0, %v1156
  %v1158 = vpop.f32.mrb[0].mxu0
  %v1159 = vadd.f32 0.0, %v1158
  %v1160 = vpop.f32.mrb[0].mxu0
  %v1161 = vadd.f32 0.0, %v1160
  %1162 = vmatprep.mubr.bf16.mxu0 0
  %1163 = vmatmul.mubr.bf16.gmra.mrb[0].mxu0 %v209
  %v1164 = vpop.f32.mrb[0].mxu0
  %v1165 = vadd.f32 0.0, %v1164
  %v1166 = vpop.f32.mrb[0].mxu0
  %v1167 = vadd.f32 0.0, %v1166
  %v1168 = vpop.f32.mrb[0].mxu0
  %v1169 = vadd.f32 0.0, %v1168
  %v1170 = vpop.f32.mrb[0].mxu0
  %v1171 = vadd.f32 0.0, %v1170
  %1172 = vdwg.mxu0
  %1173 = vmatprep.subr.bf16.mxu0 %v473
  %1174 = vmatpush1.bf16.msra.mxu0 %v472
  %1175 = vmatprep.subr.bf16.mxu0 %v481
  %1176 = vmatpush1.bf16.msra.mxu0 %v480
  %1177 = vmatprep.subr.bf16.mxu0 %v489
  %1178 = vmatpush1.bf16.msra.mxu0 %v488
  %1179 = vmatprep.subr.bf16.mxu0 %v497
  %1180 = vmatpush1.bf16.msra.mxu0 %v496
  %1181 = vmatprep.subr.bf16.mxu0 %v505
  %1182 = vmatpush1.bf16.msra.mxu0 %v504
  %1183 = vmatprep.subr.bf16.mxu0 %v513
  %1184 = vmatpush1.bf16.msra.mxu0 %v512
  %1185 = vmatprep.subr.bf16.mxu0 %v521
  %1186 = vmatpush1.bf16.msra.mxu0 %v520
  %1187 = vmatprep.subr.bf16.mxu0 %v529
  %1188 = vmatpush1.bf16.msra.mxu0 %v528
  %1189 = vmatprep.subr.bf16.mxu0 0
  %1190 = vmatpush1.bf16.msra.mxu0 0
  %1191 = vmatprep.subr.bf16.mxu0 0
  %1192 = vmatpush1.bf16.msra.mxu0 0
  %1193 = vmatprep.subr.bf16.mxu0 0
  %1194 = vmatpush1.bf16.msra.mxu0 0
  %1195 = vmatprep.subr.bf16.mxu0 0
  %1196 = vmatpush1.bf16.msra.mxu0 0
  %1197 = vmatprep.subr.bf16.mxu0 0
  %1198 = vmatpush1.bf16.msra.mxu0 0
  %1199 = vmatprep.subr.bf16.mxu0 0
  %1200 = vmatpush1.bf16.msra.mxu0 0
  %1201 = vmatprep.subr.bf16.mxu0 0
  %1202 = vmatpush1.bf16.msra.mxu0 0
  %1203 = vmatprep.subr.bf16.mxu0 0
  %1204 = vmatpush1.bf16.msra.mxu0 0
  %1205 = vmatprep.mubr.bf16.mxu0 0
  %1206 = vmatmul.mubr.bf16.gmra.mrb[0].mxu0 %v194
  %v1207 = vpop.f32.mrb[0].mxu0
  %v1208 = vadd.f32 0.0, %v1207
  %v1209 = vpop.f32.mrb[0].mxu0
  %v1210 = vadd.f32 0.0, %v1209
  %v1211 = vpop.f32.mrb[0].mxu0
  %v1212 = vadd.f32 0.0, %v1211
  %v1213 = vpop.f32.mrb[0].mxu0
  %v1214 = vadd.f32 0.0, %v1213
  %1215 = vmatprep.mubr.bf16.mxu0 0
  %1216 = vmatmul.mubr.bf16.gmra.mrb[0].mxu0 %v195
  %v1217 = vpop.f32.mrb[0].mxu0
  %v1218 = vadd.f32 0.0, %v1217
  %v1219 = vpop.f32.mrb[0].mxu0
  %v1220 = vadd.f32 0.0, %v1219
  %v1221 = vpop.f32.mrb[0].mxu0
  %v1222 = vadd.f32 0.0, %v1221
  %v1223 = vpop.f32.mrb[0].mxu0
  %v1224 = vadd.f32 0.0, %v1223
  %1225 = vmatprep.mubr.bf16.mxu0 0
  %1226 = vmatmul.mubr.bf16.gmra.mrb[0].mxu0 %v196
  %v1227 = vpop.f32.mrb[0].mxu0
  %v1228 = vadd.f32 0.0, %v1227
  %v1229 = vpop.f32.mrb[0].mxu0
  %v1230 = vadd.f32 0.0, %v1229
  %v1231 = vpop.f32.mrb[0].mxu0
  %v1232 = vadd.f32 0.0, %v1231
  %v1233 = vpop.f32.mrb[0].mxu0
  %v1234 = vadd.f32 0.0, %v1233
  %1235 = vmatprep.mubr.bf16.mxu0 0
  %1236 = vmatmul.mubr.bf16.gmra.mrb[0].mxu0 %v197
  %v1237 = vpop.f32.mrb[0].mxu0
  %v1238 = vadd.f32 0.0, %v1237
  %v1239 = vpop.f32.mrb[0].mxu0
  %v1240 = vadd.f32 0.0, %v1239
  %v1241 = vpop.f32.mrb[0].mxu0
  %v1242 = vadd.f32 0.0, %v1241
  %v1243 = vpop.f32.mrb[0].mxu0
  %v1244 = vadd.f32 0.0, %v1243
  %1245 = vmatprep.mubr.bf16.mxu0 0
  %1246 = vmatmul.mubr.bf16.gmra.mrb[0].mxu0 %v198
  %v1247 = vpop.f32.mrb[0].mxu0
  %v1248 = vadd.f32 0.0, %v1247
  %v1249 = vpop.f32.mrb[0].mxu0
  %v1250 = vadd.f32 0.0, %v1249
  %v1251 = vpop.f32.mrb[0].mxu0
  %v1252 = vadd.f32 0.0, %v1251
  %v1253 = vpop.f32.mrb[0].mxu0
  %v1254 = vadd.f32 0.0, %v1253
  %1255 = vmatprep.mubr.bf16.mxu0 0
  %1256 = vmatmul.mubr.bf16.gmra.mrb[0].mxu0 %v199
  %v1257 = vpop.f32.mrb[0].mxu0
  %v1258 = vadd.f32 0.0, %v1257
  %v1259 = vpop.f32.mrb[0].mxu0
  %v1260 = vadd.f32 0.0, %v1259
  %v1261 = vpop.f32.mrb[0].mxu0
  %v1262 = vadd.f32 0.0, %v1261
  %v1263 = vpop.f32.mrb[0].mxu0
  %v1264 = vadd.f32 0.0, %v1263
  %1265 = vmatprep.mubr.bf16.mxu0 0
  %1266 = vmatmul.mubr.bf16.gmra.mrb[0].mxu0 %v200
  %v1267 = vpop.f32.mrb[0].mxu0
  %v1268 = vadd.f32 0.0, %v1267
  %v1269 = vpop.f32.mrb[0].mxu0
  %v1270 = vadd.f32 0.0, %v1269
  %v1271 = vpop.f32.mrb[0].mxu0
  %v1272 = vadd.f32 0.0, %v1271
  %v1273 = vpop.f32.mrb[0].mxu0
  %v1274 = vadd.f32 0.0, %v1273
  %1275 = vmatprep.mubr.bf16.mxu0 0
  %1276 = vmatmul.mubr.bf16.gmra.mrb[0].mxu0 %v201
  %v1277 = vpop.f32.mrb[0].mxu0
  %v1278 = vadd.f32 0.0, %v1277
  %v1279 = vpop.f32.mrb[0].mxu0
  %v1280 = vadd.f32 0.0, %v1279
  %v1281 = vpop.f32.mrb[0].mxu0
  %v1282 = vadd.f32 0.0, %v1281
  %v1283 = vpop.f32.mrb[0].mxu0
  %v1284 = vadd.f32 0.0, %v1283
  %1285 = vmatprep.mubr.bf16.mxu0 0
  %1286 = vmatmul.mubr.bf16.gmra.mrb[0].mxu0 %v202
  %v1287 = vpop.f32.mrb[0].mxu0
  %v1288 = vadd.f32 0.0, %v1287
  %v1289 = vpop.f32.mrb[0].mxu0
  %v1290 = vadd.f32 0.0, %v1289
  %v1291 = vpop.f32.mrb[0].mxu0
  %v1292 = vadd.f32 0.0, %v1291
  %v1293 = vpop.f32.mrb[0].mxu0
  %v1294 = vadd.f32 0.0, %v1293
  %1295 = vmatprep.mubr.bf16.mxu0 0
  %1296 = vmatmul.mubr.bf16.gmra.mrb[0].mxu0 %v203
  %v1297 = vpop.f32.mrb[0].mxu0
  %v1298 = vadd.f32 0.0, %v1297
  %v1299 = vpop.f32.mrb[0].mxu0
  %v1300 = vadd.f32 0.0, %v1299
  %v1301 = vpop.f32.mrb[0].mxu0
  %v1302 = vadd.f32 0.0, %v1301
  %v1303 = vpop.f32.mrb[0].mxu0
  %v1304 = vadd.f32 0.0, %v1303
  %1305 = vmatprep.mubr.bf16.mxu0 0
  %1306 = vmatmul.mubr.bf16.gmra.mrb[0].mxu0 %v204
  %v1307 = vpop.f32.mrb[0].mxu0
  %v1308 = vadd.f32 0.0, %v1307
  %v1309 = vpop.f32.mrb[0].mxu0
  %v1310 = vadd.f32 0.0, %v1309
  %v1311 = vpop.f32.mrb[0].mxu0
  %v1312 = vadd.f32 0.0, %v1311
  %v1313 = vpop.f32.mrb[0].mxu0
  %v1314 = vadd.f32 0.0, %v1313
  %1315 = vmatprep.mubr.bf16.mxu0 0
  %1316 = vmatmul.mubr.bf16.gmra.mrb[0].mxu0 %v205
  %v1317 = vpop.f32.mrb[0].mxu0
  %v1318 = vadd.f32 0.0, %v1317
  %v1319 = vpop.f32.mrb[0].mxu0
  %v1320 = vadd.f32 0.0, %v1319
  %v1321 = vpop.f32.mrb[0].mxu0
  %v1322 = vadd.f32 0.0, %v1321
  %v1323 = vpop.f32.mrb[0].mxu0
  %v1324 = vadd.f32 0.0, %v1323
  %1325 = vmatprep.mubr.bf16.mxu0 0
  %1326 = vmatmul.mubr.bf16.gmra.mrb[0].mxu0 %v206
  %v1327 = vpop.f32.mrb[0].mxu0
  %v1328 = vadd.f32 0.0, %v1327
  %v1329 = vpop.f32.mrb[0].mxu0
  %v1330 = vadd.f32 0.0, %v1329
  %v1331 = vpop.f32.mrb[0].mxu0
  %v1332 = vadd.f32 0.0, %v1331
  %v1333 = vpop.f32.mrb[0].mxu0
  %v1334 = vadd.f32 0.0, %v1333
  %1335 = vmatprep.mubr.bf16.mxu0 0
  %1336 = vmatmul.mubr.bf16.gmra.mrb[0].mxu0 %v207
  %v1337 = vpop.f32.mrb[0].mxu0
  %v1338 = vadd.f32 0.0, %v1337
  %v1339 = vpop.f32.mrb[0].mxu0
  %v1340 = vadd.f32 0.0, %v1339
  %v1341 = vpop.f32.mrb[0].mxu0
  %v1342 = vadd.f32 0.0, %v1341
  %v1343 = vpop.f32.mrb[0].mxu0
  %v1344 = vadd.f32 0.0, %v1343
  %1345 = vmatprep.mubr.bf16.mxu0 0
  %1346 = vmatmul.mubr.bf16.gmra.mrb[0].mxu0 %v208
  %v1347 = vpop.f32.mrb[0].mxu0
  %v1348 = vadd.f32 0.0, %v1347
  %v1349 = vpop.f32.mrb[0].mxu0
  %v1350 = vadd.f32 0.0, %v1349
  %v1351 = vpop.f32.mrb[0].mxu0
  %v1352 = vadd.f32 0.0, %v1351
  %v1353 = vpop.f32.mrb[0].mxu0
  %v1354 = vadd.f32 0.0, %v1353
  %1355 = vmatprep.mubr.bf16.mxu0 0
  %1356 = vmatmul.mubr.bf16.gmra.mrb[0].mxu0 %v209
  %v1357 = vpop.f32.mrb[0].mxu0
  %v1358 = vadd.f32 0.0, %v1357
  %v1359 = vpop.f32.mrb[0].mxu0
  %v1360 = vadd.f32 0.0, %v1359
  %v1361 = vpop.f32.mrb[0].mxu0
  %v1362 = vadd.f32 0.0, %v1361
  %v1363 = vpop.f32.mrb[0].mxu0
  %v1364 = vadd.f32 0.0, %v1363
  %1365 = vdwg.mxu0
  %v1366 = vpack.c.bf16 %v633, %v629
  %v1367 = vpack.c.bf16 %v635, %v631
  %v1368 = vpack.c.bf16 %v826, %v822
  %v1369 = vpack.c.bf16 %v828, %v824
  %v1370 = vpack.c.bf16 %v1019, %v1015
  %v1371 = vpack.c.bf16 %v1021, %v1017
  %v1372 = vpack.c.bf16 %v1212, %v1208
  %v1373 = vpack.c.bf16 %v1214, %v1210
  %v1374 = vpack.c.bf16 %v643, %v639
  %v1375 = vpack.c.bf16 %v645, %v641
  %v1376 = vpack.c.bf16 %v836, %v832
  %v1377 = vpack.c.bf16 %v838, %v834
  %v1378 = vpack.c.bf16 %v1029, %v1025
  %v1379 = vpack.c.bf16 %v1031, %v1027
  %v1380 = vpack.c.bf16 %v1222, %v1218
  %v1381 = vpack.c.bf16 %v1224, %v1220
  %v1382 = vpack.c.bf16 %v653, %v649
  %v1383 = vpack.c.bf16 %v655, %v651
  %v1384 = vpack.c.bf16 %v846, %v842
  %v1385 = vpack.c.bf16 %v848, %v844
  %v1386 = vpack.c.bf16 %v1039, %v1035
  %v1387 = vpack.c.bf16 %v1041, %v1037
  %v1388 = vpack.c.bf16 %v1232, %v1228
  %v1389 = vpack.c.bf16 %v1234, %v1230
  %v1390 = vpack.c.bf16 %v663, %v659
  %v1391 = vpack.c.bf16 %v665, %v661
  %v1392 = vpack.c.bf16 %v856, %v852
  %v1393 = vpack.c.bf16 %v858, %v854
  %v1394 = vpack.c.bf16 %v1049, %v1045
  %v1395 = vpack.c.bf16 %v1051, %v1047
  %v1396 = vpack.c.bf16 %v1242, %v1238
  %v1397 = vpack.c.bf16 %v1244, %v1240
  %v1398 = vpack.c.bf16 %v673, %v669
  %v1399 = vpack.c.bf16 %v675, %v671
  %v1400 = vpack.c.bf16 %v866, %v862
  %v1401 = vpack.c.bf16 %v868, %v864
  %v1402 = vpack.c.bf16 %v1059, %v1055
  %v1403 = vpack.c.bf16 %v1061, %v1057
  %v1404 = vpack.c.bf16 %v1252, %v1248
  %v1405 = vpack.c.bf16 %v1254, %v1250
  %v1406 = vpack.c.bf16 %v683, %v679
  %v1407 = vpack.c.bf16 %v685, %v681
  %v1408 = vpack.c.bf16 %v876, %v872
  %v1409 = vpack.c.bf16 %v878, %v874
  %v1410 = vpack.c.bf16 %v1069, %v1065
  %v1411 = vpack.c.bf16 %v1071, %v1067
  %v1412 = vpack.c.bf16 %v1262, %v1258
  %v1413 = vpack.c.bf16 %v1264, %v1260
  %v1414 = vpack.c.bf16 %v693, %v689
  %v1415 = vpack.c.bf16 %v695, %v691
  %v1416 = vpack.c.bf16 %v886, %v882
  %v1417 = vpack.c.bf16 %v888, %v884
  %v1418 = vpack.c.bf16 %v1079, %v1075
  %v1419 = vpack.c.bf16 %v1081, %v1077
  %v1420 = vpack.c.bf16 %v1272, %v1268
  %v1421 = vpack.c.bf16 %v1274, %v1270
  %v1422 = vpack.c.bf16 %v703, %v699
  %v1423 = vpack.c.bf16 %v705, %v701
  %v1424 = vpack.c.bf16 %v896, %v892
  %v1425 = vpack.c.bf16 %v898, %v894
  %v1426 = vpack.c.bf16 %v1089, %v1085
  %v1427 = vpack.c.bf16 %v1091, %v1087
  %v1428 = vpack.c.bf16 %v1282, %v1278
  %v1429 = vpack.c.bf16 %v1284, %v1280
  %v1430 = vpack.c.bf16 %v713, %v709
  %v1431 = vpack.c.bf16 %v715, %v711
  %v1432 = vpack.c.bf16 %v906, %v902
  %v1433 = vpack.c.bf16 %v908, %v904
  %v1434 = vpack.c.bf16 %v1099, %v1095
  %v1435 = vpack.c.bf16 %v1101, %v1097
  %v1436 = vpack.c.bf16 %v1292, %v1288
  %v1437 = vpack.c.bf16 %v1294, %v1290
  %v1438 = vpack.c.bf16 %v723, %v719
  %v1439 = vpack.c.bf16 %v725, %v721
  %v1440 = vpack.c.bf16 %v916, %v912
  %v1441 = vpack.c.bf16 %v918, %v914
  %v1442 = vpack.c.bf16 %v1109, %v1105
  %v1443 = vpack.c.bf16 %v1111, %v1107
  %v1444 = vpack.c.bf16 %v1302, %v1298
  %v1445 = vpack.c.bf16 %v1304, %v1300
  %v1446 = vpack.c.bf16 %v733, %v729
  %v1447 = vpack.c.bf16 %v735, %v731
  %v1448 = vpack.c.bf16 %v926, %v922
  %v1449 = vpack.c.bf16 %v928, %v924
  %v1450 = vpack.c.bf16 %v1119, %v1115
  %v1451 = vpack.c.bf16 %v1121, %v1117
  %v1452 = vpack.c.bf16 %v1312, %v1308
  %v1453 = vpack.c.bf16 %v1314, %v1310
  %v1454 = vpack.c.bf16 %v743, %v739
  %v1455 = vpack.c.bf16 %v745, %v741
  %v1456 = vpack.c.bf16 %v936, %v932
  %v1457 = vpack.c.bf16 %v938, %v934
  %v1458 = vpack.c.bf16 %v1129, %v1125
  %v1459 = vpack.c.bf16 %v1131, %v1127
  %v1460 = vpack.c.bf16 %v1322, %v1318
  %v1461 = vpack.c.bf16 %v1324, %v1320
  %v1462 = vpack.c.bf16 %v753, %v749
  %v1463 = vpack.c.bf16 %v755, %v751
  %v1464 = vpack.c.bf16 %v946, %v942
  %v1465 = vpack.c.bf16 %v948, %v944
  %v1466 = vpack.c.bf16 %v1139, %v1135
  %v1467 = vpack.c.bf16 %v1141, %v1137
  %v1468 = vpack.c.bf16 %v1332, %v1328
  %v1469 = vpack.c.bf16 %v1334, %v1330
  %v1470 = vpack.c.bf16 %v763, %v759
  %v1471 = vpack.c.bf16 %v765, %v761
  %v1472 = vpack.c.bf16 %v956, %v952
  %v1473 = vpack.c.bf16 %v958, %v954
  %v1474 = vpack.c.bf16 %v1149, %v1145
  %v1475 = vpack.c.bf16 %v1151, %v1147
  %v1476 = vpack.c.bf16 %v1342, %v1338
  %v1477 = vpack.c.bf16 %v1344, %v1340
  %v1478 = vpack.c.bf16 %v773, %v769
  %v1479 = vpack.c.bf16 %v775, %v771
  %v1480 = vpack.c.bf16 %v966, %v962
  %v1481 = vpack.c.bf16 %v968, %v964
  %v1482 = vpack.c.bf16 %v1159, %v1155
  %v1483 = vpack.c.bf16 %v1161, %v1157
  %v1484 = vpack.c.bf16 %v1352, %v1348
  %v1485 = vpack.c.bf16 %v1354, %v1350
  %v1486 = vpack.c.bf16 %v783, %v779
  %v1487 = vpack.c.bf16 %v785, %v781
  %v1488 = vpack.c.bf16 %v976, %v972
  %v1489 = vpack.c.bf16 %v978, %v974
  %v1490 = vpack.c.bf16 %v1169, %v1165
  %v1491 = vpack.c.bf16 %v1171, %v1167
  %v1492 = vpack.c.bf16 %v1362, %v1358
  %v1493 = vpack.c.bf16 %v1364, %v1360
  %v1622 = vunpack.c.l.b16 %v1366
  %v1623 = vunpack.c.l.b16 %v1367
  %v1624 = vunpack.c.l.b16 %v1368
  %v1625 = vunpack.c.l.b16 %v1369
  %v1626 = vunpack.c.l.b16 %v1370
  %v1627 = vunpack.c.l.b16 %v1371
  %v1628 = vunpack.c.l.b16 %v1372
  %v1629 = vunpack.c.l.b16 %v1373
  %v1630 = vunpack.c.h.b16 %v1366
  %v1631 = vunpack.c.h.b16 %v1367
  %v1632 = vunpack.c.h.b16 %v1368
  %v1633 = vunpack.c.h.b16 %v1369
  %v1634 = vunpack.c.h.b16 %v1370
  %v1635 = vunpack.c.h.b16 %v1371
  %v1636 = vunpack.c.h.b16 %v1372
  %v1637 = vunpack.c.h.b16 %v1373
  %v1638 = vunpack.c.l.b16 %v1374
  %v1639 = vunpack.c.l.b16 %v1375
  %v1640 = vunpack.c.l.b16 %v1376
  %v1641 = vunpack.c.l.b16 %v1377
  %v1642 = vunpack.c.l.b16 %v1378
  %v1643 = vunpack.c.l.b16 %v1379
  %v1644 = vunpack.c.l.b16 %v1380
  %v1645 = vunpack.c.l.b16 %v1381
  %v1646 = vunpack.c.h.b16 %v1374
  %v1647 = vunpack.c.h.b16 %v1375
  %v1648 = vunpack.c.h.b16 %v1376
  %v1649 = vunpack.c.h.b16 %v1377
  %v1650 = vunpack.c.h.b16 %v1378
  %v1651 = vunpack.c.h.b16 %v1379
  %v1652 = vunpack.c.h.b16 %v1380
  %v1653 = vunpack.c.h.b16 %v1381
  %v1654 = vunpack.c.l.b16 %v1382
  %v1655 = vunpack.c.l.b16 %v1383
  %v1656 = vunpack.c.l.b16 %v1384
  %v1657 = vunpack.c.l.b16 %v1385
  %v1658 = vunpack.c.l.b16 %v1386
  %v1659 = vunpack.c.l.b16 %v1387
  %v1660 = vunpack.c.l.b16 %v1388
  %v1661 = vunpack.c.l.b16 %v1389
  %v1662 = vunpack.c.h.b16 %v1382
  %v1663 = vunpack.c.h.b16 %v1383
  %v1664 = vunpack.c.h.b16 %v1384
  %v1665 = vunpack.c.h.b16 %v1385
  %v1666 = vunpack.c.h.b16 %v1386
  %v1667 = vunpack.c.h.b16 %v1387
  %v1668 = vunpack.c.h.b16 %v1388
  %v1669 = vunpack.c.h.b16 %v1389
  %v1670 = vunpack.c.l.b16 %v1390
  %v1671 = vunpack.c.l.b16 %v1391
  %v1672 = vunpack.c.l.b16 %v1392
  %v1673 = vunpack.c.l.b16 %v1393
  %v1674 = vunpack.c.l.b16 %v1394
  %v1675 = vunpack.c.l.b16 %v1395
  %v1676 = vunpack.c.l.b16 %v1396
  %v1677 = vunpack.c.l.b16 %v1397
  %v1678 = vunpack.c.h.b16 %v1390
  %v1679 = vunpack.c.h.b16 %v1391
  %v1680 = vunpack.c.h.b16 %v1392
  %v1681 = vunpack.c.h.b16 %v1393
  %v1682 = vunpack.c.h.b16 %v1394
  %v1683 = vunpack.c.h.b16 %v1395
  %v1684 = vunpack.c.h.b16 %v1396
  %v1685 = vunpack.c.h.b16 %v1397
  %v1686 = vunpack.c.l.b16 %v1398
  %v1687 = vunpack.c.l.b16 %v1399
  %v1688 = vunpack.c.l.b16 %v1400
  %v1689 = vunpack.c.l.b16 %v1401
  %v1690 = vunpack.c.l.b16 %v1402
  %v1691 = vunpack.c.l.b16 %v1403
  %v1692 = vunpack.c.l.b16 %v1404
  %v1693 = vunpack.c.l.b16 %v1405
  %v1694 = vunpack.c.h.b16 %v1398
  %v1695 = vunpack.c.h.b16 %v1399
  %v1696 = vunpack.c.h.b16 %v1400
  %v1697 = vunpack.c.h.b16 %v1401
  %v1698 = vunpack.c.h.b16 %v1402
  %v1699 = vunpack.c.h.b16 %v1403
  %v1700 = vunpack.c.h.b16 %v1404
  %v1701 = vunpack.c.h.b16 %v1405
  %v1702 = vunpack.c.l.b16 %v1406
  %v1703 = vunpack.c.l.b16 %v1407
  %v1704 = vunpack.c.l.b16 %v1408
  %v1705 = vunpack.c.l.b16 %v1409
  %v1706 = vunpack.c.l.b16 %v1410
  %v1707 = vunpack.c.l.b16 %v1411
  %v1708 = vunpack.c.l.b16 %v1412
  %v1709 = vunpack.c.l.b16 %v1413
  %v1710 = vunpack.c.h.b16 %v1406
  %v1711 = vunpack.c.h.b16 %v1407
  %v1712 = vunpack.c.h.b16 %v1408
  %v1713 = vunpack.c.h.b16 %v1409
  %v1714 = vunpack.c.h.b16 %v1410
  %v1715 = vunpack.c.h.b16 %v1411
  %v1716 = vunpack.c.h.b16 %v1412
  %v1717 = vunpack.c.h.b16 %v1413
  %v1718 = vunpack.c.l.b16 %v1414
  %v1719 = vunpack.c.l.b16 %v1415
  %v1720 = vunpack.c.l.b16 %v1416
  %v1721 = vunpack.c.l.b16 %v1417
  %v1722 = vunpack.c.l.b16 %v1418
  %v1723 = vunpack.c.l.b16 %v1419
  %v1724 = vunpack.c.l.b16 %v1420
  %v1725 = vunpack.c.l.b16 %v1421
  %v1726 = vunpack.c.h.b16 %v1414
  %v1727 = vunpack.c.h.b16 %v1415
  %v1728 = vunpack.c.h.b16 %v1416
  %v1729 = vunpack.c.h.b16 %v1417
  %v1730 = vunpack.c.h.b16 %v1418
  %v1731 = vunpack.c.h.b16 %v1419
  %v1732 = vunpack.c.h.b16 %v1420
  %v1733 = vunpack.c.h.b16 %v1421
  %v1734 = vunpack.c.l.b16 %v1422
  %v1735 = vunpack.c.l.b16 %v1423
  %v1736 = vunpack.c.l.b16 %v1424
  %v1737 = vunpack.c.l.b16 %v1425
  %v1738 = vunpack.c.l.b16 %v1426
  %v1739 = vunpack.c.l.b16 %v1427
  %v1740 = vunpack.c.l.b16 %v1428
  %v1741 = vunpack.c.l.b16 %v1429
  %v1742 = vunpack.c.h.b16 %v1422
  %v1743 = vunpack.c.h.b16 %v1423
  %v1744 = vunpack.c.h.b16 %v1424
  %v1745 = vunpack.c.h.b16 %v1425
  %v1746 = vunpack.c.h.b16 %v1426
  %v1747 = vunpack.c.h.b16 %v1427
  %v1748 = vunpack.c.h.b16 %v1428
  %v1749 = vunpack.c.h.b16 %v1429
  %v1750 = vunpack.c.l.b16 %v1430
  %v1751 = vunpack.c.l.b16 %v1431
  %v1752 = vunpack.c.l.b16 %v1432
  %v1753 = vunpack.c.l.b16 %v1433
  %v1754 = vunpack.c.l.b16 %v1434
  %v1755 = vunpack.c.l.b16 %v1435
  %v1756 = vunpack.c.l.b16 %v1436
  %v1757 = vunpack.c.l.b16 %v1437
  %v1758 = vunpack.c.h.b16 %v1430
  %v1759 = vunpack.c.h.b16 %v1431
  %v1760 = vunpack.c.h.b16 %v1432
  %v1761 = vunpack.c.h.b16 %v1433
  %v1762 = vunpack.c.h.b16 %v1434
  %v1763 = vunpack.c.h.b16 %v1435
  %v1764 = vunpack.c.h.b16 %v1436
  %v1765 = vunpack.c.h.b16 %v1437
  %v1766 = vunpack.c.l.b16 %v1438
  %v1767 = vunpack.c.l.b16 %v1439
  %v1768 = vunpack.c.l.b16 %v1440
  %v1769 = vunpack.c.l.b16 %v1441
  %v1770 = vunpack.c.l.b16 %v1442
  %v1771 = vunpack.c.l.b16 %v1443
  %v1772 = vunpack.c.l.b16 %v1444
  %v1773 = vunpack.c.l.b16 %v1445
  %v1774 = vunpack.c.h.b16 %v1438
  %v1775 = vunpack.c.h.b16 %v1439
  %v1776 = vunpack.c.h.b16 %v1440
  %v1777 = vunpack.c.h.b16 %v1441
  %v1778 = vunpack.c.h.b16 %v1442
  %v1779 = vunpack.c.h.b16 %v1443
  %v1780 = vunpack.c.h.b16 %v1444
  %v1781 = vunpack.c.h.b16 %v1445
  %v1782 = vunpack.c.l.b16 %v1446
  %v1783 = vunpack.c.l.b16 %v1447
  %v1784 = vunpack.c.l.b16 %v1448
  %v1785 = vunpack.c.l.b16 %v1449
  %v1786 = vunpack.c.l.b16 %v1450
  %v1787 = vunpack.c.l.b16 %v1451
  %v1788 = vunpack.c.l.b16 %v1452
  %v1789 = vunpack.c.l.b16 %v1453
  %v1790 = vunpack.c.h.b16 %v1446
  %v1791 = vunpack.c.h.b16 %v1447
  %v1792 = vunpack.c.h.b16 %v1448
  %v1793 = vunpack.c.h.b16 %v1449
  %v1794 = vunpack.c.h.b16 %v1450
  %v1795 = vunpack.c.h.b16 %v1451
  %v1796 = vunpack.c.h.b16 %v1452
  %v1797 = vunpack.c.h.b16 %v1453
  %v1798 = vunpack.c.l.b16 %v1454
  %v1799 = vunpack.c.l.b16 %v1455
  %v1800 = vunpack.c.l.b16 %v1456
  %v1801 = vunpack.c.l.b16 %v1457
  %v1802 = vunpack.c.l.b16 %v1458
  %v1803 = vunpack.c.l.b16 %v1459
  %v1804 = vunpack.c.l.b16 %v1460
  %v1805 = vunpack.c.l.b16 %v1461
  %v1806 = vunpack.c.h.b16 %v1454
  %v1807 = vunpack.c.h.b16 %v1455
  %v1808 = vunpack.c.h.b16 %v1456
  %v1809 = vunpack.c.h.b16 %v1457
  %v1810 = vunpack.c.h.b16 %v1458
  %v1811 = vunpack.c.h.b16 %v1459
  %v1812 = vunpack.c.h.b16 %v1460
  %v1813 = vunpack.c.h.b16 %v1461
  %v1814 = vunpack.c.l.b16 %v1462
  %v1815 = vunpack.c.l.b16 %v1463
  %v1816 = vunpack.c.l.b16 %v1464
  %v1817 = vunpack.c.l.b16 %v1465
  %v1818 = vunpack.c.l.b16 %v1466
  %v1819 = vunpack.c.l.b16 %v1467
  %v1820 = vunpack.c.l.b16 %v1468
  %v1821 = vunpack.c.l.b16 %v1469
  %v1822 = vunpack.c.h.b16 %v1462
  %v1823 = vunpack.c.h.b16 %v1463
  %v1824 = vunpack.c.h.b16 %v1464
  %v1825 = vunpack.c.h.b16 %v1465
  %v1826 = vunpack.c.h.b16 %v1466
  %v1827 = vunpack.c.h.b16 %v1467
  %v1828 = vunpack.c.h.b16 %v1468
  %v1829 = vunpack.c.h.b16 %v1469
  %v1830 = vunpack.c.l.b16 %v1470
  %v1831 = vunpack.c.l.b16 %v1471
  %v1832 = vunpack.c.l.b16 %v1472
  %v1833 = vunpack.c.l.b16 %v1473
  %v1834 = vunpack.c.l.b16 %v1474
  %v1835 = vunpack.c.l.b16 %v1475
  %v1836 = vunpack.c.l.b16 %v1476
  %v1837 = vunpack.c.l.b16 %v1477
  %v1838 = vunpack.c.h.b16 %v1470
  %v1839 = vunpack.c.h.b16 %v1471
  %v1840 = vunpack.c.h.b16 %v1472
  %v1841 = vunpack.c.h.b16 %v1473
  %v1842 = vunpack.c.h.b16 %v1474
  %v1843 = vunpack.c.h.b16 %v1475
  %v1844 = vunpack.c.h.b16 %v1476
  %v1845 = vunpack.c.h.b16 %v1477
  %v1846 = vunpack.c.l.b16 %v1478
  %v1847 = vunpack.c.l.b16 %v1479
  %v1848 = vunpack.c.l.b16 %v1480
  %v1849 = vunpack.c.l.b16 %v1481
  %v1850 = vunpack.c.l.b16 %v1482
  %v1851 = vunpack.c.l.b16 %v1483
  %v1852 = vunpack.c.l.b16 %v1484
  %v1853 = vunpack.c.l.b16 %v1485
  %v1854 = vunpack.c.h.b16 %v1478
  %v1855 = vunpack.c.h.b16 %v1479
  %v1856 = vunpack.c.h.b16 %v1480
  %v1857 = vunpack.c.h.b16 %v1481
  %v1858 = vunpack.c.h.b16 %v1482
  %v1859 = vunpack.c.h.b16 %v1483
  %v1860 = vunpack.c.h.b16 %v1484
  %v1861 = vunpack.c.h.b16 %v1485
  %v1862 = vunpack.c.l.b16 %v1486
  %v1863 = vunpack.c.l.b16 %v1487
  %v1864 = vunpack.c.l.b16 %v1488
  %v1865 = vunpack.c.l.b16 %v1489
  %v1866 = vunpack.c.l.b16 %v1490
  %v1867 = vunpack.c.l.b16 %v1491
  %v1868 = vunpack.c.l.b16 %v1492
  %v1869 = vunpack.c.l.b16 %v1493
  %v1870 = vunpack.c.h.b16 %v1486
  %v1871 = vunpack.c.h.b16 %v1487
  %v1872 = vunpack.c.h.b16 %v1488
  %v1873 = vunpack.c.h.b16 %v1489
  %v1874 = vunpack.c.h.b16 %v1490
  %v1875 = vunpack.c.h.b16 %v1491
  %v1876 = vunpack.c.h.b16 %v1492
  %v1877 = vunpack.c.h.b16 %v1493
  %v1878 = vpack.c.b16 %v1623, %v1622
  %v1879 = vpack.c.b16 %v1625, %v1624
  %v1880 = vpack.c.b16 %v1627, %v1626
  %v1881 = vpack.c.b16 %v1629, %v1628
  %v1882 = vpack.c.b16 %v1631, %v1630
  %v1883 = vpack.c.b16 %v1633, %v1632
  %v1884 = vpack.c.b16 %v1635, %v1634
  %v1885 = vpack.c.b16 %v1637, %v1636
  %v1886 = vpack.c.b16 %v1639, %v1638
  %v1887 = vpack.c.b16 %v1641, %v1640
  %v1888 = vpack.c.b16 %v1643, %v1642
  %v1889 = vpack.c.b16 %v1645, %v1644
  %v1890 = vpack.c.b16 %v1647, %v1646
  %v1891 = vpack.c.b16 %v1649, %v1648
  %v1892 = vpack.c.b16 %v1651, %v1650
  %v1893 = vpack.c.b16 %v1653, %v1652
  %v1894 = vpack.c.b16 %v1655, %v1654
  %v1895 = vpack.c.b16 %v1657, %v1656
  %v1896 = vpack.c.b16 %v1659, %v1658
  %v1897 = vpack.c.b16 %v1661, %v1660
  %v1898 = vpack.c.b16 %v1663, %v1662
  %v1899 = vpack.c.b16 %v1665, %v1664
  %v1900 = vpack.c.b16 %v1667, %v1666
  %v1901 = vpack.c.b16 %v1669, %v1668
  %v1902 = vpack.c.b16 %v1671, %v1670
  %v1903 = vpack.c.b16 %v1673, %v1672
  %v1904 = vpack.c.b16 %v1675, %v1674
  %v1905 = vpack.c.b16 %v1677, %v1676
  %v1906 = vpack.c.b16 %v1679, %v1678
  %v1907 = vpack.c.b16 %v1681, %v1680
  %v1908 = vpack.c.b16 %v1683, %v1682
  %v1909 = vpack.c.b16 %v1685, %v1684
  %v1910 = vpack.c.b16 %v1687, %v1686
  %v1911 = vpack.c.b16 %v1689, %v1688
  %v1912 = vpack.c.b16 %v1691, %v1690
  %v1913 = vpack.c.b16 %v1693, %v1692
  %v1914 = vpack.c.b16 %v1695, %v1694
  %v1915 = vpack.c.b16 %v1697, %v1696
  %v1916 = vpack.c.b16 %v1699, %v1698
  %v1917 = vpack.c.b16 %v1701, %v1700
  %v1918 = vpack.c.b16 %v1703, %v1702
  %v1919 = vpack.c.b16 %v1705, %v1704
  %v1920 = vpack.c.b16 %v1707, %v1706
  %v1921 = vpack.c.b16 %v1709, %v1708
  %v1922 = vpack.c.b16 %v1711, %v1710
  %v1923 = vpack.c.b16 %v1713, %v1712
  %v1924 = vpack.c.b16 %v1715, %v1714
  %v1925 = vpack.c.b16 %v1717, %v1716
  %v1926 = vpack.c.b16 %v1719, %v1718
  %v1927 = vpack.c.b16 %v1721, %v1720
  %v1928 = vpack.c.b16 %v1723, %v1722
  %v1929 = vpack.c.b16 %v1725, %v1724
  %v1930 = vpack.c.b16 %v1727, %v1726
  %v1931 = vpack.c.b16 %v1729, %v1728
  %v1932 = vpack.c.b16 %v1731, %v1730
  %v1933 = vpack.c.b16 %v1733, %v1732
  %v1934 = vpack.c.b16 %v1735, %v1734
  %v1935 = vpack.c.b16 %v1737, %v1736
  %v1936 = vpack.c.b16 %v1739, %v1738
  %v1937 = vpack.c.b16 %v1741, %v1740
  %v1938 = vpack.c.b16 %v1743, %v1742
  %v1939 = vpack.c.b16 %v1745, %v1744
  %v1940 = vpack.c.b16 %v1747, %v1746
  %v1941 = vpack.c.b16 %v1749, %v1748
  %v1942 = vpack.c.b16 %v1751, %v1750
  %v1943 = vpack.c.b16 %v1753, %v1752
  %v1944 = vpack.c.b16 %v1755, %v1754
  %v1945 = vpack.c.b16 %v1757, %v1756
  %v1946 = vpack.c.b16 %v1759, %v1758
  %v1947 = vpack.c.b16 %v1761, %v1760
  %v1948 = vpack.c.b16 %v1763, %v1762
  %v1949 = vpack.c.b16 %v1765, %v1764
  %v1950 = vpack.c.b16 %v1767, %v1766
  %v1951 = vpack.c.b16 %v1769, %v1768
  %v1952 = vpack.c.b16 %v1771, %v1770
  %v1953 = vpack.c.b16 %v1773, %v1772
  %v1954 = vpack.c.b16 %v1775, %v1774
  %v1955 = vpack.c.b16 %v1777, %v1776
  %v1956 = vpack.c.b16 %v1779, %v1778
  %v1957 = vpack.c.b16 %v1781, %v1780
  %v1958 = vpack.c.b16 %v1783, %v1782
  %v1959 = vpack.c.b16 %v1785, %v1784
  %v1960 = vpack.c.b16 %v1787, %v1786
  %v1961 = vpack.c.b16 %v1789, %v1788
  %v1962 = vpack.c.b16 %v1791, %v1790
  %v1963 = vpack.c.b16 %v1793, %v1792
  %v1964 = vpack.c.b16 %v1795, %v1794
  %v1965 = vpack.c.b16 %v1797, %v1796
  %v1966 = vpack.c.b16 %v1799, %v1798
  %v1967 = vpack.c.b16 %v1801, %v1800
  %v1968 = vpack.c.b16 %v1803, %v1802
  %v1969 = vpack.c.b16 %v1805, %v1804
  %v1970 = vpack.c.b16 %v1807, %v1806
  %v1971 = vpack.c.b16 %v1809, %v1808
  %v1972 = vpack.c.b16 %v1811, %v1810
  %v1973 = vpack.c.b16 %v1813, %v1812
  %v1974 = vpack.c.b16 %v1815, %v1814
  %v1975 = vpack.c.b16 %v1817, %v1816
  %v1976 = vpack.c.b16 %v1819, %v1818
  %v1977 = vpack.c.b16 %v1821, %v1820
  %v1978 = vpack.c.b16 %v1823, %v1822
  %v1979 = vpack.c.b16 %v1825, %v1824
  %v1980 = vpack.c.b16 %v1827, %v1826
  %v1981 = vpack.c.b16 %v1829, %v1828
  %v1982 = vpack.c.b16 %v1831, %v1830
  %v1983 = vpack.c.b16 %v1833, %v1832
  %v1984 = vpack.c.b16 %v1835, %v1834
  %v1985 = vpack.c.b16 %v1837, %v1836
  %v1986 = vpack.c.b16 %v1839, %v1838
  %v1987 = vpack.c.b16 %v1841, %v1840
  %v1988 = vpack.c.b16 %v1843, %v1842
  %v1989 = vpack.c.b16 %v1845, %v1844
  %v1990 = vpack.c.b16 %v1847, %v1846
  %v1991 = vpack.c.b16 %v1849, %v1848
  %v1992 = vpack.c.b16 %v1851, %v1850
  %v1993 = vpack.c.b16 %v1853, %v1852
  %v1994 = vpack.c.b16 %v1855, %v1854
  %v1995 = vpack.c.b16 %v1857, %v1856
  %v1996 = vpack.c.b16 %v1859, %v1858
  %v1997 = vpack.c.b16 %v1861, %v1860
  %v1998 = vpack.c.b16 %v1863, %v1862
  %v1999 = vpack.c.b16 %v1865, %v1864
  %v2000 = vpack.c.b16 %v1867, %v1866
  %v2001 = vpack.c.b16 %v1869, %v1868
  %v2002 = vpack.c.b16 %v1871, %v1870
  %v2003 = vpack.c.b16 %v1873, %v1872
  %v2004 = vpack.c.b16 %v1875, %v1874
  %v2005 = vpack.c.b16 %v1877, %v1876
  %2134 = vst [vmem:[%s4] sm:$0xff] %v1878
  %2135 = vst [vmem:[%s4 + $0x8] sm:$0xff] %v1879
  %2136 = vst [vmem:[%s4 + $0x10] sm:$0xff] %v1880
  %2137 = vst [vmem:[%s4 + $0x18] sm:$0xff] %v1881
  %2138 = vst [vmem:[%s4 + $0x20] sm:$0xff] %v1882
  %2139 = vst [vmem:[%s4 + $0x28] sm:$0xff] %v1883
  %2140 = vst [vmem:[%s4 + $0x30] sm:$0xff] %v1884
  %2141 = vst [vmem:[%s4 + $0x38] sm:$0xff] %v1885
  %2142 = vst [vmem:[%s4 + $0x40] sm:$0xff] %v1886
  %2143 = vst [vmem:[%s4 + $0x48] sm:$0xff] %v1887
  %2144 = vst [vmem:[%s4 + $0x50] sm:$0xff] %v1888
  %2145 = vst [vmem:[%s4 + $0x58] sm:$0xff] %v1889
  %2146 = vst [vmem:[%s4 + $0x60] sm:$0xff] %v1890
  %2147 = vst [vmem:[%s4 + $0x68] sm:$0xff] %v1891
  %2148 = vst [vmem:[%s4 + $0x70] sm:$0xff] %v1892
  %2149 = vst [vmem:[%s4 + $0x78] sm:$0xff] %v1893
  %2150 = vst [vmem:[%s4 + $0x80] sm:$0xff] %v1894
  %2151 = vst [vmem:[%s4 + $0x88] sm:$0xff] %v1895
  %2152 = vst [vmem:[%s4 + $0x90] sm:$0xff] %v1896
  %2153 = vst [vmem:[%s4 + $0x98] sm:$0xff] %v1897
  %2154 = vst [vmem:[%s4 + $0xa0] sm:$0xff] %v1898
  %2155 = vst [vmem:[%s4 + $0xa8] sm:$0xff] %v1899
  %2156 = vst [vmem:[%s4 + $0xb0] sm:$0xff] %v1900
  %2157 = vst [vmem:[%s4 + $0xb8] sm:$0xff] %v1901
  %2158 = vst [vmem:[%s4 + $0xc0] sm:$0xff] %v1902
  %2159 = vst [vmem:[%s4 + $0xc8] sm:$0xff] %v1903
  %2160 = vst [vmem:[%s4 + $0xd0] sm:$0xff] %v1904
  %2161 = vst [vmem:[%s4 + $0xd8] sm:$0xff] %v1905
  %2162 = vst [vmem:[%s4 + $0xe0] sm:$0xff] %v1906
  %2163 = vst [vmem:[%s4 + $0xe8] sm:$0xff] %v1907
  %2164 = vst [vmem:[%s4 + $0xf0] sm:$0xff] %v1908
  %2165 = vst [vmem:[%s4 + $0xf8] sm:$0xff] %v1909
  %2166 = vst [vmem:[%s4 + $0x100] sm:$0xff] %v1910
  %2167 = vst [vmem:[%s4 + $0x108] sm:$0xff] %v1911
  %2168 = vst [vmem:[%s4 + $0x110] sm:$0xff] %v1912
  %2169 = vst [vmem:[%s4 + $0x118] sm:$0xff] %v1913
  %2170 = vst [vmem:[%s4 + $0x120] sm:$0xff] %v1914
  %2171 = vst [vmem:[%s4 + $0x128] sm:$0xff] %v1915
  %2172 = vst [vmem:[%s4 + $0x130] sm:$0xff] %v1916
  %2173 = vst [vmem:[%s4 + $0x138] sm:$0xff] %v1917
  %2174 = vst [vmem:[%s4 + $0x140] sm:$0xff] %v1918
  %2175 = vst [vmem:[%s4 + $0x148] sm:$0xff] %v1919
  %2176 = vst [vmem:[%s4 + $0x150] sm:$0xff] %v1920
  %2177 = vst [vmem:[%s4 + $0x158] sm:$0xff] %v1921
  %2178 = vst [vmem:[%s4 + $0x160] sm:$0xff] %v1922
  %2179 = vst [vmem:[%s4 + $0x168] sm:$0xff] %v1923
  %2180 = vst [vmem:[%s4 + $0x170] sm:$0xff] %v1924
  %2181 = vst [vmem:[%s4 + $0x178] sm:$0xff] %v1925
  %2182 = vst [vmem:[%s4 + $0x180] sm:$0xff] %v1926
  %2183 = vst [vmem:[%s4 + $0x188] sm:$0xff] %v1927
  %2184 = vst [vmem:[%s4 + $0x190] sm:$0xff] %v1928
  %2185 = vst [vmem:[%s4 + $0x198] sm:$0xff] %v1929
  %2186 = vst [vmem:[%s4 + $0x1a0] sm:$0xff] %v1930
  %2187 = vst [vmem:[%s4 + $0x1a8] sm:$0xff] %v1931
  %2188 = vst [vmem:[%s4 + $0x1b0] sm:$0xff] %v1932
  %2189 = vst [vmem:[%s4 + $0x1b8] sm:$0xff] %v1933
  %2190 = vst [vmem:[%s4 + $0x1c0] sm:$0xff] %v1934
  %2191 = vst [vmem:[%s4 + $0x1c8] sm:$0xff] %v1935
  %2192 = vst [vmem:[%s4 + $0x1d0] sm:$0xff] %v1936
  %2193 = vst [vmem:[%s4 + $0x1d8] sm:$0xff] %v1937
  %2194 = vst [vmem:[%s4 + $0x1e0] sm:$0xff] %v1938
  %2195 = vst [vmem:[%s4 + $0x1e8] sm:$0xff] %v1939
  %2196 = vst [vmem:[%s4 + $0x1f0] sm:$0xff] %v1940
  %2197 = vst [vmem:[%s4 + $0x1f8] sm:$0xff] %v1941
  %2198 = vst [vmem:[%s4 + $0x200] sm:$0xff] %v1942
  %2199 = vst [vmem:[%s4 + $0x208] sm:$0xff] %v1943
  %2200 = vst [vmem:[%s4 + $0x210] sm:$0xff] %v1944
  %2201 = vst [vmem:[%s4 + $0x218] sm:$0xff] %v1945
  %2202 = vst [vmem:[%s4 + $0x220] sm:$0xff] %v1946
  %2203 = vst [vmem:[%s4 + $0x228] sm:$0xff] %v1947
  %2204 = vst [vmem:[%s4 + $0x230] sm:$0xff] %v1948
  %2205 = vst [vmem:[%s4 + $0x238] sm:$0xff] %v1949
  %2206 = vst [vmem:[%s4 + $0x240] sm:$0xff] %v1950
  %2207 = vst [vmem:[%s4 + $0x248] sm:$0xff] %v1951
  %2208 = vst [vmem:[%s4 + $0x250] sm:$0xff] %v1952
  %2209 = vst [vmem:[%s4 + $0x258] sm:$0xff] %v1953
  %2210 = vst [vmem:[%s4 + $0x260] sm:$0xff] %v1954
  %2211 = vst [vmem:[%s4 + $0x268] sm:$0xff] %v1955
  %2212 = vst [vmem:[%s4 + $0x270] sm:$0xff] %v1956
  %2213 = vst [vmem:[%s4 + $0x278] sm:$0xff] %v1957
  %2214 = vst [vmem:[%s4 + $0x280] sm:$0xff] %v1958
  %2215 = vst [vmem:[%s4 + $0x288] sm:$0xff] %v1959
  %2216 = vst [vmem:[%s4 + $0x290] sm:$0xff] %v1960
  %2217 = vst [vmem:[%s4 + $0x298] sm:$0xff] %v1961
  %2218 = vst [vmem:[%s4 + $0x2a0] sm:$0xff] %v1962
  %2219 = vst [vmem:[%s4 + $0x2a8] sm:$0xff] %v1963
  %2220 = vst [vmem:[%s4 + $0x2b0] sm:$0xff] %v1964
  %2221 = vst [vmem:[%s4 + $0x2b8] sm:$0xff] %v1965
  %2222 = vst [vmem:[%s4 + $0x2c0] sm:$0xff] %v1966
  %2223 = vst [vmem:[%s4 + $0x2c8] sm:$0xff] %v1967
  %2224 = vst [vmem:[%s4 + $0x2d0] sm:$0xff] %v1968
  %2225 = vst [vmem:[%s4 + $0x2d8] sm:$0xff] %v1969
  %2226 = vst [vmem:[%s4 + $0x2e0] sm:$0xff] %v1970
  %2227 = vst [vmem:[%s4 + $0x2e8] sm:$0xff] %v1971
  %2228 = vst [vmem:[%s4 + $0x2f0] sm:$0xff] %v1972
  %2229 = vst [vmem:[%s4 + $0x2f8] sm:$0xff] %v1973
  %2230 = vst [vmem:[%s4 + $0x300] sm:$0xff] %v1974
  %2231 = vst [vmem:[%s4 + $0x308] sm:$0xff] %v1975
  %2232 = vst [vmem:[%s4 + $0x310] sm:$0xff] %v1976
  %2233 = vst [vmem:[%s4 + $0x318] sm:$0xff] %v1977
  %2234 = vst [vmem:[%s4 + $0x320] sm:$0xff] %v1978
  %2235 = vst [vmem:[%s4 + $0x328] sm:$0xff] %v1979
  %2236 = vst [vmem:[%s4 + $0x330] sm:$0xff] %v1980
  %2237 = vst [vmem:[%s4 + $0x338] sm:$0xff] %v1981
  %2238 = vst [vmem:[%s4 + $0x340] sm:$0xff] %v1982
  %2239 = vst [vmem:[%s4 + $0x348] sm:$0xff] %v1983
  %2240 = vst [vmem:[%s4 + $0x350] sm:$0xff] %v1984
  %2241 = vst [vmem:[%s4 + $0x358] sm:$0xff] %v1985
  %2242 = vst [vmem:[%s4 + $0x360] sm:$0xff] %v1986
  %2243 = vst [vmem:[%s4 + $0x368] sm:$0xff] %v1987
  %2244 = vst [vmem:[%s4 + $0x370] sm:$0xff] %v1988
  %2245 = vst [vmem:[%s4 + $0x378] sm:$0xff] %v1989
  %2246 = vst [vmem:[%s4 + $0x380] sm:$0xff] %v1990
  %2247 = vst [vmem:[%s4 + $0x388] sm:$0xff] %v1991
  %2248 = vst [vmem:[%s4 + $0x390] sm:$0xff] %v1992
  %2249 = vst [vmem:[%s4 + $0x398] sm:$0xff] %v1993
  %2250 = vst [vmem:[%s4 + $0x3a0] sm:$0xff] %v1994
  %2251 = vst [vmem:[%s4 + $0x3a8] sm:$0xff] %v1995
  %2252 = vst [vmem:[%s4 + $0x3b0] sm:$0xff] %v1996
  %2253 = vst [vmem:[%s4 + $0x3b8] sm:$0xff] %v1997
  %2254 = vst [vmem:[%s4 + $0x3c0] sm:$0xff] %v1998
  %2255 = vst [vmem:[%s4 + $0x3c8] sm:$0xff] %v1999
  %2256 = vst [vmem:[%s4 + $0x3d0] sm:$0xff] %v2000
  %2257 = vst [vmem:[%s4 + $0x3d8] sm:$0xff] %v2001
  %2258 = vst [vmem:[%s4 + $0x3e0] sm:$0xff] %v2002
  %2259 = vst [vmem:[%s4 + $0x3e8] sm:$0xff] %v2003
  %2260 = vst [vmem:[%s4 + $0x3f0] sm:$0xff] %v2004
  %2261 = vst [vmem:[%s4 + $0x3f8] sm:$0xff] %v2005
  %2262 = vmatprep.subr.mxu0 %v631
  %2263 = vmatpush1.msra.mxu0 %v629
  %2264 = vmatprep.subr.mxu0 %v635
  %2265 = vmatpush1.msra.mxu0 %v633
  %2266 = vmatprep.subr.mxu0 %v641
  %2267 = vmatpush1.msra.mxu0 %v639
  %2268 = vmatprep.subr.mxu0 %v645
  %2269 = vmatpush1.msra.mxu0 %v643
  %2270 = vmatprep.subr.mxu0 %v651
  %2271 = vmatpush1.msra.mxu0 %v649
  %2272 = vmatprep.subr.mxu0 %v655
  %2273 = vmatpush1.msra.mxu0 %v653
  %2274 = vmatprep.subr.mxu0 %v661
  %2275 = vmatpush1.msra.mxu0 %v659
  %2276 = vmatprep.subr.mxu0 %v665
  %2277 = vmatpush1.msra.mxu0 %v663
  %2278 = vmatprep.subr.mxu0 %v671
  %2279 = vmatpush1.msra.mxu0 %v669
  %2280 = vmatprep.subr.mxu0 %v675
  %2281 = vmatpush1.msra.mxu0 %v673
  %2282 = vmatprep.subr.mxu0 %v681
  %2283 = vmatpush1.msra.mxu0 %v679
  %2284 = vmatprep.subr.mxu0 %v685
  %2285 = vmatpush1.msra.mxu0 %v683
  %2286 = vmatprep.subr.mxu0 %v691
  %2287 = vmatpush1.msra.mxu0 %v689
  %2288 = vmatprep.subr.mxu0 %v695
  %2289 = vmatpush1.msra.mxu0 %v693
  %2290 = vmatprep.subr.mxu0 %v701
  %2291 = vmatpush1.msra.mxu0 %v699
  %2292 = vmatprep.subr.mxu0 %v705
  %2293 = vmatpush1.msra.mxu0 %v703
  %2294 = vmatprep.subr.mxu0 %v711
  %2295 = vmatpush1.msra.mxu0 %v709
  %2296 = vmatprep.subr.mxu0 %v715
  %2297 = vmatpush1.msra.mxu0 %v713
  %2298 = vmatprep.subr.mxu0 %v721
  %2299 = vmatpush1.msra.mxu0 %v719
  %2300 = vmatprep.subr.mxu0 %v725
  %2301 = vmatpush1.msra.mxu0 %v723
  %2302 = vmatprep.subr.mxu0 %v731
  %2303 = vmatpush1.msra.mxu0 %v729
  %2304 = vmatprep.subr.mxu0 %v735
  %2305 = vmatpush1.msra.mxu0 %v733
  %2306 = vmatprep.subr.mxu0 %v741
  %2307 = vmatpush1.msra.mxu0 %v739
  %2308 = vmatprep.subr.mxu0 %v745
  %2309 = vmatpush1.msra.mxu0 %v743
  %2310 = vmatprep.subr.mxu0 %v751
  %2311 = vmatpush1.msra.mxu0 %v749
  %2312 = vmatprep.subr.mxu0 %v755
  %2313 = vmatpush1.msra.mxu0 %v753
  %2314 = vmatprep.subr.mxu0 %v761
  %2315 = vmatpush1.msra.mxu0 %v759
  %2316 = vmatprep.subr.mxu0 %v765
  %2317 = vmatpush1.msra.mxu0 %v763
  %2318 = vmatprep.subr.mxu0 %v771
  %2319 = vmatpush1.msra.mxu0 %v769
  %2320 = vmatprep.subr.mxu0 %v775
  %2321 = vmatpush1.msra.mxu0 %v773
  %2322 = vmatprep.subr.mxu0 %v781
  %2323 = vmatpush1.msra.mxu0 %v779
  %2324 = vmatprep.subr.mxu0 %v785
  %2325 = vmatpush1.msra.mxu0 %v783
  %2326 = vmatprep.mubr.f32.mxu0 1.0
  %2327 = vmatmul.mubr.f32.gmra.mrb[0].mxu0 1.0
  %v2328 = vpop.f32.mrb[0].mxu0
  %v2329 = vadd.f32 0.0, %v2328
  %v2330 = vpop.f32.mrb[0].mxu0
  %v2331 = vadd.f32 0.0, %v2330
  %2332 = vdwg.mxu0
  %2333 = vmatprep.subr.mxu0 %v824
  %2334 = vmatpush1.msra.mxu0 %v822
  %2335 = vmatprep.subr.mxu0 %v828
  %2336 = vmatpush1.msra.mxu0 %v826
  %2337 = vmatprep.subr.mxu0 %v834
  %2338 = vmatpush1.msra.mxu0 %v832
  %2339 = vmatprep.subr.mxu0 %v838
  %2340 = vmatpush1.msra.mxu0 %v836
  %2341 = vmatprep.subr.mxu0 %v844
  %2342 = vmatpush1.msra.mxu0 %v842
  %2343 = vmatprep.subr.mxu0 %v848
  %2344 = vmatpush1.msra.mxu0 %v846
  %2345 = vmatprep.subr.mxu0 %v854
  %2346 = vmatpush1.msra.mxu0 %v852
  %2347 = vmatprep.subr.mxu0 %v858
  %2348 = vmatpush1.msra.mxu0 %v856
  %2349 = vmatprep.subr.mxu0 %v864
  %2350 = vmatpush1.msra.mxu0 %v862
  %2351 = vmatprep.subr.mxu0 %v868
  %2352 = vmatpush1.msra.mxu0 %v866
  %2353 = vmatprep.subr.mxu0 %v874
  %2354 = vmatpush1.msra.mxu0 %v872
  %2355 = vmatprep.subr.mxu0 %v878
  %2356 = vmatpush1.msra.mxu0 %v876
  %2357 = vmatprep.subr.mxu0 %v884
  %2358 = vmatpush1.msra.mxu0 %v882
  %2359 = vmatprep.subr.mxu0 %v888
  %2360 = vmatpush1.msra.mxu0 %v886
  %2361 = vmatprep.subr.mxu0 %v894
  %2362 = vmatpush1.msra.mxu0 %v892
  %2363 = vmatprep.subr.mxu0 %v898
  %2364 = vmatpush1.msra.mxu0 %v896
  %2365 = vmatprep.subr.mxu0 %v904
  %2366 = vmatpush1.msra.mxu0 %v902
  %2367 = vmatprep.subr.mxu0 %v908
  %2368 = vmatpush1.msra.mxu0 %v906
  %2369 = vmatprep.subr.mxu0 %v914
  %2370 = vmatpush1.msra.mxu0 %v912
  %2371 = vmatprep.subr.mxu0 %v918
  %2372 = vmatpush1.msra.mxu0 %v916
  %2373 = vmatprep.subr.mxu0 %v924
  %2374 = vmatpush1.msra.mxu0 %v922
  %2375 = vmatprep.subr.mxu0 %v928
  %2376 = vmatpush1.msra.mxu0 %v926
  %2377 = vmatprep.subr.mxu0 %v934
  %2378 = vmatpush1.msra.mxu0 %v932
  %2379 = vmatprep.subr.mxu0 %v938
  %2380 = vmatpush1.msra.mxu0 %v936
  %2381 = vmatprep.subr.mxu0 %v944
  %2382 = vmatpush1.msra.mxu0 %v942
  %2383 = vmatprep.subr.mxu0 %v948
  %2384 = vmatpush1.msra.mxu0 %v946
  %2385 = vmatprep.subr.mxu0 %v954
  %2386 = vmatpush1.msra.mxu0 %v952
  %2387 = vmatprep.subr.mxu0 %v958
  %2388 = vmatpush1.msra.mxu0 %v956
  %2389 = vmatprep.subr.mxu0 %v964
  %2390 = vmatpush1.msra.mxu0 %v962
  %2391 = vmatprep.subr.mxu0 %v968
  %2392 = vmatpush1.msra.mxu0 %v966
  %2393 = vmatprep.subr.mxu0 %v974
  %2394 = vmatpush1.msra.mxu0 %v972
  %2395 = vmatprep.subr.mxu0 %v978
  %2396 = vmatpush1.msra.mxu0 %v976
  %2397 = vmatprep.mubr.f32.mxu0 1.0
  %2398 = vmatmul.mubr.f32.gmra.mrb[0].mxu0 1.0
  %v2399 = vpop.f32.mrb[0].mxu0
  %v2400 = vadd.f32 0.0, %v2399
  %v2401 = vpop.f32.mrb[0].mxu0
  %v2402 = vadd.f32 0.0, %v2401
  %2403 = vdwg.mxu0
  %2404 = vmatprep.subr.mxu0 %v1017
  %2405 = vmatpush1.msra.mxu0 %v1015
  %2406 = vmatprep.subr.mxu0 %v1021
  %2407 = vmatpush1.msra.mxu0 %v1019
  %2408 = vmatprep.subr.mxu0 %v1027
  %2409 = vmatpush1.msra.mxu0 %v1025
  %2410 = vmatprep.subr.mxu0 %v1031
  %2411 = vmatpush1.msra.mxu0 %v1029
  %2412 = vmatprep.subr.mxu0 %v1037
  %2413 = vmatpush1.msra.mxu0 %v1035
  %2414 = vmatprep.subr.mxu0 %v1041
  %2415 = vmatpush1.msra.mxu0 %v1039
  %2416 = vmatprep.subr.mxu0 %v1047
  %2417 = vmatpush1.msra.mxu0 %v1045
  %2418 = vmatprep.subr.mxu0 %v1051
  %2419 = vmatpush1.msra.mxu0 %v1049
  %2420 = vmatprep.subr.mxu0 %v1057
  %2421 = vmatpush1.msra.mxu0 %v1055
  %2422 = vmatprep.subr.mxu0 %v1061
  %2423 = vmatpush1.msra.mxu0 %v1059
  %2424 = vmatprep.subr.mxu0 %v1067
  %2425 = vmatpush1.msra.mxu0 %v1065
  %2426 = vmatprep.subr.mxu0 %v1071
  %2427 = vmatpush1.msra.mxu0 %v1069
  %2428 = vmatprep.subr.mxu0 %v1077
  %2429 = vmatpush1.msra.mxu0 %v1075
  %2430 = vmatprep.subr.mxu0 %v1081
  %2431 = vmatpush1.msra.mxu0 %v1079
  %2432 = vmatprep.subr.mxu0 %v1087
  %2433 = vmatpush1.msra.mxu0 %v1085
  %2434 = vmatprep.subr.mxu0 %v1091
  %2435 = vmatpush1.msra.mxu0 %v1089
  %2436 = vmatprep.subr.mxu0 %v1097
  %2437 = vmatpush1.msra.mxu0 %v1095
  %2438 = vmatprep.subr.mxu0 %v1101
  %2439 = vmatpush1.msra.mxu0 %v1099
  %2440 = vmatprep.subr.mxu0 %v1107
  %2441 = vmatpush1.msra.mxu0 %v1105
  %2442 = vmatprep.subr.mxu0 %v1111
  %2443 = vmatpush1.msra.mxu0 %v1109
  %2444 = vmatprep.subr.mxu0 %v1117
  %2445 = vmatpush1.msra.mxu0 %v1115
  %2446 = vmatprep.subr.mxu0 %v1121
  %2447 = vmatpush1.msra.mxu0 %v1119
  %2448 = vmatprep.subr.mxu0 %v1127
  %2449 = vmatpush1.msra.mxu0 %v1125
  %2450 = vmatprep.subr.mxu0 %v1131
  %2451 = vmatpush1.msra.mxu0 %v1129
  %2452 = vmatprep.subr.mxu0 %v1137
  %2453 = vmatpush1.msra.mxu0 %v1135
  %2454 = vmatprep.subr.mxu0 %v1141
  %2455 = vmatpush1.msra.mxu0 %v1139
  %2456 = vmatprep.subr.mxu0 %v1147
  %2457 = vmatpush1.msra.mxu0 %v1145
  %2458 = vmatprep.subr.mxu0 %v1151
  %2459 = vmatpush1.msra.mxu0 %v1149
  %2460 = vmatprep.subr.mxu0 %v1157
  %2461 = vmatpush1.msra.mxu0 %v1155
  %2462 = vmatprep.subr.mxu0 %v1161
  %2463 = vmatpush1.msra.mxu0 %v1159
  %2464 = vmatprep.subr.mxu0 %v1167
  %2465 = vmatpush1.msra.mxu0 %v1165
  %2466 = vmatprep.subr.mxu0 %v1171
  %2467 = vmatpush1.msra.mxu0 %v1169
  %2468 = vmatprep.mubr.f32.mxu0 1.0
  %2469 = vmatmul.mubr.f32.gmra.mrb[0].mxu0 1.0
  %v2470 = vpop.f32.mrb[0].mxu0
  %v2471 = vadd.f32 0.0, %v2470
  %v2472 = vpop.f32.mrb[0].mxu0
  %v2473 = vadd.f32 0.0, %v2472
  %2474 = vdwg.mxu0
  %2475 = vmatprep.subr.mxu0 %v1210
  %2476 = vmatpush1.msra.mxu0 %v1208
  %2477 = vmatprep.subr.mxu0 %v1214
  %2478 = vmatpush1.msra.mxu0 %v1212
  %2479 = vmatprep.subr.mxu0 %v1220
  %2480 = vmatpush1.msra.mxu0 %v1218
  %2481 = vmatprep.subr.mxu0 %v1224
  %2482 = vmatpush1.msra.mxu0 %v1222
  %2483 = vmatprep.subr.mxu0 %v1230
  %2484 = vmatpush1.msra.mxu0 %v1228
  %2485 = vmatprep.subr.mxu0 %v1234
  %2486 = vmatpush1.msra.mxu0 %v1232
  %2487 = vmatprep.subr.mxu0 %v1240
  %2488 = vmatpush1.msra.mxu0 %v1238
  %2489 = vmatprep.subr.mxu0 %v1244
  %2490 = vmatpush1.msra.mxu0 %v1242
  %2491 = vmatprep.subr.mxu0 %v1250
  %2492 = vmatpush1.msra.mxu0 %v1248
  %2493 = vmatprep.subr.mxu0 %v1254
  %2494 = vmatpush1.msra.mxu0 %v1252
  %2495 = vmatprep.subr.mxu0 %v1260
  %2496 = vmatpush1.msra.mxu0 %v1258
  %2497 = vmatprep.subr.mxu0 %v1264
  %2498 = vmatpush1.msra.mxu0 %v1262
  %2499 = vmatprep.subr.mxu0 %v1270
  %2500 = vmatpush1.msra.mxu0 %v1268
  %2501 = vmatprep.subr.mxu0 %v1274
  %2502 = vmatpush1.msra.mxu0 %v1272
  %2503 = vmatprep.subr.mxu0 %v1280
  %2504 = vmatpush1.msra.mxu0 %v1278
  %2505 = vmatprep.subr.mxu0 %v1284
  %2506 = vmatpush1.msra.mxu0 %v1282
  %2507 = vmatprep.subr.mxu0 %v1290
  %2508 = vmatpush1.msra.mxu0 %v1288
  %2509 = vmatprep.subr.mxu0 %v1294
  %2510 = vmatpush1.msra.mxu0 %v1292
  %2511 = vmatprep.subr.mxu0 %v1300
  %2512 = vmatpush1.msra.mxu0 %v1298
  %2513 = vmatprep.subr.mxu0 %v1304
  %2514 = vmatpush1.msra.mxu0 %v1302
  %2515 = vmatprep.subr.mxu0 %v1310
  %2516 = vmatpush1.msra.mxu0 %v1308
  %2517 = vmatprep.subr.mxu0 %v1314
  %2518 = vmatpush1.msra.mxu0 %v1312
  %2519 = vmatprep.subr.mxu0 %v1320
  %2520 = vmatpush1.msra.mxu0 %v1318
  %2521 = vmatprep.subr.mxu0 %v1324
  %2522 = vmatpush1.msra.mxu0 %v1322
  %2523 = vmatprep.subr.mxu0 %v1330
  %2524 = vmatpush1.msra.mxu0 %v1328
  %2525 = vmatprep.subr.mxu0 %v1334
  %2526 = vmatpush1.msra.mxu0 %v1332
  %2527 = vmatprep.subr.mxu0 %v1340
  %2528 = vmatpush1.msra.mxu0 %v1338
  %2529 = vmatprep.subr.mxu0 %v1344
  %2530 = vmatpush1.msra.mxu0 %v1342
  %2531 = vmatprep.subr.mxu0 %v1350
  %2532 = vmatpush1.msra.mxu0 %v1348
  %2533 = vmatprep.subr.mxu0 %v1354
  %2534 = vmatpush1.msra.mxu0 %v1352
  %2535 = vmatprep.subr.mxu0 %v1360
  %2536 = vmatpush1.msra.mxu0 %v1358
  %2537 = vmatprep.subr.mxu0 %v1364
  %2538 = vmatpush1.msra.mxu0 %v1362
  %2539 = vmatprep.mubr.f32.mxu0 1.0
  %2540 = vmatmul.mubr.f32.gmra.mrb[0].mxu0 1.0
  %v2541 = vpop.f32.mrb[0].mxu0
  %v2542 = vadd.f32 0.0, %v2541
  %v2543 = vpop.f32.mrb[0].mxu0
  %v2544 = vadd.f32 0.0, %v2543
  %2545 = vdwg.mxu0
  %v2554 = vcombine.low %v2329, %v2331
  %v2555 = vcombine.low %v2400, %v2402
  %v2556 = vcombine.low %v2471, %v2473
  %v2557 = vcombine.low %v2542, %v2544
  %v2559 = vunpack.c.l.s4 1966171168
  %v2560 = vunpack.c.0.s8 %v2559
  %v2561 = vlaneseq
  %v2562 = vshrl.u32 %v2561, 7
  %v2563 = vsub.s32 %v2560, %v2562
  %v2564 = vrot.slane %v2554, %v2563
  %v2566 = vunpack.c.l.s4 1966171168
  %v2567 = vunpack.c.0.s8 %v2566
  %v2568 = vlaneseq
  %v2569 = vshrl.u32 %v2568, 7
  %v2570 = vsub.s32 %v2567, %v2569
  %v2571 = vrot.slane %v2555, %v2570
  %v2573 = vunpack.c.l.s4 1966171168
  %v2574 = vunpack.c.0.s8 %v2573
  %v2575 = vlaneseq
  %v2576 = vshrl.u32 %v2575, 7
  %v2577 = vsub.s32 %v2574, %v2576
  %v2578 = vrot.slane %v2556, %v2577
  %v2580 = vunpack.c.l.s4 1966171168
  %v2581 = vunpack.c.0.s8 %v2580
  %v2582 = vlaneseq
  %v2583 = vshrl.u32 %v2582, 7
  %v2584 = vsub.s32 %v2581, %v2583
  %v2585 = vrot.slane %v2557, %v2584
  %v2586 = vcombine.low %v2564, %v2571
  %v2587 = vcombine.low %v2578, %v2585
  %v2589 = vunpack.c.l.s4 1966171168
  %v2590 = vunpack.c.0.s8 %v2589
  %v2591 = vlaneseq
  %v2592 = vshrl.u32 %v2591, 7
  %v2593 = vsub.s32 %v2590, %v2592
  %v2594 = vrot.slane %v2586, %v2593
  %v2596 = vunpack.c.l.s4 1966171168
  %v2597 = vunpack.c.0.s8 %v2596
  %v2598 = vlaneseq
  %v2599 = vshrl.u32 %v2598, 7
  %v2600 = vsub.s32 %v2597, %v2599
  %v2601 = vrot.slane %v2587, %v2600
  %v2602 = vcombine.low %v2594, %v2601
  %2604 = vst [vmem:[%s5] ss:$2 sm:$0xff] %v2602
  %v2605 = vmul.f32 %v629, %v629
  %v2606 = vmul.f32 %v631, %v631
  %v2607 = vmul.f32 %v822, %v822
  %v2608 = vmul.f32 %v824, %v824
  %v2609 = vmul.f32 %v1015, %v1015
  %v2610 = vmul.f32 %v1017, %v1017
  %v2611 = vmul.f32 %v1208, %v1208
  %v2612 = vmul.f32 %v1210, %v1210
  %v2613 = vmul.f32 %v633, %v633
  %v2614 = vmul.f32 %v635, %v635
  %v2615 = vmul.f32 %v826, %v826
  %v2616 = vmul.f32 %v828, %v828
  %v2617 = vmul.f32 %v1019, %v1019
  %v2618 = vmul.f32 %v1021, %v1021
  %v2619 = vmul.f32 %v1212, %v1212
  %v2620 = vmul.f32 %v1214, %v1214
  %v2621 = vmul.f32 %v639, %v639
  %v2622 = vmul.f32 %v641, %v641
  %v2623 = vmul.f32 %v832, %v832
  %v2624 = vmul.f32 %v834, %v834
  %v2625 = vmul.f32 %v1025, %v1025
  %v2626 = vmul.f32 %v1027, %v1027
  %v2627 = vmul.f32 %v1218, %v1218
  %v2628 = vmul.f32 %v1220, %v1220
  %v2629 = vmul.f32 %v643, %v643
  %v2630 = vmul.f32 %v645, %v645
  %v2631 = vmul.f32 %v836, %v836
  %v2632 = vmul.f32 %v838, %v838
  %v2633 = vmul.f32 %v1029, %v1029
  %v2634 = vmul.f32 %v1031, %v1031
  %v2635 = vmul.f32 %v1222, %v1222
  %v2636 = vmul.f32 %v1224, %v1224
  %v2637 = vmul.f32 %v649, %v649
  %v2638 = vmul.f32 %v651, %v651
  %v2639 = vmul.f32 %v842, %v842
  %v2640 = vmul.f32 %v844, %v844
  %v2641 = vmul.f32 %v1035, %v1035
  %v2642 = vmul.f32 %v1037, %v1037
  %v2643 = vmul.f32 %v1228, %v1228
  %v2644 = vmul.f32 %v1230, %v1230
  %v2645 = vmul.f32 %v653, %v653
  %v2646 = vmul.f32 %v655, %v655
  %v2647 = vmul.f32 %v846, %v846
  %v2648 = vmul.f32 %v848, %v848
  %v2649 = vmul.f32 %v1039, %v1039
  %v2650 = vmul.f32 %v1041, %v1041
  %v2651 = vmul.f32 %v1232, %v1232
  %v2652 = vmul.f32 %v1234, %v1234
  %v2653 = vmul.f32 %v659, %v659
  %v2654 = vmul.f32 %v661, %v661
  %v2655 = vmul.f32 %v852, %v852
  %v2656 = vmul.f32 %v854, %v854
  %v2657 = vmul.f32 %v1045, %v1045
  %v2658 = vmul.f32 %v1047, %v1047
  %v2659 = vmul.f32 %v1238, %v1238
  %v2660 = vmul.f32 %v1240, %v1240
  %v2661 = vmul.f32 %v663, %v663
  %v2662 = vmul.f32 %v665, %v665
  %v2663 = vmul.f32 %v856, %v856
  %v2664 = vmul.f32 %v858, %v858
  %v2665 = vmul.f32 %v1049, %v1049
  %v2666 = vmul.f32 %v1051, %v1051
  %v2667 = vmul.f32 %v1242, %v1242
  %v2668 = vmul.f32 %v1244, %v1244
  %v2669 = vmul.f32 %v669, %v669
  %v2670 = vmul.f32 %v671, %v671
  %v2671 = vmul.f32 %v862, %v862
  %v2672 = vmul.f32 %v864, %v864
  %v2673 = vmul.f32 %v1055, %v1055
  %v2674 = vmul.f32 %v1057, %v1057
  %v2675 = vmul.f32 %v1248, %v1248
  %v2676 = vmul.f32 %v1250, %v1250
  %v2677 = vmul.f32 %v673, %v673
  %v2678 = vmul.f32 %v675, %v675
  %v2679 = vmul.f32 %v866, %v866
  %v2680 = vmul.f32 %v868, %v868
  %v2681 = vmul.f32 %v1059, %v1059
  %v2682 = vmul.f32 %v1061, %v1061
  %v2683 = vmul.f32 %v1252, %v1252
  %v2684 = vmul.f32 %v1254, %v1254
  %v2685 = vmul.f32 %v679, %v679
  %v2686 = vmul.f32 %v681, %v681
  %v2687 = vmul.f32 %v872, %v872
  %v2688 = vmul.f32 %v874, %v874
  %v2689 = vmul.f32 %v1065, %v1065
  %v2690 = vmul.f32 %v1067, %v1067
  %v2691 = vmul.f32 %v1258, %v1258
  %v2692 = vmul.f32 %v1260, %v1260
  %v2693 = vmul.f32 %v683, %v683
  %v2694 = vmul.f32 %v685, %v685
  %v2695 = vmul.f32 %v876, %v876
  %v2696 = vmul.f32 %v878, %v878
  %v2697 = vmul.f32 %v1069, %v1069
  %v2698 = vmul.f32 %v1071, %v1071
  %v2699 = vmul.f32 %v1262, %v1262
  %v2700 = vmul.f32 %v1264, %v1264
  %v2701 = vmul.f32 %v689, %v689
  %v2702 = vmul.f32 %v691, %v691
  %v2703 = vmul.f32 %v882, %v882
  %v2704 = vmul.f32 %v884, %v884
  %v2705 = vmul.f32 %v1075, %v1075
  %v2706 = vmul.f32 %v1077, %v1077
  %v2707 = vmul.f32 %v1268, %v1268
  %v2708 = vmul.f32 %v1270, %v1270
  %v2709 = vmul.f32 %v693, %v693
  %v2710 = vmul.f32 %v695, %v695
  %v2711 = vmul.f32 %v886, %v886
  %v2712 = vmul.f32 %v888, %v888
  %v2713 = vmul.f32 %v1079, %v1079
  %v2714 = vmul.f32 %v1081, %v1081
  %v2715 = vmul.f32 %v1272, %v1272
  %v2716 = vmul.f32 %v1274, %v1274
  %v2717 = vmul.f32 %v699, %v699
  %v2718 = vmul.f32 %v701, %v701
  %v2719 = vmul.f32 %v892, %v892
  %v2720 = vmul.f32 %v894, %v894
  %v2721 = vmul.f32 %v1085, %v1085
  %v2722 = vmul.f32 %v1087, %v1087
  %v2723 = vmul.f32 %v1278, %v1278
  %v2724 = vmul.f32 %v1280, %v1280
  %v2725 = vmul.f32 %v703, %v703
  %v2726 = vmul.f32 %v705, %v705
  %v2727 = vmul.f32 %v896, %v896
  %v2728 = vmul.f32 %v898, %v898
  %v2729 = vmul.f32 %v1089, %v1089
  %v2730 = vmul.f32 %v1091, %v1091
  %v2731 = vmul.f32 %v1282, %v1282
  %v2732 = vmul.f32 %v1284, %v1284
  %v2733 = vmul.f32 %v709, %v709
  %v2734 = vmul.f32 %v711, %v711
  %v2735 = vmul.f32 %v902, %v902
  %v2736 = vmul.f32 %v904, %v904
  %v2737 = vmul.f32 %v1095, %v1095
  %v2738 = vmul.f32 %v1097, %v1097
  %v2739 = vmul.f32 %v1288, %v1288
  %v2740 = vmul.f32 %v1290, %v1290
  %v2741 = vmul.f32 %v713, %v713
  %v2742 = vmul.f32 %v715, %v715
  %v2743 = vmul.f32 %v906, %v906
  %v2744 = vmul.f32 %v908, %v908
  %v2745 = vmul.f32 %v1099, %v1099
  %v2746 = vmul.f32 %v1101, %v1101
  %v2747 = vmul.f32 %v1292, %v1292
  %v2748 = vmul.f32 %v1294, %v1294
  %v2749 = vmul.f32 %v719, %v719
  %v2750 = vmul.f32 %v721, %v721
  %v2751 = vmul.f32 %v912, %v912
  %v2752 = vmul.f32 %v914, %v914
  %v2753 = vmul.f32 %v1105, %v1105
  %v2754 = vmul.f32 %v1107, %v1107
  %v2755 = vmul.f32 %v1298, %v1298
  %v2756 = vmul.f32 %v1300, %v1300
  %v2757 = vmul.f32 %v723, %v723
  %v2758 = vmul.f32 %v725, %v725
  %v2759 = vmul.f32 %v916, %v916
  %v2760 = vmul.f32 %v918, %v918
  %v2761 = vmul.f32 %v1109, %v1109
  %v2762 = vmul.f32 %v1111, %v1111
  %v2763 = vmul.f32 %v1302, %v1302
  %v2764 = vmul.f32 %v1304, %v1304
  %v2765 = vmul.f32 %v729, %v729
  %v2766 = vmul.f32 %v731, %v731
  %v2767 = vmul.f32 %v922, %v922
  %v2768 = vmul.f32 %v924, %v924
  %v2769 = vmul.f32 %v1115, %v1115
  %v2770 = vmul.f32 %v1117, %v1117
  %v2771 = vmul.f32 %v1308, %v1308
  %v2772 = vmul.f32 %v1310, %v1310
  %v2773 = vmul.f32 %v733, %v733
  %v2774 = vmul.f32 %v735, %v735
  %v2775 = vmul.f32 %v926, %v926
  %v2776 = vmul.f32 %v928, %v928
  %v2777 = vmul.f32 %v1119, %v1119
  %v2778 = vmul.f32 %v1121, %v1121
  %v2779 = vmul.f32 %v1312, %v1312
  %v2780 = vmul.f32 %v1314, %v1314
  %v2781 = vmul.f32 %v739, %v739
  %v2782 = vmul.f32 %v741, %v741
  %v2783 = vmul.f32 %v932, %v932
  %v2784 = vmul.f32 %v934, %v934
  %v2785 = vmul.f32 %v1125, %v1125
  %v2786 = vmul.f32 %v1127, %v1127
  %v2787 = vmul.f32 %v1318, %v1318
  %v2788 = vmul.f32 %v1320, %v1320
  %v2789 = vmul.f32 %v743, %v743
  %v2790 = vmul.f32 %v745, %v745
  %v2791 = vmul.f32 %v936, %v936
  %v2792 = vmul.f32 %v938, %v938
  %v2793 = vmul.f32 %v1129, %v1129
  %v2794 = vmul.f32 %v1131, %v1131
  %v2795 = vmul.f32 %v1322, %v1322
  %v2796 = vmul.f32 %v1324, %v1324
  %v2797 = vmul.f32 %v749, %v749
  %v2798 = vmul.f32 %v751, %v751
  %v2799 = vmul.f32 %v942, %v942
  %v2800 = vmul.f32 %v944, %v944
  %v2801 = vmul.f32 %v1135, %v1135
  %v2802 = vmul.f32 %v1137, %v1137
  %v2803 = vmul.f32 %v1328, %v1328
  %v2804 = vmul.f32 %v1330, %v1330
  %v2805 = vmul.f32 %v753, %v753
  %v2806 = vmul.f32 %v755, %v755
  %v2807 = vmul.f32 %v946, %v946
  %v2808 = vmul.f32 %v948, %v948
  %v2809 = vmul.f32 %v1139, %v1139
  %v2810 = vmul.f32 %v1141, %v1141
  %v2811 = vmul.f32 %v1332, %v1332
  %v2812 = vmul.f32 %v1334, %v1334
  %v2813 = vmul.f32 %v759, %v759
  %v2814 = vmul.f32 %v761, %v761
  %v2815 = vmul.f32 %v952, %v952
  %v2816 = vmul.f32 %v954, %v954
  %v2817 = vmul.f32 %v1145, %v1145
  %v2818 = vmul.f32 %v1147, %v1147
  %v2819 = vmul.f32 %v1338, %v1338
  %v2820 = vmul.f32 %v1340, %v1340
  %v2821 = vmul.f32 %v763, %v763
  %v2822 = vmul.f32 %v765, %v765
  %v2823 = vmul.f32 %v956, %v956
  %v2824 = vmul.f32 %v958, %v958
  %v2825 = vmul.f32 %v1149, %v1149
  %v2826 = vmul.f32 %v1151, %v1151
  %v2827 = vmul.f32 %v1342, %v1342
  %v2828 = vmul.f32 %v1344, %v1344
  %v2829 = vmul.f32 %v769, %v769
  %v2830 = vmul.f32 %v771, %v771
  %v2831 = vmul.f32 %v962, %v962
  %v2832 = vmul.f32 %v964, %v964
  %v2833 = vmul.f32 %v1155, %v1155
  %v2834 = vmul.f32 %v1157, %v1157
  %v2835 = vmul.f32 %v1348, %v1348
  %v2836 = vmul.f32 %v1350, %v1350
  %v2837 = vmul.f32 %v773, %v773
  %v2838 = vmul.f32 %v775, %v775
  %v2839 = vmul.f32 %v966, %v966
  %v2840 = vmul.f32 %v968, %v968
  %v2841 = vmul.f32 %v1159, %v1159
  %v2842 = vmul.f32 %v1161, %v1161
  %v2843 = vmul.f32 %v1352, %v1352
  %v2844 = vmul.f32 %v1354, %v1354
  %v2845 = vmul.f32 %v779, %v779
  %v2846 = vmul.f32 %v781, %v781
  %v2847 = vmul.f32 %v972, %v972
  %v2848 = vmul.f32 %v974, %v974
  %v2849 = vmul.f32 %v1165, %v1165
  %v2850 = vmul.f32 %v1167, %v1167
  %v2851 = vmul.f32 %v1358, %v1358
  %v2852 = vmul.f32 %v1360, %v1360
  %v2853 = vmul.f32 %v783, %v783
  %v2854 = vmul.f32 %v785, %v785
  %v2855 = vmul.f32 %v976, %v976
  %v2856 = vmul.f32 %v978, %v978
  %v2857 = vmul.f32 %v1169, %v1169
  %v2858 = vmul.f32 %v1171, %v1171
  %v2859 = vmul.f32 %v1362, %v1362
  %v2860 = vmul.f32 %v1364, %v1364
  %2861 = vmatprep.subr.mxu0 %v2606
  %2862 = vmatpush1.msra.mxu0 %v2605
  %2863 = vmatprep.subr.mxu0 %v2614
  %2864 = vmatpush1.msra.mxu0 %v2613
  %2865 = vmatprep.subr.mxu0 %v2622
  %2866 = vmatpush1.msra.mxu0 %v2621
  %2867 = vmatprep.subr.mxu0 %v2630
  %2868 = vmatpush1.msra.mxu0 %v2629
  %2869 = vmatprep.subr.mxu0 %v2638
  %2870 = vmatpush1.msra.mxu0 %v2637
  %2871 = vmatprep.subr.mxu0 %v2646
  %2872 = vmatpush1.msra.mxu0 %v2645
  %2873 = vmatprep.subr.mxu0 %v2654
  %2874 = vmatpush1.msra.mxu0 %v2653
  %2875 = vmatprep.subr.mxu0 %v2662
  %2876 = vmatpush1.msra.mxu0 %v2661
  %2877 = vmatprep.subr.mxu0 %v2670
  %2878 = vmatpush1.msra.mxu0 %v2669
  %2879 = vmatprep.subr.mxu0 %v2678
  %2880 = vmatpush1.msra.mxu0 %v2677
  %2881 = vmatprep.subr.mxu0 %v2686
  %2882 = vmatpush1.msra.mxu0 %v2685
  %2883 = vmatprep.subr.mxu0 %v2694
  %2884 = vmatpush1.msra.mxu0 %v2693
  %2885 = vmatprep.subr.mxu0 %v2702
  %2886 = vmatpush1.msra.mxu0 %v2701
  %2887 = vmatprep.subr.mxu0 %v2710
  %2888 = vmatpush1.msra.mxu0 %v2709
  %2889 = vmatprep.subr.mxu0 %v2718
  %2890 = vmatpush1.msra.mxu0 %v2717
  %2891 = vmatprep.subr.mxu0 %v2726
  %2892 = vmatpush1.msra.mxu0 %v2725
  %2893 = vmatprep.subr.mxu0 %v2734
  %2894 = vmatpush1.msra.mxu0 %v2733
  %2895 = vmatprep.subr.mxu0 %v2742
  %2896 = vmatpush1.msra.mxu0 %v2741
  %2897 = vmatprep.subr.mxu0 %v2750
  %2898 = vmatpush1.msra.mxu0 %v2749
  %2899 = vmatprep.subr.mxu0 %v2758
  %2900 = vmatpush1.msra.mxu0 %v2757
  %2901 = vmatprep.subr.mxu0 %v2766
  %2902 = vmatpush1.msra.mxu0 %v2765
  %2903 = vmatprep.subr.mxu0 %v2774
  %2904 = vmatpush1.msra.mxu0 %v2773
  %2905 = vmatprep.subr.mxu0 %v2782
  %2906 = vmatpush1.msra.mxu0 %v2781
  %2907 = vmatprep.subr.mxu0 %v2790
  %2908 = vmatpush1.msra.mxu0 %v2789
  %2909 = vmatprep.subr.mxu0 %v2798
  %2910 = vmatpush1.msra.mxu0 %v2797
  %2911 = vmatprep.subr.mxu0 %v2806
  %2912 = vmatpush1.msra.mxu0 %v2805
  %2913 = vmatprep.subr.mxu0 %v2814
  %2914 = vmatpush1.msra.mxu0 %v2813
  %2915 = vmatprep.subr.mxu0 %v2822
  %2916 = vmatpush1.msra.mxu0 %v2821
  %2917 = vmatprep.subr.mxu0 %v2830
  %2918 = vmatpush1.msra.mxu0 %v2829
  %2919 = vmatprep.subr.mxu0 %v2838
  %2920 = vmatpush1.msra.mxu0 %v2837
  %2921 = vmatprep.subr.mxu0 %v2846
  %2922 = vmatpush1.msra.mxu0 %v2845
  %2923 = vmatprep.subr.mxu0 %v2854
  %2924 = vmatpush1.msra.mxu0 %v2853
  %2925 = vmatprep.mubr.f32.mxu0 1.0
  %2926 = vmatmul.mubr.f32.gmra.mrb[0].mxu0 1.0
  %v2927 = vpop.f32.mrb[0].mxu0
  %v2928 = vadd.f32 0.0, %v2927
  %v2929 = vpop.f32.mrb[0].mxu0
  %v2930 = vadd.f32 0.0, %v2929
  %2931 = vdwg.mxu0
  %2932 = vmatprep.subr.mxu0 %v2608
  %2933 = vmatpush1.msra.mxu0 %v2607
  %2934 = vmatprep.subr.mxu0 %v2616
  %2935 = vmatpush1.msra.mxu0 %v2615
  %2936 = vmatprep.subr.mxu0 %v2624
  %2937 = vmatpush1.msra.mxu0 %v2623
  %2938 = vmatprep.subr.mxu0 %v2632
  %2939 = vmatpush1.msra.mxu0 %v2631
  %2940 = vmatprep.subr.mxu0 %v2640
  %2941 = vmatpush1.msra.mxu0 %v2639
  %2942 = vmatprep.subr.mxu0 %v2648
  %2943 = vmatpush1.msra.mxu0 %v2647
  %2944 = vmatprep.subr.mxu0 %v2656
  %2945 = vmatpush1.msra.mxu0 %v2655
  %2946 = vmatprep.subr.mxu0 %v2664
  %2947 = vmatpush1.msra.mxu0 %v2663
  %2948 = vmatprep.subr.mxu0 %v2672
  %2949 = vmatpush1.msra.mxu0 %v2671
  %2950 = vmatprep.subr.mxu0 %v2680
  %2951 = vmatpush1.msra.mxu0 %v2679
  %2952 = vmatprep.subr.mxu0 %v2688
  %2953 = vmatpush1.msra.mxu0 %v2687
  %2954 = vmatprep.subr.mxu0 %v2696
  %2955 = vmatpush1.msra.mxu0 %v2695
  %2956 = vmatprep.subr.mxu0 %v2704
  %2957 = vmatpush1.msra.mxu0 %v2703
  %2958 = vmatprep.subr.mxu0 %v2712
  %2959 = vmatpush1.msra.mxu0 %v2711
  %2960 = vmatprep.subr.mxu0 %v2720
  %2961 = vmatpush1.msra.mxu0 %v2719
  %2962 = vmatprep.subr.mxu0 %v2728
  %2963 = vmatpush1.msra.mxu0 %v2727
  %2964 = vmatprep.subr.mxu0 %v2736
  %2965 = vmatpush1.msra.mxu0 %v2735
  %2966 = vmatprep.subr.mxu0 %v2744
  %2967 = vmatpush1.msra.mxu0 %v2743
  %2968 = vmatprep.subr.mxu0 %v2752
  %2969 = vmatpush1.msra.mxu0 %v2751
  %2970 = vmatprep.subr.mxu0 %v2760
  %2971 = vmatpush1.msra.mxu0 %v2759
  %2972 = vmatprep.subr.mxu0 %v2768
  %2973 = vmatpush1.msra.mxu0 %v2767
  %2974 = vmatprep.subr.mxu0 %v2776
  %2975 = vmatpush1.msra.mxu0 %v2775
  %2976 = vmatprep.subr.mxu0 %v2784
  %2977 = vmatpush1.msra.mxu0 %v2783
  %2978 = vmatprep.subr.mxu0 %v2792
  %2979 = vmatpush1.msra.mxu0 %v2791
  %2980 = vmatprep.subr.mxu0 %v2800
  %2981 = vmatpush1.msra.mxu0 %v2799
  %2982 = vmatprep.subr.mxu0 %v2808
  %2983 = vmatpush1.msra.mxu0 %v2807
  %2984 = vmatprep.subr.mxu0 %v2816
  %2985 = vmatpush1.msra.mxu0 %v2815
  %2986 = vmatprep.subr.mxu0 %v2824
  %2987 = vmatpush1.msra.mxu0 %v2823
  %2988 = vmatprep.subr.mxu0 %v2832
  %2989 = vmatpush1.msra.mxu0 %v2831
  %2990 = vmatprep.subr.mxu0 %v2840
  %2991 = vmatpush1.msra.mxu0 %v2839
  %2992 = vmatprep.subr.mxu0 %v2848
  %2993 = vmatpush1.msra.mxu0 %v2847
  %2994 = vmatprep.subr.mxu0 %v2856
  %2995 = vmatpush1.msra.mxu0 %v2855
  %2996 = vmatprep.mubr.f32.mxu0 1.0
  %2997 = vmatmul.mubr.f32.gmra.mrb[0].mxu0 1.0
  %v2998 = vpop.f32.mrb[0].mxu0
  %v2999 = vadd.f32 0.0, %v2998
  %v3000 = vpop.f32.mrb[0].mxu0
  %v3001 = vadd.f32 0.0, %v3000
  %3002 = vdwg.mxu0
  %3003 = vmatprep.subr.mxu0 %v2610
  %3004 = vmatpush1.msra.mxu0 %v2609
  %3005 = vmatprep.subr.mxu0 %v2618
  %3006 = vmatpush1.msra.mxu0 %v2617
  %3007 = vmatprep.subr.mxu0 %v2626
  %3008 = vmatpush1.msra.mxu0 %v2625
  %3009 = vmatprep.subr.mxu0 %v2634
  %3010 = vmatpush1.msra.mxu0 %v2633
  %3011 = vmatprep.subr.mxu0 %v2642
  %3012 = vmatpush1.msra.mxu0 %v2641
  %3013 = vmatprep.subr.mxu0 %v2650
  %3014 = vmatpush1.msra.mxu0 %v2649
  %3015 = vmatprep.subr.mxu0 %v2658
  %3016 = vmatpush1.msra.mxu0 %v2657
  %3017 = vmatprep.subr.mxu0 %v2666
  %3018 = vmatpush1.msra.mxu0 %v2665
  %3019 = vmatprep.subr.mxu0 %v2674
  %3020 = vmatpush1.msra.mxu0 %v2673
  %3021 = vmatprep.subr.mxu0 %v2682
  %3022 = vmatpush1.msra.mxu0 %v2681
  %3023 = vmatprep.subr.mxu0 %v2690
  %3024 = vmatpush1.msra.mxu0 %v2689
  %3025 = vmatprep.subr.mxu0 %v2698
  %3026 = vmatpush1.msra.mxu0 %v2697
  %3027 = vmatprep.subr.mxu0 %v2706
  %3028 = vmatpush1.msra.mxu0 %v2705
  %3029 = vmatprep.subr.mxu0 %v2714
  %3030 = vmatpush1.msra.mxu0 %v2713
  %3031 = vmatprep.subr.mxu0 %v2722
  %3032 = vmatpush1.msra.mxu0 %v2721
  %3033 = vmatprep.subr.mxu0 %v2730
  %3034 = vmatpush1.msra.mxu0 %v2729
  %3035 = vmatprep.subr.mxu0 %v2738
  %3036 = vmatpush1.msra.mxu0 %v2737
  %3037 = vmatprep.subr.mxu0 %v2746
  %3038 = vmatpush1.msra.mxu0 %v2745
  %3039 = vmatprep.subr.mxu0 %v2754
  %3040 = vmatpush1.msra.mxu0 %v2753
  %3041 = vmatprep.subr.mxu0 %v2762
  %3042 = vmatpush1.msra.mxu0 %v2761
  %3043 = vmatprep.subr.mxu0 %v2770
  %3044 = vmatpush1.msra.mxu0 %v2769
  %3045 = vmatprep.subr.mxu0 %v2778
  %3046 = vmatpush1.msra.mxu0 %v2777
  %3047 = vmatprep.subr.mxu0 %v2786
  %3048 = vmatpush1.msra.mxu0 %v2785
  %3049 = vmatprep.subr.mxu0 %v2794
  %3050 = vmatpush1.msra.mxu0 %v2793
  %3051 = vmatprep.subr.mxu0 %v2802
  %3052 = vmatpush1.msra.mxu0 %v2801
  %3053 = vmatprep.subr.mxu0 %v2810
  %3054 = vmatpush1.msra.mxu0 %v2809
  %3055 = vmatprep.subr.mxu0 %v2818
  %3056 = vmatpush1.msra.mxu0 %v2817
  %3057 = vmatprep.subr.mxu0 %v2826
  %3058 = vmatpush1.msra.mxu0 %v2825
  %3059 = vmatprep.subr.mxu0 %v2834
  %3060 = vmatpush1.msra.mxu0 %v2833
  %3061 = vmatprep.subr.mxu0 %v2842
  %3062 = vmatpush1.msra.mxu0 %v2841
  %3063 = vmatprep.subr.mxu0 %v2850
  %3064 = vmatpush1.msra.mxu0 %v2849
  %3065 = vmatprep.subr.mxu0 %v2858
  %3066 = vmatpush1.msra.mxu0 %v2857
  %3067 = vmatprep.mubr.f32.mxu0 1.0
  %3068 = vmatmul.mubr.f32.gmra.mrb[0].mxu0 1.0
  %v3069 = vpop.f32.mrb[0].mxu0
  %v3070 = vadd.f32 0.0, %v3069
  %v3071 = vpop.f32.mrb[0].mxu0
  %v3072 = vadd.f32 0.0, %v3071
  %3073 = vdwg.mxu0
  %3074 = vmatprep.subr.mxu0 %v2612
  %3075 = vmatpush1.msra.mxu0 %v2611
  %3076 = vmatprep.subr.mxu0 %v2620
  %3077 = vmatpush1.msra.mxu0 %v2619
  %3078 = vmatprep.subr.mxu0 %v2628
  %3079 = vmatpush1.msra.mxu0 %v2627
  %3080 = vmatprep.subr.mxu0 %v2636
  %3081 = vmatpush1.msra.mxu0 %v2635
  %3082 = vmatprep.subr.mxu0 %v2644
  %3083 = vmatpush1.msra.mxu0 %v2643
  %3084 = vmatprep.subr.mxu0 %v2652
  %3085 = vmatpush1.msra.mxu0 %v2651
  %3086 = vmatprep.subr.mxu0 %v2660
  %3087 = vmatpush1.msra.mxu0 %v2659
  %3088 = vmatprep.subr.mxu0 %v2668
  %3089 = vmatpush1.msra.mxu0 %v2667
  %3090 = vmatprep.subr.mxu0 %v2676
  %3091 = vmatpush1.msra.mxu0 %v2675
  %3092 = vmatprep.subr.mxu0 %v2684
  %3093 = vmatpush1.msra.mxu0 %v2683
  %3094 = vmatprep.subr.mxu0 %v2692
  %3095 = vmatpush1.msra.mxu0 %v2691
  %3096 = vmatprep.subr.mxu0 %v2700
  %3097 = vmatpush1.msra.mxu0 %v2699
  %3098 = vmatprep.subr.mxu0 %v2708
  %3099 = vmatpush1.msra.mxu0 %v2707
  %3100 = vmatprep.subr.mxu0 %v2716
  %3101 = vmatpush1.msra.mxu0 %v2715
  %3102 = vmatprep.subr.mxu0 %v2724
  %3103 = vmatpush1.msra.mxu0 %v2723
  %3104 = vmatprep.subr.mxu0 %v2732
  %3105 = vmatpush1.msra.mxu0 %v2731
  %3106 = vmatprep.subr.mxu0 %v2740
  %3107 = vmatpush1.msra.mxu0 %v2739
  %3108 = vmatprep.subr.mxu0 %v2748
  %3109 = vmatpush1.msra.mxu0 %v2747
  %3110 = vmatprep.subr.mxu0 %v2756
  %3111 = vmatpush1.msra.mxu0 %v2755
  %3112 = vmatprep.subr.mxu0 %v2764
  %3113 = vmatpush1.msra.mxu0 %v2763
  %3114 = vmatprep.subr.mxu0 %v2772
  %3115 = vmatpush1.msra.mxu0 %v2771
  %3116 = vmatprep.subr.mxu0 %v2780
  %3117 = vmatpush1.msra.mxu0 %v2779
  %3118 = vmatprep.subr.mxu0 %v2788
  %3119 = vmatpush1.msra.mxu0 %v2787
  %3120 = vmatprep.subr.mxu0 %v2796
  %3121 = vmatpush1.msra.mxu0 %v2795
  %3122 = vmatprep.subr.mxu0 %v2804
  %3123 = vmatpush1.msra.mxu0 %v2803
  %3124 = vmatprep.subr.mxu0 %v2812
  %3125 = vmatpush1.msra.mxu0 %v2811
  %3126 = vmatprep.subr.mxu0 %v2820
  %3127 = vmatpush1.msra.mxu0 %v2819
  %3128 = vmatprep.subr.mxu0 %v2828
  %3129 = vmatpush1.msra.mxu0 %v2827
  %3130 = vmatprep.subr.mxu0 %v2836
  %3131 = vmatpush1.msra.mxu0 %v2835
  %3132 = vmatprep.subr.mxu0 %v2844
  %3133 = vmatpush1.msra.mxu0 %v2843
  %3134 = vmatprep.subr.mxu0 %v2852
  %3135 = vmatpush1.msra.mxu0 %v2851
  %3136 = vmatprep.subr.mxu0 %v2860
  %3137 = vmatpush1.msra.mxu0 %v2859
  %3138 = vmatprep.mubr.f32.mxu0 1.0
  %3139 = vmatmul.mubr.f32.gmra.mrb[0].mxu0 1.0
  %v3140 = vpop.f32.mrb[0].mxu0
  %v3141 = vadd.f32 0.0, %v3140
  %v3142 = vpop.f32.mrb[0].mxu0
  %v3143 = vadd.f32 0.0, %v3142
  %3144 = vdwg.mxu0
  %v3153 = vcombine.low %v2928, %v2930
  %v3154 = vcombine.low %v2999, %v3001
  %v3155 = vcombine.low %v3070, %v3072
  %v3156 = vcombine.low %v3141, %v3143
  %v3158 = vunpack.c.l.s4 1966171168
  %v3159 = vunpack.c.0.s8 %v3158
  %v3160 = vlaneseq
  %v3161 = vshrl.u32 %v3160, 7
  %v3162 = vsub.s32 %v3159, %v3161
  %v3163 = vrot.slane %v3153, %v3162
  %v3165 = vunpack.c.l.s4 1966171168
  %v3166 = vunpack.c.0.s8 %v3165
  %v3167 = vlaneseq
  %v3168 = vshrl.u32 %v3167, 7
  %v3169 = vsub.s32 %v3166, %v3168
  %v3170 = vrot.slane %v3154, %v3169
  %v3172 = vunpack.c.l.s4 1966171168
  %v3173 = vunpack.c.0.s8 %v3172
  %v3174 = vlaneseq
  %v3175 = vshrl.u32 %v3174, 7
  %v3176 = vsub.s32 %v3173, %v3175
  %v3177 = vrot.slane %v3155, %v3176
  %v3179 = vunpack.c.l.s4 1966171168
  %v3180 = vunpack.c.0.s8 %v3179
  %v3181 = vlaneseq
  %v3182 = vshrl.u32 %v3181, 7
  %v3183 = vsub.s32 %v3180, %v3182
  %v3184 = vrot.slane %v3156, %v3183
  %v3185 = vcombine.low %v3163, %v3170
  %v3186 = vcombine.low %v3177, %v3184
  %v3188 = vunpack.c.l.s4 1966171168
  %v3189 = vunpack.c.0.s8 %v3188
  %v3190 = vlaneseq
  %v3191 = vshrl.u32 %v3190, 7
  %v3192 = vsub.s32 %v3189, %v3191
  %v3193 = vrot.slane %v3185, %v3192
  %v3195 = vunpack.c.l.s4 1966171168
  %v3196 = vunpack.c.0.s8 %v3195
  %v3197 = vlaneseq
  %v3198 = vshrl.u32 %v3197, 7
  %v3199 = vsub.s32 %v3196, %v3198
  %v3200 = vrot.slane %v3186, %v3199
  %v3201 = vcombine.low %v3193, %v3200
  %s3203 = scalar_lea.vmem %s5, 1
  %3204 = vst [vmem:[%s3203] ss:$2 sm:$0xff] %v3201
  // Predicated region
  $region18: #{_lambda_.18} parent=0 // pred_check
    _
  $region19: #{_lambda_.18} parent=0 // pred_check_branch
    %3206 = sbr.rel (0) target = $region21
  $region20: #{_lambda_.18} parent=0 // pred_region
    _
  $region21: #{_lambda_.18} parent=0 // pred_fallthru
    _
  // Predicated region
  $region22: #{_lambda_.18} parent=0 // pred_check
    _
  $region23: #{_lambda_.18} parent=0 // pred_check_branch
    %3208 = sbr.rel (0) target = $region25
  $region24: #{_lambda_.18} parent=0 // pred_region
    _
  $region25: #{_lambda_.18} parent=0 // pred_fallthru
    _
  // Predicated region
  $region26: #{_lambda_.18} parent=0 // pred_check
    _
  $region27: #{_lambda_.18} parent=0 // pred_check_branch
    %3210 = sbr.rel (0) target = $region29
  $region28: #{_lambda_.18} parent=0 // pred_region
    _
  $region29: #{_lambda_.18} parent=0 // pred_fallthru
    _
  // Predicated region
  $region30: #{_lambda_.18} parent=0 // pred_check
    _
  $region31: #{_lambda_.18} parent=0 // pred_check_branch
    %3212 = sbr.rel (0) target = $region33
  $region32: #{_lambda_.18} parent=0 // pred_region
    _
  $region33: #{_lambda_.18} parent=0 // pred_fallthru
    _

</llo_original>
